<compile_context>
chip_gen: v7x
topology: tpu7x:2x2x1
jax: 0.10.0
libtpu: 0.0.40
codegen_flags: <defaults>
</compile_context>

<pallas_src>
import functools

import jax
import jax.numpy as jnp
from jax.experimental import pallas as pl
from jax.experimental.pallas import tpu as pltpu


_ACC_BUDGET_BYTES = 128 * 1024      # target live f32 accumulator (~32 vregs)
_WEIGHT_SINGLE_BUFFER = None        # lazily resolved: does pl.Buffered(1) lower?


def _round_up(x, m):
    return (x + m - 1) // m * m


def _band_config(H, Wp8, cmax):
    """Row-band size so the live f32 accumulator stays ~<=128 KiB."""
    band = max(1, min(H, _ACC_BUDGET_BYTES // (Wp8 * cmax * 4)))
    nb = -(-H // band)
    return band, nb


def _vmem_estimate(H, Wp8, Rf, cin_eff, cmid_p, cout_p, itemsize):
    """Rough per-step VMEM footprint (lane-padded, double-buffered blocks)."""
    x_buf = Rf * max(_round_up(cin_eff, 128), 128) * itemsize
    out_buf = H * Wp8 * cout_p * itemsize
    w_bytes = (3 * _round_up(3 * cin_eff, 8) * cmid_p
               + 3 * _round_up(3 * cmid_p, 8) * cout_p) * itemsize
    b_bytes = (cmid_p + cout_p) * 4
    mid = Rf * cmid_p * itemsize
    return 2 * x_buf + 2 * out_buf + 2 * (w_bytes + b_bytes) + mid


def _fold_bn_into_conv(p, cin_pad, cout_pad, dtype, eps):
    """Fold eval-mode BatchNorm into conv weights; tap-fold + channel-pad.

    Returns w: (3, 3*cin_pad, cout_pad) with K laid out (dx, cin) dx-major,
    and bias: (1, cout_pad) float32.
    """
    w = p["w"].astype(jnp.float32)                       # (cout, cin, 3, 3)
    cout, cin = w.shape[0], w.shape[1]
    scale = p["gamma"] / jnp.sqrt(p["running_var"] + eps)
    bias = p["beta"] - p["running_mean"] * scale
    w = w * scale[:, None, None, None]                   # BN scale -> weights
    w = jnp.transpose(w, (2, 3, 1, 0))                   # (dy, dx, cin, cout)
    w = jnp.pad(w, ((0, 0), (0, 0), (0, cin_pad - cin), (0, cout_pad - cout)))
    w = w.reshape(3, 3 * cin_pad, cout_pad)
    bias = jnp.pad(bias, (0, cout_pad - cout)).reshape(1, cout_pad)
    return w.astype(dtype), bias.astype(jnp.float32)


def _conv_stage(src, w_ref, b_ref, dst, *, H, Wp8, band, nb, dst_row_off,
                mask, dx_in_channels):
    """One (3x3 conv + folded-BN bias + ReLU) stage over flat row-pitch refs.

    src : Ref (rows*Wp8, Cin_k)  flat zero-halo'd source, row pitch Wp8
    w   : Ref (3, 3*Cin, Cout)   horizontal taps folded into the K dim
    b   : Ref (1, Cout)          folded BN bias, f32
    dst : Ref (rows*Wp8, Cout)   flat destination, row pitch Wp8
    """
    M = band * Wp8
    cout = w_ref.shape[-1]
    bias = b_ref[...]                                    # hoisted out of loop

    def band_body(i, carry):
        r0 = jnp.minimum(i * band, H - band)             # clamp last band
        acc = jnp.zeros((M, cout), jnp.float32)
        for dy in range(3):
            base = pl.multiple_of((r0 + dy + 1) * Wp8, 8)
            if dx_in_channels:
                # dx taps already baked into the channel dim: one aligned load.
                kmat = src[pl.ds(base, M), :]
            else:
                # dx taps are +/-1-row-offset slices; lane-aligned vreg concat.
                kmat = jnp.concatenate(
                    [src[pl.ds(base + dx - 1, M), :] for dx in range(3)],
                    axis=-1)
            acc = acc + jnp.dot(kmat, w_ref[dy],
                                preferred_element_type=jnp.float32)
        y = jnp.maximum(acc + bias, 0.0)                 # bias + ReLU (f32)
        if mask is not None:
            # Zero the horizontal halo / pitch-padding columns so they act as
            # conv zero-padding for the next stage.
            y = jnp.where(mask, y, 0.0)
        out_start = pl.multiple_of((r0 + dst_row_off) * Wp8, 8)
        dst[pl.ds(out_start, M), :] = y.astype(dst.dtype)
        return carry

    jax.lax.fori_loop(0, nb, band_body, 0)


def _double_conv_kernel(x_ref, w1_ref, b1_ref, w2_ref, b2_ref, o_ref, mid_ref,
                        *, H, W, Wp8, band, nb, s1_dx_in_channels):
    """One grid step = one batch element; both conv stages fused in VMEM.

    x_ref  : (1, (H+4)*Wp8, Cin_eff)  pre-padded, row-flattened input
    w*_ref : (3, 3*Cin, Cout)         folded weights  (b*: (1, Cout) f32)
    o_ref  : (1, H*Wp8, Cout_p)       lane-dense, pitch-padded output
    mid_ref: ((H+4)*Wp8, Cmid_p)      flat intermediate scratch, compute dtype
    """
    cmid = mid_ref.shape[-1]
    zeros2 = jnp.zeros((2 * Wp8, cmid), mid_ref.dtype)
    # Re-zero the top/bottom halo row groups every step (megacore safe).
    mid_ref[0:2 * Wp8, :] = zeros2
    mid_ref[(H + 2) * Wp8:(H + 4) * Wp8, :] = zeros2

    # Column-interior mask (built once; bands start on row boundaries so the
    # same mask applies to every band).
    col = jax.lax.broadcasted_iota(jnp.int32, (band * Wp8, 1), 0) % Wp8
    interior = (col >= 1) & (col <= W)

    # Stage 1: conv3x3 + bias + ReLU -> intermediate (stays in VMEM).
    _conv_stage(x_ref.at[0], w1_ref, b1_ref, mid_ref,
                H=H, Wp8=Wp8, band=band, nb=nb, dst_row_off=2,
                mask=interior, dx_in_channels=s1_dx_in_channels)
    # Stage 2: conv3x3 + bias + ReLU -> output tile.
    _conv_stage(mid_ref, w2_ref, b2_ref, o_ref.at[0],
                H=H, Wp8=Wp8, band=band, nb=nb, dst_row_off=0,
                mask=None, dx_in_channels=False)


@functools.partial(
    jax.jit, static_argnames=("dtype", "eps", "vmem_limit", "single_buffer"))
def _double_conv_impl(x_nchw, params, *, dtype, eps, vmem_limit, single_buffer):
    N, Cin, H, W = x_nchw.shape
    Cmid = params["block1"]["w"].shape[0]
    Cout = params["block2"]["w"].shape[0]
    Cmid_p, Cout_p = _round_up(Cmid, 128), _round_up(Cout, 128)
    Wp8 = _round_up(W + 2, 8)                 # halo'd, 8-aligned row pitch
    Rf = (H + 4) * Wp8                        # +1 extra zero row at each end
    band, nb = _band_config(H, Wp8, max(Cmid_p, Cout_p))

    x = jnp.transpose(x_nchw, (0, 2, 3, 1)).astype(dtype)       # NCHW -> NHWC

    # Stage-1 dx-fold: for lane-unaligned Cin bake the 3 horizontal taps into
    # the channel dim in the wrapper (tiny input, fuses with the transpose);
    # for Cin % 128 == 0 the fold is a free in-kernel vreg concat instead.
    s1_dx_in_channels = (Cin % 128 != 0)
    if s1_dx_in_channels:
        xl = jnp.pad(x, ((0, 0), (0, 0), (1, 0), (0, 0)))[:, :, :W, :]
        xr = jnp.pad(x, ((0, 0), (0, 0), (0, 1), (0, 0)))[:, :, 1:, :]
        x = jnp.concatenate([xl, x, xr], axis=-1)               # (N,H,W,3*Cin)
    cin_eff = x.shape[-1]

    # Zero-pad to the halo'd pitch and flatten rows: padded row pr (0..H+1)
    # lives at flat rows [(pr+1)*Wp8, (pr+2)*Wp8); image col c at padded col
    # c+1.  One extra zero row at each end keeps every +/-1 tap slice in range.
    x = jnp.pad(x, ((0, 0), (2, 2), (1, Wp8 - W - 1), (0, 0)))
    x = x.reshape(N, Rf, cin_eff)

    w1, b1 = _fold_bn_into_conv(params["block1"], Cin, Cmid_p, dtype, eps)
    w2, b2 = _fold_bn_into_conv(params["block2"], Cmid_p, Cout_p, dtype, eps)

    kernel = functools.partial(
        _double_conv_kernel, H=H, W=W, Wp8=Wp8, band=band, nb=nb,
        s1_dx_in_channels=s1_dx_in_channels)

    # Weights/biases never change across the grid -> single-buffer if possible.
    wkw = dict(pipeline_mode=pl.Buffered(1)) if single_buffer else {}

    out = pl.pallas_call(
        kernel,
        out_shape=jax.ShapeDtypeStruct((N, H * Wp8, Cout_p), dtype),
        grid_spec=pltpu.PrefetchScalarGridSpec(
            num_scalar_prefetch=0,
            grid=(N,),
            in_specs=[
                pl.BlockSpec((1, Rf, cin_eff), lambda n: (n, 0, 0)),
                pl.BlockSpec((3, 3 * Cin, Cmid_p), lambda n: (0, 0, 0), **wkw),
                pl.BlockSpec((1, Cmid_p), lambda n: (0, 0), **wkw),
                pl.BlockSpec((3, 3 * Cmid_p, Cout_p), lambda n: (0, 0, 0),
                             **wkw),
                pl.BlockSpec((1, Cout_p), lambda n: (0, 0), **wkw),
            ],
            out_specs=pl.BlockSpec((1, H * Wp8, Cout_p), lambda n: (n, 0, 0)),
            scratch_shapes=[pltpu.VMEM((Rf, Cmid_p), dtype)],   # compute dtype
        ),
        compiler_params=pltpu.CompilerParams(
            dimension_semantics=("parallel",),
            vmem_limit_bytes=vmem_limit,
        ),
    )(x, w1, b1, w2, b2)

    # Drop pitch / lane padding and return NCHW (fuses into one XLA pass).
    out = out.reshape(N, H, Wp8, Cout_p)[:, :, 1:W + 1, :Cout]
    return jnp.transpose(out, (0, 3, 1, 2))


def double_conv(x_nchw, params, *, dtype=jnp.bfloat16, eps=1e-5):
    """Forward pass of DoubleConv. Input/output in NCHW (PyTorch convention).

    `dtype` is the HBM storage / MXU-operand dtype (bfloat16 default, float32
    supported); accumulation and the BN/ReLU epilogue are always float32.
    """
    N, Cin, H, W = x_nchw.shape
    Cmid = params["block1"]["w"].shape[0]
    Cout = params["block2"]["w"].shape[0]
    Cmid_p, Cout_p = _round_up(Cmid, 128), _round_up(Cout, 128)
    Wp8 = _round_up(W + 2, 8)
    Rf = (H + 4) * Wp8
    cin_eff = Cin if Cin % 128 == 0 else 3 * Cin
    isz = jnp.dtype(dtype).itemsize
    need = _vmem_estimate(H, Wp8, Rf, cin_eff, Cmid_p, Cout_p, isz)

    # Generation-aware scoped-VMEM cap (v7x has 64 MiB physical VMEM).
    try:
        cap = int(pltpu.get_tpu_info().vmem_capacity_bytes)
    except Exception:
        cap = 64 * 1024 * 1024
    vmem_limit = int(min(cap - (4 << 20), max(32 << 20, 2 * need)))

    global _WEIGHT_SINGLE_BUFFER
    candidates = ((True, False) if _WEIGHT_SINGLE_BUFFER is None
                  else (_WEIGHT_SINGLE_BUFFER,))
    err = None
    for sb in candidates:
        try:
            out = _double_conv_impl(x_nchw, params, dtype=dtype, eps=eps,
                                    vmem_limit=vmem_limit, single_buffer=sb)
            _WEIGHT_SINGLE_BUFFER = sb
            return out
        except Exception as e:   # pl.Buffered(1) unsupported -> double buffer
            err = e
    raise err


def make_double_conv_params(key, in_channels, out_channels, mid_channels=None):
    if not mid_channels:
        mid_channels = out_channels
    k1, k2 = jax.random.split(key)

    def conv_bn(k, cin, cout):
        w = jax.random.normal(k, (cout, cin, 3, 3), jnp.float32) * 0.1
        return dict(
            w=w,
            gamma=jnp.ones((cout,), jnp.float32),
            beta=jnp.zeros((cout,), jnp.float32),
            running_mean=jnp.zeros((cout,), jnp.float32),
            running_var=jnp.ones((cout,), jnp.float32),
        )

    return dict(block1=conv_bn(k1, in_channels, mid_channels),
                block2=conv_bn(k2, mid_channels, out_channels))


def _reference_double_conv(x_nchw, params, dtype=jnp.float32, eps=1e-5):
    """Pure-JAX reference (lax.conv) matching the kernel's storage casts."""
    def cast(a):
        return a.astype(dtype).astype(jnp.float32)

    y = cast(x_nchw)
    for name in ("block1", "block2"):
        p = params[name]
        scale = p["gamma"] / jnp.sqrt(p["running_var"] + eps)
        bias = p["beta"] - p["running_mean"] * scale
        w = cast(p["w"] * scale[:, None, None, None])
        y = jax.lax.conv_general_dilated(
            y, w, window_strides=(1, 1), padding=((1, 1), (1, 1)),
            dimension_numbers=("NCHW", "OIHW", "NCHW"))
        y = jnp.maximum(y + bias[None, :, None, None], 0.0)
        y = cast(y)
    return y.astype(dtype)


if __name__ == "__main__":
    key = jax.random.PRNGKey(0)
    kx, kp = jax.random.split(key)

    N, Cin, H, W = 2, 4, 16, 16
    Cout = 8
    x = jax.random.normal(kx, (N, Cin, H, W), jnp.float32)
    params = make_double_conv_params(kp, Cin, Cout)

    # float32 storage: tight check against the lax.conv reference.
    out = jax.block_until_ready(double_conv(x, params, dtype=jnp.float32))
    ref = _reference_double_conv(x, params, dtype=jnp.float32)
    assert out.shape == (N, Cout, H, W), out.shape
    err = float(jnp.max(jnp.abs(out - ref)))
    assert err < 1e-4, err

    # bfloat16 storage (default path: bf16 MXU, bf16 mid scratch, f32 acc).
    out_bf = jax.block_until_ready(double_conv(x, params, dtype=jnp.bfloat16))
    ref_bf = _reference_double_conv(x, params, dtype=jnp.bfloat16)
    err_bf = float(jnp.max(jnp.abs(out_bf.astype(jnp.float32) -
                                   ref_bf.astype(jnp.float32))))
    assert err_bf < 2e-2, err_bf

    print("KERNEL_OK")
</pallas_src>

<mosaic_0001>
module attributes {stable_mosaic.version = 11 : i64} {
  func.func @_double_conv_kernel(%arg0: i32, %arg1: memref<1x480x12xf32, #tpu.memory_space<vmem>>, %arg2: memref<3x12x128xf32, #tpu.memory_space<vmem>>, %arg3: memref<1x128xf32, #tpu.memory_space<vmem>>, %arg4: memref<3x384x128xf32, #tpu.memory_space<vmem>>, %arg5: memref<1x128xf32, #tpu.memory_space<vmem>>, %arg6: memref<1x384x128xf32, #tpu.memory_space<vmem>>, %arg7: memref<480x128xf32, #tpu.memory_space<vmem>>) attributes {dimension_semantics = [#tpu.dimension_semantics<parallel>], iteration_bounds = array<i64: 2>, scalar_prefetch = 0 : i64, scratch_operands = 1 : i64, tpu.core_type = #tpu.core_type<tc>, window_params = [{transform_indices = @transform_0, window_bounds = array<i64: 1, 480, 12>}, {pipeline_mode = #tpu.pipeline_mode<synchronous>, transform_indices = @transform_1, window_bounds = array<i64: 3, 12, 128>}, {pipeline_mode = #tpu.pipeline_mode<synchronous>, transform_indices = @transform_2, window_bounds = array<i64: 1, 128>}, {pipeline_mode = #tpu.pipeline_mode<synchronous>, transform_indices = @transform_3, window_bounds = array<i64: 3, 384, 128>}, {pipeline_mode = #tpu.pipeline_mode<synchronous>, transform_indices = @transform_4, window_bounds = array<i64: 1, 128>}, {transform_indices = @transform_5, window_bounds = array<i64: 1, 384, 128>}]} {
    %cst = arith.constant 0.000000e+00 : f32
    %0 = vector.broadcast %cst : f32 to vector<48x128xf32>
    %c0 = arith.constant 0 : index
    %c0_0 = arith.constant 0 : index
    %1 = vector.load %arg7[%c0, %c0_0] : memref<480x128xf32, #tpu.memory_space<vmem>>, vector<48x128xf32>
    tpu.vector_store %arg7[%c0, %c0_0], %0 {strides = array<i32>} : memref<480x128xf32, #tpu.memory_space<vmem>>, vector<48x128xf32>,
    %c432 = arith.constant 432 : index
    %c0_1 = arith.constant 0 : index
    %2 = vector.load %arg7[%c432, %c0_1] : memref<480x128xf32, #tpu.memory_space<vmem>>, vector<48x128xf32>
    tpu.vector_store %arg7[%c432, %c0_1], %0 {strides = array<i32>} : memref<480x128xf32, #tpu.memory_space<vmem>>, vector<48x128xf32>,
    %3 = tpu.iota {dimensions = array<i32: 0>} : vector<240x1xi32>
    %c24_i32 = arith.constant 24 : i32
    %c0_i32 = arith.constant 0 : i32
    %4 = arith.cmpi eq, %c24_i32, %c0_i32 : i32
    %c1_i32 = arith.constant 1 : i32
    %5 = arith.select %4, %c1_i32, %c24_i32 : i32
    %6 = vector.broadcast %5 : i32 to vector<240x1xi32>
    %7 = arith.remsi %3, %6 : vector<240x1xi32>
    %c0_i32_2 = arith.constant 0 : i32
    %8 = vector.broadcast %c0_i32_2 : i32 to vector<240x1xi32>
    %9 = arith.cmpi ne, %7, %8 : vector<240x1xi32>
    %c0_i32_3 = arith.constant 0 : i32
    %10 = vector.broadcast %c0_i32_3 : i32 to vector<240x1xi32>
    %11 = arith.cmpi slt, %7, %10 : vector<240x1xi32>
    %c0_i32_4 = arith.constant 0 : i32
    %12 = arith.cmpi slt, %5, %c0_i32_4 : i32
    %13 = vector.broadcast %12 : i1 to vector<240x1xi1>
    %14 = vector.broadcast %13 : vector<240x1xi1> to vector<240x1xi1>
    %15 = arith.xori %11, %14 : vector<240x1xi1>
    %16 = arith.andi %15, %9 : vector<240x1xi1>
    %17 = vector.broadcast %5 : i32 to vector<240x1xi32>
    %18 = arith.addi %7, %17 : vector<240x1xi32>
    %19 = arith.select %16, %18, %7 : vector<240x1xi1>, vector<240x1xi32>
    %c1_i32_5 = arith.constant 1 : i32
    %20 = vector.broadcast %c1_i32_5 : i32 to vector<240x1xi32>
    %21 = arith.cmpi sge, %19, %20 : vector<240x1xi32>
    %c16_i32 = arith.constant 16 : i32
    %22 = vector.broadcast %c16_i32 : i32 to vector<240x1xi32>
    %23 = arith.cmpi sle, %19, %22 : vector<240x1xi32>
    %24 = arith.andi %21, %23 : vector<240x1xi1>
    %c0_6 = arith.constant 0 : index
    %c0_7 = arith.constant 0 : index
    %25 = vector.load %arg3[%c0_6, %c0_7] : memref<1x128xf32, #tpu.memory_space<vmem>>, vector<1x128xf32>
    %c0_i32_8 = arith.constant 0 : i32
    %c0_i32_9 = arith.constant 0 : i32
    %c2_i32 = arith.constant 2 : i32
    %26 = arith.addi %c0_i32_9, %c2_i32 : i32
    %c1_i32_10 = arith.constant 1 : i32
    scf.for %arg8 = %c0_i32_9 to %26 step %c1_i32_10  : i32 {
      %c10_i32 = arith.constant 10 : i32
      %29 = arith.muli %arg8, %c10_i32 : i32
      %c6_i32 = arith.constant 6 : i32
      %30 = arith.minsi %29, %c6_i32 : i32
      %cst_19 = arith.constant 0.000000e+00 : f32
      %31 = vector.broadcast %cst_19 : f32 to vector<240x128xf32>
      %c0_i32_20 = arith.constant 0 : i32
      %32 = arith.addi %30, %c0_i32_20 : i32
      %c1_i32_21 = arith.constant 1 : i32
      %33 = arith.addi %32, %c1_i32_21 : i32
      %c24_i32_22 = arith.constant 24 : i32
      %34 = arith.muli %33, %c24_i32_22 : i32
      %35 = tpu.assume_multiple %34, 8 : i32
      %c0_i32_23 = arith.constant 0 : i32
      %c0_i32_24 = arith.constant 0 : i32
      %36 = tpu.memref_slice %arg1[%c0_i32_8, %c0_i32_23, %c0_i32_24] : memref<1x480x12xf32, #tpu.memory_space<vmem>> -> memref<1x480x12xf32, #tpu.memory_space<vmem>>
      %37 = tpu.memref_squeeze %36 : memref<1x480x12xf32, #tpu.memory_space<vmem>> -> memref<480x12xf32, #tpu.memory_space<vmem>>
      %38 = arith.index_cast %35 : i32 to index
      %c0_25 = arith.constant 0 : index
      %39 = vector.load %37[%38, %c0_25] : memref<480x12xf32, #tpu.memory_space<vmem>>, vector<240x12xf32>
      %c0_26 = arith.constant 0 : index
      %c0_27 = arith.constant 0 : index
      %c0_28 = arith.constant 0 : index
      %40 = vector.load %arg2[%c0_26, %c0_27, %c0_28] : memref<3x12x128xf32, #tpu.memory_space<vmem>>, vector<1x12x128xf32>
      %41 = vector.shape_cast %40 : vector<1x12x128xf32> to vector<12x128xf32>
      %cst_29 = arith.constant dense<0.000000e+00> : vector<240x128xf32>
      %42 = tpu.matmul %39, %41, %cst_29 {dimension_numbers = #tpu.dot_dimension_numbers<[1], [0], [0], [1], [0, 0, 1, 1], [], []>} : vector<240x12xf32>, vector<12x128xf32>, vector<240x128xf32> -> vector<240x128xf32>
      %43 = arith.addf %31, %42 : vector<240x128xf32>
      %c1_i32_30 = arith.constant 1 : i32
      %44 = arith.addi %30, %c1_i32_30 : i32
      %c1_i32_31 = arith.constant 1 : i32
      %45 = arith.addi %44, %c1_i32_31 : i32
      %c24_i32_32 = arith.constant 24 : i32
      %46 = arith.muli %45, %c24_i32_32 : i32
      %47 = tpu.assume_multiple %46, 8 : i32
      %c0_i32_33 = arith.constant 0 : i32
      %c0_i32_34 = arith.constant 0 : i32
      %48 = tpu.memref_slice %arg1[%c0_i32_8, %c0_i32_33, %c0_i32_34] : memref<1x480x12xf32, #tpu.memory_space<vmem>> -> memref<1x480x12xf32, #tpu.memory_space<vmem>>
      %49 = tpu.memref_squeeze %48 : memref<1x480x12xf32, #tpu.memory_space<vmem>> -> memref<480x12xf32, #tpu.memory_space<vmem>>
      %50 = arith.index_cast %47 : i32 to index
      %c0_35 = arith.constant 0 : index
      %51 = vector.load %49[%50, %c0_35] : memref<480x12xf32, #tpu.memory_space<vmem>>, vector<240x12xf32>
      %c1 = arith.constant 1 : index
      %c0_36 = arith.constant 0 : index
      %c0_37 = arith.constant 0 : index
      %52 = vector.load %arg2[%c1, %c0_36, %c0_37] : memref<3x12x128xf32, #tpu.memory_space<vmem>>, vector<1x12x128xf32>
      %53 = vector.shape_cast %52 : vector<1x12x128xf32> to vector<12x128xf32>
      %cst_38 = arith.constant dense<0.000000e+00> : vector<240x128xf32>
      %54 = tpu.matmul %51, %53, %cst_38 {dimension_numbers = #tpu.dot_dimension_numbers<[1], [0], [0], [1], [0, 0, 1, 1], [], []>} : vector<240x12xf32>, vector<12x128xf32>, vector<240x128xf32> -> vector<240x128xf32>
      %55 = arith.addf %43, %54 : vector<240x128xf32>
      %c2_i32_39 = arith.constant 2 : i32
      %56 = arith.addi %30, %c2_i32_39 : i32
      %c1_i32_40 = arith.constant 1 : i32
      %57 = arith.addi %56, %c1_i32_40 : i32
      %c24_i32_41 = arith.constant 24 : i32
      %58 = arith.muli %57, %c24_i32_41 : i32
      %59 = tpu.assume_multiple %58, 8 : i32
      %c0_i32_42 = arith.constant 0 : i32
      %c0_i32_43 = arith.constant 0 : i32
      %60 = tpu.memref_slice %arg1[%c0_i32_8, %c0_i32_42, %c0_i32_43] : memref<1x480x12xf32, #tpu.memory_space<vmem>> -> memref<1x480x12xf32, #tpu.memory_space<vmem>>
      %61 = tpu.memref_squeeze %60 : memref<1x480x12xf32, #tpu.memory_space<vmem>> -> memref<480x12xf32, #tpu.memory_space<vmem>>
      %62 = arith.index_cast %59 : i32 to index
      %c0_44 = arith.constant 0 : index
      %63 = vector.load %61[%62, %c0_44] : memref<480x12xf32, #tpu.memory_space<vmem>>, vector<240x12xf32>
      %c2 = arith.constant 2 : index
      %c0_45 = arith.constant 0 : index
      %c0_46 = arith.constant 0 : index
      %64 = vector.load %arg2[%c2, %c0_45, %c0_46] : memref<3x12x128xf32, #tpu.memory_space<vmem>>, vector<1x12x128xf32>
      %65 = vector.shape_cast %64 : vector<1x12x128xf32> to vector<12x128xf32>
      %cst_47 = arith.constant dense<0.000000e+00> : vector<240x128xf32>
      %66 = tpu.matmul %63, %65, %cst_47 {dimension_numbers = #tpu.dot_dimension_numbers<[1], [0], [0], [1], [0, 0, 1, 1], [], []>} : vector<240x12xf32>, vector<12x128xf32>, vector<240x128xf32> -> vector<240x128xf32>
      %67 = arith.addf %55, %66 : vector<240x128xf32>
      %68 = vector.broadcast %25 : vector<1x128xf32> to vector<240x128xf32>
      %69 = arith.addf %67, %68 : vector<240x128xf32>
      %cst_48 = arith.constant 0.000000e+00 : f32
      %70 = vector.broadcast %cst_48 : f32 to vector<240x128xf32>
      %71 = arith.maximumf %69, %70 : vector<240x128xf32>
      %cst_49 = arith.constant 0.000000e+00 : f32
      %72 = vector.shape_cast %24 : vector<240x1xi1> to vector<240x1xi1>
      %73 = vector.broadcast %72 : vector<240x1xi1> to vector<240x128xi1>
      %74 = vector.broadcast %cst_49 : f32 to vector<240x128xf32>
      %75 = arith.select %73, %71, %74 : vector<240x128xi1>, vector<240x128xf32>
      %c2_i32_50 = arith.constant 2 : i32
      %76 = arith.addi %30, %c2_i32_50 : i32
      %c24_i32_51 = arith.constant 24 : i32
      %77 = arith.muli %76, %c24_i32_51 : i32
      %78 = tpu.assume_multiple %77, 8 : i32
      %79 = arith.index_cast %78 : i32 to index
      %c0_52 = arith.constant 0 : index
      %80 = vector.load %arg7[%79, %c0_52] : memref<480x128xf32, #tpu.memory_space<vmem>>, vector<240x128xf32>
      tpu.vector_store %arg7[%79, %c0_52], %75 {strides = array<i32>} : memref<480x128xf32, #tpu.memory_space<vmem>>, vector<240x128xf32>,
    }
    %c2_i32_11 = arith.constant 2 : i32
    %c0_12 = arith.constant 0 : index
    %c0_13 = arith.constant 0 : index
    %27 = vector.load %arg5[%c0_12, %c0_13] : memref<1x128xf32, #tpu.memory_space<vmem>>, vector<1x128xf32>
    %c0_i32_14 = arith.constant 0 : i32
    %c0_i32_15 = arith.constant 0 : i32
    %c2_i32_16 = arith.constant 2 : i32
    %28 = arith.addi %c0_i32_15, %c2_i32_16 : i32
    %c1_i32_17 = arith.constant 1 : i32
    scf.for %arg8 = %c0_i32_15 to %28 step %c1_i32_17  : i32 {
      %c10_i32 = arith.constant 10 : i32
      %29 = arith.muli %arg8, %c10_i32 : i32
      %c6_i32 = arith.constant 6 : i32
      %30 = arith.minsi %29, %c6_i32 : i32
      %cst_19 = arith.constant 0.000000e+00 : f32
      %31 = vector.broadcast %cst_19 : f32 to vector<240x128xf32>
      %c0_i32_20 = arith.constant 0 : i32
      %32 = arith.addi %30, %c0_i32_20 : i32
      %c1_i32_21 = arith.constant 1 : i32
      %33 = arith.addi %32, %c1_i32_21 : i32
      %c24_i32_22 = arith.constant 24 : i32
      %34 = arith.muli %33, %c24_i32_22 : i32
      %35 = tpu.assume_multiple %34, 8 : i32
      %c0_i32_23 = arith.constant 0 : i32
      %36 = arith.addi %35, %c0_i32_23 : i32
      %c1_i32_24 = arith.constant 1 : i32
      %37 = arith.subi %36, %c1_i32_24 : i32
      %38 = arith.index_cast %37 : i32 to index
      %c0_25 = arith.constant 0 : index
      %39 = vector.load %arg7[%38, %c0_25] : memref<480x128xf32, #tpu.memory_space<vmem>>, vector<240x128xf32>
      %c1_i32_26 = arith.constant 1 : i32
      %40 = arith.addi %35, %c1_i32_26 : i32
      %c1_i32_27 = arith.constant 1 : i32
      %41 = arith.subi %40, %c1_i32_27 : i32
      %42 = arith.index_cast %41 : i32 to index
      %c0_28 = arith.constant 0 : index
      %43 = vector.load %arg7[%42, %c0_28] : memref<480x128xf32, #tpu.memory_space<vmem>>, vector<240x128xf32>
      %c2_i32_29 = arith.constant 2 : i32
      %44 = arith.addi %35, %c2_i32_29 : i32
      %c1_i32_30 = arith.constant 1 : i32
      %45 = arith.subi %44, %c1_i32_30 : i32
      %46 = arith.index_cast %45 : i32 to index
      %c0_31 = arith.constant 0 : index
      %47 = vector.load %arg7[%46, %c0_31] : memref<480x128xf32, #tpu.memory_space<vmem>>, vector<240x128xf32>
      %48 = tpu.concatenate %39, %43, %47 in 1 : vector<240x128xf32>, vector<240x128xf32>, vector<240x128xf32> -> vector<240x384xf32>
      %c0_32 = arith.constant 0 : index
      %c0_33 = arith.constant 0 : index
      %c0_34 = arith.constant 0 : index
      %49 = vector.load %arg4[%c0_32, %c0_33, %c0_34] : memref<3x384x128xf32, #tpu.memory_space<vmem>>, vector<1x384x128xf32>
      %50 = vector.shape_cast %49 : vector<1x384x128xf32> to vector<384x128xf32>
      %cst_35 = arith.constant dense<0.000000e+00> : vector<240x128xf32>
      %51 = tpu.matmul %48, %50, %cst_35 {dimension_numbers = #tpu.dot_dimension_numbers<[1], [0], [0], [1], [0, 0, 1, 1], [], []>} : vector<240x384xf32>, vector<384x128xf32>, vector<240x128xf32> -> vector<240x128xf32>
      %52 = arith.addf %31, %51 : vector<240x128xf32>
      %c1_i32_36 = arith.constant 1 : i32
      %53 = arith.addi %30, %c1_i32_36 : i32
      %c1_i32_37 = arith.constant 1 : i32
      %54 = arith.addi %53, %c1_i32_37 : i32
      %c24_i32_38 = arith.constant 24 : i32
      %55 = arith.muli %54, %c24_i32_38 : i32
      %56 = tpu.assume_multiple %55, 8 : i32
      %c0_i32_39 = arith.constant 0 : i32
      %57 = arith.addi %56, %c0_i32_39 : i32
      %c1_i32_40 = arith.constant 1 : i32
      %58 = arith.subi %57, %c1_i32_40 : i32
      %59 = arith.index_cast %58 : i32 to index
      %c0_41 = arith.constant 0 : index
      %60 = vector.load %arg7[%59, %c0_41] : memref<480x128xf32, #tpu.memory_space<vmem>>, vector<240x128xf32>
      %c1_i32_42 = arith.constant 1 : i32
      %61 = arith.addi %56, %c1_i32_42 : i32
      %c1_i32_43 = arith.constant 1 : i32
      %62 = arith.subi %61, %c1_i32_43 : i32
      %63 = arith.index_cast %62 : i32 to index
      %c0_44 = arith.constant 0 : index
      %64 = vector.load %arg7[%63, %c0_44] : memref<480x128xf32, #tpu.memory_space<vmem>>, vector<240x128xf32>
      %c2_i32_45 = arith.constant 2 : i32
      %65 = arith.addi %56, %c2_i32_45 : i32
      %c1_i32_46 = arith.constant 1 : i32
      %66 = arith.subi %65, %c1_i32_46 : i32
      %67 = arith.index_cast %66 : i32 to index
      %c0_47 = arith.constant 0 : index
      %68 = vector.load %arg7[%67, %c0_47] : memref<480x128xf32, #tpu.memory_space<vmem>>, vector<240x128xf32>
      %69 = tpu.concatenate %60, %64, %68 in 1 : vector<240x128xf32>, vector<240x128xf32>, vector<240x128xf32> -> vector<240x384xf32>
      %c1 = arith.constant 1 : index
      %c0_48 = arith.constant 0 : index
      %c0_49 = arith.constant 0 : index
      %70 = vector.load %arg4[%c1, %c0_48, %c0_49] : memref<3x384x128xf32, #tpu.memory_space<vmem>>, vector<1x384x128xf32>
      %71 = vector.shape_cast %70 : vector<1x384x128xf32> to vector<384x128xf32>
      %cst_50 = arith.constant dense<0.000000e+00> : vector<240x128xf32>
      %72 = tpu.matmul %69, %71, %cst_50 {dimension_numbers = #tpu.dot_dimension_numbers<[1], [0], [0], [1], [0, 0, 1, 1], [], []>} : vector<240x384xf32>, vector<384x128xf32>, vector<240x128xf32> -> vector<240x128xf32>
      %73 = arith.addf %52, %72 : vector<240x128xf32>
      %c2_i32_51 = arith.constant 2 : i32
      %74 = arith.addi %30, %c2_i32_51 : i32
      %c1_i32_52 = arith.constant 1 : i32
      %75 = arith.addi %74, %c1_i32_52 : i32
      %c24_i32_53 = arith.constant 24 : i32
      %76 = arith.muli %75, %c24_i32_53 : i32
      %77 = tpu.assume_multiple %76, 8 : i32
      %c0_i32_54 = arith.constant 0 : i32
      %78 = arith.addi %77, %c0_i32_54 : i32
      %c1_i32_55 = arith.constant 1 : i32
      %79 = arith.subi %78, %c1_i32_55 : i32
      %80 = arith.index_cast %79 : i32 to index
      %c0_56 = arith.constant 0 : index
      %81 = vector.load %arg7[%80, %c0_56] : memref<480x128xf32, #tpu.memory_space<vmem>>, vector<240x128xf32>
      %c1_i32_57 = arith.constant 1 : i32
      %82 = arith.addi %77, %c1_i32_57 : i32
      %c1_i32_58 = arith.constant 1 : i32
      %83 = arith.subi %82, %c1_i32_58 : i32
      %84 = arith.index_cast %83 : i32 to index
      %c0_59 = arith.constant 0 : index
      %85 = vector.load %arg7[%84, %c0_59] : memref<480x128xf32, #tpu.memory_space<vmem>>, vector<240x128xf32>
      %c2_i32_60 = arith.constant 2 : i32
      %86 = arith.addi %77, %c2_i32_60 : i32
      %c1_i32_61 = arith.constant 1 : i32
      %87 = arith.subi %86, %c1_i32_61 : i32
      %88 = arith.index_cast %87 : i32 to index
      %c0_62 = arith.constant 0 : index
      %89 = vector.load %arg7[%88, %c0_62] : memref<480x128xf32, #tpu.memory_space<vmem>>, vector<240x128xf32>
      %90 = tpu.concatenate %81, %85, %89 in 1 : vector<240x128xf32>, vector<240x128xf32>, vector<240x128xf32> -> vector<240x384xf32>
      %c2 = arith.constant 2 : index
      %c0_63 = arith.constant 0 : index
      %c0_64 = arith.constant 0 : index
      %91 = vector.load %arg4[%c2, %c0_63, %c0_64] : memref<3x384x128xf32, #tpu.memory_space<vmem>>, vector<1x384x128xf32>
      %92 = vector.shape_cast %91 : vector<1x384x128xf32> to vector<384x128xf32>
      %cst_65 = arith.constant dense<0.000000e+00> : vector<240x128xf32>
      %93 = tpu.matmul %90, %92, %cst_65 {dimension_numbers = #tpu.dot_dimension_numbers<[1], [0], [0], [1], [0, 0, 1, 1], [], []>} : vector<240x384xf32>, vector<384x128xf32>, vector<240x128xf32> -> vector<240x128xf32>
      %94 = arith.addf %73, %93 : vector<240x128xf32>
      %95 = vector.broadcast %27 : vector<1x128xf32> to vector<240x128xf32>
      %96 = arith.addf %94, %95 : vector<240x128xf32>
      %cst_66 = arith.constant 0.000000e+00 : f32
      %97 = vector.broadcast %cst_66 : f32 to vector<240x128xf32>
      %98 = arith.maximumf %96, %97 : vector<240x128xf32>
      %c0_i32_67 = arith.constant 0 : i32
      %99 = arith.addi %30, %c0_i32_67 : i32
      %c24_i32_68 = arith.constant 24 : i32
      %100 = arith.muli %99, %c24_i32_68 : i32
      %101 = tpu.assume_multiple %100, 8 : i32
      %c0_i32_69 = arith.constant 0 : i32
      %c0_i32_70 = arith.constant 0 : i32
      %102 = tpu.memref_slice %arg6[%c0_i32_14, %c0_i32_69, %c0_i32_70] : memref<1x384x128xf32, #tpu.memory_space<vmem>> -> memref<1x384x128xf32, #tpu.memory_space<vmem>>
      %103 = tpu.memref_squeeze %102 : memref<1x384x128xf32, #tpu.memory_space<vmem>> -> memref<384x128xf32, #tpu.memory_space<vmem>>
      %104 = arith.index_cast %101 : i32 to index
      %c0_71 = arith.constant 0 : index
      %105 = vector.load %103[%104, %c0_71] : memref<384x128xf32, #tpu.memory_space<vmem>>, vector<240x128xf32>
      tpu.vector_store %103[%104, %c0_71], %98 {strides = array<i32>} : memref<384x128xf32, #tpu.memory_space<vmem>>, vector<240x128xf32>,
    }
    %c2_i32_18 = arith.constant 2 : i32
    return
  }
  func.func @transform_0(%arg0: i32) -> (i32, i32, i32) {
    %c0_i32 = arith.constant 0 : i32
    %c0_i32_0 = arith.constant 0 : i32
    %c0_i32_1 = arith.constant 0 : i32
    return %arg0, %c0_i32, %c0_i32_0 : i32, i32, i32
  }
  func.func @transform_1(%arg0: i32) -> (i32, i32, i32) {
    %c0_i32 = arith.constant 0 : i32
    %c0_i32_0 = arith.constant 0 : i32
    %c0_i32_1 = arith.constant 0 : i32
    %c0_i32_2 = arith.constant 0 : i32
    return %c0_i32, %c0_i32_0, %c0_i32_1 : i32, i32, i32
  }
  func.func @transform_2(%arg0: i32) -> (i32, i32) {
    %c0_i32 = arith.constant 0 : i32
    %c0_i32_0 = arith.constant 0 : i32
    %c0_i32_1 = arith.constant 0 : i32
    return %c0_i32, %c0_i32_0 : i32, i32
  }
  func.func @transform_3(%arg0: i32) -> (i32, i32, i32) {
    %c0_i32 = arith.constant 0 : i32
    %c0_i32_0 = arith.constant 0 : i32
    %c0_i32_1 = arith.constant 0 : i32
    %c0_i32_2 = arith.constant 0 : i32
    return %c0_i32, %c0_i32_0, %c0_i32_1 : i32, i32, i32
  }
  func.func @transform_4(%arg0: i32) -> (i32, i32) {
    %c0_i32 = arith.constant 0 : i32
    %c0_i32_0 = arith.constant 0 : i32
    %c0_i32_1 = arith.constant 0 : i32
    return %c0_i32, %c0_i32_0 : i32, i32
  }
  func.func @transform_5(%arg0: i32) -> (i32, i32, i32) {
    %c0_i32 = arith.constant 0 : i32
    %c0_i32_0 = arith.constant 0 : i32
    %c0_i32_1 = arith.constant 0 : i32
    return %arg0, %c0_i32, %c0_i32_0 : i32, i32, i32
  }
}

module attributes {stable_mosaic.version = 11 : i64} {
  func.func @_double_conv_kernel(%arg0: i32, %arg1: memref<1x480x12xf32, #tpu.memory_space<vmem>>, %arg2: memref<3x12x128xf32, #tpu.memory_space<vmem>>, %arg3: memref<1x128xf32, #tpu.memory_space<vmem>>, %arg4: memref<3x384x128xf32, #tpu.memory_space<vmem>>, %arg5: memref<1x128xf32, #tpu.memory_space<vmem>>, %arg6: memref<1x384x128xf32, #tpu.memory_space<vmem>>, %arg7: memref<480x128xf32, #tpu.memory_space<vmem>>) attributes {dimension_semantics = [#tpu.dimension_semantics<parallel>], iteration_bounds = array<i64: 2>, scalar_prefetch = 0 : i64, scratch_operands = 1 : i64, tpu.core_type = #tpu.core_type<tc>, window_params = [{transform_indices = @transform_0, window_bounds = array<i64: 1, 480, 12>}, {pipeline_mode = #tpu.pipeline_mode<synchronous>, transform_indices = @transform_1, window_bounds = array<i64: 3, 12, 128>}, {pipeline_mode = #tpu.pipeline_mode<synchronous>, transform_indices = @transform_2, window_bounds = array<i64: 1, 128>}, {pipeline_mode = #tpu.pipeline_mode<synchronous>, transform_indices = @transform_3, window_bounds = array<i64: 3, 384, 128>}, {pipeline_mode = #tpu.pipeline_mode<synchronous>, transform_indices = @transform_4, window_bounds = array<i64: 1, 128>}, {transform_indices = @transform_5, window_bounds = array<i64: 1, 384, 128>}]} {
    %cst = arith.constant 0.000000e+00 : f32
    %0 = vector.broadcast %cst : f32 to vector<48x128xf32>
    %c0 = arith.constant 0 : index
    %c0_0 = arith.constant 0 : index
    %1 = vector.load %arg7[%c0, %c0_0] : memref<480x128xf32, #tpu.memory_space<vmem>>, vector<48x128xf32>
    tpu.vector_store %arg7[%c0, %c0_0], %0 {strides = array<i32>} : memref<480x128xf32, #tpu.memory_space<vmem>>, vector<48x128xf32>,
    %c432 = arith.constant 432 : index
    %c0_1 = arith.constant 0 : index
    %2 = vector.load %arg7[%c432, %c0_1] : memref<480x128xf32, #tpu.memory_space<vmem>>, vector<48x128xf32>
    tpu.vector_store %arg7[%c432, %c0_1], %0 {strides = array<i32>} : memref<480x128xf32, #tpu.memory_space<vmem>>, vector<48x128xf32>,
    %3 = tpu.iota {dimensions = array<i32: 0>} : vector<240x1xi32>
    %c24_i32 = arith.constant 24 : i32
    %c0_i32 = arith.constant 0 : i32
    %4 = arith.cmpi eq, %c24_i32, %c0_i32 : i32
    %c1_i32 = arith.constant 1 : i32
    %5 = arith.select %4, %c1_i32, %c24_i32 : i32
    %6 = vector.broadcast %5 : i32 to vector<240x1xi32>
    %7 = arith.remsi %3, %6 : vector<240x1xi32>
    %c0_i32_2 = arith.constant 0 : i32
    %8 = vector.broadcast %c0_i32_2 : i32 to vector<240x1xi32>
    %9 = arith.cmpi ne, %7, %8 : vector<240x1xi32>
    %c0_i32_3 = arith.constant 0 : i32
    %10 = vector.broadcast %c0_i32_3 : i32 to vector<240x1xi32>
    %11 = arith.cmpi slt, %7, %10 : vector<240x1xi32>
    %c0_i32_4 = arith.constant 0 : i32
    %12 = arith.cmpi slt, %5, %c0_i32_4 : i32
    %13 = vector.broadcast %12 : i1 to vector<240x1xi1>
    %14 = vector.broadcast %13 : vector<240x1xi1> to vector<240x1xi1>
    %15 = arith.xori %11, %14 : vector<240x1xi1>
    %16 = arith.andi %15, %9 : vector<240x1xi1>
    %17 = vector.broadcast %5 : i32 to vector<240x1xi32>
    %18 = arith.addi %7, %17 : vector<240x1xi32>
    %19 = arith.select %16, %18, %7 : vector<240x1xi1>, vector<240x1xi32>
    %c1_i32_5 = arith.constant 1 : i32
    %20 = vector.broadcast %c1_i32_5 : i32 to vector<240x1xi32>
    %21 = arith.cmpi sge, %19, %20 : vector<240x1xi32>
    %c16_i32 = arith.constant 16 : i32
    %22 = vector.broadcast %c16_i32 : i32 to vector<240x1xi32>
    %23 = arith.cmpi sle, %19, %22 : vector<240x1xi32>
    %24 = arith.andi %21, %23 : vector<240x1xi1>
    %c0_6 = arith.constant 0 : index
    %c0_7 = arith.constant 0 : index
    %25 = vector.load %arg3[%c0_6, %c0_7] : memref<1x128xf32, #tpu.memory_space<vmem>>, vector<1x128xf32>
    %c0_i32_8 = arith.constant 0 : i32
    %c0_i32_9 = arith.constant 0 : i32
    %c2_i32 = arith.constant 2 : i32
    %26 = arith.addi %c0_i32_9, %c2_i32 : i32
    %c1_i32_10 = arith.constant 1 : i32
    scf.for %arg8 = %c0_i32_9 to %26 step %c1_i32_10  : i32 {
      %c10_i32 = arith.constant 10 : i32
      %29 = arith.muli %arg8, %c10_i32 : i32
      %c6_i32 = arith.constant 6 : i32
      %30 = arith.minsi %29, %c6_i32 : i32
      %cst_19 = arith.constant 0.000000e+00 : f32
      %31 = vector.broadcast %cst_19 : f32 to vector<240x128xf32>
      %c0_i32_20 = arith.constant 0 : i32
      %32 = arith.addi %30, %c0_i32_20 : i32
      %c1_i32_21 = arith.constant 1 : i32
      %33 = arith.addi %32, %c1_i32_21 : i32
      %c24_i32_22 = arith.constant 24 : i32
      %34 = arith.muli %33, %c24_i32_22 : i32
      %35 = tpu.assume_multiple %34, 8 : i32
      %c0_i32_23 = arith.constant 0 : i32
      %c0_i32_24 = arith.constant 0 : i32
      %36 = tpu.memref_slice %arg1[%c0_i32_8, %c0_i32_23, %c0_i32_24] : memref<1x480x12xf32, #tpu.memory_space<vmem>> -> memref<1x480x12xf32, #tpu.memory_space<vmem>>
      %37 = tpu.memref_squeeze %36 : memref<1x480x12xf32, #tpu.memory_space<vmem>> -> memref<480x12xf32, #tpu.memory_space<vmem>>
      %38 = arith.index_cast %35 : i32 to index
      %c0_25 = arith.constant 0 : index
      %39 = vector.load %37[%38, %c0_25] : memref<480x12xf32, #tpu.memory_space<vmem>>, vector<240x12xf32>
      %c0_26 = arith.constant 0 : index
      %c0_27 = arith.constant 0 : index
      %c0_28 = arith.constant 0 : index
      %40 = vector.load %arg2[%c0_26, %c0_27, %c0_28] : memref<3x12x128xf32, #tpu.memory_space<vmem>>, vector<1x12x128xf32>
      %41 = vector.shape_cast %40 : vector<1x12x128xf32> to vector<12x128xf32>
      %cst_29 = arith.constant dense<0.000000e+00> : vector<240x128xf32>
      %42 = tpu.matmul %39, %41, %cst_29 {dimension_numbers = #tpu.dot_dimension_numbers<[1], [0], [0], [1], [0, 0, 1, 1], [], []>} : vector<240x12xf32>, vector<12x128xf32>, vector<240x128xf32> -> vector<240x128xf32>
      %43 = arith.addf %31, %42 : vector<240x128xf32>
      %c1_i32_30 = arith.constant 1 : i32
      %44 = arith.addi %30, %c1_i32_30 : i32
      %c1_i32_31 = arith.constant 1 : i32
      %45 = arith.addi %44, %c1_i32_31 : i32
      %c24_i32_32 = arith.constant 24 : i32
      %46 = arith.muli %45, %c24_i32_32 : i32
      %47 = tpu.assume_multiple %46, 8 : i32
      %c0_i32_33 = arith.constant 0 : i32
      %c0_i32_34 = arith.constant 0 : i32
      %48 = tpu.memref_slice %arg1[%c0_i32_8, %c0_i32_33, %c0_i32_34] : memref<1x480x12xf32, #tpu.memory_space<vmem>> -> memref<1x480x12xf32, #tpu.memory_space<vmem>>
      %49 = tpu.memref_squeeze %48 : memref<1x480x12xf32, #tpu.memory_space<vmem>> -> memref<480x12xf32, #tpu.memory_space<vmem>>
      %50 = arith.index_cast %47 : i32 to index
      %c0_35 = arith.constant 0 : index
      %51 = vector.load %49[%50, %c0_35] : memref<480x12xf32, #tpu.memory_space<vmem>>, vector<240x12xf32>
      %c1 = arith.constant 1 : index
      %c0_36 = arith.constant 0 : index
      %c0_37 = arith.constant 0 : index
      %52 = vector.load %arg2[%c1, %c0_36, %c0_37] : memref<3x12x128xf32, #tpu.memory_space<vmem>>, vector<1x12x128xf32>
      %53 = vector.shape_cast %52 : vector<1x12x128xf32> to vector<12x128xf32>
      %cst_38 = arith.constant dense<0.000000e+00> : vector<240x128xf32>
      %54 = tpu.matmul %51, %53, %cst_38 {dimension_numbers = #tpu.dot_dimension_numbers<[1], [0], [0], [1], [0, 0, 1, 1], [], []>} : vector<240x12xf32>, vector<12x128xf32>, vector<240x128xf32> -> vector<240x128xf32>
      %55 = arith.addf %43, %54 : vector<240x128xf32>
      %c2_i32_39 = arith.constant 2 : i32
      %56 = arith.addi %30, %c2_i32_39 : i32
      %c1_i32_40 = arith.constant 1 : i32
      %57 = arith.addi %56, %c1_i32_40 : i32
      %c24_i32_41 = arith.constant 24 : i32
      %58 = arith.muli %57, %c24_i32_41 : i32
      %59 = tpu.assume_multiple %58, 8 : i32
      %c0_i32_42 = arith.constant 0 : i32
      %c0_i32_43 = arith.constant 0 : i32
      %60 = tpu.memref_slice %arg1[%c0_i32_8, %c0_i32_42, %c0_i32_43] : memref<1x480x12xf32, #tpu.memory_space<vmem>> -> memref<1x480x12xf32, #tpu.memory_space<vmem>>
      %61 = tpu.memref_squeeze %60 : memref<1x480x12xf32, #tpu.memory_space<vmem>> -> memref<480x12xf32, #tpu.memory_space<vmem>>
      %62 = arith.index_cast %59 : i32 to index
      %c0_44 = arith.constant 0 : index
      %63 = vector.load %61[%62, %c0_44] : memref<480x12xf32, #tpu.memory_space<vmem>>, vector<240x12xf32>
      %c2 = arith.constant 2 : index
      %c0_45 = arith.constant 0 : index
      %c0_46 = arith.constant 0 : index
      %64 = vector.load %arg2[%c2, %c0_45, %c0_46] : memref<3x12x128xf32, #tpu.memory_space<vmem>>, vector<1x12x128xf32>
      %65 = vector.shape_cast %64 : vector<1x12x128xf32> to vector<12x128xf32>
      %cst_47 = arith.constant dense<0.000000e+00> : vector<240x128xf32>
      %66 = tpu.matmul %63, %65, %cst_47 {dimension_numbers = #tpu.dot_dimension_numbers<[1], [0], [0], [1], [0, 0, 1, 1], [], []>} : vector<240x12xf32>, vector<12x128xf32>, vector<240x128xf32> -> vector<240x128xf32>
      %67 = arith.addf %55, %66 : vector<240x128xf32>
      %68 = vector.broadcast %25 : vector<1x128xf32> to vector<240x128xf32>
      %69 = arith.addf %67, %68 : vector<240x128xf32>
      %cst_48 = arith.constant 0.000000e+00 : f32
      %70 = vector.broadcast %cst_48 : f32 to vector<240x128xf32>
      %71 = arith.maximumf %69, %70 : vector<240x128xf32>
      %cst_49 = arith.constant 0.000000e+00 : f32
      %72 = vector.shape_cast %24 : vector<240x1xi1> to vector<240x1xi1>
      %73 = vector.broadcast %72 : vector<240x1xi1> to vector<240x128xi1>
      %74 = vector.broadcast %cst_49 : f32 to vector<240x128xf32>
      %75 = arith.select %73, %71, %74 : vector<240x128xi1>, vector<240x128xf32>
      %c2_i32_50 = arith.constant 2 : i32
      %76 = arith.addi %30, %c2_i32_50 : i32
      %c24_i32_51 = arith.constant 24 : i32
      %77 = arith.muli %76, %c24_i32_51 : i32
      %78 = tpu.assume_multiple %77, 8 : i32
      %79 = arith.index_cast %78 : i32 to index
      %c0_52 = arith.constant 0 : index
      %80 = vector.load %arg7[%79, %c0_52] : memref<480x128xf32, #tpu.memory_space<vmem>>, vector<240x128xf32>
      tpu.vector_store %arg7[%79, %c0_52], %75 {strides = array<i32>} : memref<480x128xf32, #tpu.memory_space<vmem>>, vector<240x128xf32>,
    }
    %c2_i32_11 = arith.constant 2 : i32
    %c0_12 = arith.constant 0 : index
    %c0_13 = arith.constant 0 : index
    %27 = vector.load %arg5[%c0_12, %c0_13] : memref<1x128xf32, #tpu.memory_space<vmem>>, vector<1x128xf32>
    %c0_i32_14 = arith.constant 0 : i32
    %c0_i32_15 = arith.constant 0 : i32
    %c2_i32_16 = arith.constant 2 : i32
    %28 = arith.addi %c0_i32_15, %c2_i32_16 : i32
    %c1_i32_17 = arith.constant 1 : i32
    scf.for %arg8 = %c0_i32_15 to %28 step %c1_i32_17  : i32 {
      %c10_i32 = arith.constant 10 : i32
      %29 = arith.muli %arg8, %c10_i32 : i32
      %c6_i32 = arith.constant 6 : i32
      %30 = arith.minsi %29, %c6_i32 : i32
      %cst_19 = arith.constant 0.000000e+00 : f32
      %31 = vector.broadcast %cst_19 : f32 to vector<240x128xf32>
      %c0_i32_20 = arith.constant 0 : i32
      %32 = arith.addi %30, %c0_i32_20 : i32
      %c1_i32_21 = arith.constant 1 : i32
      %33 = arith.addi %32, %c1_i32_21 : i32
      %c24_i32_22 = arith.constant 24 : i32
      %34 = arith.muli %33, %c24_i32_22 : i32
      %35 = tpu.assume_multiple %34, 8 : i32
      %c0_i32_23 = arith.constant 0 : i32
      %36 = arith.addi %35, %c0_i32_23 : i32
      %c1_i32_24 = arith.constant 1 : i32
      %37 = arith.subi %36, %c1_i32_24 : i32
      %38 = arith.index_cast %37 : i32 to index
      %c0_25 = arith.constant 0 : index
      %39 = vector.load %arg7[%38, %c0_25] : memref<480x128xf32, #tpu.memory_space<vmem>>, vector<240x128xf32>
      %c1_i32_26 = arith.constant 1 : i32
      %40 = arith.addi %35, %c1_i32_26 : i32
      %c1_i32_27 = arith.constant 1 : i32
      %41 = arith.subi %40, %c1_i32_27 : i32
      %42 = arith.index_cast %41 : i32 to index
      %c0_28 = arith.constant 0 : index
      %43 = vector.load %arg7[%42, %c0_28] : memref<480x128xf32, #tpu.memory_space<vmem>>, vector<240x128xf32>
      %c2_i32_29 = arith.constant 2 : i32
      %44 = arith.addi %35, %c2_i32_29 : i32
      %c1_i32_30 = arith.constant 1 : i32
      %45 = arith.subi %44, %c1_i32_30 : i32
      %46 = arith.index_cast %45 : i32 to index
      %c0_31 = arith.constant 0 : index
      %47 = vector.load %arg7[%46, %c0_31] : memref<480x128xf32, #tpu.memory_space<vmem>>, vector<240x128xf32>
      %48 = tpu.concatenate %39, %43, %47 in 1 : vector<240x128xf32>, vector<240x128xf32>, vector<240x128xf32> -> vector<240x384xf32>
      %c0_32 = arith.constant 0 : index
      %c0_33 = arith.constant 0 : index
      %c0_34 = arith.constant 0 : index
      %49 = vector.load %arg4[%c0_32, %c0_33, %c0_34] : memref<3x384x128xf32, #tpu.memory_space<vmem>>, vector<1x384x128xf32>
      %50 = vector.shape_cast %49 : vector<1x384x128xf32> to vector<384x128xf32>
      %cst_35 = arith.constant dense<0.000000e+00> : vector<240x128xf32>
      %51 = tpu.matmul %48, %50, %cst_35 {dimension_numbers = #tpu.dot_dimension_numbers<[1], [0], [0], [1], [0, 0, 1, 1], [], []>} : vector<240x384xf32>, vector<384x128xf32>, vector<240x128xf32> -> vector<240x128xf32>
      %52 = arith.addf %31, %51 : vector<240x128xf32>
      %c1_i32_36 = arith.constant 1 : i32
      %53 = arith.addi %30, %c1_i32_36 : i32
      %c1_i32_37 = arith.constant 1 : i32
      %54 = arith.addi %53, %c1_i32_37 : i32
      %c24_i32_38 = arith.constant 24 : i32
      %55 = arith.muli %54, %c24_i32_38 : i32
      %56 = tpu.assume_multiple %55, 8 : i32
      %c0_i32_39 = arith.constant 0 : i32
      %57 = arith.addi %56, %c0_i32_39 : i32
      %c1_i32_40 = arith.constant 1 : i32
      %58 = arith.subi %57, %c1_i32_40 : i32
      %59 = arith.index_cast %58 : i32 to index
      %c0_41 = arith.constant 0 : index
      %60 = vector.load %arg7[%59, %c0_41] : memref<480x128xf32, #tpu.memory_space<vmem>>, vector<240x128xf32>
      %c1_i32_42 = arith.constant 1 : i32
      %61 = arith.addi %56, %c1_i32_42 : i32
      %c1_i32_43 = arith.constant 1 : i32
      %62 = arith.subi %61, %c1_i32_43 : i32
      %63 = arith.index_cast %62 : i32 to index
      %c0_44 = arith.constant 0 : index
      %64 = vector.load %arg7[%63, %c0_44] : memref<480x128xf32, #tpu.memory_space<vmem>>, vector<240x128xf32>
      %c2_i32_45 = arith.constant 2 : i32
      %65 = arith.addi %56, %c2_i32_45 : i32
      %c1_i32_46 = arith.constant 1 : i32
      %66 = arith.subi %65, %c1_i32_46 : i32
      %67 = arith.index_cast %66 : i32 to index
      %c0_47 = arith.constant 0 : index
      %68 = vector.load %arg7[%67, %c0_47] : memref<480x128xf32, #tpu.memory_space<vmem>>, vector<240x128xf32>
      %69 = tpu.concatenate %60, %64, %68 in 1 : vector<240x128xf32>, vector<240x128xf32>, vector<240x128xf32> -> vector<240x384xf32>
      %c1 = arith.constant 1 : index
      %c0_48 = arith.constant 0 : index
      %c0_49 = arith.constant 0 : index
      %70 = vector.load %arg4[%c1, %c0_48, %c0_49] : memref<3x384x128xf32, #tpu.memory_space<vmem>>, vector<1x384x128xf32>
      %71 = vector.shape_cast %70 : vector<1x384x128xf32> to vector<384x128xf32>
      %cst_50 = arith.constant dense<0.000000e+00> : vector<240x128xf32>
      %72 = tpu.matmul %69, %71, %cst_50 {dimension_numbers = #tpu.dot_dimension_numbers<[1], [0], [0], [1], [0, 0, 1, 1], [], []>} : vector<240x384xf32>, vector<384x128xf32>, vector<240x128xf32> -> vector<240x128xf32>
      %73 = arith.addf %52, %72 : vector<240x128xf32>
      %c2_i32_51 = arith.constant 2 : i32
      %74 = arith.addi %30, %c2_i32_51 : i32
      %c1_i32_52 = arith.constant 1 : i32
      %75 = arith.addi %74, %c1_i32_52 : i32
      %c24_i32_53 = arith.constant 24 : i32
      %76 = arith.muli %75, %c24_i32_53 : i32
      %77 = tpu.assume_multiple %76, 8 : i32
      %c0_i32_54 = arith.constant 0 : i32
      %78 = arith.addi %77, %c0_i32_54 : i32
      %c1_i32_55 = arith.constant 1 : i32
      %79 = arith.subi %78, %c1_i32_55 : i32
      %80 = arith.index_cast %79 : i32 to index
      %c0_56 = arith.constant 0 : index
      %81 = vector.load %arg7[%80, %c0_56] : memref<480x128xf32, #tpu.memory_space<vmem>>, vector<240x128xf32>
      %c1_i32_57 = arith.constant 1 : i32
      %82 = arith.addi %77, %c1_i32_57 : i32
      %c1_i32_58 = arith.constant 1 : i32
      %83 = arith.subi %82, %c1_i32_58 : i32
      %84 = arith.index_cast %83 : i32 to index
      %c0_59 = arith.constant 0 : index
      %85 = vector.load %arg7[%84, %c0_59] : memref<480x128xf32, #tpu.memory_space<vmem>>, vector<240x128xf32>
      %c2_i32_60 = arith.constant 2 : i32
      %86 = arith.addi %77, %c2_i32_60 : i32
      %c1_i32_61 = arith.constant 1 : i32
      %87 = arith.subi %86, %c1_i32_61 : i32
      %88 = arith.index_cast %87 : i32 to index
      %c0_62 = arith.constant 0 : index
      %89 = vector.load %arg7[%88, %c0_62] : memref<480x128xf32, #tpu.memory_space<vmem>>, vector<240x128xf32>
      %90 = tpu.concatenate %81, %85, %89 in 1 : vector<240x128xf32>, vector<240x128xf32>, vector<240x128xf32> -> vector<240x384xf32>
      %c2 = arith.constant 2 : index
      %c0_63 = arith.constant 0 : index
      %c0_64 = arith.constant 0 : index
      %91 = vector.load %arg4[%c2, %c0_63, %c0_64] : memref<3x384x128xf32, #tpu.memory_space<vmem>>, vector<1x384x128xf32>
      %92 = vector.shape_cast %91 : vector<1x384x128xf32> to vector<384x128xf32>
      %cst_65 = arith.constant dense<0.000000e+00> : vector<240x128xf32>
      %93 = tpu.matmul %90, %92, %cst_65 {dimension_numbers = #tpu.dot_dimension_numbers<[1], [0], [0], [1], [0, 0, 1, 1], [], []>} : vector<240x384xf32>, vector<384x128xf32>, vector<240x128xf32> -> vector<240x128xf32>
      %94 = arith.addf %73, %93 : vector<240x128xf32>
      %95 = vector.broadcast %27 : vector<1x128xf32> to vector<240x128xf32>
      %96 = arith.addf %94, %95 : vector<240x128xf32>
      %cst_66 = arith.constant 0.000000e+00 : f32
      %97 = vector.broadcast %cst_66 : f32 to vector<240x128xf32>
      %98 = arith.maximumf %96, %97 : vector<240x128xf32>
      %c0_i32_67 = arith.constant 0 : i32
      %99 = arith.addi %30, %c0_i32_67 : i32
      %c24_i32_68 = arith.constant 24 : i32
      %100 = arith.muli %99, %c24_i32_68 : i32
      %101 = tpu.assume_multiple %100, 8 : i32
      %c0_i32_69 = arith.constant 0 : i32
      %c0_i32_70 = arith.constant 0 : i32
      %102 = tpu.memref_slice %arg6[%c0_i32_14, %c0_i32_69, %c0_i32_70] : memref<1x384x128xf32, #tpu.memory_space<vmem>> -> memref<1x384x128xf32, #tpu.memory_space<vmem>>
      %103 = tpu.memref_squeeze %102 : memref<1x384x128xf32, #tpu.memory_space<vmem>> -> memref<384x128xf32, #tpu.memory_space<vmem>>
      %104 = arith.index_cast %101 : i32 to index
      %c0_71 = arith.constant 0 : index
      %105 = vector.load %103[%104, %c0_71] : memref<384x128xf32, #tpu.memory_space<vmem>>, vector<240x128xf32>
      tpu.vector_store %103[%104, %c0_71], %98 {strides = array<i32>} : memref<384x128xf32, #tpu.memory_space<vmem>>, vector<240x128xf32>,
    }
    %c2_i32_18 = arith.constant 2 : i32
    return
  }
  func.func @transform_0(%arg0: i32) -> (i32, i32, i32) {
    %c0_i32 = arith.constant 0 : i32
    %c0_i32_0 = arith.constant 0 : i32
    %c0_i32_1 = arith.constant 0 : i32
    return %arg0, %c0_i32, %c0_i32_0 : i32, i32, i32
  }
  func.func @transform_1(%arg0: i32) -> (i32, i32, i32) {
    %c0_i32 = arith.constant 0 : i32
    %c0_i32_0 = arith.constant 0 : i32
    %c0_i32_1 = arith.constant 0 : i32
    %c0_i32_2 = arith.constant 0 : i32
    return %c0_i32, %c0_i32_0, %c0_i32_1 : i32, i32, i32
  }
  func.func @transform_2(%arg0: i32) -> (i32, i32) {
    %c0_i32 = arith.constant 0 : i32
    %c0_i32_0 = arith.constant 0 : i32
    %c0_i32_1 = arith.constant 0 : i32
    return %c0_i32, %c0_i32_0 : i32, i32
  }
  func.func @transform_3(%arg0: i32) -> (i32, i32, i32) {
    %c0_i32 = arith.constant 0 : i32
    %c0_i32_0 = arith.constant 0 : i32
    %c0_i32_1 = arith.constant 0 : i32
    %c0_i32_2 = arith.constant 0 : i32
    return %c0_i32, %c0_i32_0, %c0_i32_1 : i32, i32, i32
  }
  func.func @transform_4(%arg0: i32) -> (i32, i32) {
    %c0_i32 = arith.constant 0 : i32
    %c0_i32_0 = arith.constant 0 : i32
    %c0_i32_1 = arith.constant 0 : i32
    return %c0_i32, %c0_i32_0 : i32, i32
  }
  func.func @transform_5(%arg0: i32) -> (i32, i32, i32) {
    %c0_i32 = arith.constant 0 : i32
    %c0_i32_0 = arith.constant 0 : i32
    %c0_i32_1 = arith.constant 0 : i32
    return %arg0, %c0_i32, %c0_i32_0 : i32, i32, i32
  }
}

</mosaic_0001>

<llo_original>
// kernel: _double_conv_impl.1
$region0: #{_double_conv_impl.1}
  #allocation0 [shape = 'u32[]', space=smem, size = 0x4, offset = 0x4, fixed_abs, tag = 'smem constant byte address 0x4 - core index']
  #allocation1 [shape = 'u32[144,128]{1,0:T(1,128)}', space=vmem, size = 0x12000, scoped, tag = 'internal scratch']
  #allocation2 [shape = 'f32[480,128]{1,0:T(8,128)}', space=vmem, size = 0x3c000, scoped, tag = 'scratch operand']
  %s0 = inlined_call_operand.vmem [shape: f32[2,480,12], index: 0, kind: input, shape index: {}]
  %s1 = inlined_call_operand.vmem [shape: f32[3,12,128], index: 1, kind: input, shape index: {}]
  %s2 = inlined_call_operand.vmem [shape: f32[1,128], index: 2, kind: input, shape index: {}]
  %s3 = inlined_call_operand.vmem [shape: f32[3,384,128], index: 3, kind: input, shape index: {}]
  %s4 = inlined_call_operand.vmem [shape: f32[1,128], index: 4, kind: input, shape index: {}]
  %s5 = inlined_call_operand.vmem [shape: f32[2,384,128], index: 5, kind: output, shape index: {}]
  %s6 = sld [smem:[#allocation0]]
  $region67: #{_double_conv_impl.1} parent=0
    _
  %s8 = ssub.s32 1, %s6
  %s9 = scalar_select 0, %s8, %s6
  loop: start=0, step=1, limit=4
  $region2: #{_double_conv_impl.1} parent=0 // loop_pre_header
    _
  $region3: #{_double_conv_impl.1} parent=0 // loop_header
    %s11 = sphi 0, %s15
    %p12 = scmp.ge.s32.totalorder %s11, 4
    %s21 = sphi 0, %s23
    %s24 = sphi 0, %s21
    %s25 = sphi 0, %s24
    %s41 = sphi 0, %s25
    %s45 = sphi 0, %s45
    %s47 = sphi 0, %s45
    %s48 = sphi 0, %s47
    %s62 = sphi 0, %s48
    %s66 = sphi 0, %s66
    %s68 = sphi 0, %s66
    %s69 = sphi 0, %s68
    %s83 = sphi 0, %s69
    %s87 = sphi 0, %s87
    %s89 = sphi 0, %s87
    %s90 = sphi 0, %s89
    %s104 = sphi 0, %s90
    %s108 = sphi 0, %s108
    %s110 = sphi 0, %s108
    %s111 = sphi 0, %s110
    %s125 = sphi 0, %s111
    %s131 = sphi 0, %s133
    %s134 = sphi 0, %s131
    %s135 = sphi 0, %s134
    %s151 = sphi 0, %s135
  $region4: #{_double_conv_impl.1} parent=0 // loop_header_branch
    %14 = sbr.rel (%p12) target = $region8
  $region5: #{_double_conv_impl.1} parent=0 // loop_body
    %s16 = ssub.s32 %s11, 1
    %s17 = ssub.s32 %s11, 2
    %s18 = sadd.s32 %s11, 1
    %s19 = ssub.s32 %s11, %s18
    %p20 = scmp.eq.s32.totalorder %s19, 0
    %s22 = sadd.s32 %s21, 1
    %s23 = scalar_select %p20, %s21, %s22
    %p26 = pneg %p20
    %p27 = scmp.eq.s32.totalorder %s11, 1
    %p28 = por %p26, %p27
    %p29 = scmp.ne.s32.totalorder %s21, %s24
    %p30 = scmp.eq.s32.totalorder %s11, 0
    %p31 = por %p29, %p30
    %p32 = scmp.ne.s32.totalorder %s21, %s24
    %p33 = scmp.eq.s32.totalorder %s16, 1
    %p34 = por %p32, %p33
    %p35 = scmp.ne.s32.totalorder %s24, %s25
    %p36 = scmp.eq.s32.totalorder %s16, 0
    %p37 = por %p35, %p36
    %p38 = scmp.ne.s32.totalorder %s24, %s25
    %p39 = scmp.eq.s32.totalorder %s17, 1
    %p40 = por %p38, %p39
    %p42 = scmp.ne.s32.totalorder %s25, %s41
    %p43 = scmp.eq.s32.totalorder %s17, 0
    %p44 = por %p42, %p43
    %s46 = sadd.s32 %s45, 1
    %p49 = scmp.eq.s32.totalorder %s11, 1
    %p50 = scmp.ne.s32.totalorder %s45, %s47
    %p51 = scmp.eq.s32.totalorder %s11, 0
    %p52 = por %p50, %p51
    %p53 = scmp.ne.s32.totalorder %s45, %s47
    %p54 = scmp.eq.s32.totalorder %s16, 1
    %p55 = por %p53, %p54
    %p56 = scmp.ne.s32.totalorder %s47, %s48
    %p57 = scmp.eq.s32.totalorder %s16, 0
    %p58 = por %p56, %p57
    %p59 = scmp.ne.s32.totalorder %s47, %s48
    %p60 = scmp.eq.s32.totalorder %s17, 1
    %p61 = por %p59, %p60
    %p63 = scmp.ne.s32.totalorder %s48, %s62
    %p64 = scmp.eq.s32.totalorder %s17, 0
    %p65 = por %p63, %p64
    %s67 = sadd.s32 %s66, 1
    %p70 = scmp.eq.s32.totalorder %s11, 1
    %p71 = scmp.ne.s32.totalorder %s66, %s68
    %p72 = scmp.eq.s32.totalorder %s11, 0
    %p73 = por %p71, %p72
    %p74 = scmp.ne.s32.totalorder %s66, %s68
    %p75 = scmp.eq.s32.totalorder %s16, 1
    %p76 = por %p74, %p75
    %p77 = scmp.ne.s32.totalorder %s68, %s69
    %p78 = scmp.eq.s32.totalorder %s16, 0
    %p79 = por %p77, %p78
    %p80 = scmp.ne.s32.totalorder %s68, %s69
    %p81 = scmp.eq.s32.totalorder %s17, 1
    %p82 = por %p80, %p81
    %p84 = scmp.ne.s32.totalorder %s69, %s83
    %p85 = scmp.eq.s32.totalorder %s17, 0
    %p86 = por %p84, %p85
    %s88 = sadd.s32 %s87, 1
    %p91 = scmp.eq.s32.totalorder %s11, 1
    %p92 = scmp.ne.s32.totalorder %s87, %s89
    %p93 = scmp.eq.s32.totalorder %s11, 0
    %p94 = por %p92, %p93
    %p95 = scmp.ne.s32.totalorder %s87, %s89
    %p96 = scmp.eq.s32.totalorder %s16, 1
    %p97 = por %p95, %p96
    %p98 = scmp.ne.s32.totalorder %s89, %s90
    %p99 = scmp.eq.s32.totalorder %s16, 0
    %p100 = por %p98, %p99
    %p101 = scmp.ne.s32.totalorder %s89, %s90
    %p102 = scmp.eq.s32.totalorder %s17, 1
    %p103 = por %p101, %p102
    %p105 = scmp.ne.s32.totalorder %s90, %s104
    %p106 = scmp.eq.s32.totalorder %s17, 0
    %p107 = por %p105, %p106
    %s109 = sadd.s32 %s108, 1
    %p112 = scmp.eq.s32.totalorder %s11, 1
    %p113 = scmp.ne.s32.totalorder %s108, %s110
    %p114 = scmp.eq.s32.totalorder %s11, 0
    %p115 = por %p113, %p114
    %p116 = scmp.ne.s32.totalorder %s108, %s110
    %p117 = scmp.eq.s32.totalorder %s16, 1
    %p118 = por %p116, %p117
    %p119 = scmp.ne.s32.totalorder %s110, %s111
    %p120 = scmp.eq.s32.totalorder %s16, 0
    %p121 = por %p119, %p120
    %p122 = scmp.ne.s32.totalorder %s110, %s111
    %p123 = scmp.eq.s32.totalorder %s17, 1
    %p124 = por %p122, %p123
    %p126 = scmp.ne.s32.totalorder %s111, %s125
    %p127 = scmp.eq.s32.totalorder %s17, 0
    %p128 = por %p126, %p127
    %s129 = ssub.s32 %s11, %s18
    %p130 = scmp.eq.s32.totalorder %s129, 0
    %s132 = sadd.s32 %s131, 1
    %s133 = scalar_select %p130, %s131, %s132
    %p136 = pneg %p130
    %p137 = scmp.eq.s32.totalorder %s11, 1
    %p138 = por %p136, %p137
    %p139 = scmp.ne.s32.totalorder %s131, %s134
    %p140 = scmp.eq.s32.totalorder %s11, 0
    %p141 = por %p139, %p140
    %p142 = scmp.ne.s32.totalorder %s131, %s134
    %p143 = scmp.eq.s32.totalorder %s16, 1
    %p144 = por %p142, %p143
    %p145 = scmp.ne.s32.totalorder %s134, %s135
    %p146 = scmp.eq.s32.totalorder %s16, 0
    %p147 = por %p145, %p146
    %p148 = scmp.ne.s32.totalorder %s134, %s135
    %p149 = scmp.eq.s32.totalorder %s17, 1
    %p150 = por %p148, %p149
    %p152 = scmp.ne.s32.totalorder %s135, %s151
    %p153 = scmp.eq.s32.totalorder %s17, 0
    %p154 = por %p152, %p153
    %p155 = scmp.le.s32.totalorder 1, %s11
    %p156 = scmp.lt.s32.totalorder %s11, 3
    %p157 = pnand %p155, %p156
    %p158 = pneg %p157
    // Predicated region
    $region9: #{_double_conv_impl.1} parent=5 // pred_check
      _
    $region10: #{_double_conv_impl.1} parent=5 // pred_check_branch
      %160 = sbr.rel (%p157) target = $region12
    $region11: #{_double_conv_impl.1} parent=5 // pred_region
      %s161 = ssub.s32 %s11, 1
      // Predicated region
      $region13: #{_double_conv_impl.1} parent=11 // pred_check
        %p162 = pneg %p58
      $region14: #{_double_conv_impl.1} parent=11 // pred_check_branch
        %164 = sbr.rel (%p162) target = $region16
      $region15: #{_double_conv_impl.1} parent=11 // pred_region
        _
      $region16: #{_double_conv_impl.1} parent=11 // pred_fallthru
        _
      // Predicated region
      $region17: #{_double_conv_impl.1} parent=11 // pred_check
        %p165 = pneg %p79
      $region18: #{_double_conv_impl.1} parent=11 // pred_check_branch
        %167 = sbr.rel (%p165) target = $region20
      $region19: #{_double_conv_impl.1} parent=11 // pred_region
        _
      $region20: #{_double_conv_impl.1} parent=11 // pred_fallthru
        _
      // Predicated region
      $region21: #{_double_conv_impl.1} parent=11 // pred_check
        %p168 = pneg %p100
      $region22: #{_double_conv_impl.1} parent=11 // pred_check_branch
        %170 = sbr.rel (%p168) target = $region24
      $region23: #{_double_conv_impl.1} parent=11 // pred_region
        _
      $region24: #{_double_conv_impl.1} parent=11 // pred_fallthru
        _
      // Predicated region
      $region25: #{_double_conv_impl.1} parent=11 // pred_check
        %p171 = pneg %p121
      $region26: #{_double_conv_impl.1} parent=11 // pred_check_branch
        %173 = sbr.rel (%p171) target = $region28
      $region27: #{_double_conv_impl.1} parent=11 // pred_region
        _
      $region28: #{_double_conv_impl.1} parent=11 // pred_fallthru
        _
    $region12: #{_double_conv_impl.1} parent=5 // pred_fallthru
      _
    %p174 = scmp.lt.s32.totalorder %s11, 2
    // Predicated region
    $region29: #{_double_conv_impl.1} parent=5 // pred_check
      %p175 = pneg %p174
    $region30: #{_double_conv_impl.1} parent=5 // pred_check_branch
      %177 = sbr.rel (%p175) target = $region32
    $region31: #{_double_conv_impl.1} parent=5 // pred_region
      // Predicated region
      $region33: #{_double_conv_impl.1} parent=31 // pred_check
        %p178 = pneg %p31
      $region34: #{_double_conv_impl.1} parent=31 // pred_check_branch
        %180 = sbr.rel (%p178) target = $region36
      $region35: #{_double_conv_impl.1} parent=31 // pred_region
        %p181 = scmp.lt.s32.totalorder %s11, 1
        %s182 = scalar_select %p181, %s11, 1
        %s183 = smul.addr %s182, 60
        %s184 = smul.addr %s183, 8
        %s185 = scalar_lea.vmem %s0, %s184
      $region36: #{_double_conv_impl.1} parent=31 // pred_fallthru
        _
    $region32: #{_double_conv_impl.1} parent=5 // pred_fallthru
      _
    %p186 = scmp.le.s32.totalorder 1, %s11
    %p187 = scmp.lt.s32.totalorder %s11, 3
    %p188 = pnand %p186, %p187
    %p189 = pneg %p188
    // Predicated region
    $region37: #{_double_conv_impl.1} parent=5 // pred_check
      _
    $region38: #{_double_conv_impl.1} parent=5 // pred_check_branch
      %191 = sbr.rel (%p188) target = $region40
    $region39: #{_double_conv_impl.1} parent=5 // pred_region
      %s192 = ssub.s32 %s11, 1
      %p193 = scmp.lt.s32.totalorder %s16, 1
      %s194 = scalar_select %p193, %s16, 1
      %s195 = smul.addr %s194, 60
      %s196 = smul.addr %s195, 8
      %s197 = scalar_lea.vmem %s0, %s196
      %p198 = pneg %p37
      %p199 = pneg %p34
      %p200 = pneg %p58
      %p201 = pneg %p55
      %p202 = pneg %p79
      %p203 = pneg %p76
      %p204 = pneg %p100
      %p205 = pneg %p97
      %p206 = pneg %p121
      %p207 = pneg %p118
      %p208 = pneg %p147
      %p209 = pneg %p144
      %p210 = scmp.lt.s32.totalorder %s16, 1
      %s211 = scalar_select %p210, %s16, 1
      %s212 = smul.addr %s211, 48
      %s213 = smul.addr %s212, 8
      %s214 = scalar_lea.vmem %s5, %s213
      %p215 = scmp.lt.s32.totalorder %s16, 1
      %s216 = scalar_select %p215, %s16, 1
      %s217 = smul.addr %s216, 60
      %s218 = smul.addr %s217, 8
      %s219 = scalar_lea.vmem %s0, %s218
      %p220 = scmp.lt.s32.totalorder %s16, 1
      %s221 = scalar_select %p220, %s16, 1
      %s222 = smul.addr %s221, 48
      %s223 = smul.addr %s222, 8
      %s224 = scalar_lea.vmem %s5, %s223
      %225 = vst [vmem:[#allocation2] sm:$0xff] 0.0
      %226 = vst [vmem:[#allocation2 + $0x8] sm:$0xff] 0.0
      %227 = vst [vmem:[#allocation2 + $0x10] sm:$0xff] 0.0
      %228 = vst [vmem:[#allocation2 + $0x18] sm:$0xff] 0.0
      %229 = vst [vmem:[#allocation2 + $0x20] sm:$0xff] 0.0
      %230 = vst [vmem:[#allocation2 + $0x28] sm:$0xff] 0.0
      %231 = vst [vmem:[#allocation2 + $0x1b0] sm:$0xff] 0.0
      %232 = vst [vmem:[#allocation2 + $0x1b8] sm:$0xff] 0.0
      %233 = vst [vmem:[#allocation2 + $0x1c0] sm:$0xff] 0.0
      %234 = vst [vmem:[#allocation2 + $0x1c8] sm:$0xff] 0.0
      %235 = vst [vmem:[#allocation2 + $0x1d0] sm:$0xff] 0.0
      %236 = vst [vmem:[#allocation2 + $0x1d8] sm:$0xff] 0.0
      %v237 = vlaneseq
      %v238 = vshrl.u32 %v237, 7
      %v239 = vadd.s32 %v238, 8
      %v240 = vadd.s32 %v238, 16
      %v241 = vadd.s32 %v238, 24
      %v242 = vadd.s32 %v238, 32
      %v243 = vadd.s32 %v238, 40
      %v244 = vadd.s32 %v238, 48
      %v245 = vadd.s32 %v238, 56
      %v246 = vadd.s32 %v238, 64
      %v247 = vadd.s32 %v238, 72
      %v248 = vadd.s32 %v238, 80
      %v249 = vadd.s32 %v238, 88
      %v250 = vadd.s32 %v238, 96
      %v251 = vadd.s32 %v238, 104
      %v252 = vadd.s32 %v238, 112
      %v253 = vadd.s32 %v238, 120
      %v254 = vadd.s32 %v238, 128
      %v255 = vadd.s32 %v238, 136
      %v256 = vadd.s32 %v238, 144
      %v257 = vadd.s32 %v238, 152
      %v258 = vadd.s32 %v238, 160
      %v259 = vadd.s32 %v238, 168
      %v260 = vadd.s32 %v238, 176
      %v261 = vadd.s32 %v238, 184
      %v262 = vadd.s32 %v238, 192
      %v263 = vadd.s32 %v238, 200
      %v264 = vadd.s32 %v238, 208
      %v265 = vadd.s32 %v238, 216
      %v266 = vadd.s32 %v238, 224
      %v267 = vadd.s32 %v238, 232
      %vm268 = vcmp.lt.s32.totalorder %v238, 0
      %v269 = vsub.s32 0, %v238
      %v270 = vsel %vm268, %v269, %v238
      %v271 = vmul.u32.u64.compose %v270, 2863311531
      %v272 = vextract.low.u32 %v271
      %v273 = vextract.high.u32 %v271
      %v274 = vshrl.u32 %v273, 4
      %v275 = vmul.u32 %v274, 24
      %v276 = vsub.s32 %v270, %v275
      %v277 = vsub.s32 0, %v276
      %v278 = vsel %vm268, %v277, %v276
      %vm279 = vcmp.lt.s32.totalorder %v239, 0
      %v280 = vsub.s32 0, %v239
      %v281 = vsel %vm279, %v280, %v239
      %v282 = vmul.u32.u64.compose %v281, 2863311531
      %v283 = vextract.low.u32 %v282
      %v284 = vextract.high.u32 %v282
      %v285 = vshrl.u32 %v284, 4
      %v286 = vmul.u32 %v285, 24
      %v287 = vsub.s32 %v281, %v286
      %v288 = vsub.s32 0, %v287
      %v289 = vsel %vm279, %v288, %v287
      %vm290 = vcmp.lt.s32.totalorder %v240, 0
      %v291 = vsub.s32 0, %v240
      %v292 = vsel %vm290, %v291, %v240
      %v293 = vmul.u32.u64.compose %v292, 2863311531
      %v294 = vextract.low.u32 %v293
      %v295 = vextract.high.u32 %v293
      %v296 = vshrl.u32 %v295, 4
      %v297 = vmul.u32 %v296, 24
      %v298 = vsub.s32 %v292, %v297
      %v299 = vsub.s32 0, %v298
      %v300 = vsel %vm290, %v299, %v298
      %vm301 = vcmp.lt.s32.totalorder %v241, 0
      %v302 = vsub.s32 0, %v241
      %v303 = vsel %vm301, %v302, %v241
      %v304 = vmul.u32.u64.compose %v303, 2863311531
      %v305 = vextract.low.u32 %v304
      %v306 = vextract.high.u32 %v304
      %v307 = vshrl.u32 %v306, 4
      %v308 = vmul.u32 %v307, 24
      %v309 = vsub.s32 %v303, %v308
      %v310 = vsub.s32 0, %v309
      %v311 = vsel %vm301, %v310, %v309
      %vm312 = vcmp.lt.s32.totalorder %v242, 0
      %v313 = vsub.s32 0, %v242
      %v314 = vsel %vm312, %v313, %v242
      %v315 = vmul.u32.u64.compose %v314, 2863311531
      %v316 = vextract.low.u32 %v315
      %v317 = vextract.high.u32 %v315
      %v318 = vshrl.u32 %v317, 4
      %v319 = vmul.u32 %v318, 24
      %v320 = vsub.s32 %v314, %v319
      %v321 = vsub.s32 0, %v320
      %v322 = vsel %vm312, %v321, %v320
      %vm323 = vcmp.lt.s32.totalorder %v243, 0
      %v324 = vsub.s32 0, %v243
      %v325 = vsel %vm323, %v324, %v243
      %v326 = vmul.u32.u64.compose %v325, 2863311531
      %v327 = vextract.low.u32 %v326
      %v328 = vextract.high.u32 %v326
      %v329 = vshrl.u32 %v328, 4
      %v330 = vmul.u32 %v329, 24
      %v331 = vsub.s32 %v325, %v330
      %v332 = vsub.s32 0, %v331
      %v333 = vsel %vm323, %v332, %v331
      %vm334 = vcmp.lt.s32.totalorder %v244, 0
      %v335 = vsub.s32 0, %v244
      %v336 = vsel %vm334, %v335, %v244
      %v337 = vmul.u32.u64.compose %v336, 2863311531
      %v338 = vextract.low.u32 %v337
      %v339 = vextract.high.u32 %v337
      %v340 = vshrl.u32 %v339, 4
      %v341 = vmul.u32 %v340, 24
      %v342 = vsub.s32 %v336, %v341
      %v343 = vsub.s32 0, %v342
      %v344 = vsel %vm334, %v343, %v342
      %vm345 = vcmp.lt.s32.totalorder %v245, 0
      %v346 = vsub.s32 0, %v245
      %v347 = vsel %vm345, %v346, %v245
      %v348 = vmul.u32.u64.compose %v347, 2863311531
      %v349 = vextract.low.u32 %v348
      %v350 = vextract.high.u32 %v348
      %v351 = vshrl.u32 %v350, 4
      %v352 = vmul.u32 %v351, 24
      %v353 = vsub.s32 %v347, %v352
      %v354 = vsub.s32 0, %v353
      %v355 = vsel %vm345, %v354, %v353
      %vm356 = vcmp.lt.s32.totalorder %v246, 0
      %v357 = vsub.s32 0, %v246
      %v358 = vsel %vm356, %v357, %v246
      %v359 = vmul.u32.u64.compose %v358, 2863311531
      %v360 = vextract.low.u32 %v359
      %v361 = vextract.high.u32 %v359
      %v362 = vshrl.u32 %v361, 4
      %v363 = vmul.u32 %v362, 24
      %v364 = vsub.s32 %v358, %v363
      %v365 = vsub.s32 0, %v364
      %v366 = vsel %vm356, %v365, %v364
      %vm367 = vcmp.lt.s32.totalorder %v247, 0
      %v368 = vsub.s32 0, %v247
      %v369 = vsel %vm367, %v368, %v247
      %v370 = vmul.u32.u64.compose %v369, 2863311531
      %v371 = vextract.low.u32 %v370
      %v372 = vextract.high.u32 %v370
      %v373 = vshrl.u32 %v372, 4
      %v374 = vmul.u32 %v373, 24
      %v375 = vsub.s32 %v369, %v374
      %v376 = vsub.s32 0, %v375
      %v377 = vsel %vm367, %v376, %v375
      %vm378 = vcmp.lt.s32.totalorder %v248, 0
      %v379 = vsub.s32 0, %v248
      %v380 = vsel %vm378, %v379, %v248
      %v381 = vmul.u32.u64.compose %v380, 2863311531
      %v382 = vextract.low.u32 %v381
      %v383 = vextract.high.u32 %v381
      %v384 = vshrl.u32 %v383, 4
      %v385 = vmul.u32 %v384, 24
      %v386 = vsub.s32 %v380, %v385
      %v387 = vsub.s32 0, %v386
      %v388 = vsel %vm378, %v387, %v386
      %vm389 = vcmp.lt.s32.totalorder %v249, 0
      %v390 = vsub.s32 0, %v249
      %v391 = vsel %vm389, %v390, %v249
      %v392 = vmul.u32.u64.compose %v391, 2863311531
      %v393 = vextract.low.u32 %v392
      %v394 = vextract.high.u32 %v392
      %v395 = vshrl.u32 %v394, 4
      %v396 = vmul.u32 %v395, 24
      %v397 = vsub.s32 %v391, %v396
      %v398 = vsub.s32 0, %v397
      %v399 = vsel %vm389, %v398, %v397
      %vm400 = vcmp.lt.s32.totalorder %v250, 0
      %v401 = vsub.s32 0, %v250
      %v402 = vsel %vm400, %v401, %v250
      %v403 = vmul.u32.u64.compose %v402, 2863311531
      %v404 = vextract.low.u32 %v403
      %v405 = vextract.high.u32 %v403
      %v406 = vshrl.u32 %v405, 4
      %v407 = vmul.u32 %v406, 24
      %v408 = vsub.s32 %v402, %v407
      %v409 = vsub.s32 0, %v408
      %v410 = vsel %vm400, %v409, %v408
      %vm411 = vcmp.lt.s32.totalorder %v251, 0
      %v412 = vsub.s32 0, %v251
      %v413 = vsel %vm411, %v412, %v251
      %v414 = vmul.u32.u64.compose %v413, 2863311531
      %v415 = vextract.low.u32 %v414
      %v416 = vextract.high.u32 %v414
      %v417 = vshrl.u32 %v416, 4
      %v418 = vmul.u32 %v417, 24
      %v419 = vsub.s32 %v413, %v418
      %v420 = vsub.s32 0, %v419
      %v421 = vsel %vm411, %v420, %v419
      %vm422 = vcmp.lt.s32.totalorder %v252, 0
      %v423 = vsub.s32 0, %v252
      %v424 = vsel %vm422, %v423, %v252
      %v425 = vmul.u32.u64.compose %v424, 2863311531
      %v426 = vextract.low.u32 %v425
      %v427 = vextract.high.u32 %v425
      %v428 = vshrl.u32 %v427, 4
      %v429 = vmul.u32 %v428, 24
      %v430 = vsub.s32 %v424, %v429
      %v431 = vsub.s32 0, %v430
      %v432 = vsel %vm422, %v431, %v430
      %vm433 = vcmp.lt.s32.totalorder %v253, 0
      %v434 = vsub.s32 0, %v253
      %v435 = vsel %vm433, %v434, %v253
      %v436 = vmul.u32.u64.compose %v435, 2863311531
      %v437 = vextract.low.u32 %v436
      %v438 = vextract.high.u32 %v436
      %v439 = vshrl.u32 %v438, 4
      %v440 = vmul.u32 %v439, 24
      %v441 = vsub.s32 %v435, %v440
      %v442 = vsub.s32 0, %v441
      %v443 = vsel %vm433, %v442, %v441
      %vm444 = vcmp.lt.s32.totalorder %v254, 0
      %v445 = vsub.s32 0, %v254
      %v446 = vsel %vm444, %v445, %v254
      %v447 = vmul.u32.u64.compose %v446, 2863311531
      %v448 = vextract.low.u32 %v447
      %v449 = vextract.high.u32 %v447
      %v450 = vshrl.u32 %v449, 4
      %v451 = vmul.u32 %v450, 24
      %v452 = vsub.s32 %v446, %v451
      %v453 = vsub.s32 0, %v452
      %v454 = vsel %vm444, %v453, %v452
      %vm455 = vcmp.lt.s32.totalorder %v255, 0
      %v456 = vsub.s32 0, %v255
      %v457 = vsel %vm455, %v456, %v255
      %v458 = vmul.u32.u64.compose %v457, 2863311531
      %v459 = vextract.low.u32 %v458
      %v460 = vextract.high.u32 %v458
      %v461 = vshrl.u32 %v460, 4
      %v462 = vmul.u32 %v461, 24
      %v463 = vsub.s32 %v457, %v462
      %v464 = vsub.s32 0, %v463
      %v465 = vsel %vm455, %v464, %v463
      %vm466 = vcmp.lt.s32.totalorder %v256, 0
      %v467 = vsub.s32 0, %v256
      %v468 = vsel %vm466, %v467, %v256
      %v469 = vmul.u32.u64.compose %v468, 2863311531
      %v470 = vextract.low.u32 %v469
      %v471 = vextract.high.u32 %v469
      %v472 = vshrl.u32 %v471, 4
      %v473 = vmul.u32 %v472, 24
      %v474 = vsub.s32 %v468, %v473
      %v475 = vsub.s32 0, %v474
      %v476 = vsel %vm466, %v475, %v474
      %vm477 = vcmp.lt.s32.totalorder %v257, 0
      %v478 = vsub.s32 0, %v257
      %v479 = vsel %vm477, %v478, %v257
      %v480 = vmul.u32.u64.compose %v479, 2863311531
      %v481 = vextract.low.u32 %v480
      %v482 = vextract.high.u32 %v480
      %v483 = vshrl.u32 %v482, 4
      %v484 = vmul.u32 %v483, 24
      %v485 = vsub.s32 %v479, %v484
      %v486 = vsub.s32 0, %v485
      %v487 = vsel %vm477, %v486, %v485
      %vm488 = vcmp.lt.s32.totalorder %v258, 0
      %v489 = vsub.s32 0, %v258
      %v490 = vsel %vm488, %v489, %v258
      %v491 = vmul.u32.u64.compose %v490, 2863311531
      %v492 = vextract.low.u32 %v491
      %v493 = vextract.high.u32 %v491
      %v494 = vshrl.u32 %v493, 4
      %v495 = vmul.u32 %v494, 24
      %v496 = vsub.s32 %v490, %v495
      %v497 = vsub.s32 0, %v496
      %v498 = vsel %vm488, %v497, %v496
      %vm499 = vcmp.lt.s32.totalorder %v259, 0
      %v500 = vsub.s32 0, %v259
      %v501 = vsel %vm499, %v500, %v259
      %v502 = vmul.u32.u64.compose %v501, 2863311531
      %v503 = vextract.low.u32 %v502
      %v504 = vextract.high.u32 %v502
      %v505 = vshrl.u32 %v504, 4
      %v506 = vmul.u32 %v505, 24
      %v507 = vsub.s32 %v501, %v506
      %v508 = vsub.s32 0, %v507
      %v509 = vsel %vm499, %v508, %v507
      %vm510 = vcmp.lt.s32.totalorder %v260, 0
      %v511 = vsub.s32 0, %v260
      %v512 = vsel %vm510, %v511, %v260
      %v513 = vmul.u32.u64.compose %v512, 2863311531
      %v514 = vextract.low.u32 %v513
      %v515 = vextract.high.u32 %v513
      %v516 = vshrl.u32 %v515, 4
      %v517 = vmul.u32 %v516, 24
      %v518 = vsub.s32 %v512, %v517
      %v519 = vsub.s32 0, %v518
      %v520 = vsel %vm510, %v519, %v518
      %vm521 = vcmp.lt.s32.totalorder %v261, 0
      %v522 = vsub.s32 0, %v261
      %v523 = vsel %vm521, %v522, %v261
      %v524 = vmul.u32.u64.compose %v523, 2863311531
      %v525 = vextract.low.u32 %v524
      %v526 = vextract.high.u32 %v524
      %v527 = vshrl.u32 %v526, 4
      %v528 = vmul.u32 %v527, 24
      %v529 = vsub.s32 %v523, %v528
      %v530 = vsub.s32 0, %v529
      %v531 = vsel %vm521, %v530, %v529
      %vm532 = vcmp.lt.s32.totalorder %v262, 0
      %v533 = vsub.s32 0, %v262
      %v534 = vsel %vm532, %v533, %v262
      %v535 = vmul.u32.u64.compose %v534, 2863311531
      %v536 = vextract.low.u32 %v535
      %v537 = vextract.high.u32 %v535
      %v538 = vshrl.u32 %v537, 4
      %v539 = vmul.u32 %v538, 24
      %v540 = vsub.s32 %v534, %v539
      %v541 = vsub.s32 0, %v540
      %v542 = vsel %vm532, %v541, %v540
      %vm543 = vcmp.lt.s32.totalorder %v263, 0
      %v544 = vsub.s32 0, %v263
      %v545 = vsel %vm543, %v544, %v263
      %v546 = vmul.u32.u64.compose %v545, 2863311531
      %v547 = vextract.low.u32 %v546
      %v548 = vextract.high.u32 %v546
      %v549 = vshrl.u32 %v548, 4
      %v550 = vmul.u32 %v549, 24
      %v551 = vsub.s32 %v545, %v550
      %v552 = vsub.s32 0, %v551
      %v553 = vsel %vm543, %v552, %v551
      %vm554 = vcmp.lt.s32.totalorder %v264, 0
      %v555 = vsub.s32 0, %v264
      %v556 = vsel %vm554, %v555, %v264
      %v557 = vmul.u32.u64.compose %v556, 2863311531
      %v558 = vextract.low.u32 %v557
      %v559 = vextract.high.u32 %v557
      %v560 = vshrl.u32 %v559, 4
      %v561 = vmul.u32 %v560, 24
      %v562 = vsub.s32 %v556, %v561
      %v563 = vsub.s32 0, %v562
      %v564 = vsel %vm554, %v563, %v562
      %vm565 = vcmp.lt.s32.totalorder %v265, 0
      %v566 = vsub.s32 0, %v265
      %v567 = vsel %vm565, %v566, %v265
      %v568 = vmul.u32.u64.compose %v567, 2863311531
      %v569 = vextract.low.u32 %v568
      %v570 = vextract.high.u32 %v568
      %v571 = vshrl.u32 %v570, 4
      %v572 = vmul.u32 %v571, 24
      %v573 = vsub.s32 %v567, %v572
      %v574 = vsub.s32 0, %v573
      %v575 = vsel %vm565, %v574, %v573
      %vm576 = vcmp.lt.s32.totalorder %v266, 0
      %v577 = vsub.s32 0, %v266
      %v578 = vsel %vm576, %v577, %v266
      %v579 = vmul.u32.u64.compose %v578, 2863311531
      %v580 = vextract.low.u32 %v579
      %v581 = vextract.high.u32 %v579
      %v582 = vshrl.u32 %v581, 4
      %v583 = vmul.u32 %v582, 24
      %v584 = vsub.s32 %v578, %v583
      %v585 = vsub.s32 0, %v584
      %v586 = vsel %vm576, %v585, %v584
      %vm587 = vcmp.lt.s32.totalorder %v267, 0
      %v588 = vsub.s32 0, %v267
      %v589 = vsel %vm587, %v588, %v267
      %v590 = vmul.u32.u64.compose %v589, 2863311531
      %v591 = vextract.low.u32 %v590
      %v592 = vextract.high.u32 %v590
      %v593 = vshrl.u32 %v592, 4
      %v594 = vmul.u32 %v593, 24
      %v595 = vsub.s32 %v589, %v594
      %v596 = vsub.s32 0, %v595
      %v597 = vsel %vm587, %v596, %v595
      %vm598 = vcmp.ne.s32.totalorder %v278, 0
      %vm599 = vcmp.ne.s32.totalorder %v289, 0
      %vm600 = vcmp.ne.s32.totalorder %v300, 0
      %vm601 = vcmp.ne.s32.totalorder %v311, 0
      %vm602 = vcmp.ne.s32.totalorder %v322, 0
      %vm603 = vcmp.ne.s32.totalorder %v333, 0
      %vm604 = vcmp.ne.s32.totalorder %v344, 0
      %vm605 = vcmp.ne.s32.totalorder %v355, 0
      %vm606 = vcmp.ne.s32.totalorder %v366, 0
      %vm607 = vcmp.ne.s32.totalorder %v377, 0
      %vm608 = vcmp.ne.s32.totalorder %v388, 0
      %vm609 = vcmp.ne.s32.totalorder %v399, 0
      %vm610 = vcmp.ne.s32.totalorder %v410, 0
      %vm611 = vcmp.ne.s32.totalorder %v421, 0
      %vm612 = vcmp.ne.s32.totalorder %v432, 0
      %vm613 = vcmp.ne.s32.totalorder %v443, 0
      %vm614 = vcmp.ne.s32.totalorder %v454, 0
      %vm615 = vcmp.ne.s32.totalorder %v465, 0
      %vm616 = vcmp.ne.s32.totalorder %v476, 0
      %vm617 = vcmp.ne.s32.totalorder %v487, 0
      %vm618 = vcmp.ne.s32.totalorder %v498, 0
      %vm619 = vcmp.ne.s32.totalorder %v509, 0
      %vm620 = vcmp.ne.s32.totalorder %v520, 0
      %vm621 = vcmp.ne.s32.totalorder %v531, 0
      %vm622 = vcmp.ne.s32.totalorder %v542, 0
      %vm623 = vcmp.ne.s32.totalorder %v553, 0
      %vm624 = vcmp.ne.s32.totalorder %v564, 0
      %vm625 = vcmp.ne.s32.totalorder %v575, 0
      %vm626 = vcmp.ne.s32.totalorder %v586, 0
      %vm627 = vcmp.ne.s32.totalorder %v597, 0
      %vm628 = vcmp.lt.s32.totalorder %v278, 0
      %vm629 = vcmp.lt.s32.totalorder %v289, 0
      %vm630 = vcmp.lt.s32.totalorder %v300, 0
      %vm631 = vcmp.lt.s32.totalorder %v311, 0
      %vm632 = vcmp.lt.s32.totalorder %v322, 0
      %vm633 = vcmp.lt.s32.totalorder %v333, 0
      %vm634 = vcmp.lt.s32.totalorder %v344, 0
      %vm635 = vcmp.lt.s32.totalorder %v355, 0
      %vm636 = vcmp.lt.s32.totalorder %v366, 0
      %vm637 = vcmp.lt.s32.totalorder %v377, 0
      %vm638 = vcmp.lt.s32.totalorder %v388, 0
      %vm639 = vcmp.lt.s32.totalorder %v399, 0
      %vm640 = vcmp.lt.s32.totalorder %v410, 0
      %vm641 = vcmp.lt.s32.totalorder %v421, 0
      %vm642 = vcmp.lt.s32.totalorder %v432, 0
      %vm643 = vcmp.lt.s32.totalorder %v443, 0
      %vm644 = vcmp.lt.s32.totalorder %v454, 0
      %vm645 = vcmp.lt.s32.totalorder %v465, 0
      %vm646 = vcmp.lt.s32.totalorder %v476, 0
      %vm647 = vcmp.lt.s32.totalorder %v487, 0
      %vm648 = vcmp.lt.s32.totalorder %v498, 0
      %vm649 = vcmp.lt.s32.totalorder %v509, 0
      %vm650 = vcmp.lt.s32.totalorder %v520, 0
      %vm651 = vcmp.lt.s32.totalorder %v531, 0
      %vm652 = vcmp.lt.s32.totalorder %v542, 0
      %vm653 = vcmp.lt.s32.totalorder %v553, 0
      %vm654 = vcmp.lt.s32.totalorder %v564, 0
      %vm655 = vcmp.lt.s32.totalorder %v575, 0
      %vm656 = vcmp.lt.s32.totalorder %v586, 0
      %vm657 = vcmp.lt.s32.totalorder %v597, 0
      %vm658 = vmand %vm628, %vm598
      %vm659 = vmand %vm629, %vm599
      %vm660 = vmand %vm630, %vm600
      %vm661 = vmand %vm631, %vm601
      %vm662 = vmand %vm632, %vm602
      %vm663 = vmand %vm633, %vm603
      %vm664 = vmand %vm634, %vm604
      %vm665 = vmand %vm635, %vm605
      %vm666 = vmand %vm636, %vm606
      %vm667 = vmand %vm637, %vm607
      %vm668 = vmand %vm638, %vm608
      %vm669 = vmand %vm639, %vm609
      %vm670 = vmand %vm640, %vm610
      %vm671 = vmand %vm641, %vm611
      %vm672 = vmand %vm642, %vm612
      %vm673 = vmand %vm643, %vm613
      %vm674 = vmand %vm644, %vm614
      %vm675 = vmand %vm645, %vm615
      %vm676 = vmand %vm646, %vm616
      %vm677 = vmand %vm647, %vm617
      %vm678 = vmand %vm648, %vm618
      %vm679 = vmand %vm649, %vm619
      %vm680 = vmand %vm650, %vm620
      %vm681 = vmand %vm651, %vm621
      %vm682 = vmand %vm652, %vm622
      %vm683 = vmand %vm653, %vm623
      %vm684 = vmand %vm654, %vm624
      %vm685 = vmand %vm655, %vm625
      %vm686 = vmand %vm656, %vm626
      %vm687 = vmand %vm657, %vm627
      %v688 = vadd.s32 %v278, 24
      %v689 = vadd.s32 %v289, 24
      %v690 = vadd.s32 %v300, 24
      %v691 = vadd.s32 %v311, 24
      %v692 = vadd.s32 %v322, 24
      %v693 = vadd.s32 %v333, 24
      %v694 = vadd.s32 %v344, 24
      %v695 = vadd.s32 %v355, 24
      %v696 = vadd.s32 %v366, 24
      %v697 = vadd.s32 %v377, 24
      %v698 = vadd.s32 %v388, 24
      %v699 = vadd.s32 %v399, 24
      %v700 = vadd.s32 %v410, 24
      %v701 = vadd.s32 %v421, 24
      %v702 = vadd.s32 %v432, 24
      %v703 = vadd.s32 %v443, 24
      %v704 = vadd.s32 %v454, 24
      %v705 = vadd.s32 %v465, 24
      %v706 = vadd.s32 %v476, 24
      %v707 = vadd.s32 %v487, 24
      %v708 = vadd.s32 %v498, 24
      %v709 = vadd.s32 %v509, 24
      %v710 = vadd.s32 %v520, 24
      %v711 = vadd.s32 %v531, 24
      %v712 = vadd.s32 %v542, 24
      %v713 = vadd.s32 %v553, 24
      %v714 = vadd.s32 %v564, 24
      %v715 = vadd.s32 %v575, 24
      %v716 = vadd.s32 %v586, 24
      %v717 = vadd.s32 %v597, 24
      %v718 = vsel %vm658, %v688, %v278
      %v719 = vsel %vm659, %v689, %v289
      %v720 = vsel %vm660, %v690, %v300
      %v721 = vsel %vm661, %v691, %v311
      %v722 = vsel %vm662, %v692, %v322
      %v723 = vsel %vm663, %v693, %v333
      %v724 = vsel %vm664, %v694, %v344
      %v725 = vsel %vm665, %v695, %v355
      %v726 = vsel %vm666, %v696, %v366
      %v727 = vsel %vm667, %v697, %v377
      %v728 = vsel %vm668, %v698, %v388
      %v729 = vsel %vm669, %v699, %v399
      %v730 = vsel %vm670, %v700, %v410
      %v731 = vsel %vm671, %v701, %v421
      %v732 = vsel %vm672, %v702, %v432
      %v733 = vsel %vm673, %v703, %v443
      %v734 = vsel %vm674, %v704, %v454
      %v735 = vsel %vm675, %v705, %v465
      %v736 = vsel %vm676, %v706, %v476
      %v737 = vsel %vm677, %v707, %v487
      %v738 = vsel %vm678, %v708, %v498
      %v739 = vsel %vm679, %v709, %v509
      %v740 = vsel %vm680, %v710, %v520
      %v741 = vsel %vm681, %v711, %v531
      %v742 = vsel %vm682, %v712, %v542
      %v743 = vsel %vm683, %v713, %v553
      %v744 = vsel %vm684, %v714, %v564
      %v745 = vsel %vm685, %v715, %v575
      %v746 = vsel %vm686, %v716, %v586
      %v747 = vsel %vm687, %v717, %v597
      %vm748 = vcmp.ge.s32.totalorder %v718, 1
      %vm749 = vcmp.ge.s32.totalorder %v719, 1
      %vm750 = vcmp.ge.s32.totalorder %v720, 1
      %vm751 = vcmp.ge.s32.totalorder %v721, 1
      %vm752 = vcmp.ge.s32.totalorder %v722, 1
      %vm753 = vcmp.ge.s32.totalorder %v723, 1
      %vm754 = vcmp.ge.s32.totalorder %v724, 1
      %vm755 = vcmp.ge.s32.totalorder %v725, 1
      %vm756 = vcmp.ge.s32.totalorder %v726, 1
      %vm757 = vcmp.ge.s32.totalorder %v727, 1
      %vm758 = vcmp.ge.s32.totalorder %v728, 1
      %vm759 = vcmp.ge.s32.totalorder %v729, 1
      %vm760 = vcmp.ge.s32.totalorder %v730, 1
      %vm761 = vcmp.ge.s32.totalorder %v731, 1
      %vm762 = vcmp.ge.s32.totalorder %v732, 1
      %vm763 = vcmp.ge.s32.totalorder %v733, 1
      %vm764 = vcmp.ge.s32.totalorder %v734, 1
      %vm765 = vcmp.ge.s32.totalorder %v735, 1
      %vm766 = vcmp.ge.s32.totalorder %v736, 1
      %vm767 = vcmp.ge.s32.totalorder %v737, 1
      %vm768 = vcmp.ge.s32.totalorder %v738, 1
      %vm769 = vcmp.ge.s32.totalorder %v739, 1
      %vm770 = vcmp.ge.s32.totalorder %v740, 1
      %vm771 = vcmp.ge.s32.totalorder %v741, 1
      %vm772 = vcmp.ge.s32.totalorder %v742, 1
      %vm773 = vcmp.ge.s32.totalorder %v743, 1
      %vm774 = vcmp.ge.s32.totalorder %v744, 1
      %vm775 = vcmp.ge.s32.totalorder %v745, 1
      %vm776 = vcmp.ge.s32.totalorder %v746, 1
      %vm777 = vcmp.ge.s32.totalorder %v747, 1
      %vm778 = vcmp.le.s32.totalorder %v718, 16
      %vm779 = vcmp.le.s32.totalorder %v719, 16
      %vm780 = vcmp.le.s32.totalorder %v720, 16
      %vm781 = vcmp.le.s32.totalorder %v721, 16
      %vm782 = vcmp.le.s32.totalorder %v722, 16
      %vm783 = vcmp.le.s32.totalorder %v723, 16
      %vm784 = vcmp.le.s32.totalorder %v724, 16
      %vm785 = vcmp.le.s32.totalorder %v725, 16
      %vm786 = vcmp.le.s32.totalorder %v726, 16
      %vm787 = vcmp.le.s32.totalorder %v727, 16
      %vm788 = vcmp.le.s32.totalorder %v728, 16
      %vm789 = vcmp.le.s32.totalorder %v729, 16
      %vm790 = vcmp.le.s32.totalorder %v730, 16
      %vm791 = vcmp.le.s32.totalorder %v731, 16
      %vm792 = vcmp.le.s32.totalorder %v732, 16
      %vm793 = vcmp.le.s32.totalorder %v733, 16
      %vm794 = vcmp.le.s32.totalorder %v734, 16
      %vm795 = vcmp.le.s32.totalorder %v735, 16
      %vm796 = vcmp.le.s32.totalorder %v736, 16
      %vm797 = vcmp.le.s32.totalorder %v737, 16
      %vm798 = vcmp.le.s32.totalorder %v738, 16
      %vm799 = vcmp.le.s32.totalorder %v739, 16
      %vm800 = vcmp.le.s32.totalorder %v740, 16
      %vm801 = vcmp.le.s32.totalorder %v741, 16
      %vm802 = vcmp.le.s32.totalorder %v742, 16
      %vm803 = vcmp.le.s32.totalorder %v743, 16
      %vm804 = vcmp.le.s32.totalorder %v744, 16
      %vm805 = vcmp.le.s32.totalorder %v745, 16
      %vm806 = vcmp.le.s32.totalorder %v746, 16
      %vm807 = vcmp.le.s32.totalorder %v747, 16
      %vm808 = vmand %vm748, %vm778
      %vm809 = vmand %vm749, %vm779
      %vm810 = vmand %vm750, %vm780
      %vm811 = vmand %vm751, %vm781
      %vm812 = vmand %vm752, %vm782
      %vm813 = vmand %vm753, %vm783
      %vm814 = vmand %vm754, %vm784
      %vm815 = vmand %vm755, %vm785
      %vm816 = vmand %vm756, %vm786
      %vm817 = vmand %vm757, %vm787
      %vm818 = vmand %vm758, %vm788
      %vm819 = vmand %vm759, %vm789
      %vm820 = vmand %vm760, %vm790
      %vm821 = vmand %vm761, %vm791
      %vm822 = vmand %vm762, %vm792
      %vm823 = vmand %vm763, %vm793
      %vm824 = vmand %vm764, %vm794
      %vm825 = vmand %vm765, %vm795
      %vm826 = vmand %vm766, %vm796
      %vm827 = vmand %vm767, %vm797
      %vm828 = vmand %vm768, %vm798
      %vm829 = vmand %vm769, %vm799
      %vm830 = vmand %vm770, %vm800
      %vm831 = vmand %vm771, %vm801
      %vm832 = vmand %vm772, %vm802
      %vm833 = vmand %vm773, %vm803
      %vm834 = vmand %vm774, %vm804
      %vm835 = vmand %vm775, %vm805
      %vm836 = vmand %vm776, %vm806
      %vm837 = vmand %vm777, %vm807
      %v838 = vld [vmem:[%s2] sm:$0x1]
      loop: start=0, step=1, limit=2
      $region41: #{_double_conv_impl.1} parent=39 // loop_pre_header
        _
      $region42: #{_double_conv_impl.1} parent=39 // loop_header
        %s840 = sphi 0, %s844
        %p841 = scmp.ge.s32.totalorder %s840, 2
      $region43: #{_double_conv_impl.1} parent=39 // loop_header_branch
        %843 = sbr.rel (%p841) target = $region47
      $region44: #{_double_conv_impl.1} parent=39 // loop_body
        %s845 = smul.u32 %s840, 10
        %p846 = scmp.lt.s32.totalorder %s845, 6
        %s847 = scalar_select %p846, %s845, 6
        %s848 = sadd.s32 %s847, 1
        %s849 = smul.u32 %s848, 24
        %s850 = scalar_lea.vmem %s219, %s849
        %v851 = vld [vmem:[%s850] sm:$0xff]
        %v852 = vld [vmem:[%s850 + $0x8] sm:$0xff]
        %v853 = vld [vmem:[%s850 + $0x10] sm:$0xff]
        %v854 = vld [vmem:[%s850 + $0x18] sm:$0xff]
        %v855 = vld [vmem:[%s850 + $0x20] sm:$0xff]
        %v856 = vld [vmem:[%s850 + $0x28] sm:$0xff]
        %v857 = vld [vmem:[%s850 + $0x30] sm:$0xff]
        %v858 = vld [vmem:[%s850 + $0x38] sm:$0xff]
        %v859 = vld [vmem:[%s850 + $0x40] sm:$0xff]
        %v860 = vld [vmem:[%s850 + $0x48] sm:$0xff]
        %v861 = vld [vmem:[%s850 + $0x50] sm:$0xff]
        %v862 = vld [vmem:[%s850 + $0x58] sm:$0xff]
        %v863 = vld [vmem:[%s850 + $0x60] sm:$0xff]
        %v864 = vld [vmem:[%s850 + $0x68] sm:$0xff]
        %v865 = vld [vmem:[%s850 + $0x70] sm:$0xff]
        %v866 = vld [vmem:[%s850 + $0x78] sm:$0xff]
        %v867 = vld [vmem:[%s850 + $0x80] sm:$0xff]
        %v868 = vld [vmem:[%s850 + $0x88] sm:$0xff]
        %v869 = vld [vmem:[%s850 + $0x90] sm:$0xff]
        %v870 = vld [vmem:[%s850 + $0x98] sm:$0xff]
        %v871 = vld [vmem:[%s850 + $0xa0] sm:$0xff]
        %v872 = vld [vmem:[%s850 + $0xa8] sm:$0xff]
        %v873 = vld [vmem:[%s850 + $0xb0] sm:$0xff]
        %v874 = vld [vmem:[%s850 + $0xb8] sm:$0xff]
        %v875 = vld [vmem:[%s850 + $0xc0] sm:$0xff]
        %v876 = vld [vmem:[%s850 + $0xc8] sm:$0xff]
        %v877 = vld [vmem:[%s850 + $0xd0] sm:$0xff]
        %v878 = vld [vmem:[%s850 + $0xd8] sm:$0xff]
        %v879 = vld [vmem:[%s850 + $0xe0] sm:$0xff]
        %v880 = vld [vmem:[%s850 + $0xe8] sm:$0xff]
        %v881 = vld [vmem:[%s1] sm:$0xff]
        %v882 = vld [vmem:[%s1 + $0x8] sm:$0xf]
        %s883 = sadd.s32 %s847, 2
        %s884 = smul.u32 %s883, 24
        %s885 = scalar_lea.vmem %s219, %s884
        %v886 = vld [vmem:[%s885] sm:$0xff]
        %v887 = vld [vmem:[%s885 + $0x8] sm:$0xff]
        %v888 = vld [vmem:[%s885 + $0x10] sm:$0xff]
        %v889 = vld [vmem:[%s885 + $0x18] sm:$0xff]
        %v890 = vld [vmem:[%s885 + $0x20] sm:$0xff]
        %v891 = vld [vmem:[%s885 + $0x28] sm:$0xff]
        %v892 = vld [vmem:[%s885 + $0x30] sm:$0xff]
        %v893 = vld [vmem:[%s885 + $0x38] sm:$0xff]
        %v894 = vld [vmem:[%s885 + $0x40] sm:$0xff]
        %v895 = vld [vmem:[%s885 + $0x48] sm:$0xff]
        %v896 = vld [vmem:[%s885 + $0x50] sm:$0xff]
        %v897 = vld [vmem:[%s885 + $0x58] sm:$0xff]
        %v898 = vld [vmem:[%s885 + $0x60] sm:$0xff]
        %v899 = vld [vmem:[%s885 + $0x68] sm:$0xff]
        %v900 = vld [vmem:[%s885 + $0x70] sm:$0xff]
        %v901 = vld [vmem:[%s885 + $0x78] sm:$0xff]
        %v902 = vld [vmem:[%s885 + $0x80] sm:$0xff]
        %v903 = vld [vmem:[%s885 + $0x88] sm:$0xff]
        %v904 = vld [vmem:[%s885 + $0x90] sm:$0xff]
        %v905 = vld [vmem:[%s885 + $0x98] sm:$0xff]
        %v906 = vld [vmem:[%s885 + $0xa0] sm:$0xff]
        %v907 = vld [vmem:[%s885 + $0xa8] sm:$0xff]
        %v908 = vld [vmem:[%s885 + $0xb0] sm:$0xff]
        %v909 = vld [vmem:[%s885 + $0xb8] sm:$0xff]
        %v910 = vld [vmem:[%s885 + $0xc0] sm:$0xff]
        %v911 = vld [vmem:[%s885 + $0xc8] sm:$0xff]
        %v912 = vld [vmem:[%s885 + $0xd0] sm:$0xff]
        %v913 = vld [vmem:[%s885 + $0xd8] sm:$0xff]
        %v914 = vld [vmem:[%s885 + $0xe0] sm:$0xff]
        %v915 = vld [vmem:[%s885 + $0xe8] sm:$0xff]
        %s916 = scalar_lea.vmem %s1, 16
        %v917 = vld [vmem:[%s916] sm:$0xff]
        %v918 = vld [vmem:[%s916 + $0x8] sm:$0xf]
        %vm919 = vcmask 97280
        %v921 = vsel %vm919, %v886, 0
        %v924 = vsel %vm919, %v887, 0
        %v927 = vsel %vm919, %v888, 0
        %v930 = vsel %vm919, %v889, 0
        %v933 = vsel %vm919, %v890, 0
        %v936 = vsel %vm919, %v891, 0
        %v939 = vsel %vm919, %v892, 0
        %v942 = vsel %vm919, %v893, 0
        %v945 = vsel %vm919, %v894, 0
        %v948 = vsel %vm919, %v895, 0
        %v951 = vsel %vm919, %v896, 0
        %v954 = vsel %vm919, %v897, 0
        %v957 = vsel %vm919, %v898, 0
        %v960 = vsel %vm919, %v899, 0
        %v963 = vsel %vm919, %v900, 0
        %v966 = vsel %vm919, %v901, 0
        %v969 = vsel %vm919, %v902, 0
        %v972 = vsel %vm919, %v903, 0
        %v975 = vsel %vm919, %v904, 0
        %v978 = vsel %vm919, %v905, 0
        %v981 = vsel %vm919, %v906, 0
        %v984 = vsel %vm919, %v907, 0
        %v987 = vsel %vm919, %v908, 0
        %v990 = vsel %vm919, %v909, 0
        %v993 = vsel %vm919, %v910, 0
        %v996 = vsel %vm919, %v911, 0
        %v999 = vsel %vm919, %v912, 0
        %v1002 = vsel %vm919, %v913, 0
        %v1005 = vsel %vm919, %v914, 0
        %v1008 = vsel %vm919, %v915, 0
        %vm1010 = vcmask 1043456
        %v1012 = vsel %vm1010, %v918, 0
        %1014 = vmatprep.subr.mxu0 0.0
        %1015 = vmatpush1.msra.mxu0 %v917
        %1016 = vmatprep.subr.mxu0 0.0
        %1017 = vmatpush1.msra.mxu0 %v1012
        %1018 = vmatprep.subr.mxu0 0.0
        %1019 = vmatpush1.msra.mxu0 0.0
        %1020 = vmatprep.subr.mxu0 0.0
        %1021 = vmatpush1.msra.mxu0 0.0
        %1022 = vmatprep.subr.mxu0 0.0
        %1023 = vmatpush1.msra.mxu0 0.0
        %1024 = vmatprep.subr.mxu0 0.0
        %1025 = vmatpush1.msra.mxu0 0.0
        %1026 = vmatprep.subr.mxu0 0.0
        %1027 = vmatpush1.msra.mxu0 0.0
        %1028 = vmatprep.subr.mxu0 0.0
        %1029 = vmatpush1.msra.mxu0 0.0
        %1030 = vmatprep.subr.mxu0 0.0
        %1031 = vmatpush1.msra.mxu0 0.0
        %1032 = vmatprep.subr.mxu0 0.0
        %1033 = vmatpush1.msra.mxu0 0.0
        %1034 = vmatprep.subr.mxu0 0.0
        %1035 = vmatpush1.msra.mxu0 0.0
        %1036 = vmatprep.subr.mxu0 0.0
        %1037 = vmatpush1.msra.mxu0 0.0
        %1038 = vmatprep.subr.mxu0 0.0
        %1039 = vmatpush1.msra.mxu0 0.0
        %1040 = vmatprep.subr.mxu0 0.0
        %1041 = vmatpush1.msra.mxu0 0.0
        %1042 = vmatprep.subr.mxu0 0.0
        %1043 = vmatpush1.msra.mxu0 0.0
        %1044 = vmatprep.subr.mxu0 0.0
        %1045 = vmatpush1.msra.mxu0 0.0
        %1046 = vmatprep.subr.mxu0 0.0
        %1047 = vmatpush1.msra.mxu0 0.0
        %1048 = vmatprep.subr.mxu0 0.0
        %1049 = vmatpush1.msra.mxu0 0.0
        %1050 = vmatprep.subr.mxu0 0.0
        %1051 = vmatpush1.msra.mxu0 0.0
        %1052 = vmatprep.subr.mxu0 0.0
        %1053 = vmatpush1.msra.mxu0 0.0
        %1054 = vmatprep.subr.mxu0 0.0
        %1055 = vmatpush1.msra.mxu0 0.0
        %1056 = vmatprep.subr.mxu0 0.0
        %1057 = vmatpush1.msra.mxu0 0.0
        %1058 = vmatprep.subr.mxu0 0.0
        %1059 = vmatpush1.msra.mxu0 0.0
        %1060 = vmatprep.subr.mxu0 0.0
        %1061 = vmatpush1.msra.mxu0 0.0
        %1062 = vmatprep.subr.mxu0 0.0
        %1063 = vmatpush1.msra.mxu0 0.0
        %1064 = vmatprep.subr.mxu0 0.0
        %1065 = vmatpush1.msra.mxu0 0.0
        %1066 = vmatprep.subr.mxu0 0.0
        %1067 = vmatpush1.msra.mxu0 0.0
        %1068 = vmatprep.subr.mxu0 0.0
        %1069 = vmatpush1.msra.mxu0 0.0
        %1070 = vmatprep.subr.mxu0 0.0
        %1071 = vmatpush1.msra.mxu0 0.0
        %1072 = vmatprep.subr.mxu0 0.0
        %1073 = vmatpush1.msra.mxu0 0.0
        %1074 = vmatprep.subr.mxu0 0.0
        %1075 = vmatpush1.msra.mxu0 0.0
        %1076 = vmatprep.subr.mxu0 0.0
        %1077 = vmatpush1.msra.mxu0 0.0
        %1078 = vmatprep.mubr.f32.mxu0 0.0
        %1079 = vmatmul.mubr.f32.gmra.mrb[0].mxu0 %v921
        %v1080 = vpop.f32.mrb[0].mxu0
        %v1081 = vadd.f32 0.0, %v1080
        %v1082 = vpop.f32.mrb[0].mxu0
        %1083 = vmatprep.mubr.f32.mxu0 0.0
        %1084 = vmatmul.mubr.f32.gmra.mrb[0].mxu0 %v924
        %v1085 = vpop.f32.mrb[0].mxu0
        %v1086 = vadd.f32 0.0, %v1085
        %v1087 = vpop.f32.mrb[0].mxu0
        %1088 = vmatprep.mubr.f32.mxu0 0.0
        %1089 = vmatmul.mubr.f32.gmra.mrb[0].mxu0 %v927
        %v1090 = vpop.f32.mrb[0].mxu0
        %v1091 = vadd.f32 0.0, %v1090
        %v1092 = vpop.f32.mrb[0].mxu0
        %1093 = vmatprep.mubr.f32.mxu0 0.0
        %1094 = vmatmul.mubr.f32.gmra.mrb[0].mxu0 %v930
        %v1095 = vpop.f32.mrb[0].mxu0
        %v1096 = vadd.f32 0.0, %v1095
        %v1097 = vpop.f32.mrb[0].mxu0
        %1098 = vmatprep.mubr.f32.mxu0 0.0
        %1099 = vmatmul.mubr.f32.gmra.mrb[0].mxu0 %v933
        %v1100 = vpop.f32.mrb[0].mxu0
        %v1101 = vadd.f32 0.0, %v1100
        %v1102 = vpop.f32.mrb[0].mxu0
        %1103 = vmatprep.mubr.f32.mxu0 0.0
        %1104 = vmatmul.mubr.f32.gmra.mrb[0].mxu0 %v936
        %v1105 = vpop.f32.mrb[0].mxu0
        %v1106 = vadd.f32 0.0, %v1105
        %v1107 = vpop.f32.mrb[0].mxu0
        %1108 = vmatprep.mubr.f32.mxu0 0.0
        %1109 = vmatmul.mubr.f32.gmra.mrb[0].mxu0 %v939
        %v1110 = vpop.f32.mrb[0].mxu0
        %v1111 = vadd.f32 0.0, %v1110
        %v1112 = vpop.f32.mrb[0].mxu0
        %1113 = vmatprep.mubr.f32.mxu0 0.0
        %1114 = vmatmul.mubr.f32.gmra.mrb[0].mxu0 %v942
        %v1115 = vpop.f32.mrb[0].mxu0
        %v1116 = vadd.f32 0.0, %v1115
        %v1117 = vpop.f32.mrb[0].mxu0
        %1118 = vmatprep.mubr.f32.mxu0 0.0
        %1119 = vmatmul.mubr.f32.gmra.mrb[0].mxu0 %v945
        %v1120 = vpop.f32.mrb[0].mxu0
        %v1121 = vadd.f32 0.0, %v1120
        %v1122 = vpop.f32.mrb[0].mxu0
        %1123 = vmatprep.mubr.f32.mxu0 0.0
        %1124 = vmatmul.mubr.f32.gmra.mrb[0].mxu0 %v948
        %v1125 = vpop.f32.mrb[0].mxu0
        %v1126 = vadd.f32 0.0, %v1125
        %v1127 = vpop.f32.mrb[0].mxu0
        %1128 = vmatprep.mubr.f32.mxu0 0.0
        %1129 = vmatmul.mubr.f32.gmra.mrb[0].mxu0 %v951
        %v1130 = vpop.f32.mrb[0].mxu0
        %v1131 = vadd.f32 0.0, %v1130
        %v1132 = vpop.f32.mrb[0].mxu0
        %1133 = vmatprep.mubr.f32.mxu0 0.0
        %1134 = vmatmul.mubr.f32.gmra.mrb[0].mxu0 %v954
        %v1135 = vpop.f32.mrb[0].mxu0
        %v1136 = vadd.f32 0.0, %v1135
        %v1137 = vpop.f32.mrb[0].mxu0
        %1138 = vmatprep.mubr.f32.mxu0 0.0
        %1139 = vmatmul.mubr.f32.gmra.mrb[0].mxu0 %v957
        %v1140 = vpop.f32.mrb[0].mxu0
        %v1141 = vadd.f32 0.0, %v1140
        %v1142 = vpop.f32.mrb[0].mxu0
        %1143 = vmatprep.mubr.f32.mxu0 0.0
        %1144 = vmatmul.mubr.f32.gmra.mrb[0].mxu0 %v960
        %v1145 = vpop.f32.mrb[0].mxu0
        %v1146 = vadd.f32 0.0, %v1145
        %v1147 = vpop.f32.mrb[0].mxu0
        %1148 = vmatprep.mubr.f32.mxu0 0.0
        %1149 = vmatmul.mubr.f32.gmra.mrb[0].mxu0 %v963
        %v1150 = vpop.f32.mrb[0].mxu0
        %v1151 = vadd.f32 0.0, %v1150
        %v1152 = vpop.f32.mrb[0].mxu0
        %1153 = vmatprep.mubr.f32.mxu0 0.0
        %1154 = vmatmul.mubr.f32.gmra.mrb[0].mxu0 %v966
        %v1155 = vpop.f32.mrb[0].mxu0
        %v1156 = vadd.f32 0.0, %v1155
        %v1157 = vpop.f32.mrb[0].mxu0
        %1158 = vmatprep.mubr.f32.mxu0 0.0
        %1159 = vmatmul.mubr.f32.gmra.mrb[0].mxu0 %v969
        %v1160 = vpop.f32.mrb[0].mxu0
        %v1161 = vadd.f32 0.0, %v1160
        %v1162 = vpop.f32.mrb[0].mxu0
        %1163 = vmatprep.mubr.f32.mxu0 0.0
        %1164 = vmatmul.mubr.f32.gmra.mrb[0].mxu0 %v972
        %v1165 = vpop.f32.mrb[0].mxu0
        %v1166 = vadd.f32 0.0, %v1165
        %v1167 = vpop.f32.mrb[0].mxu0
        %1168 = vmatprep.mubr.f32.mxu0 0.0
        %1169 = vmatmul.mubr.f32.gmra.mrb[0].mxu0 %v975
        %v1170 = vpop.f32.mrb[0].mxu0
        %v1171 = vadd.f32 0.0, %v1170
        %v1172 = vpop.f32.mrb[0].mxu0
        %1173 = vmatprep.mubr.f32.mxu0 0.0
        %1174 = vmatmul.mubr.f32.gmra.mrb[0].mxu0 %v978
        %v1175 = vpop.f32.mrb[0].mxu0
        %v1176 = vadd.f32 0.0, %v1175
        %v1177 = vpop.f32.mrb[0].mxu0
        %1178 = vmatprep.mubr.f32.mxu0 0.0
        %1179 = vmatmul.mubr.f32.gmra.mrb[0].mxu0 %v981
        %v1180 = vpop.f32.mrb[0].mxu0
        %v1181 = vadd.f32 0.0, %v1180
        %v1182 = vpop.f32.mrb[0].mxu0
        %1183 = vmatprep.mubr.f32.mxu0 0.0
        %1184 = vmatmul.mubr.f32.gmra.mrb[0].mxu0 %v984
        %v1185 = vpop.f32.mrb[0].mxu0
        %v1186 = vadd.f32 0.0, %v1185
        %v1187 = vpop.f32.mrb[0].mxu0
        %1188 = vmatprep.mubr.f32.mxu0 0.0
        %1189 = vmatmul.mubr.f32.gmra.mrb[0].mxu0 %v987
        %v1190 = vpop.f32.mrb[0].mxu0
        %v1191 = vadd.f32 0.0, %v1190
        %v1192 = vpop.f32.mrb[0].mxu0
        %1193 = vmatprep.mubr.f32.mxu0 0.0
        %1194 = vmatmul.mubr.f32.gmra.mrb[0].mxu0 %v990
        %v1195 = vpop.f32.mrb[0].mxu0
        %v1196 = vadd.f32 0.0, %v1195
        %v1197 = vpop.f32.mrb[0].mxu0
        %1198 = vmatprep.mubr.f32.mxu0 0.0
        %1199 = vmatmul.mubr.f32.gmra.mrb[0].mxu0 %v993
        %v1200 = vpop.f32.mrb[0].mxu0
        %v1201 = vadd.f32 0.0, %v1200
        %v1202 = vpop.f32.mrb[0].mxu0
        %1203 = vmatprep.mubr.f32.mxu0 0.0
        %1204 = vmatmul.mubr.f32.gmra.mrb[0].mxu0 %v996
        %v1205 = vpop.f32.mrb[0].mxu0
        %v1206 = vadd.f32 0.0, %v1205
        %v1207 = vpop.f32.mrb[0].mxu0
        %1208 = vmatprep.mubr.f32.mxu0 0.0
        %1209 = vmatmul.mubr.f32.gmra.mrb[0].mxu0 %v999
        %v1210 = vpop.f32.mrb[0].mxu0
        %v1211 = vadd.f32 0.0, %v1210
        %v1212 = vpop.f32.mrb[0].mxu0
        %1213 = vmatprep.mubr.f32.mxu0 0.0
        %1214 = vmatmul.mubr.f32.gmra.mrb[0].mxu0 %v1002
        %v1215 = vpop.f32.mrb[0].mxu0
        %v1216 = vadd.f32 0.0, %v1215
        %v1217 = vpop.f32.mrb[0].mxu0
        %1218 = vmatprep.mubr.f32.mxu0 0.0
        %1219 = vmatmul.mubr.f32.gmra.mrb[0].mxu0 %v1005
        %v1220 = vpop.f32.mrb[0].mxu0
        %v1221 = vadd.f32 0.0, %v1220
        %v1222 = vpop.f32.mrb[0].mxu0
        %1223 = vmatprep.mubr.f32.mxu0 0.0
        %1224 = vmatmul.mubr.f32.gmra.mrb[0].mxu0 %v1008
        %v1225 = vpop.f32.mrb[0].mxu0
        %v1226 = vadd.f32 0.0, %v1225
        %v1227 = vpop.f32.mrb[0].mxu0
        %1228 = vdwg.mxu0
        %v1230 = vsel %vm919, %v851, 0
        %v1233 = vsel %vm919, %v852, 0
        %v1236 = vsel %vm919, %v853, 0
        %v1239 = vsel %vm919, %v854, 0
        %v1242 = vsel %vm919, %v855, 0
        %v1245 = vsel %vm919, %v856, 0
        %v1248 = vsel %vm919, %v857, 0
        %v1251 = vsel %vm919, %v858, 0
        %v1254 = vsel %vm919, %v859, 0
        %v1257 = vsel %vm919, %v860, 0
        %v1260 = vsel %vm919, %v861, 0
        %v1263 = vsel %vm919, %v862, 0
        %v1266 = vsel %vm919, %v863, 0
        %v1269 = vsel %vm919, %v864, 0
        %v1272 = vsel %vm919, %v865, 0
        %v1275 = vsel %vm919, %v866, 0
        %v1278 = vsel %vm919, %v867, 0
        %v1281 = vsel %vm919, %v868, 0
        %v1284 = vsel %vm919, %v869, 0
        %v1287 = vsel %vm919, %v870, 0
        %v1290 = vsel %vm919, %v871, 0
        %v1293 = vsel %vm919, %v872, 0
        %v1296 = vsel %vm919, %v873, 0
        %v1299 = vsel %vm919, %v874, 0
        %v1302 = vsel %vm919, %v875, 0
        %v1305 = vsel %vm919, %v876, 0
        %v1308 = vsel %vm919, %v877, 0
        %v1311 = vsel %vm919, %v878, 0
        %v1314 = vsel %vm919, %v879, 0
        %v1317 = vsel %vm919, %v880, 0
        %v1320 = vsel %vm1010, %v882, 0
        %1322 = vmatprep.subr.mxu0 0.0
        %1323 = vmatpush1.msra.mxu0 %v881
        %1324 = vmatprep.subr.mxu0 0.0
        %1325 = vmatpush1.msra.mxu0 %v1320
        %1326 = vmatprep.subr.mxu0 0.0
        %1327 = vmatpush1.msra.mxu0 0.0
        %1328 = vmatprep.subr.mxu0 0.0
        %1329 = vmatpush1.msra.mxu0 0.0
        %1330 = vmatprep.subr.mxu0 0.0
        %1331 = vmatpush1.msra.mxu0 0.0
        %1332 = vmatprep.subr.mxu0 0.0
        %1333 = vmatpush1.msra.mxu0 0.0
        %1334 = vmatprep.subr.mxu0 0.0
        %1335 = vmatpush1.msra.mxu0 0.0
        %1336 = vmatprep.subr.mxu0 0.0
        %1337 = vmatpush1.msra.mxu0 0.0
        %1338 = vmatprep.subr.mxu0 0.0
        %1339 = vmatpush1.msra.mxu0 0.0
        %1340 = vmatprep.subr.mxu0 0.0
        %1341 = vmatpush1.msra.mxu0 0.0
        %1342 = vmatprep.subr.mxu0 0.0
        %1343 = vmatpush1.msra.mxu0 0.0
        %1344 = vmatprep.subr.mxu0 0.0
        %1345 = vmatpush1.msra.mxu0 0.0
        %1346 = vmatprep.subr.mxu0 0.0
        %1347 = vmatpush1.msra.mxu0 0.0
        %1348 = vmatprep.subr.mxu0 0.0
        %1349 = vmatpush1.msra.mxu0 0.0
        %1350 = vmatprep.subr.mxu0 0.0
        %1351 = vmatpush1.msra.mxu0 0.0
        %1352 = vmatprep.subr.mxu0 0.0
        %1353 = vmatpush1.msra.mxu0 0.0
        %1354 = vmatprep.subr.mxu0 0.0
        %1355 = vmatpush1.msra.mxu0 0.0
        %1356 = vmatprep.subr.mxu0 0.0
        %1357 = vmatpush1.msra.mxu0 0.0
        %1358 = vmatprep.subr.mxu0 0.0
        %1359 = vmatpush1.msra.mxu0 0.0
        %1360 = vmatprep.subr.mxu0 0.0
        %1361 = vmatpush1.msra.mxu0 0.0
        %1362 = vmatprep.subr.mxu0 0.0
        %1363 = vmatpush1.msra.mxu0 0.0
        %1364 = vmatprep.subr.mxu0 0.0
        %1365 = vmatpush1.msra.mxu0 0.0
        %1366 = vmatprep.subr.mxu0 0.0
        %1367 = vmatpush1.msra.mxu0 0.0
        %1368 = vmatprep.subr.mxu0 0.0
        %1369 = vmatpush1.msra.mxu0 0.0
        %1370 = vmatprep.subr.mxu0 0.0
        %1371 = vmatpush1.msra.mxu0 0.0
        %1372 = vmatprep.subr.mxu0 0.0
        %1373 = vmatpush1.msra.mxu0 0.0
        %1374 = vmatprep.subr.mxu0 0.0
        %1375 = vmatpush1.msra.mxu0 0.0
        %1376 = vmatprep.subr.mxu0 0.0
        %1377 = vmatpush1.msra.mxu0 0.0
        %1378 = vmatprep.subr.mxu0 0.0
        %1379 = vmatpush1.msra.mxu0 0.0
        %1380 = vmatprep.subr.mxu0 0.0
        %1381 = vmatpush1.msra.mxu0 0.0
        %1382 = vmatprep.subr.mxu0 0.0
        %1383 = vmatpush1.msra.mxu0 0.0
        %1384 = vmatprep.subr.mxu0 0.0
        %1385 = vmatpush1.msra.mxu0 0.0
        %1386 = vmatprep.mubr.f32.mxu0 0.0
        %1387 = vmatmul.mubr.f32.gmra.mrb[0].mxu0 %v1230
        %v1388 = vpop.f32.mrb[0].mxu0
        %v1389 = vadd.f32 %v1081, %v1388
        %v1390 = vpop.f32.mrb[0].mxu0
        %1391 = vmatprep.mubr.f32.mxu0 0.0
        %1392 = vmatmul.mubr.f32.gmra.mrb[0].mxu0 %v1233
        %v1393 = vpop.f32.mrb[0].mxu0
        %v1394 = vadd.f32 %v1086, %v1393
        %v1395 = vpop.f32.mrb[0].mxu0
        %1396 = vmatprep.mubr.f32.mxu0 0.0
        %1397 = vmatmul.mubr.f32.gmra.mrb[0].mxu0 %v1236
        %v1398 = vpop.f32.mrb[0].mxu0
        %v1399 = vadd.f32 %v1091, %v1398
        %v1400 = vpop.f32.mrb[0].mxu0
        %1401 = vmatprep.mubr.f32.mxu0 0.0
        %1402 = vmatmul.mubr.f32.gmra.mrb[0].mxu0 %v1239
        %v1403 = vpop.f32.mrb[0].mxu0
        %v1404 = vadd.f32 %v1096, %v1403
        %v1405 = vpop.f32.mrb[0].mxu0
        %1406 = vmatprep.mubr.f32.mxu0 0.0
        %1407 = vmatmul.mubr.f32.gmra.mrb[0].mxu0 %v1242
        %v1408 = vpop.f32.mrb[0].mxu0
        %v1409 = vadd.f32 %v1101, %v1408
        %v1410 = vpop.f32.mrb[0].mxu0
        %1411 = vmatprep.mubr.f32.mxu0 0.0
        %1412 = vmatmul.mubr.f32.gmra.mrb[0].mxu0 %v1245
        %v1413 = vpop.f32.mrb[0].mxu0
        %v1414 = vadd.f32 %v1106, %v1413
        %v1415 = vpop.f32.mrb[0].mxu0
        %1416 = vmatprep.mubr.f32.mxu0 0.0
        %1417 = vmatmul.mubr.f32.gmra.mrb[0].mxu0 %v1248
        %v1418 = vpop.f32.mrb[0].mxu0
        %v1419 = vadd.f32 %v1111, %v1418
        %v1420 = vpop.f32.mrb[0].mxu0
        %1421 = vmatprep.mubr.f32.mxu0 0.0
        %1422 = vmatmul.mubr.f32.gmra.mrb[0].mxu0 %v1251
        %v1423 = vpop.f32.mrb[0].mxu0
        %v1424 = vadd.f32 %v1116, %v1423
        %v1425 = vpop.f32.mrb[0].mxu0
        %1426 = vmatprep.mubr.f32.mxu0 0.0
        %1427 = vmatmul.mubr.f32.gmra.mrb[0].mxu0 %v1254
        %v1428 = vpop.f32.mrb[0].mxu0
        %v1429 = vadd.f32 %v1121, %v1428
        %v1430 = vpop.f32.mrb[0].mxu0
        %1431 = vmatprep.mubr.f32.mxu0 0.0
        %1432 = vmatmul.mubr.f32.gmra.mrb[0].mxu0 %v1257
        %v1433 = vpop.f32.mrb[0].mxu0
        %v1434 = vadd.f32 %v1126, %v1433
        %v1435 = vpop.f32.mrb[0].mxu0
        %1436 = vmatprep.mubr.f32.mxu0 0.0
        %1437 = vmatmul.mubr.f32.gmra.mrb[0].mxu0 %v1260
        %v1438 = vpop.f32.mrb[0].mxu0
        %v1439 = vadd.f32 %v1131, %v1438
        %v1440 = vpop.f32.mrb[0].mxu0
        %1441 = vmatprep.mubr.f32.mxu0 0.0
        %1442 = vmatmul.mubr.f32.gmra.mrb[0].mxu0 %v1263
        %v1443 = vpop.f32.mrb[0].mxu0
        %v1444 = vadd.f32 %v1136, %v1443
        %v1445 = vpop.f32.mrb[0].mxu0
        %1446 = vmatprep.mubr.f32.mxu0 0.0
        %1447 = vmatmul.mubr.f32.gmra.mrb[0].mxu0 %v1266
        %v1448 = vpop.f32.mrb[0].mxu0
        %v1449 = vadd.f32 %v1141, %v1448
        %v1450 = vpop.f32.mrb[0].mxu0
        %1451 = vmatprep.mubr.f32.mxu0 0.0
        %1452 = vmatmul.mubr.f32.gmra.mrb[0].mxu0 %v1269
        %v1453 = vpop.f32.mrb[0].mxu0
        %v1454 = vadd.f32 %v1146, %v1453
        %v1455 = vpop.f32.mrb[0].mxu0
        %1456 = vmatprep.mubr.f32.mxu0 0.0
        %1457 = vmatmul.mubr.f32.gmra.mrb[0].mxu0 %v1272
        %v1458 = vpop.f32.mrb[0].mxu0
        %v1459 = vadd.f32 %v1151, %v1458
        %v1460 = vpop.f32.mrb[0].mxu0
        %1461 = vmatprep.mubr.f32.mxu0 0.0
        %1462 = vmatmul.mubr.f32.gmra.mrb[0].mxu0 %v1275
        %v1463 = vpop.f32.mrb[0].mxu0
        %v1464 = vadd.f32 %v1156, %v1463
        %v1465 = vpop.f32.mrb[0].mxu0
        %1466 = vmatprep.mubr.f32.mxu0 0.0
        %1467 = vmatmul.mubr.f32.gmra.mrb[0].mxu0 %v1278
        %v1468 = vpop.f32.mrb[0].mxu0
        %v1469 = vadd.f32 %v1161, %v1468
        %v1470 = vpop.f32.mrb[0].mxu0
        %1471 = vmatprep.mubr.f32.mxu0 0.0
        %1472 = vmatmul.mubr.f32.gmra.mrb[0].mxu0 %v1281
        %v1473 = vpop.f32.mrb[0].mxu0
        %v1474 = vadd.f32 %v1166, %v1473
        %v1475 = vpop.f32.mrb[0].mxu0
        %1476 = vmatprep.mubr.f32.mxu0 0.0
        %1477 = vmatmul.mubr.f32.gmra.mrb[0].mxu0 %v1284
        %v1478 = vpop.f32.mrb[0].mxu0
        %v1479 = vadd.f32 %v1171, %v1478
        %v1480 = vpop.f32.mrb[0].mxu0
        %1481 = vmatprep.mubr.f32.mxu0 0.0
        %1482 = vmatmul.mubr.f32.gmra.mrb[0].mxu0 %v1287
        %v1483 = vpop.f32.mrb[0].mxu0
        %v1484 = vadd.f32 %v1176, %v1483
        %v1485 = vpop.f32.mrb[0].mxu0
        %1486 = vmatprep.mubr.f32.mxu0 0.0
        %1487 = vmatmul.mubr.f32.gmra.mrb[0].mxu0 %v1290
        %v1488 = vpop.f32.mrb[0].mxu0
        %v1489 = vadd.f32 %v1181, %v1488
        %v1490 = vpop.f32.mrb[0].mxu0
        %1491 = vmatprep.mubr.f32.mxu0 0.0
        %1492 = vmatmul.mubr.f32.gmra.mrb[0].mxu0 %v1293
        %v1493 = vpop.f32.mrb[0].mxu0
        %v1494 = vadd.f32 %v1186, %v1493
        %v1495 = vpop.f32.mrb[0].mxu0
        %1496 = vmatprep.mubr.f32.mxu0 0.0
        %1497 = vmatmul.mubr.f32.gmra.mrb[0].mxu0 %v1296
        %v1498 = vpop.f32.mrb[0].mxu0
        %v1499 = vadd.f32 %v1191, %v1498
        %v1500 = vpop.f32.mrb[0].mxu0
        %1501 = vmatprep.mubr.f32.mxu0 0.0
        %1502 = vmatmul.mubr.f32.gmra.mrb[0].mxu0 %v1299
        %v1503 = vpop.f32.mrb[0].mxu0
        %v1504 = vadd.f32 %v1196, %v1503
        %v1505 = vpop.f32.mrb[0].mxu0
        %1506 = vmatprep.mubr.f32.mxu0 0.0
        %1507 = vmatmul.mubr.f32.gmra.mrb[0].mxu0 %v1302
        %v1508 = vpop.f32.mrb[0].mxu0
        %v1509 = vadd.f32 %v1201, %v1508
        %v1510 = vpop.f32.mrb[0].mxu0
        %1511 = vmatprep.mubr.f32.mxu0 0.0
        %1512 = vmatmul.mubr.f32.gmra.mrb[0].mxu0 %v1305
        %v1513 = vpop.f32.mrb[0].mxu0
        %v1514 = vadd.f32 %v1206, %v1513
        %v1515 = vpop.f32.mrb[0].mxu0
        %1516 = vmatprep.mubr.f32.mxu0 0.0
        %1517 = vmatmul.mubr.f32.gmra.mrb[0].mxu0 %v1308
        %v1518 = vpop.f32.mrb[0].mxu0
        %v1519 = vadd.f32 %v1211, %v1518
        %v1520 = vpop.f32.mrb[0].mxu0
        %1521 = vmatprep.mubr.f32.mxu0 0.0
        %1522 = vmatmul.mubr.f32.gmra.mrb[0].mxu0 %v1311
        %v1523 = vpop.f32.mrb[0].mxu0
        %v1524 = vadd.f32 %v1216, %v1523
        %v1525 = vpop.f32.mrb[0].mxu0
        %1526 = vmatprep.mubr.f32.mxu0 0.0
        %1527 = vmatmul.mubr.f32.gmra.mrb[0].mxu0 %v1314
        %v1528 = vpop.f32.mrb[0].mxu0
        %v1529 = vadd.f32 %v1221, %v1528
        %v1530 = vpop.f32.mrb[0].mxu0
        %1531 = vmatprep.mubr.f32.mxu0 0.0
        %1532 = vmatmul.mubr.f32.gmra.mrb[0].mxu0 %v1317
        %v1533 = vpop.f32.mrb[0].mxu0
        %v1534 = vadd.f32 %v1226, %v1533
        %v1535 = vpop.f32.mrb[0].mxu0
        %1536 = vdwg.mxu0
        %s1537 = sadd.s32 %s847, 3
        %s1538 = smul.u32 %s1537, 24
        %s1539 = scalar_lea.vmem %s219, %s1538
        %v1540 = vld [vmem:[%s1539] sm:$0xff]
        %v1541 = vld [vmem:[%s1539 + $0x8] sm:$0xff]
        %v1542 = vld [vmem:[%s1539 + $0x10] sm:$0xff]
        %v1543 = vld [vmem:[%s1539 + $0x18] sm:$0xff]
        %v1544 = vld [vmem:[%s1539 + $0x20] sm:$0xff]
        %v1545 = vld [vmem:[%s1539 + $0x28] sm:$0xff]
        %v1546 = vld [vmem:[%s1539 + $0x30] sm:$0xff]
        %v1547 = vld [vmem:[%s1539 + $0x38] sm:$0xff]
        %v1548 = vld [vmem:[%s1539 + $0x40] sm:$0xff]
        %v1549 = vld [vmem:[%s1539 + $0x48] sm:$0xff]
        %v1550 = vld [vmem:[%s1539 + $0x50] sm:$0xff]
        %v1551 = vld [vmem:[%s1539 + $0x58] sm:$0xff]
        %v1552 = vld [vmem:[%s1539 + $0x60] sm:$0xff]
        %v1553 = vld [vmem:[%s1539 + $0x68] sm:$0xff]
        %v1554 = vld [vmem:[%s1539 + $0x70] sm:$0xff]
        %v1555 = vld [vmem:[%s1539 + $0x78] sm:$0xff]
        %v1556 = vld [vmem:[%s1539 + $0x80] sm:$0xff]
        %v1557 = vld [vmem:[%s1539 + $0x88] sm:$0xff]
        %v1558 = vld [vmem:[%s1539 + $0x90] sm:$0xff]
        %v1559 = vld [vmem:[%s1539 + $0x98] sm:$0xff]
        %v1560 = vld [vmem:[%s1539 + $0xa0] sm:$0xff]
        %v1561 = vld [vmem:[%s1539 + $0xa8] sm:$0xff]
        %v1562 = vld [vmem:[%s1539 + $0xb0] sm:$0xff]
        %v1563 = vld [vmem:[%s1539 + $0xb8] sm:$0xff]
        %v1564 = vld [vmem:[%s1539 + $0xc0] sm:$0xff]
        %v1565 = vld [vmem:[%s1539 + $0xc8] sm:$0xff]
        %v1566 = vld [vmem:[%s1539 + $0xd0] sm:$0xff]
        %v1567 = vld [vmem:[%s1539 + $0xd8] sm:$0xff]
        %v1568 = vld [vmem:[%s1539 + $0xe0] sm:$0xff]
        %v1569 = vld [vmem:[%s1539 + $0xe8] sm:$0xff]
        %s1570 = scalar_lea.vmem %s1, 32
        %v1571 = vld [vmem:[%s1570] sm:$0xff]
        %v1572 = vld [vmem:[%s1570 + $0x8] sm:$0xf]
        %v1574 = vsel %vm919, %v1540, 0
        %v1577 = vsel %vm919, %v1541, 0
        %v1580 = vsel %vm919, %v1542, 0
        %v1583 = vsel %vm919, %v1543, 0
        %v1586 = vsel %vm919, %v1544, 0
        %v1589 = vsel %vm919, %v1545, 0
        %v1592 = vsel %vm919, %v1546, 0
        %v1595 = vsel %vm919, %v1547, 0
        %v1598 = vsel %vm919, %v1548, 0
        %v1601 = vsel %vm919, %v1549, 0
        %v1604 = vsel %vm919, %v1550, 0
        %v1607 = vsel %vm919, %v1551, 0
        %v1610 = vsel %vm919, %v1552, 0
        %v1613 = vsel %vm919, %v1553, 0
        %v1616 = vsel %vm919, %v1554, 0
        %v1619 = vsel %vm919, %v1555, 0
        %v1622 = vsel %vm919, %v1556, 0
        %v1625 = vsel %vm919, %v1557, 0
        %v1628 = vsel %vm919, %v1558, 0
        %v1631 = vsel %vm919, %v1559, 0
        %v1634 = vsel %vm919, %v1560, 0
        %v1637 = vsel %vm919, %v1561, 0
        %v1640 = vsel %vm919, %v1562, 0
        %v1643 = vsel %vm919, %v1563, 0
        %v1646 = vsel %vm919, %v1564, 0
        %v1649 = vsel %vm919, %v1565, 0
        %v1652 = vsel %vm919, %v1566, 0
        %v1655 = vsel %vm919, %v1567, 0
        %v1658 = vsel %vm919, %v1568, 0
        %v1661 = vsel %vm919, %v1569, 0
        %v1664 = vsel %vm1010, %v1572, 0
        %1666 = vmatprep.subr.mxu0 0.0
        %1667 = vmatpush1.msra.mxu0 %v1571
        %1668 = vmatprep.subr.mxu0 0.0
        %1669 = vmatpush1.msra.mxu0 %v1664
        %1670 = vmatprep.subr.mxu0 0.0
        %1671 = vmatpush1.msra.mxu0 0.0
        %1672 = vmatprep.subr.mxu0 0.0
        %1673 = vmatpush1.msra.mxu0 0.0
        %1674 = vmatprep.subr.mxu0 0.0
        %1675 = vmatpush1.msra.mxu0 0.0
        %1676 = vmatprep.subr.mxu0 0.0
        %1677 = vmatpush1.msra.mxu0 0.0
        %1678 = vmatprep.subr.mxu0 0.0
        %1679 = vmatpush1.msra.mxu0 0.0
        %1680 = vmatprep.subr.mxu0 0.0
        %1681 = vmatpush1.msra.mxu0 0.0
        %1682 = vmatprep.subr.mxu0 0.0
        %1683 = vmatpush1.msra.mxu0 0.0
        %1684 = vmatprep.subr.mxu0 0.0
        %1685 = vmatpush1.msra.mxu0 0.0
        %1686 = vmatprep.subr.mxu0 0.0
        %1687 = vmatpush1.msra.mxu0 0.0
        %1688 = vmatprep.subr.mxu0 0.0
        %1689 = vmatpush1.msra.mxu0 0.0
        %1690 = vmatprep.subr.mxu0 0.0
        %1691 = vmatpush1.msra.mxu0 0.0
        %1692 = vmatprep.subr.mxu0 0.0
        %1693 = vmatpush1.msra.mxu0 0.0
        %1694 = vmatprep.subr.mxu0 0.0
        %1695 = vmatpush1.msra.mxu0 0.0
        %1696 = vmatprep.subr.mxu0 0.0
        %1697 = vmatpush1.msra.mxu0 0.0
        %1698 = vmatprep.subr.mxu0 0.0
        %1699 = vmatpush1.msra.mxu0 0.0
        %1700 = vmatprep.subr.mxu0 0.0
        %1701 = vmatpush1.msra.mxu0 0.0
        %1702 = vmatprep.subr.mxu0 0.0
        %1703 = vmatpush1.msra.mxu0 0.0
        %1704 = vmatprep.subr.mxu0 0.0
        %1705 = vmatpush1.msra.mxu0 0.0
        %1706 = vmatprep.subr.mxu0 0.0
        %1707 = vmatpush1.msra.mxu0 0.0
        %1708 = vmatprep.subr.mxu0 0.0
        %1709 = vmatpush1.msra.mxu0 0.0
        %1710 = vmatprep.subr.mxu0 0.0
        %1711 = vmatpush1.msra.mxu0 0.0
        %1712 = vmatprep.subr.mxu0 0.0
        %1713 = vmatpush1.msra.mxu0 0.0
        %1714 = vmatprep.subr.mxu0 0.0
        %1715 = vmatpush1.msra.mxu0 0.0
        %1716 = vmatprep.subr.mxu0 0.0
        %1717 = vmatpush1.msra.mxu0 0.0
        %1718 = vmatprep.subr.mxu0 0.0
        %1719 = vmatpush1.msra.mxu0 0.0
        %1720 = vmatprep.subr.mxu0 0.0
        %1721 = vmatpush1.msra.mxu0 0.0
        %1722 = vmatprep.subr.mxu0 0.0
        %1723 = vmatpush1.msra.mxu0 0.0
        %1724 = vmatprep.subr.mxu0 0.0
        %1725 = vmatpush1.msra.mxu0 0.0
        %1726 = vmatprep.subr.mxu0 0.0
        %1727 = vmatpush1.msra.mxu0 0.0
        %1728 = vmatprep.subr.mxu0 0.0
        %1729 = vmatpush1.msra.mxu0 0.0
        %1730 = vmatprep.mubr.f32.mxu0 0.0
        %1731 = vmatmul.mubr.f32.gmra.mrb[0].mxu0 %v1574
        %v1732 = vpop.f32.mrb[0].mxu0
        %v1733 = vadd.f32 0.0, %v1732
        %v1734 = vpop.f32.mrb[0].mxu0
        %1735 = vmatprep.mubr.f32.mxu0 0.0
        %1736 = vmatmul.mubr.f32.gmra.mrb[0].mxu0 %v1577
        %v1737 = vpop.f32.mrb[0].mxu0
        %v1738 = vadd.f32 0.0, %v1737
        %v1739 = vpop.f32.mrb[0].mxu0
        %1740 = vmatprep.mubr.f32.mxu0 0.0
        %1741 = vmatmul.mubr.f32.gmra.mrb[0].mxu0 %v1580
        %v1742 = vpop.f32.mrb[0].mxu0
        %v1743 = vadd.f32 0.0, %v1742
        %v1744 = vpop.f32.mrb[0].mxu0
        %1745 = vmatprep.mubr.f32.mxu0 0.0
        %1746 = vmatmul.mubr.f32.gmra.mrb[0].mxu0 %v1583
        %v1747 = vpop.f32.mrb[0].mxu0
        %v1748 = vadd.f32 0.0, %v1747
        %v1749 = vpop.f32.mrb[0].mxu0
        %1750 = vmatprep.mubr.f32.mxu0 0.0
        %1751 = vmatmul.mubr.f32.gmra.mrb[0].mxu0 %v1586
        %v1752 = vpop.f32.mrb[0].mxu0
        %v1753 = vadd.f32 0.0, %v1752
        %v1754 = vpop.f32.mrb[0].mxu0
        %1755 = vmatprep.mubr.f32.mxu0 0.0
        %1756 = vmatmul.mubr.f32.gmra.mrb[0].mxu0 %v1589
        %v1757 = vpop.f32.mrb[0].mxu0
        %v1758 = vadd.f32 0.0, %v1757
        %v1759 = vpop.f32.mrb[0].mxu0
        %1760 = vmatprep.mubr.f32.mxu0 0.0
        %1761 = vmatmul.mubr.f32.gmra.mrb[0].mxu0 %v1592
        %v1762 = vpop.f32.mrb[0].mxu0
        %v1763 = vadd.f32 0.0, %v1762
        %v1764 = vpop.f32.mrb[0].mxu0
        %1765 = vmatprep.mubr.f32.mxu0 0.0
        %1766 = vmatmul.mubr.f32.gmra.mrb[0].mxu0 %v1595
        %v1767 = vpop.f32.mrb[0].mxu0
        %v1768 = vadd.f32 0.0, %v1767
        %v1769 = vpop.f32.mrb[0].mxu0
        %1770 = vmatprep.mubr.f32.mxu0 0.0
        %1771 = vmatmul.mubr.f32.gmra.mrb[0].mxu0 %v1598
        %v1772 = vpop.f32.mrb[0].mxu0
        %v1773 = vadd.f32 0.0, %v1772
        %v1774 = vpop.f32.mrb[0].mxu0
        %1775 = vmatprep.mubr.f32.mxu0 0.0
        %1776 = vmatmul.mubr.f32.gmra.mrb[0].mxu0 %v1601
        %v1777 = vpop.f32.mrb[0].mxu0
        %v1778 = vadd.f32 0.0, %v1777
        %v1779 = vpop.f32.mrb[0].mxu0
        %1780 = vmatprep.mubr.f32.mxu0 0.0
        %1781 = vmatmul.mubr.f32.gmra.mrb[0].mxu0 %v1604
        %v1782 = vpop.f32.mrb[0].mxu0
        %v1783 = vadd.f32 0.0, %v1782
        %v1784 = vpop.f32.mrb[0].mxu0
        %1785 = vmatprep.mubr.f32.mxu0 0.0
        %1786 = vmatmul.mubr.f32.gmra.mrb[0].mxu0 %v1607
        %v1787 = vpop.f32.mrb[0].mxu0
        %v1788 = vadd.f32 0.0, %v1787
        %v1789 = vpop.f32.mrb[0].mxu0
        %1790 = vmatprep.mubr.f32.mxu0 0.0
        %1791 = vmatmul.mubr.f32.gmra.mrb[0].mxu0 %v1610
        %v1792 = vpop.f32.mrb[0].mxu0
        %v1793 = vadd.f32 0.0, %v1792
        %v1794 = vpop.f32.mrb[0].mxu0
        %1795 = vmatprep.mubr.f32.mxu0 0.0
        %1796 = vmatmul.mubr.f32.gmra.mrb[0].mxu0 %v1613
        %v1797 = vpop.f32.mrb[0].mxu0
        %v1798 = vadd.f32 0.0, %v1797
        %v1799 = vpop.f32.mrb[0].mxu0
        %1800 = vmatprep.mubr.f32.mxu0 0.0
        %1801 = vmatmul.mubr.f32.gmra.mrb[0].mxu0 %v1616
        %v1802 = vpop.f32.mrb[0].mxu0
        %v1803 = vadd.f32 0.0, %v1802
        %v1804 = vpop.f32.mrb[0].mxu0
        %1805 = vmatprep.mubr.f32.mxu0 0.0
        %1806 = vmatmul.mubr.f32.gmra.mrb[0].mxu0 %v1619
        %v1807 = vpop.f32.mrb[0].mxu0
        %v1808 = vadd.f32 0.0, %v1807
        %v1809 = vpop.f32.mrb[0].mxu0
        %1810 = vmatprep.mubr.f32.mxu0 0.0
        %1811 = vmatmul.mubr.f32.gmra.mrb[0].mxu0 %v1622
        %v1812 = vpop.f32.mrb[0].mxu0
        %v1813 = vadd.f32 0.0, %v1812
        %v1814 = vpop.f32.mrb[0].mxu0
        %1815 = vmatprep.mubr.f32.mxu0 0.0
        %1816 = vmatmul.mubr.f32.gmra.mrb[0].mxu0 %v1625
        %v1817 = vpop.f32.mrb[0].mxu0
        %v1818 = vadd.f32 0.0, %v1817
        %v1819 = vpop.f32.mrb[0].mxu0
        %1820 = vmatprep.mubr.f32.mxu0 0.0
        %1821 = vmatmul.mubr.f32.gmra.mrb[0].mxu0 %v1628
        %v1822 = vpop.f32.mrb[0].mxu0
        %v1823 = vadd.f32 0.0, %v1822
        %v1824 = vpop.f32.mrb[0].mxu0
        %1825 = vmatprep.mubr.f32.mxu0 0.0
        %1826 = vmatmul.mubr.f32.gmra.mrb[0].mxu0 %v1631
        %v1827 = vpop.f32.mrb[0].mxu0
        %v1828 = vadd.f32 0.0, %v1827
        %v1829 = vpop.f32.mrb[0].mxu0
        %1830 = vmatprep.mubr.f32.mxu0 0.0
        %1831 = vmatmul.mubr.f32.gmra.mrb[0].mxu0 %v1634
        %v1832 = vpop.f32.mrb[0].mxu0
        %v1833 = vadd.f32 0.0, %v1832
        %v1834 = vpop.f32.mrb[0].mxu0
        %1835 = vmatprep.mubr.f32.mxu0 0.0
        %1836 = vmatmul.mubr.f32.gmra.mrb[0].mxu0 %v1637
        %v1837 = vpop.f32.mrb[0].mxu0
        %v1838 = vadd.f32 0.0, %v1837
        %v1839 = vpop.f32.mrb[0].mxu0
        %1840 = vmatprep.mubr.f32.mxu0 0.0
        %1841 = vmatmul.mubr.f32.gmra.mrb[0].mxu0 %v1640
        %v1842 = vpop.f32.mrb[0].mxu0
        %v1843 = vadd.f32 0.0, %v1842
        %v1844 = vpop.f32.mrb[0].mxu0
        %1845 = vmatprep.mubr.f32.mxu0 0.0
        %1846 = vmatmul.mubr.f32.gmra.mrb[0].mxu0 %v1643
        %v1847 = vpop.f32.mrb[0].mxu0
        %v1848 = vadd.f32 0.0, %v1847
        %v1849 = vpop.f32.mrb[0].mxu0
        %1850 = vmatprep.mubr.f32.mxu0 0.0
        %1851 = vmatmul.mubr.f32.gmra.mrb[0].mxu0 %v1646
        %v1852 = vpop.f32.mrb[0].mxu0
        %v1853 = vadd.f32 0.0, %v1852
        %v1854 = vpop.f32.mrb[0].mxu0
        %1855 = vmatprep.mubr.f32.mxu0 0.0
        %1856 = vmatmul.mubr.f32.gmra.mrb[0].mxu0 %v1649
        %v1857 = vpop.f32.mrb[0].mxu0
        %v1858 = vadd.f32 0.0, %v1857
        %v1859 = vpop.f32.mrb[0].mxu0
        %1860 = vmatprep.mubr.f32.mxu0 0.0
        %1861 = vmatmul.mubr.f32.gmra.mrb[0].mxu0 %v1652
        %v1862 = vpop.f32.mrb[0].mxu0
        %v1863 = vadd.f32 0.0, %v1862
        %v1864 = vpop.f32.mrb[0].mxu0
        %1865 = vmatprep.mubr.f32.mxu0 0.0
        %1866 = vmatmul.mubr.f32.gmra.mrb[0].mxu0 %v1655
        %v1867 = vpop.f32.mrb[0].mxu0
        %v1868 = vadd.f32 0.0, %v1867
        %v1869 = vpop.f32.mrb[0].mxu0
        %1870 = vmatprep.mubr.f32.mxu0 0.0
        %1871 = vmatmul.mubr.f32.gmra.mrb[0].mxu0 %v1658
        %v1872 = vpop.f32.mrb[0].mxu0
        %v1873 = vadd.f32 0.0, %v1872
        %v1874 = vpop.f32.mrb[0].mxu0
        %1875 = vmatprep.mubr.f32.mxu0 0.0
        %1876 = vmatmul.mubr.f32.gmra.mrb[0].mxu0 %v1661
        %v1877 = vpop.f32.mrb[0].mxu0
        %v1878 = vadd.f32 0.0, %v1877
        %v1879 = vpop.f32.mrb[0].mxu0
        %1880 = vdwg.mxu0
        %v1881 = vadd.f32 %v1389, %v1733
        %v1882 = vadd.f32 %v1394, %v1738
        %v1883 = vadd.f32 %v1399, %v1743
        %v1884 = vadd.f32 %v1404, %v1748
        %v1885 = vadd.f32 %v1409, %v1753
        %v1886 = vadd.f32 %v1414, %v1758
        %v1887 = vadd.f32 %v1419, %v1763
        %v1888 = vadd.f32 %v1424, %v1768
        %v1889 = vadd.f32 %v1429, %v1773
        %v1890 = vadd.f32 %v1434, %v1778
        %v1891 = vadd.f32 %v1439, %v1783
        %v1892 = vadd.f32 %v1444, %v1788
        %v1893 = vadd.f32 %v1449, %v1793
        %v1894 = vadd.f32 %v1454, %v1798
        %v1895 = vadd.f32 %v1459, %v1803
        %v1896 = vadd.f32 %v1464, %v1808
        %v1897 = vadd.f32 %v1469, %v1813
        %v1898 = vadd.f32 %v1474, %v1818
        %v1899 = vadd.f32 %v1479, %v1823
        %v1900 = vadd.f32 %v1484, %v1828
        %v1901 = vadd.f32 %v1489, %v1833
        %v1902 = vadd.f32 %v1494, %v1838
        %v1903 = vadd.f32 %v1499, %v1843
        %v1904 = vadd.f32 %v1504, %v1848
        %v1905 = vadd.f32 %v1509, %v1853
        %v1906 = vadd.f32 %v1514, %v1858
        %v1907 = vadd.f32 %v1519, %v1863
        %v1908 = vadd.f32 %v1524, %v1868
        %v1909 = vadd.f32 %v1529, %v1873
        %v1910 = vadd.f32 %v1534, %v1878
        %v1912 = vlaneseq
        %v1913 = vshrl.u32 %v1912, 7
        %v1914 = vsub.s32 0, %v1913
        %v1915 = vrot.slane %v838, %v1914
        %v1917 = vadd.f32 %v1881, %v1915
        %v1918 = vadd.f32 %v1882, %v1915
        %v1919 = vadd.f32 %v1883, %v1915
        %v1920 = vadd.f32 %v1884, %v1915
        %v1921 = vadd.f32 %v1885, %v1915
        %v1922 = vadd.f32 %v1886, %v1915
        %v1923 = vadd.f32 %v1887, %v1915
        %v1924 = vadd.f32 %v1888, %v1915
        %v1925 = vadd.f32 %v1889, %v1915
        %v1926 = vadd.f32 %v1890, %v1915
        %v1927 = vadd.f32 %v1891, %v1915
        %v1928 = vadd.f32 %v1892, %v1915
        %v1929 = vadd.f32 %v1893, %v1915
        %v1930 = vadd.f32 %v1894, %v1915
        %v1931 = vadd.f32 %v1895, %v1915
        %v1932 = vadd.f32 %v1896, %v1915
        %v1933 = vadd.f32 %v1897, %v1915
        %v1934 = vadd.f32 %v1898, %v1915
        %v1935 = vadd.f32 %v1899, %v1915
        %v1936 = vadd.f32 %v1900, %v1915
        %v1937 = vadd.f32 %v1901, %v1915
        %v1938 = vadd.f32 %v1902, %v1915
        %v1939 = vadd.f32 %v1903, %v1915
        %v1940 = vadd.f32 %v1904, %v1915
        %v1941 = vadd.f32 %v1905, %v1915
        %v1942 = vadd.f32 %v1906, %v1915
        %v1943 = vadd.f32 %v1907, %v1915
        %v1944 = vadd.f32 %v1908, %v1915
        %v1945 = vadd.f32 %v1909, %v1915
        %v1946 = vadd.f32 %v1910, %v1915
        %v1947 = vmax.f32 %v1917, 0.0
        %v1948 = vmax.f32 %v1918, 0.0
        %v1949 = vmax.f32 %v1919, 0.0
        %v1950 = vmax.f32 %v1920, 0.0
        %v1951 = vmax.f32 %v1921, 0.0
        %v1952 = vmax.f32 %v1922, 0.0
        %v1953 = vmax.f32 %v1923, 0.0
        %v1954 = vmax.f32 %v1924, 0.0
        %v1955 = vmax.f32 %v1925, 0.0
        %v1956 = vmax.f32 %v1926, 0.0
        %v1957 = vmax.f32 %v1927, 0.0
        %v1958 = vmax.f32 %v1928, 0.0
        %v1959 = vmax.f32 %v1929, 0.0
        %v1960 = vmax.f32 %v1930, 0.0
        %v1961 = vmax.f32 %v1931, 0.0
        %v1962 = vmax.f32 %v1932, 0.0
        %v1963 = vmax.f32 %v1933, 0.0
        %v1964 = vmax.f32 %v1934, 0.0
        %v1965 = vmax.f32 %v1935, 0.0
        %v1966 = vmax.f32 %v1936, 0.0
        %v1967 = vmax.f32 %v1937, 0.0
        %v1968 = vmax.f32 %v1938, 0.0
        %v1969 = vmax.f32 %v1939, 0.0
        %v1970 = vmax.f32 %v1940, 0.0
        %v1971 = vmax.f32 %v1941, 0.0
        %v1972 = vmax.f32 %v1942, 0.0
        %v1973 = vmax.f32 %v1943, 0.0
        %v1974 = vmax.f32 %v1944, 0.0
        %v1975 = vmax.f32 %v1945, 0.0
        %v1976 = vmax.f32 %v1946, 0.0
        %v1977 = vsel %vm808, 1, 0
        %v1978 = vsel %vm809, 1, 0
        %v1979 = vsel %vm810, 1, 0
        %v1980 = vsel %vm811, 1, 0
        %v1981 = vsel %vm812, 1, 0
        %v1982 = vsel %vm813, 1, 0
        %v1983 = vsel %vm814, 1, 0
        %v1984 = vsel %vm815, 1, 0
        %v1985 = vsel %vm816, 1, 0
        %v1986 = vsel %vm817, 1, 0
        %v1987 = vsel %vm818, 1, 0
        %v1988 = vsel %vm819, 1, 0
        %v1989 = vsel %vm820, 1, 0
        %v1990 = vsel %vm821, 1, 0
        %v1991 = vsel %vm822, 1, 0
        %v1992 = vsel %vm823, 1, 0
        %v1993 = vsel %vm824, 1, 0
        %v1994 = vsel %vm825, 1, 0
        %v1995 = vsel %vm826, 1, 0
        %v1996 = vsel %vm827, 1, 0
        %v1997 = vsel %vm828, 1, 0
        %v1998 = vsel %vm829, 1, 0
        %v1999 = vsel %vm830, 1, 0
        %v2000 = vsel %vm831, 1, 0
        %v2001 = vsel %vm832, 1, 0
        %v2002 = vsel %vm833, 1, 0
        %v2003 = vsel %vm834, 1, 0
        %v2004 = vsel %vm835, 1, 0
        %v2005 = vsel %vm836, 1, 0
        %v2006 = vsel %vm837, 1, 0
        %vm2007 = vcmp.eq.s32.totalorder %v1977, 1
        %vm2008 = vcmp.eq.s32.totalorder %v1978, 1
        %vm2009 = vcmp.eq.s32.totalorder %v1979, 1
        %vm2010 = vcmp.eq.s32.totalorder %v1980, 1
        %vm2011 = vcmp.eq.s32.totalorder %v1981, 1
        %vm2012 = vcmp.eq.s32.totalorder %v1982, 1
        %vm2013 = vcmp.eq.s32.totalorder %v1983, 1
        %vm2014 = vcmp.eq.s32.totalorder %v1984, 1
        %vm2015 = vcmp.eq.s32.totalorder %v1985, 1
        %vm2016 = vcmp.eq.s32.totalorder %v1986, 1
        %vm2017 = vcmp.eq.s32.totalorder %v1987, 1
        %vm2018 = vcmp.eq.s32.totalorder %v1988, 1
        %vm2019 = vcmp.eq.s32.totalorder %v1989, 1
        %vm2020 = vcmp.eq.s32.totalorder %v1990, 1
        %vm2021 = vcmp.eq.s32.totalorder %v1991, 1
        %vm2022 = vcmp.eq.s32.totalorder %v1992, 1
        %vm2023 = vcmp.eq.s32.totalorder %v1993, 1
        %vm2024 = vcmp.eq.s32.totalorder %v1994, 1
        %vm2025 = vcmp.eq.s32.totalorder %v1995, 1
        %vm2026 = vcmp.eq.s32.totalorder %v1996, 1
        %vm2027 = vcmp.eq.s32.totalorder %v1997, 1
        %vm2028 = vcmp.eq.s32.totalorder %v1998, 1
        %vm2029 = vcmp.eq.s32.totalorder %v1999, 1
        %vm2030 = vcmp.eq.s32.totalorder %v2000, 1
        %vm2031 = vcmp.eq.s32.totalorder %v2001, 1
        %vm2032 = vcmp.eq.s32.totalorder %v2002, 1
        %vm2033 = vcmp.eq.s32.totalorder %v2003, 1
        %vm2034 = vcmp.eq.s32.totalorder %v2004, 1
        %vm2035 = vcmp.eq.s32.totalorder %v2005, 1
        %vm2036 = vcmp.eq.s32.totalorder %v2006, 1
        %v2037 = vsel %vm2007, %v1947, 0.0
        %v2038 = vsel %vm2008, %v1948, 0.0
        %v2039 = vsel %vm2009, %v1949, 0.0
        %v2040 = vsel %vm2010, %v1950, 0.0
        %v2041 = vsel %vm2011, %v1951, 0.0
        %v2042 = vsel %vm2012, %v1952, 0.0
        %v2043 = vsel %vm2013, %v1953, 0.0
        %v2044 = vsel %vm2014, %v1954, 0.0
        %v2045 = vsel %vm2015, %v1955, 0.0
        %v2046 = vsel %vm2016, %v1956, 0.0
        %v2047 = vsel %vm2017, %v1957, 0.0
        %v2048 = vsel %vm2018, %v1958, 0.0
        %v2049 = vsel %vm2019, %v1959, 0.0
        %v2050 = vsel %vm2020, %v1960, 0.0
        %v2051 = vsel %vm2021, %v1961, 0.0
        %v2052 = vsel %vm2022, %v1962, 0.0
        %v2053 = vsel %vm2023, %v1963, 0.0
        %v2054 = vsel %vm2024, %v1964, 0.0
        %v2055 = vsel %vm2025, %v1965, 0.0
        %v2056 = vsel %vm2026, %v1966, 0.0
        %v2057 = vsel %vm2027, %v1967, 0.0
        %v2058 = vsel %vm2028, %v1968, 0.0
        %v2059 = vsel %vm2029, %v1969, 0.0
        %v2060 = vsel %vm2030, %v1970, 0.0
        %v2061 = vsel %vm2031, %v1971, 0.0
        %v2062 = vsel %vm2032, %v1972, 0.0
        %v2063 = vsel %vm2033, %v1973, 0.0
        %v2064 = vsel %vm2034, %v1974, 0.0
        %v2065 = vsel %vm2035, %v1975, 0.0
        %v2066 = vsel %vm2036, %v1976, 0.0
        %s2067 = scalar_lea.vmem [#allocation2], %s884
        %2068 = vst [vmem:[%s2067] sm:$0xff] %v2037
        %2069 = vst [vmem:[%s2067 + $0x8] sm:$0xff] %v2038
        %2070 = vst [vmem:[%s2067 + $0x10] sm:$0xff] %v2039
        %2071 = vst [vmem:[%s2067 + $0x18] sm:$0xff] %v2040
        %2072 = vst [vmem:[%s2067 + $0x20] sm:$0xff] %v2041
        %2073 = vst [vmem:[%s2067 + $0x28] sm:$0xff] %v2042
        %2074 = vst [vmem:[%s2067 + $0x30] sm:$0xff] %v2043
        %2075 = vst [vmem:[%s2067 + $0x38] sm:$0xff] %v2044
        %2076 = vst [vmem:[%s2067 + $0x40] sm:$0xff] %v2045
        %2077 = vst [vmem:[%s2067 + $0x48] sm:$0xff] %v2046
        %2078 = vst [vmem:[%s2067 + $0x50] sm:$0xff] %v2047
        %2079 = vst [vmem:[%s2067 + $0x58] sm:$0xff] %v2048
        %2080 = vst [vmem:[%s2067 + $0x60] sm:$0xff] %v2049
        %2081 = vst [vmem:[%s2067 + $0x68] sm:$0xff] %v2050
        %2082 = vst [vmem:[%s2067 + $0x70] sm:$0xff] %v2051
        %2083 = vst [vmem:[%s2067 + $0x78] sm:$0xff] %v2052
        %2084 = vst [vmem:[%s2067 + $0x80] sm:$0xff] %v2053
        %2085 = vst [vmem:[%s2067 + $0x88] sm:$0xff] %v2054
        %2086 = vst [vmem:[%s2067 + $0x90] sm:$0xff] %v2055
        %2087 = vst [vmem:[%s2067 + $0x98] sm:$0xff] %v2056
        %2088 = vst [vmem:[%s2067 + $0xa0] sm:$0xff] %v2057
        %2089 = vst [vmem:[%s2067 + $0xa8] sm:$0xff] %v2058
        %2090 = vst [vmem:[%s2067 + $0xb0] sm:$0xff] %v2059
        %2091 = vst [vmem:[%s2067 + $0xb8] sm:$0xff] %v2060
        %2092 = vst [vmem:[%s2067 + $0xc0] sm:$0xff] %v2061
        %2093 = vst [vmem:[%s2067 + $0xc8] sm:$0xff] %v2062
        %2094 = vst [vmem:[%s2067 + $0xd0] sm:$0xff] %v2063
        %2095 = vst [vmem:[%s2067 + $0xd8] sm:$0xff] %v2064
        %2096 = vst [vmem:[%s2067 + $0xe0] sm:$0xff] %v2065
        %2097 = vst [vmem:[%s2067 + $0xe8] sm:$0xff] %v2066
      $region45: #{_double_conv_impl.1} parent=39 // loop_footer
        %s844 = sadd.s32 1, %s840
      $region46: #{_double_conv_impl.1} parent=39 // loop_footer_branch
        %839 = sbr.rel target = $region42
      $region47: #{_double_conv_impl.1} parent=39 // loop_exit
        _
      %v2098 = vld [vmem:[%s4] sm:$0x1]
      loop: start=0, step=1, limit=2
      $region48: #{_double_conv_impl.1} parent=39 // loop_pre_header
        _
      $region49: #{_double_conv_impl.1} parent=39 // loop_header
        %s2100 = sphi 0, %s2104
        %p2101 = scmp.ge.s32.totalorder %s2100, 2
      $region50: #{_double_conv_impl.1} parent=39 // loop_header_branch
        %2103 = sbr.rel (%p2101) target = $region54
      $region51: #{_double_conv_impl.1} parent=39 // loop_body
        %s2105 = smul.u32 %s2100, 10
        %p2106 = scmp.lt.s32.totalorder %s2105, 6
        %s2107 = scalar_select %p2106, %s2105, 6
        %s2108 = sadd.s32 %s2107, 1
        %s2109 = smul.u32 %s2108, 24
        %s2110 = sadd.s32 %s2109, 4294967295
        %s2111 = scalar_lea.vmem [#allocation2], %s2110
        %v2112 = vld [vmem:[%s2111] sm:$0xff]
        %v2113 = vld [vmem:[%s2111 + $0x8] sm:$0xff]
        %v2114 = vld [vmem:[%s2111 + $0x10] sm:$0xff]
        %v2115 = vld [vmem:[%s2111 + $0x18] sm:$0xff]
        %v2116 = vld [vmem:[%s2111 + $0x20] sm:$0xff]
        %v2117 = vld [vmem:[%s2111 + $0x28] sm:$0xff]
        %v2118 = vld [vmem:[%s2111 + $0x30] sm:$0xff]
        %v2119 = vld [vmem:[%s2111 + $0x38] sm:$0xff]
        %v2120 = vld [vmem:[%s2111 + $0x40] sm:$0xff]
        %v2121 = vld [vmem:[%s2111 + $0x48] sm:$0xff]
        %v2122 = vld [vmem:[%s2111 + $0x50] sm:$0xff]
        %v2123 = vld [vmem:[%s2111 + $0x58] sm:$0xff]
        %v2124 = vld [vmem:[%s2111 + $0x60] sm:$0xff]
        %v2125 = vld [vmem:[%s2111 + $0x68] sm:$0xff]
        %v2126 = vld [vmem:[%s2111 + $0x70] sm:$0xff]
        %v2127 = vld [vmem:[%s2111 + $0x78] sm:$0xff]
        %v2128 = vld [vmem:[%s2111 + $0x80] sm:$0xff]
        %v2129 = vld [vmem:[%s2111 + $0x88] sm:$0xff]
        %v2130 = vld [vmem:[%s2111 + $0x90] sm:$0xff]
        %v2131 = vld [vmem:[%s2111 + $0x98] sm:$0xff]
        %v2132 = vld [vmem:[%s2111 + $0xa0] sm:$0xff]
        %v2133 = vld [vmem:[%s2111 + $0xa8] sm:$0xff]
        %v2134 = vld [vmem:[%s2111 + $0xb0] sm:$0xff]
        %v2135 = vld [vmem:[%s2111 + $0xb8] sm:$0xff]
        %v2136 = vld [vmem:[%s2111 + $0xc0] sm:$0xff]
        %v2137 = vld [vmem:[%s2111 + $0xc8] sm:$0xff]
        %v2138 = vld [vmem:[%s2111 + $0xd0] sm:$0xff]
        %v2139 = vld [vmem:[%s2111 + $0xd8] sm:$0xff]
        %v2140 = vld [vmem:[%s2111 + $0xe0] sm:$0xff]
        %v2141 = vld [vmem:[%s2111 + $0xe8] sm:$0xff]
        %s2142 = scalar_lea.vmem [#allocation2], %s2109
        %v2143 = vld [vmem:[%s2142] sm:$0xff]
        %v2144 = vld [vmem:[%s2142 + $0x8] sm:$0xff]
        %v2145 = vld [vmem:[%s2142 + $0x10] sm:$0xff]
        %v2146 = vld [vmem:[%s2142 + $0x18] sm:$0xff]
        %v2147 = vld [vmem:[%s2142 + $0x20] sm:$0xff]
        %v2148 = vld [vmem:[%s2142 + $0x28] sm:$0xff]
        %v2149 = vld [vmem:[%s2142 + $0x30] sm:$0xff]
        %v2150 = vld [vmem:[%s2142 + $0x38] sm:$0xff]
        %v2151 = vld [vmem:[%s2142 + $0x40] sm:$0xff]
        %v2152 = vld [vmem:[%s2142 + $0x48] sm:$0xff]
        %v2153 = vld [vmem:[%s2142 + $0x50] sm:$0xff]
        %v2154 = vld [vmem:[%s2142 + $0x58] sm:$0xff]
        %v2155 = vld [vmem:[%s2142 + $0x60] sm:$0xff]
        %v2156 = vld [vmem:[%s2142 + $0x68] sm:$0xff]
        %v2157 = vld [vmem:[%s2142 + $0x70] sm:$0xff]
        %v2158 = vld [vmem:[%s2142 + $0x78] sm:$0xff]
        %v2159 = vld [vmem:[%s2142 + $0x80] sm:$0xff]
        %v2160 = vld [vmem:[%s2142 + $0x88] sm:$0xff]
        %v2161 = vld [vmem:[%s2142 + $0x90] sm:$0xff]
        %v2162 = vld [vmem:[%s2142 + $0x98] sm:$0xff]
        %v2163 = vld [vmem:[%s2142 + $0xa0] sm:$0xff]
        %v2164 = vld [vmem:[%s2142 + $0xa8] sm:$0xff]
        %v2165 = vld [vmem:[%s2142 + $0xb0] sm:$0xff]
        %v2166 = vld [vmem:[%s2142 + $0xb8] sm:$0xff]
        %v2167 = vld [vmem:[%s2142 + $0xc0] sm:$0xff]
        %v2168 = vld [vmem:[%s2142 + $0xc8] sm:$0xff]
        %v2169 = vld [vmem:[%s2142 + $0xd0] sm:$0xff]
        %v2170 = vld [vmem:[%s2142 + $0xd8] sm:$0xff]
        %v2171 = vld [vmem:[%s2142 + $0xe0] sm:$0xff]
        %v2172 = vld [vmem:[%s2142 + $0xe8] sm:$0xff]
        %s2173 = sadd.s32 %s2109, 1
        %s2174 = scalar_lea.vmem [#allocation2], %s2173
        %v2175 = vld [vmem:[%s2174] sm:$0xff]
        %v2176 = vld [vmem:[%s2174 + $0x8] sm:$0xff]
        %v2177 = vld [vmem:[%s2174 + $0x10] sm:$0xff]
        %v2178 = vld [vmem:[%s2174 + $0x18] sm:$0xff]
        %v2179 = vld [vmem:[%s2174 + $0x20] sm:$0xff]
        %v2180 = vld [vmem:[%s2174 + $0x28] sm:$0xff]
        %v2181 = vld [vmem:[%s2174 + $0x30] sm:$0xff]
        %v2182 = vld [vmem:[%s2174 + $0x38] sm:$0xff]
        %v2183 = vld [vmem:[%s2174 + $0x40] sm:$0xff]
        %v2184 = vld [vmem:[%s2174 + $0x48] sm:$0xff]
        %v2185 = vld [vmem:[%s2174 + $0x50] sm:$0xff]
        %v2186 = vld [vmem:[%s2174 + $0x58] sm:$0xff]
        %v2187 = vld [vmem:[%s2174 + $0x60] sm:$0xff]
        %v2188 = vld [vmem:[%s2174 + $0x68] sm:$0xff]
        %v2189 = vld [vmem:[%s2174 + $0x70] sm:$0xff]
        %v2190 = vld [vmem:[%s2174 + $0x78] sm:$0xff]
        %v2191 = vld [vmem:[%s2174 + $0x80] sm:$0xff]
        %v2192 = vld [vmem:[%s2174 + $0x88] sm:$0xff]
        %v2193 = vld [vmem:[%s2174 + $0x90] sm:$0xff]
        %v2194 = vld [vmem:[%s2174 + $0x98] sm:$0xff]
        %v2195 = vld [vmem:[%s2174 + $0xa0] sm:$0xff]
        %v2196 = vld [vmem:[%s2174 + $0xa8] sm:$0xff]
        %v2197 = vld [vmem:[%s2174 + $0xb0] sm:$0xff]
        %v2198 = vld [vmem:[%s2174 + $0xb8] sm:$0xff]
        %v2199 = vld [vmem:[%s2174 + $0xc0] sm:$0xff]
        %v2200 = vld [vmem:[%s2174 + $0xc8] sm:$0xff]
        %v2201 = vld [vmem:[%s2174 + $0xd0] sm:$0xff]
        %v2202 = vld [vmem:[%s2174 + $0xd8] sm:$0xff]
        %v2203 = vld [vmem:[%s2174 + $0xe0] sm:$0xff]
        %v2204 = vld [vmem:[%s2174 + $0xe8] sm:$0xff]
        %v2205 = vld [vmem:[%s3] sm:$0xff]
        %v2206 = vld [vmem:[%s3 + $0x8] sm:$0xff]
        %v2207 = vld [vmem:[%s3 + $0x10] sm:$0xff]
        %v2208 = vld [vmem:[%s3 + $0x18] sm:$0xff]
        %v2209 = vld [vmem:[%s3 + $0x20] sm:$0xff]
        %v2210 = vld [vmem:[%s3 + $0x28] sm:$0xff]
        %v2211 = vld [vmem:[%s3 + $0x30] sm:$0xff]
        %v2212 = vld [vmem:[%s3 + $0x38] sm:$0xff]
        %v2213 = vld [vmem:[%s3 + $0x40] sm:$0xff]
        %v2214 = vld [vmem:[%s3 + $0x48] sm:$0xff]
        %v2215 = vld [vmem:[%s3 + $0x50] sm:$0xff]
        %v2216 = vld [vmem:[%s3 + $0x58] sm:$0xff]
        %v2217 = vld [vmem:[%s3 + $0x60] sm:$0xff]
        %v2218 = vld [vmem:[%s3 + $0x68] sm:$0xff]
        %v2219 = vld [vmem:[%s3 + $0x70] sm:$0xff]
        %v2220 = vld [vmem:[%s3 + $0x78] sm:$0xff]
        %v2221 = vld [vmem:[%s3 + $0x80] sm:$0xff]
        %v2222 = vld [vmem:[%s3 + $0x88] sm:$0xff]
        %v2223 = vld [vmem:[%s3 + $0x90] sm:$0xff]
        %v2224 = vld [vmem:[%s3 + $0x98] sm:$0xff]
        %v2225 = vld [vmem:[%s3 + $0xa0] sm:$0xff]
        %v2226 = vld [vmem:[%s3 + $0xa8] sm:$0xff]
        %v2227 = vld [vmem:[%s3 + $0xb0] sm:$0xff]
        %v2228 = vld [vmem:[%s3 + $0xb8] sm:$0xff]
        %v2229 = vld [vmem:[%s3 + $0xc0] sm:$0xff]
        %v2230 = vld [vmem:[%s3 + $0xc8] sm:$0xff]
        %v2231 = vld [vmem:[%s3 + $0xd0] sm:$0xff]
        %v2232 = vld [vmem:[%s3 + $0xd8] sm:$0xff]
        %v2233 = vld [vmem:[%s3 + $0xe0] sm:$0xff]
        %v2234 = vld [vmem:[%s3 + $0xe8] sm:$0xff]
        %v2235 = vld [vmem:[%s3 + $0xf0] sm:$0xff]
        %v2236 = vld [vmem:[%s3 + $0xf8] sm:$0xff]
        %v2237 = vld [vmem:[%s3 + $0x100] sm:$0xff]
        %v2238 = vld [vmem:[%s3 + $0x108] sm:$0xff]
        %v2239 = vld [vmem:[%s3 + $0x110] sm:$0xff]
        %v2240 = vld [vmem:[%s3 + $0x118] sm:$0xff]
        %v2241 = vld [vmem:[%s3 + $0x120] sm:$0xff]
        %v2242 = vld [vmem:[%s3 + $0x128] sm:$0xff]
        %v2243 = vld [vmem:[%s3 + $0x130] sm:$0xff]
        %v2244 = vld [vmem:[%s3 + $0x138] sm:$0xff]
        %v2245 = vld [vmem:[%s3 + $0x140] sm:$0xff]
        %v2246 = vld [vmem:[%s3 + $0x148] sm:$0xff]
        %v2247 = vld [vmem:[%s3 + $0x150] sm:$0xff]
        %v2248 = vld [vmem:[%s3 + $0x158] sm:$0xff]
        %v2249 = vld [vmem:[%s3 + $0x160] sm:$0xff]
        %v2250 = vld [vmem:[%s3 + $0x168] sm:$0xff]
        %v2251 = vld [vmem:[%s3 + $0x170] sm:$0xff]
        %v2252 = vld [vmem:[%s3 + $0x178] sm:$0xff]
        %s2253 = sadd.s32 %s2107, 2
        %s2254 = smul.u32 %s2253, 24
        %s2255 = sadd.s32 %s2254, 4294967295
        %s2256 = scalar_lea.vmem [#allocation2], %s2255
        %v2257 = vld [vmem:[%s2256] sm:$0xff]
        %v2258 = vld [vmem:[%s2256 + $0x8] sm:$0xff]
        %v2259 = vld [vmem:[%s2256 + $0x10] sm:$0xff]
        %v2260 = vld [vmem:[%s2256 + $0x18] sm:$0xff]
        %v2261 = vld [vmem:[%s2256 + $0x20] sm:$0xff]
        %v2262 = vld [vmem:[%s2256 + $0x28] sm:$0xff]
        %v2263 = vld [vmem:[%s2256 + $0x30] sm:$0xff]
        %v2264 = vld [vmem:[%s2256 + $0x38] sm:$0xff]
        %v2265 = vld [vmem:[%s2256 + $0x40] sm:$0xff]
        %v2266 = vld [vmem:[%s2256 + $0x48] sm:$0xff]
        %v2267 = vld [vmem:[%s2256 + $0x50] sm:$0xff]
        %v2268 = vld [vmem:[%s2256 + $0x58] sm:$0xff]
        %v2269 = vld [vmem:[%s2256 + $0x60] sm:$0xff]
        %v2270 = vld [vmem:[%s2256 + $0x68] sm:$0xff]
        %v2271 = vld [vmem:[%s2256 + $0x70] sm:$0xff]
        %v2272 = vld [vmem:[%s2256 + $0x78] sm:$0xff]
        %v2273 = vld [vmem:[%s2256 + $0x80] sm:$0xff]
        %v2274 = vld [vmem:[%s2256 + $0x88] sm:$0xff]
        %v2275 = vld [vmem:[%s2256 + $0x90] sm:$0xff]
        %v2276 = vld [vmem:[%s2256 + $0x98] sm:$0xff]
        %v2277 = vld [vmem:[%s2256 + $0xa0] sm:$0xff]
        %v2278 = vld [vmem:[%s2256 + $0xa8] sm:$0xff]
        %v2279 = vld [vmem:[%s2256 + $0xb0] sm:$0xff]
        %v2280 = vld [vmem:[%s2256 + $0xb8] sm:$0xff]
        %v2281 = vld [vmem:[%s2256 + $0xc0] sm:$0xff]
        %v2282 = vld [vmem:[%s2256 + $0xc8] sm:$0xff]
        %v2283 = vld [vmem:[%s2256 + $0xd0] sm:$0xff]
        %v2284 = vld [vmem:[%s2256 + $0xd8] sm:$0xff]
        %v2285 = vld [vmem:[%s2256 + $0xe0] sm:$0xff]
        %v2286 = vld [vmem:[%s2256 + $0xe8] sm:$0xff]
        %s2287 = scalar_lea.vmem [#allocation2], %s2254
        %v2288 = vld [vmem:[%s2287] sm:$0xff]
        %v2289 = vld [vmem:[%s2287 + $0x8] sm:$0xff]
        %v2290 = vld [vmem:[%s2287 + $0x10] sm:$0xff]
        %v2291 = vld [vmem:[%s2287 + $0x18] sm:$0xff]
        %v2292 = vld [vmem:[%s2287 + $0x20] sm:$0xff]
        %v2293 = vld [vmem:[%s2287 + $0x28] sm:$0xff]
        %v2294 = vld [vmem:[%s2287 + $0x30] sm:$0xff]
        %v2295 = vld [vmem:[%s2287 + $0x38] sm:$0xff]
        %v2296 = vld [vmem:[%s2287 + $0x40] sm:$0xff]
        %v2297 = vld [vmem:[%s2287 + $0x48] sm:$0xff]
        %v2298 = vld [vmem:[%s2287 + $0x50] sm:$0xff]
        %v2299 = vld [vmem:[%s2287 + $0x58] sm:$0xff]
        %v2300 = vld [vmem:[%s2287 + $0x60] sm:$0xff]
        %v2301 = vld [vmem:[%s2287 + $0x68] sm:$0xff]
        %v2302 = vld [vmem:[%s2287 + $0x70] sm:$0xff]
        %v2303 = vld [vmem:[%s2287 + $0x78] sm:$0xff]
        %v2304 = vld [vmem:[%s2287 + $0x80] sm:$0xff]
        %v2305 = vld [vmem:[%s2287 + $0x88] sm:$0xff]
        %v2306 = vld [vmem:[%s2287 + $0x90] sm:$0xff]
        %v2307 = vld [vmem:[%s2287 + $0x98] sm:$0xff]
        %v2308 = vld [vmem:[%s2287 + $0xa0] sm:$0xff]
        %v2309 = vld [vmem:[%s2287 + $0xa8] sm:$0xff]
        %v2310 = vld [vmem:[%s2287 + $0xb0] sm:$0xff]
        %v2311 = vld [vmem:[%s2287 + $0xb8] sm:$0xff]
        %v2312 = vld [vmem:[%s2287 + $0xc0] sm:$0xff]
        %v2313 = vld [vmem:[%s2287 + $0xc8] sm:$0xff]
        %v2314 = vld [vmem:[%s2287 + $0xd0] sm:$0xff]
        %v2315 = vld [vmem:[%s2287 + $0xd8] sm:$0xff]
        %v2316 = vld [vmem:[%s2287 + $0xe0] sm:$0xff]
        %v2317 = vld [vmem:[%s2287 + $0xe8] sm:$0xff]
        %s2318 = sadd.s32 %s2254, 1
        %s2319 = scalar_lea.vmem [#allocation2], %s2318
        %v2320 = vld [vmem:[%s2319] sm:$0xff]
        %v2321 = vld [vmem:[%s2319 + $0x8] sm:$0xff]
        %v2322 = vld [vmem:[%s2319 + $0x10] sm:$0xff]
        %v2323 = vld [vmem:[%s2319 + $0x18] sm:$0xff]
        %v2324 = vld [vmem:[%s2319 + $0x20] sm:$0xff]
        %v2325 = vld [vmem:[%s2319 + $0x28] sm:$0xff]
        %v2326 = vld [vmem:[%s2319 + $0x30] sm:$0xff]
        %v2327 = vld [vmem:[%s2319 + $0x38] sm:$0xff]
        %v2328 = vld [vmem:[%s2319 + $0x40] sm:$0xff]
        %v2329 = vld [vmem:[%s2319 + $0x48] sm:$0xff]
        %v2330 = vld [vmem:[%s2319 + $0x50] sm:$0xff]
        %v2331 = vld [vmem:[%s2319 + $0x58] sm:$0xff]
        %v2332 = vld [vmem:[%s2319 + $0x60] sm:$0xff]
        %v2333 = vld [vmem:[%s2319 + $0x68] sm:$0xff]
        %v2334 = vld [vmem:[%s2319 + $0x70] sm:$0xff]
        %v2335 = vld [vmem:[%s2319 + $0x78] sm:$0xff]
        %v2336 = vld [vmem:[%s2319 + $0x80] sm:$0xff]
        %v2337 = vld [vmem:[%s2319 + $0x88] sm:$0xff]
        %v2338 = vld [vmem:[%s2319 + $0x90] sm:$0xff]
        %v2339 = vld [vmem:[%s2319 + $0x98] sm:$0xff]
        %v2340 = vld [vmem:[%s2319 + $0xa0] sm:$0xff]
        %v2341 = vld [vmem:[%s2319 + $0xa8] sm:$0xff]
        %v2342 = vld [vmem:[%s2319 + $0xb0] sm:$0xff]
        %v2343 = vld [vmem:[%s2319 + $0xb8] sm:$0xff]
        %v2344 = vld [vmem:[%s2319 + $0xc0] sm:$0xff]
        %v2345 = vld [vmem:[%s2319 + $0xc8] sm:$0xff]
        %v2346 = vld [vmem:[%s2319 + $0xd0] sm:$0xff]
        %v2347 = vld [vmem:[%s2319 + $0xd8] sm:$0xff]
        %v2348 = vld [vmem:[%s2319 + $0xe0] sm:$0xff]
        %v2349 = vld [vmem:[%s2319 + $0xe8] sm:$0xff]
        %s2350 = scalar_lea.vmem %s3, 384
        %v2351 = vld [vmem:[%s2350] sm:$0xff]
        %v2352 = vld [vmem:[%s2350 + $0x8] sm:$0xff]
        %v2353 = vld [vmem:[%s2350 + $0x10] sm:$0xff]
        %v2354 = vld [vmem:[%s2350 + $0x18] sm:$0xff]
        %v2355 = vld [vmem:[%s2350 + $0x20] sm:$0xff]
        %v2356 = vld [vmem:[%s2350 + $0x28] sm:$0xff]
        %v2357 = vld [vmem:[%s2350 + $0x30] sm:$0xff]
        %v2358 = vld [vmem:[%s2350 + $0x38] sm:$0xff]
        %v2359 = vld [vmem:[%s2350 + $0x40] sm:$0xff]
        %v2360 = vld [vmem:[%s2350 + $0x48] sm:$0xff]
        %v2361 = vld [vmem:[%s2350 + $0x50] sm:$0xff]
        %v2362 = vld [vmem:[%s2350 + $0x58] sm:$0xff]
        %v2363 = vld [vmem:[%s2350 + $0x60] sm:$0xff]
        %v2364 = vld [vmem:[%s2350 + $0x68] sm:$0xff]
        %v2365 = vld [vmem:[%s2350 + $0x70] sm:$0xff]
        %v2366 = vld [vmem:[%s2350 + $0x78] sm:$0xff]
        %v2367 = vld [vmem:[%s2350 + $0x80] sm:$0xff]
        %v2368 = vld [vmem:[%s2350 + $0x88] sm:$0xff]
        %v2369 = vld [vmem:[%s2350 + $0x90] sm:$0xff]
        %v2370 = vld [vmem:[%s2350 + $0x98] sm:$0xff]
        %v2371 = vld [vmem:[%s2350 + $0xa0] sm:$0xff]
        %v2372 = vld [vmem:[%s2350 + $0xa8] sm:$0xff]
        %v2373 = vld [vmem:[%s2350 + $0xb0] sm:$0xff]
        %v2374 = vld [vmem:[%s2350 + $0xb8] sm:$0xff]
        %v2375 = vld [vmem:[%s2350 + $0xc0] sm:$0xff]
        %v2376 = vld [vmem:[%s2350 + $0xc8] sm:$0xff]
        %v2377 = vld [vmem:[%s2350 + $0xd0] sm:$0xff]
        %v2378 = vld [vmem:[%s2350 + $0xd8] sm:$0xff]
        %v2379 = vld [vmem:[%s2350 + $0xe0] sm:$0xff]
        %v2380 = vld [vmem:[%s2350 + $0xe8] sm:$0xff]
        %v2381 = vld [vmem:[%s2350 + $0xf0] sm:$0xff]
        %v2382 = vld [vmem:[%s2350 + $0xf8] sm:$0xff]
        %v2383 = vld [vmem:[%s2350 + $0x100] sm:$0xff]
        %v2384 = vld [vmem:[%s2350 + $0x108] sm:$0xff]
        %v2385 = vld [vmem:[%s2350 + $0x110] sm:$0xff]
        %v2386 = vld [vmem:[%s2350 + $0x118] sm:$0xff]
        %v2387 = vld [vmem:[%s2350 + $0x120] sm:$0xff]
        %v2388 = vld [vmem:[%s2350 + $0x128] sm:$0xff]
        %v2389 = vld [vmem:[%s2350 + $0x130] sm:$0xff]
        %v2390 = vld [vmem:[%s2350 + $0x138] sm:$0xff]
        %v2391 = vld [vmem:[%s2350 + $0x140] sm:$0xff]
        %v2392 = vld [vmem:[%s2350 + $0x148] sm:$0xff]
        %v2393 = vld [vmem:[%s2350 + $0x150] sm:$0xff]
        %v2394 = vld [vmem:[%s2350 + $0x158] sm:$0xff]
        %v2395 = vld [vmem:[%s2350 + $0x160] sm:$0xff]
        %v2396 = vld [vmem:[%s2350 + $0x168] sm:$0xff]
        %v2397 = vld [vmem:[%s2350 + $0x170] sm:$0xff]
        %v2398 = vld [vmem:[%s2350 + $0x178] sm:$0xff]
        %2399 = vmatprep.subr.mxu0 0.0
        %2400 = vmatpush1.msra.mxu0 %v2351
        %2401 = vmatprep.subr.mxu0 0.0
        %2402 = vmatpush1.msra.mxu0 %v2352
        %2403 = vmatprep.subr.mxu0 0.0
        %2404 = vmatpush1.msra.mxu0 %v2353
        %2405 = vmatprep.subr.mxu0 0.0
        %2406 = vmatpush1.msra.mxu0 %v2354
        %2407 = vmatprep.subr.mxu0 0.0
        %2408 = vmatpush1.msra.mxu0 %v2355
        %2409 = vmatprep.subr.mxu0 0.0
        %2410 = vmatpush1.msra.mxu0 %v2356
        %2411 = vmatprep.subr.mxu0 0.0
        %2412 = vmatpush1.msra.mxu0 %v2357
        %2413 = vmatprep.subr.mxu0 0.0
        %2414 = vmatpush1.msra.mxu0 %v2358
        %2415 = vmatprep.subr.mxu0 0.0
        %2416 = vmatpush1.msra.mxu0 %v2359
        %2417 = vmatprep.subr.mxu0 0.0
        %2418 = vmatpush1.msra.mxu0 %v2360
        %2419 = vmatprep.subr.mxu0 0.0
        %2420 = vmatpush1.msra.mxu0 %v2361
        %2421 = vmatprep.subr.mxu0 0.0
        %2422 = vmatpush1.msra.mxu0 %v2362
        %2423 = vmatprep.subr.mxu0 0.0
        %2424 = vmatpush1.msra.mxu0 %v2363
        %2425 = vmatprep.subr.mxu0 0.0
        %2426 = vmatpush1.msra.mxu0 %v2364
        %2427 = vmatprep.subr.mxu0 0.0
        %2428 = vmatpush1.msra.mxu0 %v2365
        %2429 = vmatprep.subr.mxu0 0.0
        %2430 = vmatpush1.msra.mxu0 %v2366
        %2431 = vmatprep.subr.mxu0 0.0
        %2432 = vmatpush1.msra.mxu0 %v2367
        %2433 = vmatprep.subr.mxu0 0.0
        %2434 = vmatpush1.msra.mxu0 %v2368
        %2435 = vmatprep.subr.mxu0 0.0
        %2436 = vmatpush1.msra.mxu0 %v2369
        %2437 = vmatprep.subr.mxu0 0.0
        %2438 = vmatpush1.msra.mxu0 %v2370
        %2439 = vmatprep.subr.mxu0 0.0
        %2440 = vmatpush1.msra.mxu0 %v2371
        %2441 = vmatprep.subr.mxu0 0.0
        %2442 = vmatpush1.msra.mxu0 %v2372
        %2443 = vmatprep.subr.mxu0 0.0
        %2444 = vmatpush1.msra.mxu0 %v2373
        %2445 = vmatprep.subr.mxu0 0.0
        %2446 = vmatpush1.msra.mxu0 %v2374
        %2447 = vmatprep.subr.mxu0 0.0
        %2448 = vmatpush1.msra.mxu0 %v2375
        %2449 = vmatprep.subr.mxu0 0.0
        %2450 = vmatpush1.msra.mxu0 %v2376
        %2451 = vmatprep.subr.mxu0 0.0
        %2452 = vmatpush1.msra.mxu0 %v2377
        %2453 = vmatprep.subr.mxu0 0.0
        %2454 = vmatpush1.msra.mxu0 %v2378
        %2455 = vmatprep.subr.mxu0 0.0
        %2456 = vmatpush1.msra.mxu0 %v2379
        %2457 = vmatprep.subr.mxu0 0.0
        %2458 = vmatpush1.msra.mxu0 %v2380
        %2459 = vmatprep.subr.mxu0 0.0
        %2460 = vmatpush1.msra.mxu0 %v2381
        %2461 = vmatprep.subr.mxu0 0.0
        %2462 = vmatpush1.msra.mxu0 %v2382
        %2463 = vmatprep.mubr.f32.mxu0 %v2288
        %2464 = vmatmul.mubr.f32.gmra.mrb[0].mxu0 %v2257
        %v2465 = vpop.f32.mrb[0].mxu0
        %v2466 = vadd.f32 0.0, %v2465
        %v2467 = vpop.f32.mrb[0].mxu0
        %2468 = vmatprep.mubr.f32.mxu0 %v2289
        %2469 = vmatmul.mubr.f32.gmra.mrb[0].mxu0 %v2258
        %v2470 = vpop.f32.mrb[0].mxu0
        %v2471 = vadd.f32 0.0, %v2470
        %v2472 = vpop.f32.mrb[0].mxu0
        %2473 = vmatprep.mubr.f32.mxu0 %v2290
        %2474 = vmatmul.mubr.f32.gmra.mrb[0].mxu0 %v2259
        %v2475 = vpop.f32.mrb[0].mxu0
        %v2476 = vadd.f32 0.0, %v2475
        %v2477 = vpop.f32.mrb[0].mxu0
        %2478 = vmatprep.mubr.f32.mxu0 %v2291
        %2479 = vmatmul.mubr.f32.gmra.mrb[0].mxu0 %v2260
        %v2480 = vpop.f32.mrb[0].mxu0
        %v2481 = vadd.f32 0.0, %v2480
        %v2482 = vpop.f32.mrb[0].mxu0
        %2483 = vmatprep.mubr.f32.mxu0 %v2292
        %2484 = vmatmul.mubr.f32.gmra.mrb[0].mxu0 %v2261
        %v2485 = vpop.f32.mrb[0].mxu0
        %v2486 = vadd.f32 0.0, %v2485
        %v2487 = vpop.f32.mrb[0].mxu0
        %2488 = vmatprep.mubr.f32.mxu0 %v2293
        %2489 = vmatmul.mubr.f32.gmra.mrb[0].mxu0 %v2262
        %v2490 = vpop.f32.mrb[0].mxu0
        %v2491 = vadd.f32 0.0, %v2490
        %v2492 = vpop.f32.mrb[0].mxu0
        %2493 = vmatprep.mubr.f32.mxu0 %v2294
        %2494 = vmatmul.mubr.f32.gmra.mrb[0].mxu0 %v2263
        %v2495 = vpop.f32.mrb[0].mxu0
        %v2496 = vadd.f32 0.0, %v2495
        %v2497 = vpop.f32.mrb[0].mxu0
        %2498 = vmatprep.mubr.f32.mxu0 %v2295
        %2499 = vmatmul.mubr.f32.gmra.mrb[0].mxu0 %v2264
        %v2500 = vpop.f32.mrb[0].mxu0
        %v2501 = vadd.f32 0.0, %v2500
        %v2502 = vpop.f32.mrb[0].mxu0
        %2503 = vmatprep.mubr.f32.mxu0 %v2296
        %2504 = vmatmul.mubr.f32.gmra.mrb[0].mxu0 %v2265
        %v2505 = vpop.f32.mrb[0].mxu0
        %v2506 = vadd.f32 0.0, %v2505
        %v2507 = vpop.f32.mrb[0].mxu0
        %2508 = vmatprep.mubr.f32.mxu0 %v2297
        %2509 = vmatmul.mubr.f32.gmra.mrb[0].mxu0 %v2266
        %v2510 = vpop.f32.mrb[0].mxu0
        %v2511 = vadd.f32 0.0, %v2510
        %v2512 = vpop.f32.mrb[0].mxu0
        %2513 = vmatprep.mubr.f32.mxu0 %v2298
        %2514 = vmatmul.mubr.f32.gmra.mrb[0].mxu0 %v2267
        %v2515 = vpop.f32.mrb[0].mxu0
        %v2516 = vadd.f32 0.0, %v2515
        %v2517 = vpop.f32.mrb[0].mxu0
        %2518 = vmatprep.mubr.f32.mxu0 %v2299
        %2519 = vmatmul.mubr.f32.gmra.mrb[0].mxu0 %v2268
        %v2520 = vpop.f32.mrb[0].mxu0
        %v2521 = vadd.f32 0.0, %v2520
        %v2522 = vpop.f32.mrb[0].mxu0
        %2523 = vmatprep.mubr.f32.mxu0 %v2300
        %2524 = vmatmul.mubr.f32.gmra.mrb[0].mxu0 %v2269
        %v2525 = vpop.f32.mrb[0].mxu0
        %v2526 = vadd.f32 0.0, %v2525
        %v2527 = vpop.f32.mrb[0].mxu0
        %2528 = vmatprep.mubr.f32.mxu0 %v2301
        %2529 = vmatmul.mubr.f32.gmra.mrb[0].mxu0 %v2270
        %v2530 = vpop.f32.mrb[0].mxu0
        %v2531 = vadd.f32 0.0, %v2530
        %v2532 = vpop.f32.mrb[0].mxu0
        %2533 = vmatprep.mubr.f32.mxu0 %v2302
        %2534 = vmatmul.mubr.f32.gmra.mrb[0].mxu0 %v2271
        %v2535 = vpop.f32.mrb[0].mxu0
        %v2536 = vadd.f32 0.0, %v2535
        %v2537 = vpop.f32.mrb[0].mxu0
        %2538 = vmatprep.mubr.f32.mxu0 %v2303
        %2539 = vmatmul.mubr.f32.gmra.mrb[0].mxu0 %v2272
        %v2540 = vpop.f32.mrb[0].mxu0
        %v2541 = vadd.f32 0.0, %v2540
        %v2542 = vpop.f32.mrb[0].mxu0
        %2543 = vmatprep.mubr.f32.mxu0 %v2304
        %2544 = vmatmul.mubr.f32.gmra.mrb[0].mxu0 %v2273
        %v2545 = vpop.f32.mrb[0].mxu0
        %v2546 = vadd.f32 0.0, %v2545
        %v2547 = vpop.f32.mrb[0].mxu0
        %2548 = vmatprep.mubr.f32.mxu0 %v2305
        %2549 = vmatmul.mubr.f32.gmra.mrb[0].mxu0 %v2274
        %v2550 = vpop.f32.mrb[0].mxu0
        %v2551 = vadd.f32 0.0, %v2550
        %v2552 = vpop.f32.mrb[0].mxu0
        %2553 = vmatprep.mubr.f32.mxu0 %v2306
        %2554 = vmatmul.mubr.f32.gmra.mrb[0].mxu0 %v2275
        %v2555 = vpop.f32.mrb[0].mxu0
        %v2556 = vadd.f32 0.0, %v2555
        %v2557 = vpop.f32.mrb[0].mxu0
        %2558 = vmatprep.mubr.f32.mxu0 %v2307
        %2559 = vmatmul.mubr.f32.gmra.mrb[0].mxu0 %v2276
        %v2560 = vpop.f32.mrb[0].mxu0
        %v2561 = vadd.f32 0.0, %v2560
        %v2562 = vpop.f32.mrb[0].mxu0
        %2563 = vmatprep.mubr.f32.mxu0 %v2308
        %2564 = vmatmul.mubr.f32.gmra.mrb[0].mxu0 %v2277
        %v2565 = vpop.f32.mrb[0].mxu0
        %v2566 = vadd.f32 0.0, %v2565
        %v2567 = vpop.f32.mrb[0].mxu0
        %2568 = vmatprep.mubr.f32.mxu0 %v2309
        %2569 = vmatmul.mubr.f32.gmra.mrb[0].mxu0 %v2278
        %v2570 = vpop.f32.mrb[0].mxu0
        %v2571 = vadd.f32 0.0, %v2570
        %v2572 = vpop.f32.mrb[0].mxu0
        %2573 = vmatprep.mubr.f32.mxu0 %v2310
        %2574 = vmatmul.mubr.f32.gmra.mrb[0].mxu0 %v2279
        %v2575 = vpop.f32.mrb[0].mxu0
        %v2576 = vadd.f32 0.0, %v2575
        %v2577 = vpop.f32.mrb[0].mxu0
        %2578 = vmatprep.mubr.f32.mxu0 %v2311
        %2579 = vmatmul.mubr.f32.gmra.mrb[0].mxu0 %v2280
        %v2580 = vpop.f32.mrb[0].mxu0
        %v2581 = vadd.f32 0.0, %v2580
        %v2582 = vpop.f32.mrb[0].mxu0
        %2583 = vmatprep.mubr.f32.mxu0 %v2312
        %2584 = vmatmul.mubr.f32.gmra.mrb[0].mxu0 %v2281
        %v2585 = vpop.f32.mrb[0].mxu0
        %v2586 = vadd.f32 0.0, %v2585
        %v2587 = vpop.f32.mrb[0].mxu0
        %2588 = vmatprep.mubr.f32.mxu0 %v2313
        %2589 = vmatmul.mubr.f32.gmra.mrb[0].mxu0 %v2282
        %v2590 = vpop.f32.mrb[0].mxu0
        %v2591 = vadd.f32 0.0, %v2590
        %v2592 = vpop.f32.mrb[0].mxu0
        %2593 = vmatprep.mubr.f32.mxu0 %v2314
        %2594 = vmatmul.mubr.f32.gmra.mrb[0].mxu0 %v2283
        %v2595 = vpop.f32.mrb[0].mxu0
        %v2596 = vadd.f32 0.0, %v2595
        %v2597 = vpop.f32.mrb[0].mxu0
        %2598 = vmatprep.mubr.f32.mxu0 %v2315
        %2599 = vmatmul.mubr.f32.gmra.mrb[0].mxu0 %v2284
        %v2600 = vpop.f32.mrb[0].mxu0
        %v2601 = vadd.f32 0.0, %v2600
        %v2602 = vpop.f32.mrb[0].mxu0
        %2603 = vmatprep.mubr.f32.mxu0 %v2316
        %2604 = vmatmul.mubr.f32.gmra.mrb[0].mxu0 %v2285
        %v2605 = vpop.f32.mrb[0].mxu0
        %v2606 = vadd.f32 0.0, %v2605
        %v2607 = vpop.f32.mrb[0].mxu0
        %2608 = vmatprep.mubr.f32.mxu0 %v2317
        %2609 = vmatmul.mubr.f32.gmra.mrb[0].mxu0 %v2286
        %v2610 = vpop.f32.mrb[0].mxu0
        %v2611 = vadd.f32 0.0, %v2610
        %v2612 = vpop.f32.mrb[0].mxu0
        %2613 = vdwg.mxu0
        %2614 = vmatprep.subr.mxu0 0.0
        %2615 = vmatpush1.msra.mxu0 %v2383
        %2616 = vmatprep.subr.mxu0 0.0
        %2617 = vmatpush1.msra.mxu0 %v2384
        %2618 = vmatprep.subr.mxu0 0.0
        %2619 = vmatpush1.msra.mxu0 %v2385
        %2620 = vmatprep.subr.mxu0 0.0
        %2621 = vmatpush1.msra.mxu0 %v2386
        %2622 = vmatprep.subr.mxu0 0.0
        %2623 = vmatpush1.msra.mxu0 %v2387
        %2624 = vmatprep.subr.mxu0 0.0
        %2625 = vmatpush1.msra.mxu0 %v2388
        %2626 = vmatprep.subr.mxu0 0.0
        %2627 = vmatpush1.msra.mxu0 %v2389
        %2628 = vmatprep.subr.mxu0 0.0
        %2629 = vmatpush1.msra.mxu0 %v2390
        %2630 = vmatprep.subr.mxu0 0.0
        %2631 = vmatpush1.msra.mxu0 %v2391
        %2632 = vmatprep.subr.mxu0 0.0
        %2633 = vmatpush1.msra.mxu0 %v2392
        %2634 = vmatprep.subr.mxu0 0.0
        %2635 = vmatpush1.msra.mxu0 %v2393
        %2636 = vmatprep.subr.mxu0 0.0
        %2637 = vmatpush1.msra.mxu0 %v2394
        %2638 = vmatprep.subr.mxu0 0.0
        %2639 = vmatpush1.msra.mxu0 %v2395
        %2640 = vmatprep.subr.mxu0 0.0
        %2641 = vmatpush1.msra.mxu0 %v2396
        %2642 = vmatprep.subr.mxu0 0.0
        %2643 = vmatpush1.msra.mxu0 %v2397
        %2644 = vmatprep.subr.mxu0 0.0
        %2645 = vmatpush1.msra.mxu0 %v2398
        %2646 = vmatprep.subr.mxu0 0.0
        %2647 = vmatpush1.msra.mxu0 0.0
        %2648 = vmatprep.subr.mxu0 0.0
        %2649 = vmatpush1.msra.mxu0 0.0
        %2650 = vmatprep.subr.mxu0 0.0
        %2651 = vmatpush1.msra.mxu0 0.0
        %2652 = vmatprep.subr.mxu0 0.0
        %2653 = vmatpush1.msra.mxu0 0.0
        %2654 = vmatprep.subr.mxu0 0.0
        %2655 = vmatpush1.msra.mxu0 0.0
        %2656 = vmatprep.subr.mxu0 0.0
        %2657 = vmatpush1.msra.mxu0 0.0
        %2658 = vmatprep.subr.mxu0 0.0
        %2659 = vmatpush1.msra.mxu0 0.0
        %2660 = vmatprep.subr.mxu0 0.0
        %2661 = vmatpush1.msra.mxu0 0.0
        %2662 = vmatprep.subr.mxu0 0.0
        %2663 = vmatpush1.msra.mxu0 0.0
        %2664 = vmatprep.subr.mxu0 0.0
        %2665 = vmatpush1.msra.mxu0 0.0
        %2666 = vmatprep.subr.mxu0 0.0
        %2667 = vmatpush1.msra.mxu0 0.0
        %2668 = vmatprep.subr.mxu0 0.0
        %2669 = vmatpush1.msra.mxu0 0.0
        %2670 = vmatprep.subr.mxu0 0.0
        %2671 = vmatpush1.msra.mxu0 0.0
        %2672 = vmatprep.subr.mxu0 0.0
        %2673 = vmatpush1.msra.mxu0 0.0
        %2674 = vmatprep.subr.mxu0 0.0
        %2675 = vmatpush1.msra.mxu0 0.0
        %2676 = vmatprep.subr.mxu0 0.0
        %2677 = vmatpush1.msra.mxu0 0.0
        %2678 = vmatprep.mubr.f32.mxu0 0.0
        %2679 = vmatmul.mubr.f32.gmra.mrb[0].mxu0 %v2320
        %v2680 = vpop.f32.mrb[0].mxu0
        %v2681 = vadd.f32 %v2466, %v2680
        %v2682 = vpop.f32.mrb[0].mxu0
        %2683 = vmatprep.mubr.f32.mxu0 0.0
        %2684 = vmatmul.mubr.f32.gmra.mrb[0].mxu0 %v2321
        %v2685 = vpop.f32.mrb[0].mxu0
        %v2686 = vadd.f32 %v2471, %v2685
        %v2687 = vpop.f32.mrb[0].mxu0
        %2688 = vmatprep.mubr.f32.mxu0 0.0
        %2689 = vmatmul.mubr.f32.gmra.mrb[0].mxu0 %v2322
        %v2690 = vpop.f32.mrb[0].mxu0
        %v2691 = vadd.f32 %v2476, %v2690
        %v2692 = vpop.f32.mrb[0].mxu0
        %2693 = vmatprep.mubr.f32.mxu0 0.0
        %2694 = vmatmul.mubr.f32.gmra.mrb[0].mxu0 %v2323
        %v2695 = vpop.f32.mrb[0].mxu0
        %v2696 = vadd.f32 %v2481, %v2695
        %v2697 = vpop.f32.mrb[0].mxu0
        %2698 = vmatprep.mubr.f32.mxu0 0.0
        %2699 = vmatmul.mubr.f32.gmra.mrb[0].mxu0 %v2324
        %v2700 = vpop.f32.mrb[0].mxu0
        %v2701 = vadd.f32 %v2486, %v2700
        %v2702 = vpop.f32.mrb[0].mxu0
        %2703 = vmatprep.mubr.f32.mxu0 0.0
        %2704 = vmatmul.mubr.f32.gmra.mrb[0].mxu0 %v2325
        %v2705 = vpop.f32.mrb[0].mxu0
        %v2706 = vadd.f32 %v2491, %v2705
        %v2707 = vpop.f32.mrb[0].mxu0
        %2708 = vmatprep.mubr.f32.mxu0 0.0
        %2709 = vmatmul.mubr.f32.gmra.mrb[0].mxu0 %v2326
        %v2710 = vpop.f32.mrb[0].mxu0
        %v2711 = vadd.f32 %v2496, %v2710
        %v2712 = vpop.f32.mrb[0].mxu0
        %2713 = vmatprep.mubr.f32.mxu0 0.0
        %2714 = vmatmul.mubr.f32.gmra.mrb[0].mxu0 %v2327
        %v2715 = vpop.f32.mrb[0].mxu0
        %v2716 = vadd.f32 %v2501, %v2715
        %v2717 = vpop.f32.mrb[0].mxu0
        %2718 = vmatprep.mubr.f32.mxu0 0.0
        %2719 = vmatmul.mubr.f32.gmra.mrb[0].mxu0 %v2328
        %v2720 = vpop.f32.mrb[0].mxu0
        %v2721 = vadd.f32 %v2506, %v2720
        %v2722 = vpop.f32.mrb[0].mxu0
        %2723 = vmatprep.mubr.f32.mxu0 0.0
        %2724 = vmatmul.mubr.f32.gmra.mrb[0].mxu0 %v2329
        %v2725 = vpop.f32.mrb[0].mxu0
        %v2726 = vadd.f32 %v2511, %v2725
        %v2727 = vpop.f32.mrb[0].mxu0
        %2728 = vmatprep.mubr.f32.mxu0 0.0
        %2729 = vmatmul.mubr.f32.gmra.mrb[0].mxu0 %v2330
        %v2730 = vpop.f32.mrb[0].mxu0
        %v2731 = vadd.f32 %v2516, %v2730
        %v2732 = vpop.f32.mrb[0].mxu0
        %2733 = vmatprep.mubr.f32.mxu0 0.0
        %2734 = vmatmul.mubr.f32.gmra.mrb[0].mxu0 %v2331
        %v2735 = vpop.f32.mrb[0].mxu0
        %v2736 = vadd.f32 %v2521, %v2735
        %v2737 = vpop.f32.mrb[0].mxu0
        %2738 = vmatprep.mubr.f32.mxu0 0.0
        %2739 = vmatmul.mubr.f32.gmra.mrb[0].mxu0 %v2332
        %v2740 = vpop.f32.mrb[0].mxu0
        %v2741 = vadd.f32 %v2526, %v2740
        %v2742 = vpop.f32.mrb[0].mxu0
        %2743 = vmatprep.mubr.f32.mxu0 0.0
        %2744 = vmatmul.mubr.f32.gmra.mrb[0].mxu0 %v2333
        %v2745 = vpop.f32.mrb[0].mxu0
        %v2746 = vadd.f32 %v2531, %v2745
        %v2747 = vpop.f32.mrb[0].mxu0
        %2748 = vmatprep.mubr.f32.mxu0 0.0
        %2749 = vmatmul.mubr.f32.gmra.mrb[0].mxu0 %v2334
        %v2750 = vpop.f32.mrb[0].mxu0
        %v2751 = vadd.f32 %v2536, %v2750
        %v2752 = vpop.f32.mrb[0].mxu0
        %2753 = vmatprep.mubr.f32.mxu0 0.0
        %2754 = vmatmul.mubr.f32.gmra.mrb[0].mxu0 %v2335
        %v2755 = vpop.f32.mrb[0].mxu0
        %v2756 = vadd.f32 %v2541, %v2755
        %v2757 = vpop.f32.mrb[0].mxu0
        %2758 = vmatprep.mubr.f32.mxu0 0.0
        %2759 = vmatmul.mubr.f32.gmra.mrb[0].mxu0 %v2336
        %v2760 = vpop.f32.mrb[0].mxu0
        %v2761 = vadd.f32 %v2546, %v2760
        %v2762 = vpop.f32.mrb[0].mxu0
        %2763 = vmatprep.mubr.f32.mxu0 0.0
        %2764 = vmatmul.mubr.f32.gmra.mrb[0].mxu0 %v2337
        %v2765 = vpop.f32.mrb[0].mxu0
        %v2766 = vadd.f32 %v2551, %v2765
        %v2767 = vpop.f32.mrb[0].mxu0
        %2768 = vmatprep.mubr.f32.mxu0 0.0
        %2769 = vmatmul.mubr.f32.gmra.mrb[0].mxu0 %v2338
        %v2770 = vpop.f32.mrb[0].mxu0
        %v2771 = vadd.f32 %v2556, %v2770
        %v2772 = vpop.f32.mrb[0].mxu0
        %2773 = vmatprep.mubr.f32.mxu0 0.0
        %2774 = vmatmul.mubr.f32.gmra.mrb[0].mxu0 %v2339
        %v2775 = vpop.f32.mrb[0].mxu0
        %v2776 = vadd.f32 %v2561, %v2775
        %v2777 = vpop.f32.mrb[0].mxu0
        %2778 = vmatprep.mubr.f32.mxu0 0.0
        %2779 = vmatmul.mubr.f32.gmra.mrb[0].mxu0 %v2340
        %v2780 = vpop.f32.mrb[0].mxu0
        %v2781 = vadd.f32 %v2566, %v2780
        %v2782 = vpop.f32.mrb[0].mxu0
        %2783 = vmatprep.mubr.f32.mxu0 0.0
        %2784 = vmatmul.mubr.f32.gmra.mrb[0].mxu0 %v2341
        %v2785 = vpop.f32.mrb[0].mxu0
        %v2786 = vadd.f32 %v2571, %v2785
        %v2787 = vpop.f32.mrb[0].mxu0
        %2788 = vmatprep.mubr.f32.mxu0 0.0
        %2789 = vmatmul.mubr.f32.gmra.mrb[0].mxu0 %v2342
        %v2790 = vpop.f32.mrb[0].mxu0
        %v2791 = vadd.f32 %v2576, %v2790
        %v2792 = vpop.f32.mrb[0].mxu0
        %2793 = vmatprep.mubr.f32.mxu0 0.0
        %2794 = vmatmul.mubr.f32.gmra.mrb[0].mxu0 %v2343
        %v2795 = vpop.f32.mrb[0].mxu0
        %v2796 = vadd.f32 %v2581, %v2795
        %v2797 = vpop.f32.mrb[0].mxu0
        %2798 = vmatprep.mubr.f32.mxu0 0.0
        %2799 = vmatmul.mubr.f32.gmra.mrb[0].mxu0 %v2344
        %v2800 = vpop.f32.mrb[0].mxu0
        %v2801 = vadd.f32 %v2586, %v2800
        %v2802 = vpop.f32.mrb[0].mxu0
        %2803 = vmatprep.mubr.f32.mxu0 0.0
        %2804 = vmatmul.mubr.f32.gmra.mrb[0].mxu0 %v2345
        %v2805 = vpop.f32.mrb[0].mxu0
        %v2806 = vadd.f32 %v2591, %v2805
        %v2807 = vpop.f32.mrb[0].mxu0
        %2808 = vmatprep.mubr.f32.mxu0 0.0
        %2809 = vmatmul.mubr.f32.gmra.mrb[0].mxu0 %v2346
        %v2810 = vpop.f32.mrb[0].mxu0
        %v2811 = vadd.f32 %v2596, %v2810
        %v2812 = vpop.f32.mrb[0].mxu0
        %2813 = vmatprep.mubr.f32.mxu0 0.0
        %2814 = vmatmul.mubr.f32.gmra.mrb[0].mxu0 %v2347
        %v2815 = vpop.f32.mrb[0].mxu0
        %v2816 = vadd.f32 %v2601, %v2815
        %v2817 = vpop.f32.mrb[0].mxu0
        %2818 = vmatprep.mubr.f32.mxu0 0.0
        %2819 = vmatmul.mubr.f32.gmra.mrb[0].mxu0 %v2348
        %v2820 = vpop.f32.mrb[0].mxu0
        %v2821 = vadd.f32 %v2606, %v2820
        %v2822 = vpop.f32.mrb[0].mxu0
        %2823 = vmatprep.mubr.f32.mxu0 0.0
        %2824 = vmatmul.mubr.f32.gmra.mrb[0].mxu0 %v2349
        %v2825 = vpop.f32.mrb[0].mxu0
        %v2826 = vadd.f32 %v2611, %v2825
        %v2827 = vpop.f32.mrb[0].mxu0
        %2828 = vdwg.mxu0
        %2829 = vmatprep.subr.mxu0 0.0
        %2830 = vmatpush1.msra.mxu0 %v2205
        %2831 = vmatprep.subr.mxu0 0.0
        %2832 = vmatpush1.msra.mxu0 %v2206
        %2833 = vmatprep.subr.mxu0 0.0
        %2834 = vmatpush1.msra.mxu0 %v2207
        %2835 = vmatprep.subr.mxu0 0.0
        %2836 = vmatpush1.msra.mxu0 %v2208
        %2837 = vmatprep.subr.mxu0 0.0
        %2838 = vmatpush1.msra.mxu0 %v2209
        %2839 = vmatprep.subr.mxu0 0.0
        %2840 = vmatpush1.msra.mxu0 %v2210
        %2841 = vmatprep.subr.mxu0 0.0
        %2842 = vmatpush1.msra.mxu0 %v2211
        %2843 = vmatprep.subr.mxu0 0.0
        %2844 = vmatpush1.msra.mxu0 %v2212
        %2845 = vmatprep.subr.mxu0 0.0
        %2846 = vmatpush1.msra.mxu0 %v2213
        %2847 = vmatprep.subr.mxu0 0.0
        %2848 = vmatpush1.msra.mxu0 %v2214
        %2849 = vmatprep.subr.mxu0 0.0
        %2850 = vmatpush1.msra.mxu0 %v2215
        %2851 = vmatprep.subr.mxu0 0.0
        %2852 = vmatpush1.msra.mxu0 %v2216
        %2853 = vmatprep.subr.mxu0 0.0
        %2854 = vmatpush1.msra.mxu0 %v2217
        %2855 = vmatprep.subr.mxu0 0.0
        %2856 = vmatpush1.msra.mxu0 %v2218
        %2857 = vmatprep.subr.mxu0 0.0
        %2858 = vmatpush1.msra.mxu0 %v2219
        %2859 = vmatprep.subr.mxu0 0.0
        %2860 = vmatpush1.msra.mxu0 %v2220
        %2861 = vmatprep.subr.mxu0 0.0
        %2862 = vmatpush1.msra.mxu0 %v2221
        %2863 = vmatprep.subr.mxu0 0.0
        %2864 = vmatpush1.msra.mxu0 %v2222
        %2865 = vmatprep.subr.mxu0 0.0
        %2866 = vmatpush1.msra.mxu0 %v2223
        %2867 = vmatprep.subr.mxu0 0.0
        %2868 = vmatpush1.msra.mxu0 %v2224
        %2869 = vmatprep.subr.mxu0 0.0
        %2870 = vmatpush1.msra.mxu0 %v2225
        %2871 = vmatprep.subr.mxu0 0.0
        %2872 = vmatpush1.msra.mxu0 %v2226
        %2873 = vmatprep.subr.mxu0 0.0
        %2874 = vmatpush1.msra.mxu0 %v2227
        %2875 = vmatprep.subr.mxu0 0.0
        %2876 = vmatpush1.msra.mxu0 %v2228
        %2877 = vmatprep.subr.mxu0 0.0
        %2878 = vmatpush1.msra.mxu0 %v2229
        %2879 = vmatprep.subr.mxu0 0.0
        %2880 = vmatpush1.msra.mxu0 %v2230
        %2881 = vmatprep.subr.mxu0 0.0
        %2882 = vmatpush1.msra.mxu0 %v2231
        %2883 = vmatprep.subr.mxu0 0.0
        %2884 = vmatpush1.msra.mxu0 %v2232
        %2885 = vmatprep.subr.mxu0 0.0
        %2886 = vmatpush1.msra.mxu0 %v2233
        %2887 = vmatprep.subr.mxu0 0.0
        %2888 = vmatpush1.msra.mxu0 %v2234
        %2889 = vmatprep.subr.mxu0 0.0
        %2890 = vmatpush1.msra.mxu0 %v2235
        %2891 = vmatprep.subr.mxu0 0.0
        %2892 = vmatpush1.msra.mxu0 %v2236
        %2893 = vmatprep.mubr.f32.mxu0 %v2143
        %2894 = vmatmul.mubr.f32.gmra.mrb[0].mxu0 %v2112
        %v2895 = vpop.f32.mrb[0].mxu0
        %v2896 = vadd.f32 %v2681, %v2895
        %v2897 = vpop.f32.mrb[0].mxu0
        %2898 = vmatprep.mubr.f32.mxu0 %v2144
        %2899 = vmatmul.mubr.f32.gmra.mrb[0].mxu0 %v2113
        %v2900 = vpop.f32.mrb[0].mxu0
        %v2901 = vadd.f32 %v2686, %v2900
        %v2902 = vpop.f32.mrb[0].mxu0
        %2903 = vmatprep.mubr.f32.mxu0 %v2145
        %2904 = vmatmul.mubr.f32.gmra.mrb[0].mxu0 %v2114
        %v2905 = vpop.f32.mrb[0].mxu0
        %v2906 = vadd.f32 %v2691, %v2905
        %v2907 = vpop.f32.mrb[0].mxu0
        %2908 = vmatprep.mubr.f32.mxu0 %v2146
        %2909 = vmatmul.mubr.f32.gmra.mrb[0].mxu0 %v2115
        %v2910 = vpop.f32.mrb[0].mxu0
        %v2911 = vadd.f32 %v2696, %v2910
        %v2912 = vpop.f32.mrb[0].mxu0
        %2913 = vmatprep.mubr.f32.mxu0 %v2147
        %2914 = vmatmul.mubr.f32.gmra.mrb[0].mxu0 %v2116
        %v2915 = vpop.f32.mrb[0].mxu0
        %v2916 = vadd.f32 %v2701, %v2915
        %v2917 = vpop.f32.mrb[0].mxu0
        %2918 = vmatprep.mubr.f32.mxu0 %v2148
        %2919 = vmatmul.mubr.f32.gmra.mrb[0].mxu0 %v2117
        %v2920 = vpop.f32.mrb[0].mxu0
        %v2921 = vadd.f32 %v2706, %v2920
        %v2922 = vpop.f32.mrb[0].mxu0
        %2923 = vmatprep.mubr.f32.mxu0 %v2149
        %2924 = vmatmul.mubr.f32.gmra.mrb[0].mxu0 %v2118
        %v2925 = vpop.f32.mrb[0].mxu0
        %v2926 = vadd.f32 %v2711, %v2925
        %v2927 = vpop.f32.mrb[0].mxu0
        %2928 = vmatprep.mubr.f32.mxu0 %v2150
        %2929 = vmatmul.mubr.f32.gmra.mrb[0].mxu0 %v2119
        %v2930 = vpop.f32.mrb[0].mxu0
        %v2931 = vadd.f32 %v2716, %v2930
        %v2932 = vpop.f32.mrb[0].mxu0
        %2933 = vmatprep.mubr.f32.mxu0 %v2151
        %2934 = vmatmul.mubr.f32.gmra.mrb[0].mxu0 %v2120
        %v2935 = vpop.f32.mrb[0].mxu0
        %v2936 = vadd.f32 %v2721, %v2935
        %v2937 = vpop.f32.mrb[0].mxu0
        %2938 = vmatprep.mubr.f32.mxu0 %v2152
        %2939 = vmatmul.mubr.f32.gmra.mrb[0].mxu0 %v2121
        %v2940 = vpop.f32.mrb[0].mxu0
        %v2941 = vadd.f32 %v2726, %v2940
        %v2942 = vpop.f32.mrb[0].mxu0
        %2943 = vmatprep.mubr.f32.mxu0 %v2153
        %2944 = vmatmul.mubr.f32.gmra.mrb[0].mxu0 %v2122
        %v2945 = vpop.f32.mrb[0].mxu0
        %v2946 = vadd.f32 %v2731, %v2945
        %v2947 = vpop.f32.mrb[0].mxu0
        %2948 = vmatprep.mubr.f32.mxu0 %v2154
        %2949 = vmatmul.mubr.f32.gmra.mrb[0].mxu0 %v2123
        %v2950 = vpop.f32.mrb[0].mxu0
        %v2951 = vadd.f32 %v2736, %v2950
        %v2952 = vpop.f32.mrb[0].mxu0
        %2953 = vmatprep.mubr.f32.mxu0 %v2155
        %2954 = vmatmul.mubr.f32.gmra.mrb[0].mxu0 %v2124
        %v2955 = vpop.f32.mrb[0].mxu0
        %v2956 = vadd.f32 %v2741, %v2955
        %v2957 = vpop.f32.mrb[0].mxu0
        %2958 = vmatprep.mubr.f32.mxu0 %v2156
        %2959 = vmatmul.mubr.f32.gmra.mrb[0].mxu0 %v2125
        %v2960 = vpop.f32.mrb[0].mxu0
        %v2961 = vadd.f32 %v2746, %v2960
        %v2962 = vpop.f32.mrb[0].mxu0
        %2963 = vmatprep.mubr.f32.mxu0 %v2157
        %2964 = vmatmul.mubr.f32.gmra.mrb[0].mxu0 %v2126
        %v2965 = vpop.f32.mrb[0].mxu0
        %v2966 = vadd.f32 %v2751, %v2965
        %v2967 = vpop.f32.mrb[0].mxu0
        %2968 = vmatprep.mubr.f32.mxu0 %v2158
        %2969 = vmatmul.mubr.f32.gmra.mrb[0].mxu0 %v2127
        %v2970 = vpop.f32.mrb[0].mxu0
        %v2971 = vadd.f32 %v2756, %v2970
        %v2972 = vpop.f32.mrb[0].mxu0
        %2973 = vmatprep.mubr.f32.mxu0 %v2159
        %2974 = vmatmul.mubr.f32.gmra.mrb[0].mxu0 %v2128
        %v2975 = vpop.f32.mrb[0].mxu0
        %v2976 = vadd.f32 %v2761, %v2975
        %v2977 = vpop.f32.mrb[0].mxu0
        %2978 = vmatprep.mubr.f32.mxu0 %v2160
        %2979 = vmatmul.mubr.f32.gmra.mrb[0].mxu0 %v2129
        %v2980 = vpop.f32.mrb[0].mxu0
        %v2981 = vadd.f32 %v2766, %v2980
        %v2982 = vpop.f32.mrb[0].mxu0
        %2983 = vmatprep.mubr.f32.mxu0 %v2161
        %2984 = vmatmul.mubr.f32.gmra.mrb[0].mxu0 %v2130
        %v2985 = vpop.f32.mrb[0].mxu0
        %v2986 = vadd.f32 %v2771, %v2985
        %v2987 = vpop.f32.mrb[0].mxu0
        %2988 = vmatprep.mubr.f32.mxu0 %v2162
        %2989 = vmatmul.mubr.f32.gmra.mrb[0].mxu0 %v2131
        %v2990 = vpop.f32.mrb[0].mxu0
        %v2991 = vadd.f32 %v2776, %v2990
        %v2992 = vpop.f32.mrb[0].mxu0
        %2993 = vmatprep.mubr.f32.mxu0 %v2163
        %2994 = vmatmul.mubr.f32.gmra.mrb[0].mxu0 %v2132
        %v2995 = vpop.f32.mrb[0].mxu0
        %v2996 = vadd.f32 %v2781, %v2995
        %v2997 = vpop.f32.mrb[0].mxu0
        %2998 = vmatprep.mubr.f32.mxu0 %v2164
        %2999 = vmatmul.mubr.f32.gmra.mrb[0].mxu0 %v2133
        %v3000 = vpop.f32.mrb[0].mxu0
        %v3001 = vadd.f32 %v2786, %v3000
        %v3002 = vpop.f32.mrb[0].mxu0
        %3003 = vmatprep.mubr.f32.mxu0 %v2165
        %3004 = vmatmul.mubr.f32.gmra.mrb[0].mxu0 %v2134
        %v3005 = vpop.f32.mrb[0].mxu0
        %v3006 = vadd.f32 %v2791, %v3005
        %v3007 = vpop.f32.mrb[0].mxu0
        %3008 = vmatprep.mubr.f32.mxu0 %v2166
        %3009 = vmatmul.mubr.f32.gmra.mrb[0].mxu0 %v2135
        %v3010 = vpop.f32.mrb[0].mxu0
        %v3011 = vadd.f32 %v2796, %v3010
        %v3012 = vpop.f32.mrb[0].mxu0
        %3013 = vmatprep.mubr.f32.mxu0 %v2167
        %3014 = vmatmul.mubr.f32.gmra.mrb[0].mxu0 %v2136
        %v3015 = vpop.f32.mrb[0].mxu0
        %v3016 = vadd.f32 %v2801, %v3015
        %v3017 = vpop.f32.mrb[0].mxu0
        %3018 = vmatprep.mubr.f32.mxu0 %v2168
        %3019 = vmatmul.mubr.f32.gmra.mrb[0].mxu0 %v2137
        %v3020 = vpop.f32.mrb[0].mxu0
        %v3021 = vadd.f32 %v2806, %v3020
        %v3022 = vpop.f32.mrb[0].mxu0
        %3023 = vmatprep.mubr.f32.mxu0 %v2169
        %3024 = vmatmul.mubr.f32.gmra.mrb[0].mxu0 %v2138
        %v3025 = vpop.f32.mrb[0].mxu0
        %v3026 = vadd.f32 %v2811, %v3025
        %v3027 = vpop.f32.mrb[0].mxu0
        %3028 = vmatprep.mubr.f32.mxu0 %v2170
        %3029 = vmatmul.mubr.f32.gmra.mrb[0].mxu0 %v2139
        %v3030 = vpop.f32.mrb[0].mxu0
        %v3031 = vadd.f32 %v2816, %v3030
        %v3032 = vpop.f32.mrb[0].mxu0
        %3033 = vmatprep.mubr.f32.mxu0 %v2171
        %3034 = vmatmul.mubr.f32.gmra.mrb[0].mxu0 %v2140
        %v3035 = vpop.f32.mrb[0].mxu0
        %v3036 = vadd.f32 %v2821, %v3035
        %v3037 = vpop.f32.mrb[0].mxu0
        %3038 = vmatprep.mubr.f32.mxu0 %v2172
        %3039 = vmatmul.mubr.f32.gmra.mrb[0].mxu0 %v2141
        %v3040 = vpop.f32.mrb[0].mxu0
        %v3041 = vadd.f32 %v2826, %v3040
        %v3042 = vpop.f32.mrb[0].mxu0
        %3043 = vdwg.mxu0
        %3044 = vmatprep.subr.mxu0 0.0
        %3045 = vmatpush1.msra.mxu0 %v2237
        %3046 = vmatprep.subr.mxu0 0.0
        %3047 = vmatpush1.msra.mxu0 %v2238
        %3048 = vmatprep.subr.mxu0 0.0
        %3049 = vmatpush1.msra.mxu0 %v2239
        %3050 = vmatprep.subr.mxu0 0.0
        %3051 = vmatpush1.msra.mxu0 %v2240
        %3052 = vmatprep.subr.mxu0 0.0
        %3053 = vmatpush1.msra.mxu0 %v2241
        %3054 = vmatprep.subr.mxu0 0.0
        %3055 = vmatpush1.msra.mxu0 %v2242
        %3056 = vmatprep.subr.mxu0 0.0
        %3057 = vmatpush1.msra.mxu0 %v2243
        %3058 = vmatprep.subr.mxu0 0.0
        %3059 = vmatpush1.msra.mxu0 %v2244
        %3060 = vmatprep.subr.mxu0 0.0
        %3061 = vmatpush1.msra.mxu0 %v2245
        %3062 = vmatprep.subr.mxu0 0.0
        %3063 = vmatpush1.msra.mxu0 %v2246
        %3064 = vmatprep.subr.mxu0 0.0
        %3065 = vmatpush1.msra.mxu0 %v2247
        %3066 = vmatprep.subr.mxu0 0.0
        %3067 = vmatpush1.msra.mxu0 %v2248
        %3068 = vmatprep.subr.mxu0 0.0
        %3069 = vmatpush1.msra.mxu0 %v2249
        %3070 = vmatprep.subr.mxu0 0.0
        %3071 = vmatpush1.msra.mxu0 %v2250
        %3072 = vmatprep.subr.mxu0 0.0
        %3073 = vmatpush1.msra.mxu0 %v2251
        %3074 = vmatprep.subr.mxu0 0.0
        %3075 = vmatpush1.msra.mxu0 %v2252
        %3076 = vmatprep.subr.mxu0 0.0
        %3077 = vmatpush1.msra.mxu0 0.0
        %3078 = vmatprep.subr.mxu0 0.0
        %3079 = vmatpush1.msra.mxu0 0.0
        %3080 = vmatprep.subr.mxu0 0.0
        %3081 = vmatpush1.msra.mxu0 0.0
        %3082 = vmatprep.subr.mxu0 0.0
        %3083 = vmatpush1.msra.mxu0 0.0
        %3084 = vmatprep.subr.mxu0 0.0
        %3085 = vmatpush1.msra.mxu0 0.0
        %3086 = vmatprep.subr.mxu0 0.0
        %3087 = vmatpush1.msra.mxu0 0.0
        %3088 = vmatprep.subr.mxu0 0.0
        %3089 = vmatpush1.msra.mxu0 0.0
        %3090 = vmatprep.subr.mxu0 0.0
        %3091 = vmatpush1.msra.mxu0 0.0
        %3092 = vmatprep.subr.mxu0 0.0
        %3093 = vmatpush1.msra.mxu0 0.0
        %3094 = vmatprep.subr.mxu0 0.0
        %3095 = vmatpush1.msra.mxu0 0.0
        %3096 = vmatprep.subr.mxu0 0.0
        %3097 = vmatpush1.msra.mxu0 0.0
        %3098 = vmatprep.subr.mxu0 0.0
        %3099 = vmatpush1.msra.mxu0 0.0
        %3100 = vmatprep.subr.mxu0 0.0
        %3101 = vmatpush1.msra.mxu0 0.0
        %3102 = vmatprep.subr.mxu0 0.0
        %3103 = vmatpush1.msra.mxu0 0.0
        %3104 = vmatprep.subr.mxu0 0.0
        %3105 = vmatpush1.msra.mxu0 0.0
        %3106 = vmatprep.subr.mxu0 0.0
        %3107 = vmatpush1.msra.mxu0 0.0
        %3108 = vmatprep.mubr.f32.mxu0 0.0
        %3109 = vmatmul.mubr.f32.gmra.mrb[0].mxu0 %v2175
        %v3110 = vpop.f32.mrb[0].mxu0
        %v3111 = vadd.f32 %v2896, %v3110
        %v3112 = vpop.f32.mrb[0].mxu0
        %3113 = vmatprep.mubr.f32.mxu0 0.0
        %3114 = vmatmul.mubr.f32.gmra.mrb[0].mxu0 %v2176
        %v3115 = vpop.f32.mrb[0].mxu0
        %v3116 = vadd.f32 %v2901, %v3115
        %v3117 = vpop.f32.mrb[0].mxu0
        %3118 = vmatprep.mubr.f32.mxu0 0.0
        %3119 = vmatmul.mubr.f32.gmra.mrb[0].mxu0 %v2177
        %v3120 = vpop.f32.mrb[0].mxu0
        %v3121 = vadd.f32 %v2906, %v3120
        %v3122 = vpop.f32.mrb[0].mxu0
        %3123 = vmatprep.mubr.f32.mxu0 0.0
        %3124 = vmatmul.mubr.f32.gmra.mrb[0].mxu0 %v2178
        %v3125 = vpop.f32.mrb[0].mxu0
        %v3126 = vadd.f32 %v2911, %v3125
        %v3127 = vpop.f32.mrb[0].mxu0
        %3128 = vmatprep.mubr.f32.mxu0 0.0
        %3129 = vmatmul.mubr.f32.gmra.mrb[0].mxu0 %v2179
        %v3130 = vpop.f32.mrb[0].mxu0
        %v3131 = vadd.f32 %v2916, %v3130
        %v3132 = vpop.f32.mrb[0].mxu0
        %3133 = vmatprep.mubr.f32.mxu0 0.0
        %3134 = vmatmul.mubr.f32.gmra.mrb[0].mxu0 %v2180
        %v3135 = vpop.f32.mrb[0].mxu0
        %v3136 = vadd.f32 %v2921, %v3135
        %v3137 = vpop.f32.mrb[0].mxu0
        %3138 = vmatprep.mubr.f32.mxu0 0.0
        %3139 = vmatmul.mubr.f32.gmra.mrb[0].mxu0 %v2181
        %v3140 = vpop.f32.mrb[0].mxu0
        %v3141 = vadd.f32 %v2926, %v3140
        %v3142 = vpop.f32.mrb[0].mxu0
        %3143 = vmatprep.mubr.f32.mxu0 0.0
        %3144 = vmatmul.mubr.f32.gmra.mrb[0].mxu0 %v2182
        %v3145 = vpop.f32.mrb[0].mxu0
        %v3146 = vadd.f32 %v2931, %v3145
        %v3147 = vpop.f32.mrb[0].mxu0
        %3148 = vmatprep.mubr.f32.mxu0 0.0
        %3149 = vmatmul.mubr.f32.gmra.mrb[0].mxu0 %v2183
        %v3150 = vpop.f32.mrb[0].mxu0
        %v3151 = vadd.f32 %v2936, %v3150
        %v3152 = vpop.f32.mrb[0].mxu0
        %3153 = vmatprep.mubr.f32.mxu0 0.0
        %3154 = vmatmul.mubr.f32.gmra.mrb[0].mxu0 %v2184
        %v3155 = vpop.f32.mrb[0].mxu0
        %v3156 = vadd.f32 %v2941, %v3155
        %v3157 = vpop.f32.mrb[0].mxu0
        %3158 = vmatprep.mubr.f32.mxu0 0.0
        %3159 = vmatmul.mubr.f32.gmra.mrb[0].mxu0 %v2185
        %v3160 = vpop.f32.mrb[0].mxu0
        %v3161 = vadd.f32 %v2946, %v3160
        %v3162 = vpop.f32.mrb[0].mxu0
        %3163 = vmatprep.mubr.f32.mxu0 0.0
        %3164 = vmatmul.mubr.f32.gmra.mrb[0].mxu0 %v2186
        %v3165 = vpop.f32.mrb[0].mxu0
        %v3166 = vadd.f32 %v2951, %v3165
        %v3167 = vpop.f32.mrb[0].mxu0
        %3168 = vmatprep.mubr.f32.mxu0 0.0
        %3169 = vmatmul.mubr.f32.gmra.mrb[0].mxu0 %v2187
        %v3170 = vpop.f32.mrb[0].mxu0
        %v3171 = vadd.f32 %v2956, %v3170
        %v3172 = vpop.f32.mrb[0].mxu0
        %3173 = vmatprep.mubr.f32.mxu0 0.0
        %3174 = vmatmul.mubr.f32.gmra.mrb[0].mxu0 %v2188
        %v3175 = vpop.f32.mrb[0].mxu0
        %v3176 = vadd.f32 %v2961, %v3175
        %v3177 = vpop.f32.mrb[0].mxu0
        %3178 = vmatprep.mubr.f32.mxu0 0.0
        %3179 = vmatmul.mubr.f32.gmra.mrb[0].mxu0 %v2189
        %v3180 = vpop.f32.mrb[0].mxu0
        %v3181 = vadd.f32 %v2966, %v3180
        %v3182 = vpop.f32.mrb[0].mxu0
        %3183 = vmatprep.mubr.f32.mxu0 0.0
        %3184 = vmatmul.mubr.f32.gmra.mrb[0].mxu0 %v2190
        %v3185 = vpop.f32.mrb[0].mxu0
        %v3186 = vadd.f32 %v2971, %v3185
        %v3187 = vpop.f32.mrb[0].mxu0
        %3188 = vmatprep.mubr.f32.mxu0 0.0
        %3189 = vmatmul.mubr.f32.gmra.mrb[0].mxu0 %v2191
        %v3190 = vpop.f32.mrb[0].mxu0
        %v3191 = vadd.f32 %v2976, %v3190
        %v3192 = vpop.f32.mrb[0].mxu0
        %3193 = vmatprep.mubr.f32.mxu0 0.0
        %3194 = vmatmul.mubr.f32.gmra.mrb[0].mxu0 %v2192
        %v3195 = vpop.f32.mrb[0].mxu0
        %v3196 = vadd.f32 %v2981, %v3195
        %v3197 = vpop.f32.mrb[0].mxu0
        %3198 = vmatprep.mubr.f32.mxu0 0.0
        %3199 = vmatmul.mubr.f32.gmra.mrb[0].mxu0 %v2193
        %v3200 = vpop.f32.mrb[0].mxu0
        %v3201 = vadd.f32 %v2986, %v3200
        %v3202 = vpop.f32.mrb[0].mxu0
        %3203 = vmatprep.mubr.f32.mxu0 0.0
        %3204 = vmatmul.mubr.f32.gmra.mrb[0].mxu0 %v2194
        %v3205 = vpop.f32.mrb[0].mxu0
        %v3206 = vadd.f32 %v2991, %v3205
        %v3207 = vpop.f32.mrb[0].mxu0
        %3208 = vmatprep.mubr.f32.mxu0 0.0
        %3209 = vmatmul.mubr.f32.gmra.mrb[0].mxu0 %v2195
        %v3210 = vpop.f32.mrb[0].mxu0
        %v3211 = vadd.f32 %v2996, %v3210
        %v3212 = vpop.f32.mrb[0].mxu0
        %3213 = vmatprep.mubr.f32.mxu0 0.0
        %3214 = vmatmul.mubr.f32.gmra.mrb[0].mxu0 %v2196
        %v3215 = vpop.f32.mrb[0].mxu0
        %v3216 = vadd.f32 %v3001, %v3215
        %v3217 = vpop.f32.mrb[0].mxu0
        %3218 = vmatprep.mubr.f32.mxu0 0.0
        %3219 = vmatmul.mubr.f32.gmra.mrb[0].mxu0 %v2197
        %v3220 = vpop.f32.mrb[0].mxu0
        %v3221 = vadd.f32 %v3006, %v3220
        %v3222 = vpop.f32.mrb[0].mxu0
        %3223 = vmatprep.mubr.f32.mxu0 0.0
        %3224 = vmatmul.mubr.f32.gmra.mrb[0].mxu0 %v2198
        %v3225 = vpop.f32.mrb[0].mxu0
        %v3226 = vadd.f32 %v3011, %v3225
        %v3227 = vpop.f32.mrb[0].mxu0
        %3228 = vmatprep.mubr.f32.mxu0 0.0
        %3229 = vmatmul.mubr.f32.gmra.mrb[0].mxu0 %v2199
        %v3230 = vpop.f32.mrb[0].mxu0
        %v3231 = vadd.f32 %v3016, %v3230
        %v3232 = vpop.f32.mrb[0].mxu0
        %3233 = vmatprep.mubr.f32.mxu0 0.0
        %3234 = vmatmul.mubr.f32.gmra.mrb[0].mxu0 %v2200
        %v3235 = vpop.f32.mrb[0].mxu0
        %v3236 = vadd.f32 %v3021, %v3235
        %v3237 = vpop.f32.mrb[0].mxu0
        %3238 = vmatprep.mubr.f32.mxu0 0.0
        %3239 = vmatmul.mubr.f32.gmra.mrb[0].mxu0 %v2201
        %v3240 = vpop.f32.mrb[0].mxu0
        %v3241 = vadd.f32 %v3026, %v3240
        %v3242 = vpop.f32.mrb[0].mxu0
        %3243 = vmatprep.mubr.f32.mxu0 0.0
        %3244 = vmatmul.mubr.f32.gmra.mrb[0].mxu0 %v2202
        %v3245 = vpop.f32.mrb[0].mxu0
        %v3246 = vadd.f32 %v3031, %v3245
        %v3247 = vpop.f32.mrb[0].mxu0
        %3248 = vmatprep.mubr.f32.mxu0 0.0
        %3249 = vmatmul.mubr.f32.gmra.mrb[0].mxu0 %v2203
        %v3250 = vpop.f32.mrb[0].mxu0
        %v3251 = vadd.f32 %v3036, %v3250
        %v3252 = vpop.f32.mrb[0].mxu0
        %3253 = vmatprep.mubr.f32.mxu0 0.0
        %3254 = vmatmul.mubr.f32.gmra.mrb[0].mxu0 %v2204
        %v3255 = vpop.f32.mrb[0].mxu0
        %v3256 = vadd.f32 %v3041, %v3255
        %v3257 = vpop.f32.mrb[0].mxu0
        %3258 = vdwg.mxu0
        %s3259 = sadd.s32 %s2107, 3
        %s3260 = smul.u32 %s3259, 24
        %s3261 = sadd.s32 %s3260, 4294967295
        %s3262 = scalar_lea.vmem [#allocation2], %s3261
        %v3263 = vld [vmem:[%s3262] sm:$0xff]
        %v3264 = vld [vmem:[%s3262 + $0x8] sm:$0xff]
        %v3265 = vld [vmem:[%s3262 + $0x10] sm:$0xff]
        %v3266 = vld [vmem:[%s3262 + $0x18] sm:$0xff]
        %v3267 = vld [vmem:[%s3262 + $0x20] sm:$0xff]
        %v3268 = vld [vmem:[%s3262 + $0x28] sm:$0xff]
        %v3269 = vld [vmem:[%s3262 + $0x30] sm:$0xff]
        %v3270 = vld [vmem:[%s3262 + $0x38] sm:$0xff]
        %v3271 = vld [vmem:[%s3262 + $0x40] sm:$0xff]
        %v3272 = vld [vmem:[%s3262 + $0x48] sm:$0xff]
        %v3273 = vld [vmem:[%s3262 + $0x50] sm:$0xff]
        %v3274 = vld [vmem:[%s3262 + $0x58] sm:$0xff]
        %v3275 = vld [vmem:[%s3262 + $0x60] sm:$0xff]
        %v3276 = vld [vmem:[%s3262 + $0x68] sm:$0xff]
        %v3277 = vld [vmem:[%s3262 + $0x70] sm:$0xff]
        %v3278 = vld [vmem:[%s3262 + $0x78] sm:$0xff]
        %v3279 = vld [vmem:[%s3262 + $0x80] sm:$0xff]
        %v3280 = vld [vmem:[%s3262 + $0x88] sm:$0xff]
        %v3281 = vld [vmem:[%s3262 + $0x90] sm:$0xff]
        %v3282 = vld [vmem:[%s3262 + $0x98] sm:$0xff]
        %v3283 = vld [vmem:[%s3262 + $0xa0] sm:$0xff]
        %v3284 = vld [vmem:[%s3262 + $0xa8] sm:$0xff]
        %v3285 = vld [vmem:[%s3262 + $0xb0] sm:$0xff]
        %v3286 = vld [vmem:[%s3262 + $0xb8] sm:$0xff]
        %v3287 = vld [vmem:[%s3262 + $0xc0] sm:$0xff]
        %v3288 = vld [vmem:[%s3262 + $0xc8] sm:$0xff]
        %v3289 = vld [vmem:[%s3262 + $0xd0] sm:$0xff]
        %v3290 = vld [vmem:[%s3262 + $0xd8] sm:$0xff]
        %v3291 = vld [vmem:[%s3262 + $0xe0] sm:$0xff]
        %v3292 = vld [vmem:[%s3262 + $0xe8] sm:$0xff]
        %s3293 = scalar_lea.vmem [#allocation2], %s3260
        %v3294 = vld [vmem:[%s3293] sm:$0xff]
        %v3295 = vld [vmem:[%s3293 + $0x8] sm:$0xff]
        %v3296 = vld [vmem:[%s3293 + $0x10] sm:$0xff]
        %v3297 = vld [vmem:[%s3293 + $0x18] sm:$0xff]
        %v3298 = vld [vmem:[%s3293 + $0x20] sm:$0xff]
        %v3299 = vld [vmem:[%s3293 + $0x28] sm:$0xff]
        %v3300 = vld [vmem:[%s3293 + $0x30] sm:$0xff]
        %v3301 = vld [vmem:[%s3293 + $0x38] sm:$0xff]
        %v3302 = vld [vmem:[%s3293 + $0x40] sm:$0xff]
        %v3303 = vld [vmem:[%s3293 + $0x48] sm:$0xff]
        %v3304 = vld [vmem:[%s3293 + $0x50] sm:$0xff]
        %v3305 = vld [vmem:[%s3293 + $0x58] sm:$0xff]
        %v3306 = vld [vmem:[%s3293 + $0x60] sm:$0xff]
        %v3307 = vld [vmem:[%s3293 + $0x68] sm:$0xff]
        %v3308 = vld [vmem:[%s3293 + $0x70] sm:$0xff]
        %v3309 = vld [vmem:[%s3293 + $0x78] sm:$0xff]
        %v3310 = vld [vmem:[%s3293 + $0x80] sm:$0xff]
        %v3311 = vld [vmem:[%s3293 + $0x88] sm:$0xff]
        %v3312 = vld [vmem:[%s3293 + $0x90] sm:$0xff]
        %v3313 = vld [vmem:[%s3293 + $0x98] sm:$0xff]
        %v3314 = vld [vmem:[%s3293 + $0xa0] sm:$0xff]
        %v3315 = vld [vmem:[%s3293 + $0xa8] sm:$0xff]
        %v3316 = vld [vmem:[%s3293 + $0xb0] sm:$0xff]
        %v3317 = vld [vmem:[%s3293 + $0xb8] sm:$0xff]
        %v3318 = vld [vmem:[%s3293 + $0xc0] sm:$0xff]
        %v3319 = vld [vmem:[%s3293 + $0xc8] sm:$0xff]
        %v3320 = vld [vmem:[%s3293 + $0xd0] sm:$0xff]
        %v3321 = vld [vmem:[%s3293 + $0xd8] sm:$0xff]
        %v3322 = vld [vmem:[%s3293 + $0xe0] sm:$0xff]
        %v3323 = vld [vmem:[%s3293 + $0xe8] sm:$0xff]
        %s3324 = sadd.s32 %s3260, 1
        %s3325 = scalar_lea.vmem [#allocation2], %s3324
        %v3326 = vld [vmem:[%s3325] sm:$0xff]
        %v3327 = vld [vmem:[%s3325 + $0x8] sm:$0xff]
        %v3328 = vld [vmem:[%s3325 + $0x10] sm:$0xff]
        %v3329 = vld [vmem:[%s3325 + $0x18] sm:$0xff]
        %v3330 = vld [vmem:[%s3325 + $0x20] sm:$0xff]
        %v3331 = vld [vmem:[%s3325 + $0x28] sm:$0xff]
        %v3332 = vld [vmem:[%s3325 + $0x30] sm:$0xff]
        %v3333 = vld [vmem:[%s3325 + $0x38] sm:$0xff]
        %v3334 = vld [vmem:[%s3325 + $0x40] sm:$0xff]
        %v3335 = vld [vmem:[%s3325 + $0x48] sm:$0xff]
        %v3336 = vld [vmem:[%s3325 + $0x50] sm:$0xff]
        %v3337 = vld [vmem:[%s3325 + $0x58] sm:$0xff]
        %v3338 = vld [vmem:[%s3325 + $0x60] sm:$0xff]
        %v3339 = vld [vmem:[%s3325 + $0x68] sm:$0xff]
        %v3340 = vld [vmem:[%s3325 + $0x70] sm:$0xff]
        %v3341 = vld [vmem:[%s3325 + $0x78] sm:$0xff]
        %v3342 = vld [vmem:[%s3325 + $0x80] sm:$0xff]
        %v3343 = vld [vmem:[%s3325 + $0x88] sm:$0xff]
        %v3344 = vld [vmem:[%s3325 + $0x90] sm:$0xff]
        %v3345 = vld [vmem:[%s3325 + $0x98] sm:$0xff]
        %v3346 = vld [vmem:[%s3325 + $0xa0] sm:$0xff]
        %v3347 = vld [vmem:[%s3325 + $0xa8] sm:$0xff]
        %v3348 = vld [vmem:[%s3325 + $0xb0] sm:$0xff]
        %v3349 = vld [vmem:[%s3325 + $0xb8] sm:$0xff]
        %v3350 = vld [vmem:[%s3325 + $0xc0] sm:$0xff]
        %v3351 = vld [vmem:[%s3325 + $0xc8] sm:$0xff]
        %v3352 = vld [vmem:[%s3325 + $0xd0] sm:$0xff]
        %v3353 = vld [vmem:[%s3325 + $0xd8] sm:$0xff]
        %v3354 = vld [vmem:[%s3325 + $0xe0] sm:$0xff]
        %v3355 = vld [vmem:[%s3325 + $0xe8] sm:$0xff]
        %s3356 = scalar_lea.vmem %s3, 768
        %v3357 = vld [vmem:[%s3356] sm:$0xff]
        %v3358 = vld [vmem:[%s3356 + $0x8] sm:$0xff]
        %v3359 = vld [vmem:[%s3356 + $0x10] sm:$0xff]
        %v3360 = vld [vmem:[%s3356 + $0x18] sm:$0xff]
        %v3361 = vld [vmem:[%s3356 + $0x20] sm:$0xff]
        %v3362 = vld [vmem:[%s3356 + $0x28] sm:$0xff]
        %v3363 = vld [vmem:[%s3356 + $0x30] sm:$0xff]
        %v3364 = vld [vmem:[%s3356 + $0x38] sm:$0xff]
        %v3365 = vld [vmem:[%s3356 + $0x40] sm:$0xff]
        %v3366 = vld [vmem:[%s3356 + $0x48] sm:$0xff]
        %v3367 = vld [vmem:[%s3356 + $0x50] sm:$0xff]
        %v3368 = vld [vmem:[%s3356 + $0x58] sm:$0xff]
        %v3369 = vld [vmem:[%s3356 + $0x60] sm:$0xff]
        %v3370 = vld [vmem:[%s3356 + $0x68] sm:$0xff]
        %v3371 = vld [vmem:[%s3356 + $0x70] sm:$0xff]
        %v3372 = vld [vmem:[%s3356 + $0x78] sm:$0xff]
        %v3373 = vld [vmem:[%s3356 + $0x80] sm:$0xff]
        %v3374 = vld [vmem:[%s3356 + $0x88] sm:$0xff]
        %v3375 = vld [vmem:[%s3356 + $0x90] sm:$0xff]
        %v3376 = vld [vmem:[%s3356 + $0x98] sm:$0xff]
        %v3377 = vld [vmem:[%s3356 + $0xa0] sm:$0xff]
        %v3378 = vld [vmem:[%s3356 + $0xa8] sm:$0xff]
        %v3379 = vld [vmem:[%s3356 + $0xb0] sm:$0xff]
        %v3380 = vld [vmem:[%s3356 + $0xb8] sm:$0xff]
        %v3381 = vld [vmem:[%s3356 + $0xc0] sm:$0xff]
        %v3382 = vld [vmem:[%s3356 + $0xc8] sm:$0xff]
        %v3383 = vld [vmem:[%s3356 + $0xd0] sm:$0xff]
        %v3384 = vld [vmem:[%s3356 + $0xd8] sm:$0xff]
        %v3385 = vld [vmem:[%s3356 + $0xe0] sm:$0xff]
        %v3386 = vld [vmem:[%s3356 + $0xe8] sm:$0xff]
        %v3387 = vld [vmem:[%s3356 + $0xf0] sm:$0xff]
        %v3388 = vld [vmem:[%s3356 + $0xf8] sm:$0xff]
        %v3389 = vld [vmem:[%s3356 + $0x100] sm:$0xff]
        %v3390 = vld [vmem:[%s3356 + $0x108] sm:$0xff]
        %v3391 = vld [vmem:[%s3356 + $0x110] sm:$0xff]
        %v3392 = vld [vmem:[%s3356 + $0x118] sm:$0xff]
        %v3393 = vld [vmem:[%s3356 + $0x120] sm:$0xff]
        %v3394 = vld [vmem:[%s3356 + $0x128] sm:$0xff]
        %v3395 = vld [vmem:[%s3356 + $0x130] sm:$0xff]
        %v3396 = vld [vmem:[%s3356 + $0x138] sm:$0xff]
        %v3397 = vld [vmem:[%s3356 + $0x140] sm:$0xff]
        %v3398 = vld [vmem:[%s3356 + $0x148] sm:$0xff]
        %v3399 = vld [vmem:[%s3356 + $0x150] sm:$0xff]
        %v3400 = vld [vmem:[%s3356 + $0x158] sm:$0xff]
        %v3401 = vld [vmem:[%s3356 + $0x160] sm:$0xff]
        %v3402 = vld [vmem:[%s3356 + $0x168] sm:$0xff]
        %v3403 = vld [vmem:[%s3356 + $0x170] sm:$0xff]
        %v3404 = vld [vmem:[%s3356 + $0x178] sm:$0xff]
        %3405 = vmatprep.subr.mxu0 0.0
        %3406 = vmatpush1.msra.mxu0 %v3357
        %3407 = vmatprep.subr.mxu0 0.0
        %3408 = vmatpush1.msra.mxu0 %v3358
        %3409 = vmatprep.subr.mxu0 0.0
        %3410 = vmatpush1.msra.mxu0 %v3359
        %3411 = vmatprep.subr.mxu0 0.0
        %3412 = vmatpush1.msra.mxu0 %v3360
        %3413 = vmatprep.subr.mxu0 0.0
        %3414 = vmatpush1.msra.mxu0 %v3361
        %3415 = vmatprep.subr.mxu0 0.0
        %3416 = vmatpush1.msra.mxu0 %v3362
        %3417 = vmatprep.subr.mxu0 0.0
        %3418 = vmatpush1.msra.mxu0 %v3363
        %3419 = vmatprep.subr.mxu0 0.0
        %3420 = vmatpush1.msra.mxu0 %v3364
        %3421 = vmatprep.subr.mxu0 0.0
        %3422 = vmatpush1.msra.mxu0 %v3365
        %3423 = vmatprep.subr.mxu0 0.0
        %3424 = vmatpush1.msra.mxu0 %v3366
        %3425 = vmatprep.subr.mxu0 0.0
        %3426 = vmatpush1.msra.mxu0 %v3367
        %3427 = vmatprep.subr.mxu0 0.0
        %3428 = vmatpush1.msra.mxu0 %v3368
        %3429 = vmatprep.subr.mxu0 0.0
        %3430 = vmatpush1.msra.mxu0 %v3369
        %3431 = vmatprep.subr.mxu0 0.0
        %3432 = vmatpush1.msra.mxu0 %v3370
        %3433 = vmatprep.subr.mxu0 0.0
        %3434 = vmatpush1.msra.mxu0 %v3371
        %3435 = vmatprep.subr.mxu0 0.0
        %3436 = vmatpush1.msra.mxu0 %v3372
        %3437 = vmatprep.subr.mxu0 0.0
        %3438 = vmatpush1.msra.mxu0 %v3373
        %3439 = vmatprep.subr.mxu0 0.0
        %3440 = vmatpush1.msra.mxu0 %v3374
        %3441 = vmatprep.subr.mxu0 0.0
        %3442 = vmatpush1.msra.mxu0 %v3375
        %3443 = vmatprep.subr.mxu0 0.0
        %3444 = vmatpush1.msra.mxu0 %v3376
        %3445 = vmatprep.subr.mxu0 0.0
        %3446 = vmatpush1.msra.mxu0 %v3377
        %3447 = vmatprep.subr.mxu0 0.0
        %3448 = vmatpush1.msra.mxu0 %v3378
        %3449 = vmatprep.subr.mxu0 0.0
        %3450 = vmatpush1.msra.mxu0 %v3379
        %3451 = vmatprep.subr.mxu0 0.0
        %3452 = vmatpush1.msra.mxu0 %v3380
        %3453 = vmatprep.subr.mxu0 0.0
        %3454 = vmatpush1.msra.mxu0 %v3381
        %3455 = vmatprep.subr.mxu0 0.0
        %3456 = vmatpush1.msra.mxu0 %v3382
        %3457 = vmatprep.subr.mxu0 0.0
        %3458 = vmatpush1.msra.mxu0 %v3383
        %3459 = vmatprep.subr.mxu0 0.0
        %3460 = vmatpush1.msra.mxu0 %v3384
        %3461 = vmatprep.subr.mxu0 0.0
        %3462 = vmatpush1.msra.mxu0 %v3385
        %3463 = vmatprep.subr.mxu0 0.0
        %3464 = vmatpush1.msra.mxu0 %v3386
        %3465 = vmatprep.subr.mxu0 0.0
        %3466 = vmatpush1.msra.mxu0 %v3387
        %3467 = vmatprep.subr.mxu0 0.0
        %3468 = vmatpush1.msra.mxu0 %v3388
        %3469 = vmatprep.mubr.f32.mxu0 %v3294
        %3470 = vmatmul.mubr.f32.gmra.mrb[0].mxu0 %v3263
        %v3471 = vpop.f32.mrb[0].mxu0
        %v3472 = vadd.f32 0.0, %v3471
        %v3473 = vpop.f32.mrb[0].mxu0
        %3474 = vmatprep.mubr.f32.mxu0 %v3295
        %3475 = vmatmul.mubr.f32.gmra.mrb[0].mxu0 %v3264
        %v3476 = vpop.f32.mrb[0].mxu0
        %v3477 = vadd.f32 0.0, %v3476
        %v3478 = vpop.f32.mrb[0].mxu0
        %3479 = vmatprep.mubr.f32.mxu0 %v3296
        %3480 = vmatmul.mubr.f32.gmra.mrb[0].mxu0 %v3265
        %v3481 = vpop.f32.mrb[0].mxu0
        %v3482 = vadd.f32 0.0, %v3481
        %v3483 = vpop.f32.mrb[0].mxu0
        %3484 = vmatprep.mubr.f32.mxu0 %v3297
        %3485 = vmatmul.mubr.f32.gmra.mrb[0].mxu0 %v3266
        %v3486 = vpop.f32.mrb[0].mxu0
        %v3487 = vadd.f32 0.0, %v3486
        %v3488 = vpop.f32.mrb[0].mxu0
        %3489 = vmatprep.mubr.f32.mxu0 %v3298
        %3490 = vmatmul.mubr.f32.gmra.mrb[0].mxu0 %v3267
        %v3491 = vpop.f32.mrb[0].mxu0
        %v3492 = vadd.f32 0.0, %v3491
        %v3493 = vpop.f32.mrb[0].mxu0
        %3494 = vmatprep.mubr.f32.mxu0 %v3299
        %3495 = vmatmul.mubr.f32.gmra.mrb[0].mxu0 %v3268
        %v3496 = vpop.f32.mrb[0].mxu0
        %v3497 = vadd.f32 0.0, %v3496
        %v3498 = vpop.f32.mrb[0].mxu0
        %3499 = vmatprep.mubr.f32.mxu0 %v3300
        %3500 = vmatmul.mubr.f32.gmra.mrb[0].mxu0 %v3269
        %v3501 = vpop.f32.mrb[0].mxu0
        %v3502 = vadd.f32 0.0, %v3501
        %v3503 = vpop.f32.mrb[0].mxu0
        %3504 = vmatprep.mubr.f32.mxu0 %v3301
        %3505 = vmatmul.mubr.f32.gmra.mrb[0].mxu0 %v3270
        %v3506 = vpop.f32.mrb[0].mxu0
        %v3507 = vadd.f32 0.0, %v3506
        %v3508 = vpop.f32.mrb[0].mxu0
        %3509 = vmatprep.mubr.f32.mxu0 %v3302
        %3510 = vmatmul.mubr.f32.gmra.mrb[0].mxu0 %v3271
        %v3511 = vpop.f32.mrb[0].mxu0
        %v3512 = vadd.f32 0.0, %v3511
        %v3513 = vpop.f32.mrb[0].mxu0
        %3514 = vmatprep.mubr.f32.mxu0 %v3303
        %3515 = vmatmul.mubr.f32.gmra.mrb[0].mxu0 %v3272
        %v3516 = vpop.f32.mrb[0].mxu0
        %v3517 = vadd.f32 0.0, %v3516
        %v3518 = vpop.f32.mrb[0].mxu0
        %3519 = vmatprep.mubr.f32.mxu0 %v3304
        %3520 = vmatmul.mubr.f32.gmra.mrb[0].mxu0 %v3273
        %v3521 = vpop.f32.mrb[0].mxu0
        %v3522 = vadd.f32 0.0, %v3521
        %v3523 = vpop.f32.mrb[0].mxu0
        %3524 = vmatprep.mubr.f32.mxu0 %v3305
        %3525 = vmatmul.mubr.f32.gmra.mrb[0].mxu0 %v3274
        %v3526 = vpop.f32.mrb[0].mxu0
        %v3527 = vadd.f32 0.0, %v3526
        %v3528 = vpop.f32.mrb[0].mxu0
        %3529 = vmatprep.mubr.f32.mxu0 %v3306
        %3530 = vmatmul.mubr.f32.gmra.mrb[0].mxu0 %v3275
        %v3531 = vpop.f32.mrb[0].mxu0
        %v3532 = vadd.f32 0.0, %v3531
        %v3533 = vpop.f32.mrb[0].mxu0
        %3534 = vmatprep.mubr.f32.mxu0 %v3307
        %3535 = vmatmul.mubr.f32.gmra.mrb[0].mxu0 %v3276
        %v3536 = vpop.f32.mrb[0].mxu0
        %v3537 = vadd.f32 0.0, %v3536
        %v3538 = vpop.f32.mrb[0].mxu0
        %3539 = vmatprep.mubr.f32.mxu0 %v3308
        %3540 = vmatmul.mubr.f32.gmra.mrb[0].mxu0 %v3277
        %v3541 = vpop.f32.mrb[0].mxu0
        %v3542 = vadd.f32 0.0, %v3541
        %v3543 = vpop.f32.mrb[0].mxu0
        %3544 = vmatprep.mubr.f32.mxu0 %v3309
        %3545 = vmatmul.mubr.f32.gmra.mrb[0].mxu0 %v3278
        %v3546 = vpop.f32.mrb[0].mxu0
        %v3547 = vadd.f32 0.0, %v3546
        %v3548 = vpop.f32.mrb[0].mxu0
        %3549 = vmatprep.mubr.f32.mxu0 %v3310
        %3550 = vmatmul.mubr.f32.gmra.mrb[0].mxu0 %v3279
        %v3551 = vpop.f32.mrb[0].mxu0
        %v3552 = vadd.f32 0.0, %v3551
        %v3553 = vpop.f32.mrb[0].mxu0
        %3554 = vmatprep.mubr.f32.mxu0 %v3311
        %3555 = vmatmul.mubr.f32.gmra.mrb[0].mxu0 %v3280
        %v3556 = vpop.f32.mrb[0].mxu0
        %v3557 = vadd.f32 0.0, %v3556
        %v3558 = vpop.f32.mrb[0].mxu0
        %3559 = vmatprep.mubr.f32.mxu0 %v3312
        %3560 = vmatmul.mubr.f32.gmra.mrb[0].mxu0 %v3281
        %v3561 = vpop.f32.mrb[0].mxu0
        %v3562 = vadd.f32 0.0, %v3561
        %v3563 = vpop.f32.mrb[0].mxu0
        %3564 = vmatprep.mubr.f32.mxu0 %v3313
        %3565 = vmatmul.mubr.f32.gmra.mrb[0].mxu0 %v3282
        %v3566 = vpop.f32.mrb[0].mxu0
        %v3567 = vadd.f32 0.0, %v3566
        %v3568 = vpop.f32.mrb[0].mxu0
        %3569 = vmatprep.mubr.f32.mxu0 %v3314
        %3570 = vmatmul.mubr.f32.gmra.mrb[0].mxu0 %v3283
        %v3571 = vpop.f32.mrb[0].mxu0
        %v3572 = vadd.f32 0.0, %v3571
        %v3573 = vpop.f32.mrb[0].mxu0
        %3574 = vmatprep.mubr.f32.mxu0 %v3315
        %3575 = vmatmul.mubr.f32.gmra.mrb[0].mxu0 %v3284
        %v3576 = vpop.f32.mrb[0].mxu0
        %v3577 = vadd.f32 0.0, %v3576
        %v3578 = vpop.f32.mrb[0].mxu0
        %3579 = vmatprep.mubr.f32.mxu0 %v3316
        %3580 = vmatmul.mubr.f32.gmra.mrb[0].mxu0 %v3285
        %v3581 = vpop.f32.mrb[0].mxu0
        %v3582 = vadd.f32 0.0, %v3581
        %v3583 = vpop.f32.mrb[0].mxu0
        %3584 = vmatprep.mubr.f32.mxu0 %v3317
        %3585 = vmatmul.mubr.f32.gmra.mrb[0].mxu0 %v3286
        %v3586 = vpop.f32.mrb[0].mxu0
        %v3587 = vadd.f32 0.0, %v3586
        %v3588 = vpop.f32.mrb[0].mxu0
        %3589 = vmatprep.mubr.f32.mxu0 %v3318
        %3590 = vmatmul.mubr.f32.gmra.mrb[0].mxu0 %v3287
        %v3591 = vpop.f32.mrb[0].mxu0
        %v3592 = vadd.f32 0.0, %v3591
        %v3593 = vpop.f32.mrb[0].mxu0
        %3594 = vmatprep.mubr.f32.mxu0 %v3319
        %3595 = vmatmul.mubr.f32.gmra.mrb[0].mxu0 %v3288
        %v3596 = vpop.f32.mrb[0].mxu0
        %v3597 = vadd.f32 0.0, %v3596
        %v3598 = vpop.f32.mrb[0].mxu0
        %3599 = vmatprep.mubr.f32.mxu0 %v3320
        %3600 = vmatmul.mubr.f32.gmra.mrb[0].mxu0 %v3289
        %v3601 = vpop.f32.mrb[0].mxu0
        %v3602 = vadd.f32 0.0, %v3601
        %v3603 = vpop.f32.mrb[0].mxu0
        %3604 = vmatprep.mubr.f32.mxu0 %v3321
        %3605 = vmatmul.mubr.f32.gmra.mrb[0].mxu0 %v3290
        %v3606 = vpop.f32.mrb[0].mxu0
        %v3607 = vadd.f32 0.0, %v3606
        %v3608 = vpop.f32.mrb[0].mxu0
        %3609 = vmatprep.mubr.f32.mxu0 %v3322
        %3610 = vmatmul.mubr.f32.gmra.mrb[0].mxu0 %v3291
        %v3611 = vpop.f32.mrb[0].mxu0
        %v3612 = vadd.f32 0.0, %v3611
        %v3613 = vpop.f32.mrb[0].mxu0
        %3614 = vmatprep.mubr.f32.mxu0 %v3323
        %3615 = vmatmul.mubr.f32.gmra.mrb[0].mxu0 %v3292
        %v3616 = vpop.f32.mrb[0].mxu0
        %v3617 = vadd.f32 0.0, %v3616
        %v3618 = vpop.f32.mrb[0].mxu0
        %3619 = vdwg.mxu0
        %3620 = vmatprep.subr.mxu0 0.0
        %3621 = vmatpush1.msra.mxu0 %v3389
        %3622 = vmatprep.subr.mxu0 0.0
        %3623 = vmatpush1.msra.mxu0 %v3390
        %3624 = vmatprep.subr.mxu0 0.0
        %3625 = vmatpush1.msra.mxu0 %v3391
        %3626 = vmatprep.subr.mxu0 0.0
        %3627 = vmatpush1.msra.mxu0 %v3392
        %3628 = vmatprep.subr.mxu0 0.0
        %3629 = vmatpush1.msra.mxu0 %v3393
        %3630 = vmatprep.subr.mxu0 0.0
        %3631 = vmatpush1.msra.mxu0 %v3394
        %3632 = vmatprep.subr.mxu0 0.0
        %3633 = vmatpush1.msra.mxu0 %v3395
        %3634 = vmatprep.subr.mxu0 0.0
        %3635 = vmatpush1.msra.mxu0 %v3396
        %3636 = vmatprep.subr.mxu0 0.0
        %3637 = vmatpush1.msra.mxu0 %v3397
        %3638 = vmatprep.subr.mxu0 0.0
        %3639 = vmatpush1.msra.mxu0 %v3398
        %3640 = vmatprep.subr.mxu0 0.0
        %3641 = vmatpush1.msra.mxu0 %v3399
        %3642 = vmatprep.subr.mxu0 0.0
        %3643 = vmatpush1.msra.mxu0 %v3400
        %3644 = vmatprep.subr.mxu0 0.0
        %3645 = vmatpush1.msra.mxu0 %v3401
        %3646 = vmatprep.subr.mxu0 0.0
        %3647 = vmatpush1.msra.mxu0 %v3402
        %3648 = vmatprep.subr.mxu0 0.0
        %3649 = vmatpush1.msra.mxu0 %v3403
        %3650 = vmatprep.subr.mxu0 0.0
        %3651 = vmatpush1.msra.mxu0 %v3404
        %3652 = vmatprep.subr.mxu0 0.0
        %3653 = vmatpush1.msra.mxu0 0.0
        %3654 = vmatprep.subr.mxu0 0.0
        %3655 = vmatpush1.msra.mxu0 0.0
        %3656 = vmatprep.subr.mxu0 0.0
        %3657 = vmatpush1.msra.mxu0 0.0
        %3658 = vmatprep.subr.mxu0 0.0
        %3659 = vmatpush1.msra.mxu0 0.0
        %3660 = vmatprep.subr.mxu0 0.0
        %3661 = vmatpush1.msra.mxu0 0.0
        %3662 = vmatprep.subr.mxu0 0.0
        %3663 = vmatpush1.msra.mxu0 0.0
        %3664 = vmatprep.subr.mxu0 0.0
        %3665 = vmatpush1.msra.mxu0 0.0
        %3666 = vmatprep.subr.mxu0 0.0
        %3667 = vmatpush1.msra.mxu0 0.0
        %3668 = vmatprep.subr.mxu0 0.0
        %3669 = vmatpush1.msra.mxu0 0.0
        %3670 = vmatprep.subr.mxu0 0.0
        %3671 = vmatpush1.msra.mxu0 0.0
        %3672 = vmatprep.subr.mxu0 0.0
        %3673 = vmatpush1.msra.mxu0 0.0
        %3674 = vmatprep.subr.mxu0 0.0
        %3675 = vmatpush1.msra.mxu0 0.0
        %3676 = vmatprep.subr.mxu0 0.0
        %3677 = vmatpush1.msra.mxu0 0.0
        %3678 = vmatprep.subr.mxu0 0.0
        %3679 = vmatpush1.msra.mxu0 0.0
        %3680 = vmatprep.subr.mxu0 0.0
        %3681 = vmatpush1.msra.mxu0 0.0
        %3682 = vmatprep.subr.mxu0 0.0
        %3683 = vmatpush1.msra.mxu0 0.0
        %3684 = vmatprep.mubr.f32.mxu0 0.0
        %3685 = vmatmul.mubr.f32.gmra.mrb[0].mxu0 %v3326
        %v3686 = vpop.f32.mrb[0].mxu0
        %v3687 = vadd.f32 %v3472, %v3686
        %v3688 = vpop.f32.mrb[0].mxu0
        %3689 = vmatprep.mubr.f32.mxu0 0.0
        %3690 = vmatmul.mubr.f32.gmra.mrb[0].mxu0 %v3327
        %v3691 = vpop.f32.mrb[0].mxu0
        %v3692 = vadd.f32 %v3477, %v3691
        %v3693 = vpop.f32.mrb[0].mxu0
        %3694 = vmatprep.mubr.f32.mxu0 0.0
        %3695 = vmatmul.mubr.f32.gmra.mrb[0].mxu0 %v3328
        %v3696 = vpop.f32.mrb[0].mxu0
        %v3697 = vadd.f32 %v3482, %v3696
        %v3698 = vpop.f32.mrb[0].mxu0
        %3699 = vmatprep.mubr.f32.mxu0 0.0
        %3700 = vmatmul.mubr.f32.gmra.mrb[0].mxu0 %v3329
        %v3701 = vpop.f32.mrb[0].mxu0
        %v3702 = vadd.f32 %v3487, %v3701
        %v3703 = vpop.f32.mrb[0].mxu0
        %3704 = vmatprep.mubr.f32.mxu0 0.0
        %3705 = vmatmul.mubr.f32.gmra.mrb[0].mxu0 %v3330
        %v3706 = vpop.f32.mrb[0].mxu0
        %v3707 = vadd.f32 %v3492, %v3706
        %v3708 = vpop.f32.mrb[0].mxu0
        %3709 = vmatprep.mubr.f32.mxu0 0.0
        %3710 = vmatmul.mubr.f32.gmra.mrb[0].mxu0 %v3331
        %v3711 = vpop.f32.mrb[0].mxu0
        %v3712 = vadd.f32 %v3497, %v3711
        %v3713 = vpop.f32.mrb[0].mxu0
        %3714 = vmatprep.mubr.f32.mxu0 0.0
        %3715 = vmatmul.mubr.f32.gmra.mrb[0].mxu0 %v3332
        %v3716 = vpop.f32.mrb[0].mxu0
        %v3717 = vadd.f32 %v3502, %v3716
        %v3718 = vpop.f32.mrb[0].mxu0
        %3719 = vmatprep.mubr.f32.mxu0 0.0
        %3720 = vmatmul.mubr.f32.gmra.mrb[0].mxu0 %v3333
        %v3721 = vpop.f32.mrb[0].mxu0
        %v3722 = vadd.f32 %v3507, %v3721
        %v3723 = vpop.f32.mrb[0].mxu0
        %3724 = vmatprep.mubr.f32.mxu0 0.0
        %3725 = vmatmul.mubr.f32.gmra.mrb[0].mxu0 %v3334
        %v3726 = vpop.f32.mrb[0].mxu0
        %v3727 = vadd.f32 %v3512, %v3726
        %v3728 = vpop.f32.mrb[0].mxu0
        %3729 = vmatprep.mubr.f32.mxu0 0.0
        %3730 = vmatmul.mubr.f32.gmra.mrb[0].mxu0 %v3335
        %v3731 = vpop.f32.mrb[0].mxu0
        %v3732 = vadd.f32 %v3517, %v3731
        %v3733 = vpop.f32.mrb[0].mxu0
        %3734 = vmatprep.mubr.f32.mxu0 0.0
        %3735 = vmatmul.mubr.f32.gmra.mrb[0].mxu0 %v3336
        %v3736 = vpop.f32.mrb[0].mxu0
        %v3737 = vadd.f32 %v3522, %v3736
        %v3738 = vpop.f32.mrb[0].mxu0
        %3739 = vmatprep.mubr.f32.mxu0 0.0
        %3740 = vmatmul.mubr.f32.gmra.mrb[0].mxu0 %v3337
        %v3741 = vpop.f32.mrb[0].mxu0
        %v3742 = vadd.f32 %v3527, %v3741
        %v3743 = vpop.f32.mrb[0].mxu0
        %3744 = vmatprep.mubr.f32.mxu0 0.0
        %3745 = vmatmul.mubr.f32.gmra.mrb[0].mxu0 %v3338
        %v3746 = vpop.f32.mrb[0].mxu0
        %v3747 = vadd.f32 %v3532, %v3746
        %v3748 = vpop.f32.mrb[0].mxu0
        %3749 = vmatprep.mubr.f32.mxu0 0.0
        %3750 = vmatmul.mubr.f32.gmra.mrb[0].mxu0 %v3339
        %v3751 = vpop.f32.mrb[0].mxu0
        %v3752 = vadd.f32 %v3537, %v3751
        %v3753 = vpop.f32.mrb[0].mxu0
        %3754 = vmatprep.mubr.f32.mxu0 0.0
        %3755 = vmatmul.mubr.f32.gmra.mrb[0].mxu0 %v3340
        %v3756 = vpop.f32.mrb[0].mxu0
        %v3757 = vadd.f32 %v3542, %v3756
        %v3758 = vpop.f32.mrb[0].mxu0
        %3759 = vmatprep.mubr.f32.mxu0 0.0
        %3760 = vmatmul.mubr.f32.gmra.mrb[0].mxu0 %v3341
        %v3761 = vpop.f32.mrb[0].mxu0
        %v3762 = vadd.f32 %v3547, %v3761
        %v3763 = vpop.f32.mrb[0].mxu0
        %3764 = vmatprep.mubr.f32.mxu0 0.0
        %3765 = vmatmul.mubr.f32.gmra.mrb[0].mxu0 %v3342
        %v3766 = vpop.f32.mrb[0].mxu0
        %v3767 = vadd.f32 %v3552, %v3766
        %v3768 = vpop.f32.mrb[0].mxu0
        %3769 = vmatprep.mubr.f32.mxu0 0.0
        %3770 = vmatmul.mubr.f32.gmra.mrb[0].mxu0 %v3343
        %v3771 = vpop.f32.mrb[0].mxu0
        %v3772 = vadd.f32 %v3557, %v3771
        %v3773 = vpop.f32.mrb[0].mxu0
        %3774 = vmatprep.mubr.f32.mxu0 0.0
        %3775 = vmatmul.mubr.f32.gmra.mrb[0].mxu0 %v3344
        %v3776 = vpop.f32.mrb[0].mxu0
        %v3777 = vadd.f32 %v3562, %v3776
        %v3778 = vpop.f32.mrb[0].mxu0
        %3779 = vmatprep.mubr.f32.mxu0 0.0
        %3780 = vmatmul.mubr.f32.gmra.mrb[0].mxu0 %v3345
        %v3781 = vpop.f32.mrb[0].mxu0
        %v3782 = vadd.f32 %v3567, %v3781
        %v3783 = vpop.f32.mrb[0].mxu0
        %3784 = vmatprep.mubr.f32.mxu0 0.0
        %3785 = vmatmul.mubr.f32.gmra.mrb[0].mxu0 %v3346
        %v3786 = vpop.f32.mrb[0].mxu0
        %v3787 = vadd.f32 %v3572, %v3786
        %v3788 = vpop.f32.mrb[0].mxu0
        %3789 = vmatprep.mubr.f32.mxu0 0.0
        %3790 = vmatmul.mubr.f32.gmra.mrb[0].mxu0 %v3347
        %v3791 = vpop.f32.mrb[0].mxu0
        %v3792 = vadd.f32 %v3577, %v3791
        %v3793 = vpop.f32.mrb[0].mxu0
        %3794 = vmatprep.mubr.f32.mxu0 0.0
        %3795 = vmatmul.mubr.f32.gmra.mrb[0].mxu0 %v3348
        %v3796 = vpop.f32.mrb[0].mxu0
        %v3797 = vadd.f32 %v3582, %v3796
        %v3798 = vpop.f32.mrb[0].mxu0
        %3799 = vmatprep.mubr.f32.mxu0 0.0
        %3800 = vmatmul.mubr.f32.gmra.mrb[0].mxu0 %v3349
        %v3801 = vpop.f32.mrb[0].mxu0
        %v3802 = vadd.f32 %v3587, %v3801
        %v3803 = vpop.f32.mrb[0].mxu0
        %3804 = vmatprep.mubr.f32.mxu0 0.0
        %3805 = vmatmul.mubr.f32.gmra.mrb[0].mxu0 %v3350
        %v3806 = vpop.f32.mrb[0].mxu0
        %v3807 = vadd.f32 %v3592, %v3806
        %v3808 = vpop.f32.mrb[0].mxu0
        %3809 = vmatprep.mubr.f32.mxu0 0.0
        %3810 = vmatmul.mubr.f32.gmra.mrb[0].mxu0 %v3351
        %v3811 = vpop.f32.mrb[0].mxu0
        %v3812 = vadd.f32 %v3597, %v3811
        %v3813 = vpop.f32.mrb[0].mxu0
        %3814 = vmatprep.mubr.f32.mxu0 0.0
        %3815 = vmatmul.mubr.f32.gmra.mrb[0].mxu0 %v3352
        %v3816 = vpop.f32.mrb[0].mxu0
        %v3817 = vadd.f32 %v3602, %v3816
        %v3818 = vpop.f32.mrb[0].mxu0
        %3819 = vmatprep.mubr.f32.mxu0 0.0
        %3820 = vmatmul.mubr.f32.gmra.mrb[0].mxu0 %v3353
        %v3821 = vpop.f32.mrb[0].mxu0
        %v3822 = vadd.f32 %v3607, %v3821
        %v3823 = vpop.f32.mrb[0].mxu0
        %3824 = vmatprep.mubr.f32.mxu0 0.0
        %3825 = vmatmul.mubr.f32.gmra.mrb[0].mxu0 %v3354
        %v3826 = vpop.f32.mrb[0].mxu0
        %v3827 = vadd.f32 %v3612, %v3826
        %v3828 = vpop.f32.mrb[0].mxu0
        %3829 = vmatprep.mubr.f32.mxu0 0.0
        %3830 = vmatmul.mubr.f32.gmra.mrb[0].mxu0 %v3355
        %v3831 = vpop.f32.mrb[0].mxu0
        %v3832 = vadd.f32 %v3617, %v3831
        %v3833 = vpop.f32.mrb[0].mxu0
        %3834 = vdwg.mxu0
        %v3835 = vadd.f32 %v3111, %v3687
        %v3836 = vadd.f32 %v3116, %v3692
        %v3837 = vadd.f32 %v3121, %v3697
        %v3838 = vadd.f32 %v3126, %v3702
        %v3839 = vadd.f32 %v3131, %v3707
        %v3840 = vadd.f32 %v3136, %v3712
        %v3841 = vadd.f32 %v3141, %v3717
        %v3842 = vadd.f32 %v3146, %v3722
        %v3843 = vadd.f32 %v3151, %v3727
        %v3844 = vadd.f32 %v3156, %v3732
        %v3845 = vadd.f32 %v3161, %v3737
        %v3846 = vadd.f32 %v3166, %v3742
        %v3847 = vadd.f32 %v3171, %v3747
        %v3848 = vadd.f32 %v3176, %v3752
        %v3849 = vadd.f32 %v3181, %v3757
        %v3850 = vadd.f32 %v3186, %v3762
        %v3851 = vadd.f32 %v3191, %v3767
        %v3852 = vadd.f32 %v3196, %v3772
        %v3853 = vadd.f32 %v3201, %v3777
        %v3854 = vadd.f32 %v3206, %v3782
        %v3855 = vadd.f32 %v3211, %v3787
        %v3856 = vadd.f32 %v3216, %v3792
        %v3857 = vadd.f32 %v3221, %v3797
        %v3858 = vadd.f32 %v3226, %v3802
        %v3859 = vadd.f32 %v3231, %v3807
        %v3860 = vadd.f32 %v3236, %v3812
        %v3861 = vadd.f32 %v3241, %v3817
        %v3862 = vadd.f32 %v3246, %v3822
        %v3863 = vadd.f32 %v3251, %v3827
        %v3864 = vadd.f32 %v3256, %v3832
        %v3866 = vlaneseq
        %v3867 = vshrl.u32 %v3866, 7
        %v3868 = vsub.s32 0, %v3867
        %v3869 = vrot.slane %v2098, %v3868
        %v3871 = vadd.f32 %v3835, %v3869
        %v3872 = vadd.f32 %v3836, %v3869
        %v3873 = vadd.f32 %v3837, %v3869
        %v3874 = vadd.f32 %v3838, %v3869
        %v3875 = vadd.f32 %v3839, %v3869
        %v3876 = vadd.f32 %v3840, %v3869
        %v3877 = vadd.f32 %v3841, %v3869
        %v3878 = vadd.f32 %v3842, %v3869
        %v3879 = vadd.f32 %v3843, %v3869
        %v3880 = vadd.f32 %v3844, %v3869
        %v3881 = vadd.f32 %v3845, %v3869
        %v3882 = vadd.f32 %v3846, %v3869
        %v3883 = vadd.f32 %v3847, %v3869
        %v3884 = vadd.f32 %v3848, %v3869
        %v3885 = vadd.f32 %v3849, %v3869
        %v3886 = vadd.f32 %v3850, %v3869
        %v3887 = vadd.f32 %v3851, %v3869
        %v3888 = vadd.f32 %v3852, %v3869
        %v3889 = vadd.f32 %v3853, %v3869
        %v3890 = vadd.f32 %v3854, %v3869
        %v3891 = vadd.f32 %v3855, %v3869
        %v3892 = vadd.f32 %v3856, %v3869
        %v3893 = vadd.f32 %v3857, %v3869
        %v3894 = vadd.f32 %v3858, %v3869
        %v3895 = vadd.f32 %v3859, %v3869
        %v3896 = vadd.f32 %v3860, %v3869
        %v3897 = vadd.f32 %v3861, %v3869
        %v3898 = vadd.f32 %v3862, %v3869
        %v3899 = vadd.f32 %v3863, %v3869
        %v3900 = vadd.f32 %v3864, %v3869
        %v3901 = vmax.f32 %v3871, 0.0
        %v3902 = vmax.f32 %v3872, 0.0
        %v3903 = vmax.f32 %v3873, 0.0
        %v3904 = vmax.f32 %v3874, 0.0
        %v3905 = vmax.f32 %v3875, 0.0
        %v3906 = vmax.f32 %v3876, 0.0
        %v3907 = vmax.f32 %v3877, 0.0
        %v3908 = vmax.f32 %v3878, 0.0
        %v3909 = vmax.f32 %v3879, 0.0
        %v3910 = vmax.f32 %v3880, 0.0
        %v3911 = vmax.f32 %v3881, 0.0
        %v3912 = vmax.f32 %v3882, 0.0
        %v3913 = vmax.f32 %v3883, 0.0
        %v3914 = vmax.f32 %v3884, 0.0
        %v3915 = vmax.f32 %v3885, 0.0
        %v3916 = vmax.f32 %v3886, 0.0
        %v3917 = vmax.f32 %v3887, 0.0
        %v3918 = vmax.f32 %v3888, 0.0
        %v3919 = vmax.f32 %v3889, 0.0
        %v3920 = vmax.f32 %v3890, 0.0
        %v3921 = vmax.f32 %v3891, 0.0
        %v3922 = vmax.f32 %v3892, 0.0
        %v3923 = vmax.f32 %v3893, 0.0
        %v3924 = vmax.f32 %v3894, 0.0
        %v3925 = vmax.f32 %v3895, 0.0
        %v3926 = vmax.f32 %v3896, 0.0
        %v3927 = vmax.f32 %v3897, 0.0
        %v3928 = vmax.f32 %v3898, 0.0
        %v3929 = vmax.f32 %v3899, 0.0
        %v3930 = vmax.f32 %v3900, 0.0
        %s3931 = smul.u32 %s2107, 24
        %s3932 = scalar_lea.vmem %s224, %s3931
        %3933 = vst [vmem:[%s3932] sm:$0xff] %v3901
        %3934 = vst [vmem:[%s3932 + $0x8] sm:$0xff] %v3902
        %3935 = vst [vmem:[%s3932 + $0x10] sm:$0xff] %v3903
        %3936 = vst [vmem:[%s3932 + $0x18] sm:$0xff] %v3904
        %3937 = vst [vmem:[%s3932 + $0x20] sm:$0xff] %v3905
        %3938 = vst [vmem:[%s3932 + $0x28] sm:$0xff] %v3906
        %3939 = vst [vmem:[%s3932 + $0x30] sm:$0xff] %v3907
        %3940 = vst [vmem:[%s3932 + $0x38] sm:$0xff] %v3908
        %3941 = vst [vmem:[%s3932 + $0x40] sm:$0xff] %v3909
        %3942 = vst [vmem:[%s3932 + $0x48] sm:$0xff] %v3910
        %3943 = vst [vmem:[%s3932 + $0x50] sm:$0xff] %v3911
        %3944 = vst [vmem:[%s3932 + $0x58] sm:$0xff] %v3912
        %3945 = vst [vmem:[%s3932 + $0x60] sm:$0xff] %v3913
        %3946 = vst [vmem:[%s3932 + $0x68] sm:$0xff] %v3914
        %3947 = vst [vmem:[%s3932 + $0x70] sm:$0xff] %v3915
        %3948 = vst [vmem:[%s3932 + $0x78] sm:$0xff] %v3916
        %3949 = vst [vmem:[%s3932 + $0x80] sm:$0xff] %v3917
        %3950 = vst [vmem:[%s3932 + $0x88] sm:$0xff] %v3918
        %3951 = vst [vmem:[%s3932 + $0x90] sm:$0xff] %v3919
        %3952 = vst [vmem:[%s3932 + $0x98] sm:$0xff] %v3920
        %3953 = vst [vmem:[%s3932 + $0xa0] sm:$0xff] %v3921
        %3954 = vst [vmem:[%s3932 + $0xa8] sm:$0xff] %v3922
        %3955 = vst [vmem:[%s3932 + $0xb0] sm:$0xff] %v3923
        %3956 = vst [vmem:[%s3932 + $0xb8] sm:$0xff] %v3924
        %3957 = vst [vmem:[%s3932 + $0xc0] sm:$0xff] %v3925
        %3958 = vst [vmem:[%s3932 + $0xc8] sm:$0xff] %v3926
        %3959 = vst [vmem:[%s3932 + $0xd0] sm:$0xff] %v3927
        %3960 = vst [vmem:[%s3932 + $0xd8] sm:$0xff] %v3928
        %3961 = vst [vmem:[%s3932 + $0xe0] sm:$0xff] %v3929
        %3962 = vst [vmem:[%s3932 + $0xe8] sm:$0xff] %v3930
      $region52: #{_double_conv_impl.1} parent=39 // loop_footer
        %s2104 = sadd.s32 1, %s2100
      $region53: #{_double_conv_impl.1} parent=39 // loop_footer_branch
        %2099 = sbr.rel target = $region49
      $region54: #{_double_conv_impl.1} parent=39 // loop_exit
        _
      %p3963 = scmp.lt.s32.totalorder %s16, 1
      %s3964 = scalar_select %p3963, %s16, 1
      %s3965 = smul.addr %s3964, 48
      %s3966 = smul.addr %s3965, 8
      %s3967 = scalar_lea.vmem %s5, %s3966
      // Predicated region
      $region55: #{_double_conv_impl.1} parent=39 // pred_check
        %p3968 = pneg %p144
      $region56: #{_double_conv_impl.1} parent=39 // pred_check_branch
        %3970 = sbr.rel (%p3968) target = $region58
      $region57: #{_double_conv_impl.1} parent=39 // pred_region
        _
      $region58: #{_double_conv_impl.1} parent=39 // pred_fallthru
        _
    $region40: #{_double_conv_impl.1} parent=5 // pred_fallthru
      _
    %p3971 = scmp.le.s32.totalorder 2, %s11
    // Predicated region
    $region59: #{_double_conv_impl.1} parent=5 // pred_check
      %p3972 = pneg %p3971
    $region60: #{_double_conv_impl.1} parent=5 // pred_check_branch
      %3974 = sbr.rel (%p3972) target = $region62
    $region61: #{_double_conv_impl.1} parent=5 // pred_region
      %s3975 = ssub.s32 %s11, 2
      // Predicated region
      $region63: #{_double_conv_impl.1} parent=61 // pred_check
        %p3976 = pneg %p150
      $region64: #{_double_conv_impl.1} parent=61 // pred_check_branch
        %3978 = sbr.rel (%p3976) target = $region66
      $region65: #{_double_conv_impl.1} parent=61 // pred_region
        %p3979 = scmp.lt.s32.totalorder %s17, 1
        %s3980 = scalar_select %p3979, %s17, 1
        %s3981 = smul.addr %s3980, 48
        %s3982 = smul.addr %s3981, 8
        %s3983 = scalar_lea.vmem %s5, %s3982
      $region66: #{_double_conv_impl.1} parent=61 // pred_fallthru
        _
    $region62: #{_double_conv_impl.1} parent=5 // pred_fallthru
      _
  $region6: #{_double_conv_impl.1} parent=0 // loop_footer
    %s15 = sadd.s32 1, %s11
  $region7: #{_double_conv_impl.1} parent=0 // loop_footer_branch
    %10 = sbr.rel target = $region3
  $region8: #{_double_conv_impl.1} parent=0 // loop_exit
    _

// kernel: _double_conv_impl.1
$region0: #{_double_conv_impl.1}
  #allocation0 [shape = 'u32[]', space=smem, size = 0x4, offset = 0x4, fixed_abs, tag = 'smem constant byte address 0x4 - core index']
  #allocation1 [shape = 'u32[144,128]{1,0:T(1,128)}', space=vmem, size = 0x12000, scoped, tag = 'internal scratch']
  #allocation2 [shape = 'f32[480,128]{1,0:T(8,128)}', space=vmem, size = 0x3c000, scoped, tag = 'scratch operand']
  %s0 = inlined_call_operand.vmem [shape: f32[2,480,12], index: 0, kind: input, shape index: {}]
  %s1 = inlined_call_operand.vmem [shape: f32[3,12,128], index: 1, kind: input, shape index: {}]
  %s2 = inlined_call_operand.vmem [shape: f32[1,128], index: 2, kind: input, shape index: {}]
  %s3 = inlined_call_operand.vmem [shape: f32[3,384,128], index: 3, kind: input, shape index: {}]
  %s4 = inlined_call_operand.vmem [shape: f32[1,128], index: 4, kind: input, shape index: {}]
  %s5 = inlined_call_operand.vmem [shape: f32[2,384,128], index: 5, kind: output, shape index: {}]
  %s6 = sld [smem:[#allocation0]]
  $region67: #{_double_conv_impl.1} parent=0
    _
  %s8 = ssub.s32 1, %s6
  %s9 = scalar_select 0, %s8, %s6
  loop: start=0, step=1, limit=4
  $region2: #{_double_conv_impl.1} parent=0 // loop_pre_header
    _
  $region3: #{_double_conv_impl.1} parent=0 // loop_header
    %s11 = sphi 0, %s15
    %p12 = scmp.ge.s32.totalorder %s11, 4
    %s21 = sphi 0, %s23
    %s24 = sphi 0, %s21
    %s25 = sphi 0, %s24
    %s41 = sphi 0, %s25
    %s45 = sphi 0, %s45
    %s47 = sphi 0, %s45
    %s48 = sphi 0, %s47
    %s62 = sphi 0, %s48
    %s66 = sphi 0, %s66
    %s68 = sphi 0, %s66
    %s69 = sphi 0, %s68
    %s83 = sphi 0, %s69
    %s87 = sphi 0, %s87
    %s89 = sphi 0, %s87
    %s90 = sphi 0, %s89
    %s104 = sphi 0, %s90
    %s108 = sphi 0, %s108
    %s110 = sphi 0, %s108
    %s111 = sphi 0, %s110
    %s125 = sphi 0, %s111
    %s131 = sphi 0, %s133
    %s134 = sphi 0, %s131
    %s135 = sphi 0, %s134
    %s151 = sphi 0, %s135
  $region4: #{_double_conv_impl.1} parent=0 // loop_header_branch
    %14 = sbr.rel (%p12) target = $region8
  $region5: #{_double_conv_impl.1} parent=0 // loop_body
    %s16 = ssub.s32 %s11, 1
    %s17 = ssub.s32 %s11, 2
    %s18 = sadd.s32 %s11, 1
    %s19 = ssub.s32 %s11, %s18
    %p20 = scmp.eq.s32.totalorder %s19, 0
    %s22 = sadd.s32 %s21, 1
    %s23 = scalar_select %p20, %s21, %s22
    %p26 = pneg %p20
    %p27 = scmp.eq.s32.totalorder %s11, 1
    %p28 = por %p26, %p27
    %p29 = scmp.ne.s32.totalorder %s21, %s24
    %p30 = scmp.eq.s32.totalorder %s11, 0
    %p31 = por %p29, %p30
    %p32 = scmp.ne.s32.totalorder %s21, %s24
    %p33 = scmp.eq.s32.totalorder %s16, 1
    %p34 = por %p32, %p33
    %p35 = scmp.ne.s32.totalorder %s24, %s25
    %p36 = scmp.eq.s32.totalorder %s16, 0
    %p37 = por %p35, %p36
    %p38 = scmp.ne.s32.totalorder %s24, %s25
    %p39 = scmp.eq.s32.totalorder %s17, 1
    %p40 = por %p38, %p39
    %p42 = scmp.ne.s32.totalorder %s25, %s41
    %p43 = scmp.eq.s32.totalorder %s17, 0
    %p44 = por %p42, %p43
    %s46 = sadd.s32 %s45, 1
    %p49 = scmp.eq.s32.totalorder %s11, 1
    %p50 = scmp.ne.s32.totalorder %s45, %s47
    %p51 = scmp.eq.s32.totalorder %s11, 0
    %p52 = por %p50, %p51
    %p53 = scmp.ne.s32.totalorder %s45, %s47
    %p54 = scmp.eq.s32.totalorder %s16, 1
    %p55 = por %p53, %p54
    %p56 = scmp.ne.s32.totalorder %s47, %s48
    %p57 = scmp.eq.s32.totalorder %s16, 0
    %p58 = por %p56, %p57
    %p59 = scmp.ne.s32.totalorder %s47, %s48
    %p60 = scmp.eq.s32.totalorder %s17, 1
    %p61 = por %p59, %p60
    %p63 = scmp.ne.s32.totalorder %s48, %s62
    %p64 = scmp.eq.s32.totalorder %s17, 0
    %p65 = por %p63, %p64
    %s67 = sadd.s32 %s66, 1
    %p70 = scmp.eq.s32.totalorder %s11, 1
    %p71 = scmp.ne.s32.totalorder %s66, %s68
    %p72 = scmp.eq.s32.totalorder %s11, 0
    %p73 = por %p71, %p72
    %p74 = scmp.ne.s32.totalorder %s66, %s68
    %p75 = scmp.eq.s32.totalorder %s16, 1
    %p76 = por %p74, %p75
    %p77 = scmp.ne.s32.totalorder %s68, %s69
    %p78 = scmp.eq.s32.totalorder %s16, 0
    %p79 = por %p77, %p78
    %p80 = scmp.ne.s32.totalorder %s68, %s69
    %p81 = scmp.eq.s32.totalorder %s17, 1
    %p82 = por %p80, %p81
    %p84 = scmp.ne.s32.totalorder %s69, %s83
    %p85 = scmp.eq.s32.totalorder %s17, 0
    %p86 = por %p84, %p85
    %s88 = sadd.s32 %s87, 1
    %p91 = scmp.eq.s32.totalorder %s11, 1
    %p92 = scmp.ne.s32.totalorder %s87, %s89
    %p93 = scmp.eq.s32.totalorder %s11, 0
    %p94 = por %p92, %p93
    %p95 = scmp.ne.s32.totalorder %s87, %s89
    %p96 = scmp.eq.s32.totalorder %s16, 1
    %p97 = por %p95, %p96
    %p98 = scmp.ne.s32.totalorder %s89, %s90
    %p99 = scmp.eq.s32.totalorder %s16, 0
    %p100 = por %p98, %p99
    %p101 = scmp.ne.s32.totalorder %s89, %s90
    %p102 = scmp.eq.s32.totalorder %s17, 1
    %p103 = por %p101, %p102
    %p105 = scmp.ne.s32.totalorder %s90, %s104
    %p106 = scmp.eq.s32.totalorder %s17, 0
    %p107 = por %p105, %p106
    %s109 = sadd.s32 %s108, 1
    %p112 = scmp.eq.s32.totalorder %s11, 1
    %p113 = scmp.ne.s32.totalorder %s108, %s110
    %p114 = scmp.eq.s32.totalorder %s11, 0
    %p115 = por %p113, %p114
    %p116 = scmp.ne.s32.totalorder %s108, %s110
    %p117 = scmp.eq.s32.totalorder %s16, 1
    %p118 = por %p116, %p117
    %p119 = scmp.ne.s32.totalorder %s110, %s111
    %p120 = scmp.eq.s32.totalorder %s16, 0
    %p121 = por %p119, %p120
    %p122 = scmp.ne.s32.totalorder %s110, %s111
    %p123 = scmp.eq.s32.totalorder %s17, 1
    %p124 = por %p122, %p123
    %p126 = scmp.ne.s32.totalorder %s111, %s125
    %p127 = scmp.eq.s32.totalorder %s17, 0
    %p128 = por %p126, %p127
    %s129 = ssub.s32 %s11, %s18
    %p130 = scmp.eq.s32.totalorder %s129, 0
    %s132 = sadd.s32 %s131, 1
    %s133 = scalar_select %p130, %s131, %s132
    %p136 = pneg %p130
    %p137 = scmp.eq.s32.totalorder %s11, 1
    %p138 = por %p136, %p137
    %p139 = scmp.ne.s32.totalorder %s131, %s134
    %p140 = scmp.eq.s32.totalorder %s11, 0
    %p141 = por %p139, %p140
    %p142 = scmp.ne.s32.totalorder %s131, %s134
    %p143 = scmp.eq.s32.totalorder %s16, 1
    %p144 = por %p142, %p143
    %p145 = scmp.ne.s32.totalorder %s134, %s135
    %p146 = scmp.eq.s32.totalorder %s16, 0
    %p147 = por %p145, %p146
    %p148 = scmp.ne.s32.totalorder %s134, %s135
    %p149 = scmp.eq.s32.totalorder %s17, 1
    %p150 = por %p148, %p149
    %p152 = scmp.ne.s32.totalorder %s135, %s151
    %p153 = scmp.eq.s32.totalorder %s17, 0
    %p154 = por %p152, %p153
    %p155 = scmp.le.s32.totalorder 1, %s11
    %p156 = scmp.lt.s32.totalorder %s11, 3
    %p157 = pnand %p155, %p156
    %p158 = pneg %p157
    // Predicated region
    $region9: #{_double_conv_impl.1} parent=5 // pred_check
      _
    $region10: #{_double_conv_impl.1} parent=5 // pred_check_branch
      %160 = sbr.rel (%p157) target = $region12
    $region11: #{_double_conv_impl.1} parent=5 // pred_region
      %s161 = ssub.s32 %s11, 1
      // Predicated region
      $region13: #{_double_conv_impl.1} parent=11 // pred_check
        %p162 = pneg %p58
      $region14: #{_double_conv_impl.1} parent=11 // pred_check_branch
        %164 = sbr.rel (%p162) target = $region16
      $region15: #{_double_conv_impl.1} parent=11 // pred_region
        _
      $region16: #{_double_conv_impl.1} parent=11 // pred_fallthru
        _
      // Predicated region
      $region17: #{_double_conv_impl.1} parent=11 // pred_check
        %p165 = pneg %p79
      $region18: #{_double_conv_impl.1} parent=11 // pred_check_branch
        %167 = sbr.rel (%p165) target = $region20
      $region19: #{_double_conv_impl.1} parent=11 // pred_region
        _
      $region20: #{_double_conv_impl.1} parent=11 // pred_fallthru
        _
      // Predicated region
      $region21: #{_double_conv_impl.1} parent=11 // pred_check
        %p168 = pneg %p100
      $region22: #{_double_conv_impl.1} parent=11 // pred_check_branch
        %170 = sbr.rel (%p168) target = $region24
      $region23: #{_double_conv_impl.1} parent=11 // pred_region
        _
      $region24: #{_double_conv_impl.1} parent=11 // pred_fallthru
        _
      // Predicated region
      $region25: #{_double_conv_impl.1} parent=11 // pred_check
        %p171 = pneg %p121
      $region26: #{_double_conv_impl.1} parent=11 // pred_check_branch
        %173 = sbr.rel (%p171) target = $region28
      $region27: #{_double_conv_impl.1} parent=11 // pred_region
        _
      $region28: #{_double_conv_impl.1} parent=11 // pred_fallthru
        _
    $region12: #{_double_conv_impl.1} parent=5 // pred_fallthru
      _
    %p174 = scmp.lt.s32.totalorder %s11, 2
    // Predicated region
    $region29: #{_double_conv_impl.1} parent=5 // pred_check
      %p175 = pneg %p174
    $region30: #{_double_conv_impl.1} parent=5 // pred_check_branch
      %177 = sbr.rel (%p175) target = $region32
    $region31: #{_double_conv_impl.1} parent=5 // pred_region
      // Predicated region
      $region33: #{_double_conv_impl.1} parent=31 // pred_check
        %p178 = pneg %p31
      $region34: #{_double_conv_impl.1} parent=31 // pred_check_branch
        %180 = sbr.rel (%p178) target = $region36
      $region35: #{_double_conv_impl.1} parent=31 // pred_region
        %p181 = scmp.lt.s32.totalorder %s11, 1
        %s182 = scalar_select %p181, %s11, 1
        %s183 = smul.addr %s182, 60
        %s184 = smul.addr %s183, 8
        %s185 = scalar_lea.vmem %s0, %s184
      $region36: #{_double_conv_impl.1} parent=31 // pred_fallthru
        _
    $region32: #{_double_conv_impl.1} parent=5 // pred_fallthru
      _
    %p186 = scmp.le.s32.totalorder 1, %s11
    %p187 = scmp.lt.s32.totalorder %s11, 3
    %p188 = pnand %p186, %p187
    %p189 = pneg %p188
    // Predicated region
    $region37: #{_double_conv_impl.1} parent=5 // pred_check
      _
    $region38: #{_double_conv_impl.1} parent=5 // pred_check_branch
      %191 = sbr.rel (%p188) target = $region40
    $region39: #{_double_conv_impl.1} parent=5 // pred_region
      %s192 = ssub.s32 %s11, 1
      %p193 = scmp.lt.s32.totalorder %s16, 1
      %s194 = scalar_select %p193, %s16, 1
      %s195 = smul.addr %s194, 60
      %s196 = smul.addr %s195, 8
      %s197 = scalar_lea.vmem %s0, %s196
      %p198 = pneg %p37
      %p199 = pneg %p34
      %p200 = pneg %p58
      %p201 = pneg %p55
      %p202 = pneg %p79
      %p203 = pneg %p76
      %p204 = pneg %p100
      %p205 = pneg %p97
      %p206 = pneg %p121
      %p207 = pneg %p118
      %p208 = pneg %p147
      %p209 = pneg %p144
      %p210 = scmp.lt.s32.totalorder %s16, 1
      %s211 = scalar_select %p210, %s16, 1
      %s212 = smul.addr %s211, 48
      %s213 = smul.addr %s212, 8
      %s214 = scalar_lea.vmem %s5, %s213
      %p215 = scmp.lt.s32.totalorder %s16, 1
      %s216 = scalar_select %p215, %s16, 1
      %s217 = smul.addr %s216, 60
      %s218 = smul.addr %s217, 8
      %s219 = scalar_lea.vmem %s0, %s218
      %p220 = scmp.lt.s32.totalorder %s16, 1
      %s221 = scalar_select %p220, %s16, 1
      %s222 = smul.addr %s221, 48
      %s223 = smul.addr %s222, 8
      %s224 = scalar_lea.vmem %s5, %s223
      %225 = vst [vmem:[#allocation2] sm:$0xff] 0.0
      %226 = vst [vmem:[#allocation2 + $0x8] sm:$0xff] 0.0
      %227 = vst [vmem:[#allocation2 + $0x10] sm:$0xff] 0.0
      %228 = vst [vmem:[#allocation2 + $0x18] sm:$0xff] 0.0
      %229 = vst [vmem:[#allocation2 + $0x20] sm:$0xff] 0.0
      %230 = vst [vmem:[#allocation2 + $0x28] sm:$0xff] 0.0
      %231 = vst [vmem:[#allocation2 + $0x1b0] sm:$0xff] 0.0
      %232 = vst [vmem:[#allocation2 + $0x1b8] sm:$0xff] 0.0
      %233 = vst [vmem:[#allocation2 + $0x1c0] sm:$0xff] 0.0
      %234 = vst [vmem:[#allocation2 + $0x1c8] sm:$0xff] 0.0
      %235 = vst [vmem:[#allocation2 + $0x1d0] sm:$0xff] 0.0
      %236 = vst [vmem:[#allocation2 + $0x1d8] sm:$0xff] 0.0
      %v237 = vlaneseq
      %v238 = vshrl.u32 %v237, 7
      %v239 = vadd.s32 %v238, 8
      %v240 = vadd.s32 %v238, 16
      %v241 = vadd.s32 %v238, 24
      %v242 = vadd.s32 %v238, 32
      %v243 = vadd.s32 %v238, 40
      %v244 = vadd.s32 %v238, 48
      %v245 = vadd.s32 %v238, 56
      %v246 = vadd.s32 %v238, 64
      %v247 = vadd.s32 %v238, 72
      %v248 = vadd.s32 %v238, 80
      %v249 = vadd.s32 %v238, 88
      %v250 = vadd.s32 %v238, 96
      %v251 = vadd.s32 %v238, 104
      %v252 = vadd.s32 %v238, 112
      %v253 = vadd.s32 %v238, 120
      %v254 = vadd.s32 %v238, 128
      %v255 = vadd.s32 %v238, 136
      %v256 = vadd.s32 %v238, 144
      %v257 = vadd.s32 %v238, 152
      %v258 = vadd.s32 %v238, 160
      %v259 = vadd.s32 %v238, 168
      %v260 = vadd.s32 %v238, 176
      %v261 = vadd.s32 %v238, 184
      %v262 = vadd.s32 %v238, 192
      %v263 = vadd.s32 %v238, 200
      %v264 = vadd.s32 %v238, 208
      %v265 = vadd.s32 %v238, 216
      %v266 = vadd.s32 %v238, 224
      %v267 = vadd.s32 %v238, 232
      %vm268 = vcmp.lt.s32.totalorder %v238, 0
      %v269 = vsub.s32 0, %v238
      %v270 = vsel %vm268, %v269, %v238
      %v271 = vmul.u32.u64.compose %v270, 2863311531
      %v272 = vextract.low.u32 %v271
      %v273 = vextract.high.u32 %v271
      %v274 = vshrl.u32 %v273, 4
      %v275 = vmul.u32 %v274, 24
      %v276 = vsub.s32 %v270, %v275
      %v277 = vsub.s32 0, %v276
      %v278 = vsel %vm268, %v277, %v276
      %vm279 = vcmp.lt.s32.totalorder %v239, 0
      %v280 = vsub.s32 0, %v239
      %v281 = vsel %vm279, %v280, %v239
      %v282 = vmul.u32.u64.compose %v281, 2863311531
      %v283 = vextract.low.u32 %v282
      %v284 = vextract.high.u32 %v282
      %v285 = vshrl.u32 %v284, 4
      %v286 = vmul.u32 %v285, 24
      %v287 = vsub.s32 %v281, %v286
      %v288 = vsub.s32 0, %v287
      %v289 = vsel %vm279, %v288, %v287
      %vm290 = vcmp.lt.s32.totalorder %v240, 0
      %v291 = vsub.s32 0, %v240
      %v292 = vsel %vm290, %v291, %v240
      %v293 = vmul.u32.u64.compose %v292, 2863311531
      %v294 = vextract.low.u32 %v293
      %v295 = vextract.high.u32 %v293
      %v296 = vshrl.u32 %v295, 4
      %v297 = vmul.u32 %v296, 24
      %v298 = vsub.s32 %v292, %v297
      %v299 = vsub.s32 0, %v298
      %v300 = vsel %vm290, %v299, %v298
      %vm301 = vcmp.lt.s32.totalorder %v241, 0
      %v302 = vsub.s32 0, %v241
      %v303 = vsel %vm301, %v302, %v241
      %v304 = vmul.u32.u64.compose %v303, 2863311531
      %v305 = vextract.low.u32 %v304
      %v306 = vextract.high.u32 %v304
      %v307 = vshrl.u32 %v306, 4
      %v308 = vmul.u32 %v307, 24
      %v309 = vsub.s32 %v303, %v308
      %v310 = vsub.s32 0, %v309
      %v311 = vsel %vm301, %v310, %v309
      %vm312 = vcmp.lt.s32.totalorder %v242, 0
      %v313 = vsub.s32 0, %v242
      %v314 = vsel %vm312, %v313, %v242
      %v315 = vmul.u32.u64.compose %v314, 2863311531
      %v316 = vextract.low.u32 %v315
      %v317 = vextract.high.u32 %v315
      %v318 = vshrl.u32 %v317, 4
      %v319 = vmul.u32 %v318, 24
      %v320 = vsub.s32 %v314, %v319
      %v321 = vsub.s32 0, %v320
      %v322 = vsel %vm312, %v321, %v320
      %vm323 = vcmp.lt.s32.totalorder %v243, 0
      %v324 = vsub.s32 0, %v243
      %v325 = vsel %vm323, %v324, %v243
      %v326 = vmul.u32.u64.compose %v325, 2863311531
      %v327 = vextract.low.u32 %v326
      %v328 = vextract.high.u32 %v326
      %v329 = vshrl.u32 %v328, 4
      %v330 = vmul.u32 %v329, 24
      %v331 = vsub.s32 %v325, %v330
      %v332 = vsub.s32 0, %v331
      %v333 = vsel %vm323, %v332, %v331
      %vm334 = vcmp.lt.s32.totalorder %v244, 0
      %v335 = vsub.s32 0, %v244
      %v336 = vsel %vm334, %v335, %v244
      %v337 = vmul.u32.u64.compose %v336, 2863311531
      %v338 = vextract.low.u32 %v337
      %v339 = vextract.high.u32 %v337
      %v340 = vshrl.u32 %v339, 4
      %v341 = vmul.u32 %v340, 24
      %v342 = vsub.s32 %v336, %v341
      %v343 = vsub.s32 0, %v342
      %v344 = vsel %vm334, %v343, %v342
      %vm345 = vcmp.lt.s32.totalorder %v245, 0
      %v346 = vsub.s32 0, %v245
      %v347 = vsel %vm345, %v346, %v245
      %v348 = vmul.u32.u64.compose %v347, 2863311531
      %v349 = vextract.low.u32 %v348
      %v350 = vextract.high.u32 %v348
      %v351 = vshrl.u32 %v350, 4
      %v352 = vmul.u32 %v351, 24
      %v353 = vsub.s32 %v347, %v352
      %v354 = vsub.s32 0, %v353
      %v355 = vsel %vm345, %v354, %v353
      %vm356 = vcmp.lt.s32.totalorder %v246, 0
      %v357 = vsub.s32 0, %v246
      %v358 = vsel %vm356, %v357, %v246
      %v359 = vmul.u32.u64.compose %v358, 2863311531
      %v360 = vextract.low.u32 %v359
      %v361 = vextract.high.u32 %v359
      %v362 = vshrl.u32 %v361, 4
      %v363 = vmul.u32 %v362, 24
      %v364 = vsub.s32 %v358, %v363
      %v365 = vsub.s32 0, %v364
      %v366 = vsel %vm356, %v365, %v364
      %vm367 = vcmp.lt.s32.totalorder %v247, 0
      %v368 = vsub.s32 0, %v247
      %v369 = vsel %vm367, %v368, %v247
      %v370 = vmul.u32.u64.compose %v369, 2863311531
      %v371 = vextract.low.u32 %v370
      %v372 = vextract.high.u32 %v370
      %v373 = vshrl.u32 %v372, 4
      %v374 = vmul.u32 %v373, 24
      %v375 = vsub.s32 %v369, %v374
      %v376 = vsub.s32 0, %v375
      %v377 = vsel %vm367, %v376, %v375
      %vm378 = vcmp.lt.s32.totalorder %v248, 0
      %v379 = vsub.s32 0, %v248
      %v380 = vsel %vm378, %v379, %v248
      %v381 = vmul.u32.u64.compose %v380, 2863311531
      %v382 = vextract.low.u32 %v381
      %v383 = vextract.high.u32 %v381
      %v384 = vshrl.u32 %v383, 4
      %v385 = vmul.u32 %v384, 24
      %v386 = vsub.s32 %v380, %v385
      %v387 = vsub.s32 0, %v386
      %v388 = vsel %vm378, %v387, %v386
      %vm389 = vcmp.lt.s32.totalorder %v249, 0
      %v390 = vsub.s32 0, %v249
      %v391 = vsel %vm389, %v390, %v249
      %v392 = vmul.u32.u64.compose %v391, 2863311531
      %v393 = vextract.low.u32 %v392
      %v394 = vextract.high.u32 %v392
      %v395 = vshrl.u32 %v394, 4
      %v396 = vmul.u32 %v395, 24
      %v397 = vsub.s32 %v391, %v396
      %v398 = vsub.s32 0, %v397
      %v399 = vsel %vm389, %v398, %v397
      %vm400 = vcmp.lt.s32.totalorder %v250, 0
      %v401 = vsub.s32 0, %v250
      %v402 = vsel %vm400, %v401, %v250
      %v403 = vmul.u32.u64.compose %v402, 2863311531
      %v404 = vextract.low.u32 %v403
      %v405 = vextract.high.u32 %v403
      %v406 = vshrl.u32 %v405, 4
      %v407 = vmul.u32 %v406, 24
      %v408 = vsub.s32 %v402, %v407
      %v409 = vsub.s32 0, %v408
      %v410 = vsel %vm400, %v409, %v408
      %vm411 = vcmp.lt.s32.totalorder %v251, 0
      %v412 = vsub.s32 0, %v251
      %v413 = vsel %vm411, %v412, %v251
      %v414 = vmul.u32.u64.compose %v413, 2863311531
      %v415 = vextract.low.u32 %v414
      %v416 = vextract.high.u32 %v414
      %v417 = vshrl.u32 %v416, 4
      %v418 = vmul.u32 %v417, 24
      %v419 = vsub.s32 %v413, %v418
      %v420 = vsub.s32 0, %v419
      %v421 = vsel %vm411, %v420, %v419
      %vm422 = vcmp.lt.s32.totalorder %v252, 0
      %v423 = vsub.s32 0, %v252
      %v424 = vsel %vm422, %v423, %v252
      %v425 = vmul.u32.u64.compose %v424, 2863311531
      %v426 = vextract.low.u32 %v425
      %v427 = vextract.high.u32 %v425
      %v428 = vshrl.u32 %v427, 4
      %v429 = vmul.u32 %v428, 24
      %v430 = vsub.s32 %v424, %v429
      %v431 = vsub.s32 0, %v430
      %v432 = vsel %vm422, %v431, %v430
      %vm433 = vcmp.lt.s32.totalorder %v253, 0
      %v434 = vsub.s32 0, %v253
      %v435 = vsel %vm433, %v434, %v253
      %v436 = vmul.u32.u64.compose %v435, 2863311531
      %v437 = vextract.low.u32 %v436
      %v438 = vextract.high.u32 %v436
      %v439 = vshrl.u32 %v438, 4
      %v440 = vmul.u32 %v439, 24
      %v441 = vsub.s32 %v435, %v440
      %v442 = vsub.s32 0, %v441
      %v443 = vsel %vm433, %v442, %v441
      %vm444 = vcmp.lt.s32.totalorder %v254, 0
      %v445 = vsub.s32 0, %v254
      %v446 = vsel %vm444, %v445, %v254
      %v447 = vmul.u32.u64.compose %v446, 2863311531
      %v448 = vextract.low.u32 %v447
      %v449 = vextract.high.u32 %v447
      %v450 = vshrl.u32 %v449, 4
      %v451 = vmul.u32 %v450, 24
      %v452 = vsub.s32 %v446, %v451
      %v453 = vsub.s32 0, %v452
      %v454 = vsel %vm444, %v453, %v452
      %vm455 = vcmp.lt.s32.totalorder %v255, 0
      %v456 = vsub.s32 0, %v255
      %v457 = vsel %vm455, %v456, %v255
      %v458 = vmul.u32.u64.compose %v457, 2863311531
      %v459 = vextract.low.u32 %v458
      %v460 = vextract.high.u32 %v458
      %v461 = vshrl.u32 %v460, 4
      %v462 = vmul.u32 %v461, 24
      %v463 = vsub.s32 %v457, %v462
      %v464 = vsub.s32 0, %v463
      %v465 = vsel %vm455, %v464, %v463
      %vm466 = vcmp.lt.s32.totalorder %v256, 0
      %v467 = vsub.s32 0, %v256
      %v468 = vsel %vm466, %v467, %v256
      %v469 = vmul.u32.u64.compose %v468, 2863311531
      %v470 = vextract.low.u32 %v469
      %v471 = vextract.high.u32 %v469
      %v472 = vshrl.u32 %v471, 4
      %v473 = vmul.u32 %v472, 24
      %v474 = vsub.s32 %v468, %v473
      %v475 = vsub.s32 0, %v474
      %v476 = vsel %vm466, %v475, %v474
      %vm477 = vcmp.lt.s32.totalorder %v257, 0
      %v478 = vsub.s32 0, %v257
      %v479 = vsel %vm477, %v478, %v257
      %v480 = vmul.u32.u64.compose %v479, 2863311531
      %v481 = vextract.low.u32 %v480
      %v482 = vextract.high.u32 %v480
      %v483 = vshrl.u32 %v482, 4
      %v484 = vmul.u32 %v483, 24
      %v485 = vsub.s32 %v479, %v484
      %v486 = vsub.s32 0, %v485
      %v487 = vsel %vm477, %v486, %v485
      %vm488 = vcmp.lt.s32.totalorder %v258, 0
      %v489 = vsub.s32 0, %v258
      %v490 = vsel %vm488, %v489, %v258
      %v491 = vmul.u32.u64.compose %v490, 2863311531
      %v492 = vextract.low.u32 %v491
      %v493 = vextract.high.u32 %v491
      %v494 = vshrl.u32 %v493, 4
      %v495 = vmul.u32 %v494, 24
      %v496 = vsub.s32 %v490, %v495
      %v497 = vsub.s32 0, %v496
      %v498 = vsel %vm488, %v497, %v496
      %vm499 = vcmp.lt.s32.totalorder %v259, 0
      %v500 = vsub.s32 0, %v259
      %v501 = vsel %vm499, %v500, %v259
      %v502 = vmul.u32.u64.compose %v501, 2863311531
      %v503 = vextract.low.u32 %v502
      %v504 = vextract.high.u32 %v502
      %v505 = vshrl.u32 %v504, 4
      %v506 = vmul.u32 %v505, 24
      %v507 = vsub.s32 %v501, %v506
      %v508 = vsub.s32 0, %v507
      %v509 = vsel %vm499, %v508, %v507
      %vm510 = vcmp.lt.s32.totalorder %v260, 0
      %v511 = vsub.s32 0, %v260
      %v512 = vsel %vm510, %v511, %v260
      %v513 = vmul.u32.u64.compose %v512, 2863311531
      %v514 = vextract.low.u32 %v513
      %v515 = vextract.high.u32 %v513
      %v516 = vshrl.u32 %v515, 4
      %v517 = vmul.u32 %v516, 24
      %v518 = vsub.s32 %v512, %v517
      %v519 = vsub.s32 0, %v518
      %v520 = vsel %vm510, %v519, %v518
      %vm521 = vcmp.lt.s32.totalorder %v261, 0
      %v522 = vsub.s32 0, %v261
      %v523 = vsel %vm521, %v522, %v261
      %v524 = vmul.u32.u64.compose %v523, 2863311531
      %v525 = vextract.low.u32 %v524
      %v526 = vextract.high.u32 %v524
      %v527 = vshrl.u32 %v526, 4
      %v528 = vmul.u32 %v527, 24
      %v529 = vsub.s32 %v523, %v528
      %v530 = vsub.s32 0, %v529
      %v531 = vsel %vm521, %v530, %v529
      %vm532 = vcmp.lt.s32.totalorder %v262, 0
      %v533 = vsub.s32 0, %v262
      %v534 = vsel %vm532, %v533, %v262
      %v535 = vmul.u32.u64.compose %v534, 2863311531
      %v536 = vextract.low.u32 %v535
      %v537 = vextract.high.u32 %v535
      %v538 = vshrl.u32 %v537, 4
      %v539 = vmul.u32 %v538, 24
      %v540 = vsub.s32 %v534, %v539
      %v541 = vsub.s32 0, %v540
      %v542 = vsel %vm532, %v541, %v540
      %vm543 = vcmp.lt.s32.totalorder %v263, 0
      %v544 = vsub.s32 0, %v263
      %v545 = vsel %vm543, %v544, %v263
      %v546 = vmul.u32.u64.compose %v545, 2863311531
      %v547 = vextract.low.u32 %v546
      %v548 = vextract.high.u32 %v546
      %v549 = vshrl.u32 %v548, 4
      %v550 = vmul.u32 %v549, 24
      %v551 = vsub.s32 %v545, %v550
      %v552 = vsub.s32 0, %v551
      %v553 = vsel %vm543, %v552, %v551
      %vm554 = vcmp.lt.s32.totalorder %v264, 0
      %v555 = vsub.s32 0, %v264
      %v556 = vsel %vm554, %v555, %v264
      %v557 = vmul.u32.u64.compose %v556, 2863311531
      %v558 = vextract.low.u32 %v557
      %v559 = vextract.high.u32 %v557
      %v560 = vshrl.u32 %v559, 4
      %v561 = vmul.u32 %v560, 24
      %v562 = vsub.s32 %v556, %v561
      %v563 = vsub.s32 0, %v562
      %v564 = vsel %vm554, %v563, %v562
      %vm565 = vcmp.lt.s32.totalorder %v265, 0
      %v566 = vsub.s32 0, %v265
      %v567 = vsel %vm565, %v566, %v265
      %v568 = vmul.u32.u64.compose %v567, 2863311531
      %v569 = vextract.low.u32 %v568
      %v570 = vextract.high.u32 %v568
      %v571 = vshrl.u32 %v570, 4
      %v572 = vmul.u32 %v571, 24
      %v573 = vsub.s32 %v567, %v572
      %v574 = vsub.s32 0, %v573
      %v575 = vsel %vm565, %v574, %v573
      %vm576 = vcmp.lt.s32.totalorder %v266, 0
      %v577 = vsub.s32 0, %v266
      %v578 = vsel %vm576, %v577, %v266
      %v579 = vmul.u32.u64.compose %v578, 2863311531
      %v580 = vextract.low.u32 %v579
      %v581 = vextract.high.u32 %v579
      %v582 = vshrl.u32 %v581, 4
      %v583 = vmul.u32 %v582, 24
      %v584 = vsub.s32 %v578, %v583
      %v585 = vsub.s32 0, %v584
      %v586 = vsel %vm576, %v585, %v584
      %vm587 = vcmp.lt.s32.totalorder %v267, 0
      %v588 = vsub.s32 0, %v267
      %v589 = vsel %vm587, %v588, %v267
      %v590 = vmul.u32.u64.compose %v589, 2863311531
      %v591 = vextract.low.u32 %v590
      %v592 = vextract.high.u32 %v590
      %v593 = vshrl.u32 %v592, 4
      %v594 = vmul.u32 %v593, 24
      %v595 = vsub.s32 %v589, %v594
      %v596 = vsub.s32 0, %v595
      %v597 = vsel %vm587, %v596, %v595
      %vm598 = vcmp.ne.s32.totalorder %v278, 0
      %vm599 = vcmp.ne.s32.totalorder %v289, 0
      %vm600 = vcmp.ne.s32.totalorder %v300, 0
      %vm601 = vcmp.ne.s32.totalorder %v311, 0
      %vm602 = vcmp.ne.s32.totalorder %v322, 0
      %vm603 = vcmp.ne.s32.totalorder %v333, 0
      %vm604 = vcmp.ne.s32.totalorder %v344, 0
      %vm605 = vcmp.ne.s32.totalorder %v355, 0
      %vm606 = vcmp.ne.s32.totalorder %v366, 0
      %vm607 = vcmp.ne.s32.totalorder %v377, 0
      %vm608 = vcmp.ne.s32.totalorder %v388, 0
      %vm609 = vcmp.ne.s32.totalorder %v399, 0
      %vm610 = vcmp.ne.s32.totalorder %v410, 0
      %vm611 = vcmp.ne.s32.totalorder %v421, 0
      %vm612 = vcmp.ne.s32.totalorder %v432, 0
      %vm613 = vcmp.ne.s32.totalorder %v443, 0
      %vm614 = vcmp.ne.s32.totalorder %v454, 0
      %vm615 = vcmp.ne.s32.totalorder %v465, 0
      %vm616 = vcmp.ne.s32.totalorder %v476, 0
      %vm617 = vcmp.ne.s32.totalorder %v487, 0
      %vm618 = vcmp.ne.s32.totalorder %v498, 0
      %vm619 = vcmp.ne.s32.totalorder %v509, 0
      %vm620 = vcmp.ne.s32.totalorder %v520, 0
      %vm621 = vcmp.ne.s32.totalorder %v531, 0
      %vm622 = vcmp.ne.s32.totalorder %v542, 0
      %vm623 = vcmp.ne.s32.totalorder %v553, 0
      %vm624 = vcmp.ne.s32.totalorder %v564, 0
      %vm625 = vcmp.ne.s32.totalorder %v575, 0
      %vm626 = vcmp.ne.s32.totalorder %v586, 0
      %vm627 = vcmp.ne.s32.totalorder %v597, 0
      %vm628 = vcmp.lt.s32.totalorder %v278, 0
      %vm629 = vcmp.lt.s32.totalorder %v289, 0
      %vm630 = vcmp.lt.s32.totalorder %v300, 0
      %vm631 = vcmp.lt.s32.totalorder %v311, 0
      %vm632 = vcmp.lt.s32.totalorder %v322, 0
      %vm633 = vcmp.lt.s32.totalorder %v333, 0
      %vm634 = vcmp.lt.s32.totalorder %v344, 0
      %vm635 = vcmp.lt.s32.totalorder %v355, 0
      %vm636 = vcmp.lt.s32.totalorder %v366, 0
      %vm637 = vcmp.lt.s32.totalorder %v377, 0
      %vm638 = vcmp.lt.s32.totalorder %v388, 0
      %vm639 = vcmp.lt.s32.totalorder %v399, 0
      %vm640 = vcmp.lt.s32.totalorder %v410, 0
      %vm641 = vcmp.lt.s32.totalorder %v421, 0
      %vm642 = vcmp.lt.s32.totalorder %v432, 0
      %vm643 = vcmp.lt.s32.totalorder %v443, 0
      %vm644 = vcmp.lt.s32.totalorder %v454, 0
      %vm645 = vcmp.lt.s32.totalorder %v465, 0
      %vm646 = vcmp.lt.s32.totalorder %v476, 0
      %vm647 = vcmp.lt.s32.totalorder %v487, 0
      %vm648 = vcmp.lt.s32.totalorder %v498, 0
      %vm649 = vcmp.lt.s32.totalorder %v509, 0
      %vm650 = vcmp.lt.s32.totalorder %v520, 0
      %vm651 = vcmp.lt.s32.totalorder %v531, 0
      %vm652 = vcmp.lt.s32.totalorder %v542, 0
      %vm653 = vcmp.lt.s32.totalorder %v553, 0
      %vm654 = vcmp.lt.s32.totalorder %v564, 0
      %vm655 = vcmp.lt.s32.totalorder %v575, 0
      %vm656 = vcmp.lt.s32.totalorder %v586, 0
      %vm657 = vcmp.lt.s32.totalorder %v597, 0
      %vm658 = vmand %vm628, %vm598
      %vm659 = vmand %vm629, %vm599
      %vm660 = vmand %vm630, %vm600
      %vm661 = vmand %vm631, %vm601
      %vm662 = vmand %vm632, %vm602
      %vm663 = vmand %vm633, %vm603
      %vm664 = vmand %vm634, %vm604
      %vm665 = vmand %vm635, %vm605
      %vm666 = vmand %vm636, %vm606
      %vm667 = vmand %vm637, %vm607
      %vm668 = vmand %vm638, %vm608
      %vm669 = vmand %vm639, %vm609
      %vm670 = vmand %vm640, %vm610
      %vm671 = vmand %vm641, %vm611
      %vm672 = vmand %vm642, %vm612
      %vm673 = vmand %vm643, %vm613
      %vm674 = vmand %vm644, %vm614
      %vm675 = vmand %vm645, %vm615
      %vm676 = vmand %vm646, %vm616
      %vm677 = vmand %vm647, %vm617
      %vm678 = vmand %vm648, %vm618
      %vm679 = vmand %vm649, %vm619
      %vm680 = vmand %vm650, %vm620
      %vm681 = vmand %vm651, %vm621
      %vm682 = vmand %vm652, %vm622
      %vm683 = vmand %vm653, %vm623
      %vm684 = vmand %vm654, %vm624
      %vm685 = vmand %vm655, %vm625
      %vm686 = vmand %vm656, %vm626
      %vm687 = vmand %vm657, %vm627
      %v688 = vadd.s32 %v278, 24
      %v689 = vadd.s32 %v289, 24
      %v690 = vadd.s32 %v300, 24
      %v691 = vadd.s32 %v311, 24
      %v692 = vadd.s32 %v322, 24
      %v693 = vadd.s32 %v333, 24
      %v694 = vadd.s32 %v344, 24
      %v695 = vadd.s32 %v355, 24
      %v696 = vadd.s32 %v366, 24
      %v697 = vadd.s32 %v377, 24
      %v698 = vadd.s32 %v388, 24
      %v699 = vadd.s32 %v399, 24
      %v700 = vadd.s32 %v410, 24
      %v701 = vadd.s32 %v421, 24
      %v702 = vadd.s32 %v432, 24
      %v703 = vadd.s32 %v443, 24
      %v704 = vadd.s32 %v454, 24
      %v705 = vadd.s32 %v465, 24
      %v706 = vadd.s32 %v476, 24
      %v707 = vadd.s32 %v487, 24
      %v708 = vadd.s32 %v498, 24
      %v709 = vadd.s32 %v509, 24
      %v710 = vadd.s32 %v520, 24
      %v711 = vadd.s32 %v531, 24
      %v712 = vadd.s32 %v542, 24
      %v713 = vadd.s32 %v553, 24
      %v714 = vadd.s32 %v564, 24
      %v715 = vadd.s32 %v575, 24
      %v716 = vadd.s32 %v586, 24
      %v717 = vadd.s32 %v597, 24
      %v718 = vsel %vm658, %v688, %v278
      %v719 = vsel %vm659, %v689, %v289
      %v720 = vsel %vm660, %v690, %v300
      %v721 = vsel %vm661, %v691, %v311
      %v722 = vsel %vm662, %v692, %v322
      %v723 = vsel %vm663, %v693, %v333
      %v724 = vsel %vm664, %v694, %v344
      %v725 = vsel %vm665, %v695, %v355
      %v726 = vsel %vm666, %v696, %v366
      %v727 = vsel %vm667, %v697, %v377
      %v728 = vsel %vm668, %v698, %v388
      %v729 = vsel %vm669, %v699, %v399
      %v730 = vsel %vm670, %v700, %v410
      %v731 = vsel %vm671, %v701, %v421
      %v732 = vsel %vm672, %v702, %v432
      %v733 = vsel %vm673, %v703, %v443
      %v734 = vsel %vm674, %v704, %v454
      %v735 = vsel %vm675, %v705, %v465
      %v736 = vsel %vm676, %v706, %v476
      %v737 = vsel %vm677, %v707, %v487
      %v738 = vsel %vm678, %v708, %v498
      %v739 = vsel %vm679, %v709, %v509
      %v740 = vsel %vm680, %v710, %v520
      %v741 = vsel %vm681, %v711, %v531
      %v742 = vsel %vm682, %v712, %v542
      %v743 = vsel %vm683, %v713, %v553
      %v744 = vsel %vm684, %v714, %v564
      %v745 = vsel %vm685, %v715, %v575
      %v746 = vsel %vm686, %v716, %v586
      %v747 = vsel %vm687, %v717, %v597
      %vm748 = vcmp.ge.s32.totalorder %v718, 1
      %vm749 = vcmp.ge.s32.totalorder %v719, 1
      %vm750 = vcmp.ge.s32.totalorder %v720, 1
      %vm751 = vcmp.ge.s32.totalorder %v721, 1
      %vm752 = vcmp.ge.s32.totalorder %v722, 1
      %vm753 = vcmp.ge.s32.totalorder %v723, 1
      %vm754 = vcmp.ge.s32.totalorder %v724, 1
      %vm755 = vcmp.ge.s32.totalorder %v725, 1
      %vm756 = vcmp.ge.s32.totalorder %v726, 1
      %vm757 = vcmp.ge.s32.totalorder %v727, 1
      %vm758 = vcmp.ge.s32.totalorder %v728, 1
      %vm759 = vcmp.ge.s32.totalorder %v729, 1
      %vm760 = vcmp.ge.s32.totalorder %v730, 1
      %vm761 = vcmp.ge.s32.totalorder %v731, 1
      %vm762 = vcmp.ge.s32.totalorder %v732, 1
      %vm763 = vcmp.ge.s32.totalorder %v733, 1
      %vm764 = vcmp.ge.s32.totalorder %v734, 1
      %vm765 = vcmp.ge.s32.totalorder %v735, 1
      %vm766 = vcmp.ge.s32.totalorder %v736, 1
      %vm767 = vcmp.ge.s32.totalorder %v737, 1
      %vm768 = vcmp.ge.s32.totalorder %v738, 1
      %vm769 = vcmp.ge.s32.totalorder %v739, 1
      %vm770 = vcmp.ge.s32.totalorder %v740, 1
      %vm771 = vcmp.ge.s32.totalorder %v741, 1
      %vm772 = vcmp.ge.s32.totalorder %v742, 1
      %vm773 = vcmp.ge.s32.totalorder %v743, 1
      %vm774 = vcmp.ge.s32.totalorder %v744, 1
      %vm775 = vcmp.ge.s32.totalorder %v745, 1
      %vm776 = vcmp.ge.s32.totalorder %v746, 1
      %vm777 = vcmp.ge.s32.totalorder %v747, 1
      %vm778 = vcmp.le.s32.totalorder %v718, 16
      %vm779 = vcmp.le.s32.totalorder %v719, 16
      %vm780 = vcmp.le.s32.totalorder %v720, 16
      %vm781 = vcmp.le.s32.totalorder %v721, 16
      %vm782 = vcmp.le.s32.totalorder %v722, 16
      %vm783 = vcmp.le.s32.totalorder %v723, 16
      %vm784 = vcmp.le.s32.totalorder %v724, 16
      %vm785 = vcmp.le.s32.totalorder %v725, 16
      %vm786 = vcmp.le.s32.totalorder %v726, 16
      %vm787 = vcmp.le.s32.totalorder %v727, 16
      %vm788 = vcmp.le.s32.totalorder %v728, 16
      %vm789 = vcmp.le.s32.totalorder %v729, 16
      %vm790 = vcmp.le.s32.totalorder %v730, 16
      %vm791 = vcmp.le.s32.totalorder %v731, 16
      %vm792 = vcmp.le.s32.totalorder %v732, 16
      %vm793 = vcmp.le.s32.totalorder %v733, 16
      %vm794 = vcmp.le.s32.totalorder %v734, 16
      %vm795 = vcmp.le.s32.totalorder %v735, 16
      %vm796 = vcmp.le.s32.totalorder %v736, 16
      %vm797 = vcmp.le.s32.totalorder %v737, 16
      %vm798 = vcmp.le.s32.totalorder %v738, 16
      %vm799 = vcmp.le.s32.totalorder %v739, 16
      %vm800 = vcmp.le.s32.totalorder %v740, 16
      %vm801 = vcmp.le.s32.totalorder %v741, 16
      %vm802 = vcmp.le.s32.totalorder %v742, 16
      %vm803 = vcmp.le.s32.totalorder %v743, 16
      %vm804 = vcmp.le.s32.totalorder %v744, 16
      %vm805 = vcmp.le.s32.totalorder %v745, 16
      %vm806 = vcmp.le.s32.totalorder %v746, 16
      %vm807 = vcmp.le.s32.totalorder %v747, 16
      %vm808 = vmand %vm748, %vm778
      %vm809 = vmand %vm749, %vm779
      %vm810 = vmand %vm750, %vm780
      %vm811 = vmand %vm751, %vm781
      %vm812 = vmand %vm752, %vm782
      %vm813 = vmand %vm753, %vm783
      %vm814 = vmand %vm754, %vm784
      %vm815 = vmand %vm755, %vm785
      %vm816 = vmand %vm756, %vm786
      %vm817 = vmand %vm757, %vm787
      %vm818 = vmand %vm758, %vm788
      %vm819 = vmand %vm759, %vm789
      %vm820 = vmand %vm760, %vm790
      %vm821 = vmand %vm761, %vm791
      %vm822 = vmand %vm762, %vm792
      %vm823 = vmand %vm763, %vm793
      %vm824 = vmand %vm764, %vm794
      %vm825 = vmand %vm765, %vm795
      %vm826 = vmand %vm766, %vm796
      %vm827 = vmand %vm767, %vm797
      %vm828 = vmand %vm768, %vm798
      %vm829 = vmand %vm769, %vm799
      %vm830 = vmand %vm770, %vm800
      %vm831 = vmand %vm771, %vm801
      %vm832 = vmand %vm772, %vm802
      %vm833 = vmand %vm773, %vm803
      %vm834 = vmand %vm774, %vm804
      %vm835 = vmand %vm775, %vm805
      %vm836 = vmand %vm776, %vm806
      %vm837 = vmand %vm777, %vm807
      %v838 = vld [vmem:[%s2] sm:$0x1]
      loop: start=0, step=1, limit=2
      $region41: #{_double_conv_impl.1} parent=39 // loop_pre_header
        _
      $region42: #{_double_conv_impl.1} parent=39 // loop_header
        %s840 = sphi 0, %s844
        %p841 = scmp.ge.s32.totalorder %s840, 2
      $region43: #{_double_conv_impl.1} parent=39 // loop_header_branch
        %843 = sbr.rel (%p841) target = $region47
      $region44: #{_double_conv_impl.1} parent=39 // loop_body
        %s845 = smul.u32 %s840, 10
        %p846 = scmp.lt.s32.totalorder %s845, 6
        %s847 = scalar_select %p846, %s845, 6
        %s848 = sadd.s32 %s847, 1
        %s849 = smul.u32 %s848, 24
        %s850 = scalar_lea.vmem %s219, %s849
        %v851 = vld [vmem:[%s850] sm:$0xff]
        %v852 = vld [vmem:[%s850 + $0x8] sm:$0xff]
        %v853 = vld [vmem:[%s850 + $0x10] sm:$0xff]
        %v854 = vld [vmem:[%s850 + $0x18] sm:$0xff]
        %v855 = vld [vmem:[%s850 + $0x20] sm:$0xff]
        %v856 = vld [vmem:[%s850 + $0x28] sm:$0xff]
        %v857 = vld [vmem:[%s850 + $0x30] sm:$0xff]
        %v858 = vld [vmem:[%s850 + $0x38] sm:$0xff]
        %v859 = vld [vmem:[%s850 + $0x40] sm:$0xff]
        %v860 = vld [vmem:[%s850 + $0x48] sm:$0xff]
        %v861 = vld [vmem:[%s850 + $0x50] sm:$0xff]
        %v862 = vld [vmem:[%s850 + $0x58] sm:$0xff]
        %v863 = vld [vmem:[%s850 + $0x60] sm:$0xff]
        %v864 = vld [vmem:[%s850 + $0x68] sm:$0xff]
        %v865 = vld [vmem:[%s850 + $0x70] sm:$0xff]
        %v866 = vld [vmem:[%s850 + $0x78] sm:$0xff]
        %v867 = vld [vmem:[%s850 + $0x80] sm:$0xff]
        %v868 = vld [vmem:[%s850 + $0x88] sm:$0xff]
        %v869 = vld [vmem:[%s850 + $0x90] sm:$0xff]
        %v870 = vld [vmem:[%s850 + $0x98] sm:$0xff]
        %v871 = vld [vmem:[%s850 + $0xa0] sm:$0xff]
        %v872 = vld [vmem:[%s850 + $0xa8] sm:$0xff]
        %v873 = vld [vmem:[%s850 + $0xb0] sm:$0xff]
        %v874 = vld [vmem:[%s850 + $0xb8] sm:$0xff]
        %v875 = vld [vmem:[%s850 + $0xc0] sm:$0xff]
        %v876 = vld [vmem:[%s850 + $0xc8] sm:$0xff]
        %v877 = vld [vmem:[%s850 + $0xd0] sm:$0xff]
        %v878 = vld [vmem:[%s850 + $0xd8] sm:$0xff]
        %v879 = vld [vmem:[%s850 + $0xe0] sm:$0xff]
        %v880 = vld [vmem:[%s850 + $0xe8] sm:$0xff]
        %v881 = vld [vmem:[%s1] sm:$0xff]
        %v882 = vld [vmem:[%s1 + $0x8] sm:$0xf]
        %s883 = sadd.s32 %s847, 2
        %s884 = smul.u32 %s883, 24
        %s885 = scalar_lea.vmem %s219, %s884
        %v886 = vld [vmem:[%s885] sm:$0xff]
        %v887 = vld [vmem:[%s885 + $0x8] sm:$0xff]
        %v888 = vld [vmem:[%s885 + $0x10] sm:$0xff]
        %v889 = vld [vmem:[%s885 + $0x18] sm:$0xff]
        %v890 = vld [vmem:[%s885 + $0x20] sm:$0xff]
        %v891 = vld [vmem:[%s885 + $0x28] sm:$0xff]
        %v892 = vld [vmem:[%s885 + $0x30] sm:$0xff]
        %v893 = vld [vmem:[%s885 + $0x38] sm:$0xff]
        %v894 = vld [vmem:[%s885 + $0x40] sm:$0xff]
        %v895 = vld [vmem:[%s885 + $0x48] sm:$0xff]
        %v896 = vld [vmem:[%s885 + $0x50] sm:$0xff]
        %v897 = vld [vmem:[%s885 + $0x58] sm:$0xff]
        %v898 = vld [vmem:[%s885 + $0x60] sm:$0xff]
        %v899 = vld [vmem:[%s885 + $0x68] sm:$0xff]
        %v900 = vld [vmem:[%s885 + $0x70] sm:$0xff]
        %v901 = vld [vmem:[%s885 + $0x78] sm:$0xff]
        %v902 = vld [vmem:[%s885 + $0x80] sm:$0xff]
        %v903 = vld [vmem:[%s885 + $0x88] sm:$0xff]
        %v904 = vld [vmem:[%s885 + $0x90] sm:$0xff]
        %v905 = vld [vmem:[%s885 + $0x98] sm:$0xff]
        %v906 = vld [vmem:[%s885 + $0xa0] sm:$0xff]
        %v907 = vld [vmem:[%s885 + $0xa8] sm:$0xff]
        %v908 = vld [vmem:[%s885 + $0xb0] sm:$0xff]
        %v909 = vld [vmem:[%s885 + $0xb8] sm:$0xff]
        %v910 = vld [vmem:[%s885 + $0xc0] sm:$0xff]
        %v911 = vld [vmem:[%s885 + $0xc8] sm:$0xff]
        %v912 = vld [vmem:[%s885 + $0xd0] sm:$0xff]
        %v913 = vld [vmem:[%s885 + $0xd8] sm:$0xff]
        %v914 = vld [vmem:[%s885 + $0xe0] sm:$0xff]
        %v915 = vld [vmem:[%s885 + $0xe8] sm:$0xff]
        %s916 = scalar_lea.vmem %s1, 16
        %v917 = vld [vmem:[%s916] sm:$0xff]
        %v918 = vld [vmem:[%s916 + $0x8] sm:$0xf]
        %vm919 = vcmask 97280
        %v921 = vsel %vm919, %v886, 0
        %v924 = vsel %vm919, %v887, 0
        %v927 = vsel %vm919, %v888, 0
        %v930 = vsel %vm919, %v889, 0
        %v933 = vsel %vm919, %v890, 0
        %v936 = vsel %vm919, %v891, 0
        %v939 = vsel %vm919, %v892, 0
        %v942 = vsel %vm919, %v893, 0
        %v945 = vsel %vm919, %v894, 0
        %v948 = vsel %vm919, %v895, 0
        %v951 = vsel %vm919, %v896, 0
        %v954 = vsel %vm919, %v897, 0
        %v957 = vsel %vm919, %v898, 0
        %v960 = vsel %vm919, %v899, 0
        %v963 = vsel %vm919, %v900, 0
        %v966 = vsel %vm919, %v901, 0
        %v969 = vsel %vm919, %v902, 0
        %v972 = vsel %vm919, %v903, 0
        %v975 = vsel %vm919, %v904, 0
        %v978 = vsel %vm919, %v905, 0
        %v981 = vsel %vm919, %v906, 0
        %v984 = vsel %vm919, %v907, 0
        %v987 = vsel %vm919, %v908, 0
        %v990 = vsel %vm919, %v909, 0
        %v993 = vsel %vm919, %v910, 0
        %v996 = vsel %vm919, %v911, 0
        %v999 = vsel %vm919, %v912, 0
        %v1002 = vsel %vm919, %v913, 0
        %v1005 = vsel %vm919, %v914, 0
        %v1008 = vsel %vm919, %v915, 0
        %vm1010 = vcmask 1043456
        %v1012 = vsel %vm1010, %v918, 0
        %1014 = vmatprep.subr.mxu0 0.0
        %1015 = vmatpush1.msra.mxu0 %v917
        %1016 = vmatprep.subr.mxu0 0.0
        %1017 = vmatpush1.msra.mxu0 %v1012
        %1018 = vmatprep.subr.mxu0 0.0
        %1019 = vmatpush1.msra.mxu0 0.0
        %1020 = vmatprep.subr.mxu0 0.0
        %1021 = vmatpush1.msra.mxu0 0.0
        %1022 = vmatprep.subr.mxu0 0.0
        %1023 = vmatpush1.msra.mxu0 0.0
        %1024 = vmatprep.subr.mxu0 0.0
        %1025 = vmatpush1.msra.mxu0 0.0
        %1026 = vmatprep.subr.mxu0 0.0
        %1027 = vmatpush1.msra.mxu0 0.0
        %1028 = vmatprep.subr.mxu0 0.0
        %1029 = vmatpush1.msra.mxu0 0.0
        %1030 = vmatprep.subr.mxu0 0.0
        %1031 = vmatpush1.msra.mxu0 0.0
        %1032 = vmatprep.subr.mxu0 0.0
        %1033 = vmatpush1.msra.mxu0 0.0
        %1034 = vmatprep.subr.mxu0 0.0
        %1035 = vmatpush1.msra.mxu0 0.0
        %1036 = vmatprep.subr.mxu0 0.0
        %1037 = vmatpush1.msra.mxu0 0.0
        %1038 = vmatprep.subr.mxu0 0.0
        %1039 = vmatpush1.msra.mxu0 0.0
        %1040 = vmatprep.subr.mxu0 0.0
        %1041 = vmatpush1.msra.mxu0 0.0
        %1042 = vmatprep.subr.mxu0 0.0
        %1043 = vmatpush1.msra.mxu0 0.0
        %1044 = vmatprep.subr.mxu0 0.0
        %1045 = vmatpush1.msra.mxu0 0.0
        %1046 = vmatprep.subr.mxu0 0.0
        %1047 = vmatpush1.msra.mxu0 0.0
        %1048 = vmatprep.subr.mxu0 0.0
        %1049 = vmatpush1.msra.mxu0 0.0
        %1050 = vmatprep.subr.mxu0 0.0
        %1051 = vmatpush1.msra.mxu0 0.0
        %1052 = vmatprep.subr.mxu0 0.0
        %1053 = vmatpush1.msra.mxu0 0.0
        %1054 = vmatprep.subr.mxu0 0.0
        %1055 = vmatpush1.msra.mxu0 0.0
        %1056 = vmatprep.subr.mxu0 0.0
        %1057 = vmatpush1.msra.mxu0 0.0
        %1058 = vmatprep.subr.mxu0 0.0
        %1059 = vmatpush1.msra.mxu0 0.0
        %1060 = vmatprep.subr.mxu0 0.0
        %1061 = vmatpush1.msra.mxu0 0.0
        %1062 = vmatprep.subr.mxu0 0.0
        %1063 = vmatpush1.msra.mxu0 0.0
        %1064 = vmatprep.subr.mxu0 0.0
        %1065 = vmatpush1.msra.mxu0 0.0
        %1066 = vmatprep.subr.mxu0 0.0
        %1067 = vmatpush1.msra.mxu0 0.0
        %1068 = vmatprep.subr.mxu0 0.0
        %1069 = vmatpush1.msra.mxu0 0.0
        %1070 = vmatprep.subr.mxu0 0.0
        %1071 = vmatpush1.msra.mxu0 0.0
        %1072 = vmatprep.subr.mxu0 0.0
        %1073 = vmatpush1.msra.mxu0 0.0
        %1074 = vmatprep.subr.mxu0 0.0
        %1075 = vmatpush1.msra.mxu0 0.0
        %1076 = vmatprep.subr.mxu0 0.0
        %1077 = vmatpush1.msra.mxu0 0.0
        %1078 = vmatprep.mubr.f32.mxu0 0.0
        %1079 = vmatmul.mubr.f32.gmra.mrb[0].mxu0 %v921
        %v1080 = vpop.f32.mrb[0].mxu0
        %v1081 = vadd.f32 0.0, %v1080
        %v1082 = vpop.f32.mrb[0].mxu0
        %1083 = vmatprep.mubr.f32.mxu0 0.0
        %1084 = vmatmul.mubr.f32.gmra.mrb[0].mxu0 %v924
        %v1085 = vpop.f32.mrb[0].mxu0
        %v1086 = vadd.f32 0.0, %v1085
        %v1087 = vpop.f32.mrb[0].mxu0
        %1088 = vmatprep.mubr.f32.mxu0 0.0
        %1089 = vmatmul.mubr.f32.gmra.mrb[0].mxu0 %v927
        %v1090 = vpop.f32.mrb[0].mxu0
        %v1091 = vadd.f32 0.0, %v1090
        %v1092 = vpop.f32.mrb[0].mxu0
        %1093 = vmatprep.mubr.f32.mxu0 0.0
        %1094 = vmatmul.mubr.f32.gmra.mrb[0].mxu0 %v930
        %v1095 = vpop.f32.mrb[0].mxu0
        %v1096 = vadd.f32 0.0, %v1095
        %v1097 = vpop.f32.mrb[0].mxu0
        %1098 = vmatprep.mubr.f32.mxu0 0.0
        %1099 = vmatmul.mubr.f32.gmra.mrb[0].mxu0 %v933
        %v1100 = vpop.f32.mrb[0].mxu0
        %v1101 = vadd.f32 0.0, %v1100
        %v1102 = vpop.f32.mrb[0].mxu0
        %1103 = vmatprep.mubr.f32.mxu0 0.0
        %1104 = vmatmul.mubr.f32.gmra.mrb[0].mxu0 %v936
        %v1105 = vpop.f32.mrb[0].mxu0
        %v1106 = vadd.f32 0.0, %v1105
        %v1107 = vpop.f32.mrb[0].mxu0
        %1108 = vmatprep.mubr.f32.mxu0 0.0
        %1109 = vmatmul.mubr.f32.gmra.mrb[0].mxu0 %v939
        %v1110 = vpop.f32.mrb[0].mxu0
        %v1111 = vadd.f32 0.0, %v1110
        %v1112 = vpop.f32.mrb[0].mxu0
        %1113 = vmatprep.mubr.f32.mxu0 0.0
        %1114 = vmatmul.mubr.f32.gmra.mrb[0].mxu0 %v942
        %v1115 = vpop.f32.mrb[0].mxu0
        %v1116 = vadd.f32 0.0, %v1115
        %v1117 = vpop.f32.mrb[0].mxu0
        %1118 = vmatprep.mubr.f32.mxu0 0.0
        %1119 = vmatmul.mubr.f32.gmra.mrb[0].mxu0 %v945
        %v1120 = vpop.f32.mrb[0].mxu0
        %v1121 = vadd.f32 0.0, %v1120
        %v1122 = vpop.f32.mrb[0].mxu0
        %1123 = vmatprep.mubr.f32.mxu0 0.0
        %1124 = vmatmul.mubr.f32.gmra.mrb[0].mxu0 %v948
        %v1125 = vpop.f32.mrb[0].mxu0
        %v1126 = vadd.f32 0.0, %v1125
        %v1127 = vpop.f32.mrb[0].mxu0
        %1128 = vmatprep.mubr.f32.mxu0 0.0
        %1129 = vmatmul.mubr.f32.gmra.mrb[0].mxu0 %v951
        %v1130 = vpop.f32.mrb[0].mxu0
        %v1131 = vadd.f32 0.0, %v1130
        %v1132 = vpop.f32.mrb[0].mxu0
        %1133 = vmatprep.mubr.f32.mxu0 0.0
        %1134 = vmatmul.mubr.f32.gmra.mrb[0].mxu0 %v954
        %v1135 = vpop.f32.mrb[0].mxu0
        %v1136 = vadd.f32 0.0, %v1135
        %v1137 = vpop.f32.mrb[0].mxu0
        %1138 = vmatprep.mubr.f32.mxu0 0.0
        %1139 = vmatmul.mubr.f32.gmra.mrb[0].mxu0 %v957
        %v1140 = vpop.f32.mrb[0].mxu0
        %v1141 = vadd.f32 0.0, %v1140
        %v1142 = vpop.f32.mrb[0].mxu0
        %1143 = vmatprep.mubr.f32.mxu0 0.0
        %1144 = vmatmul.mubr.f32.gmra.mrb[0].mxu0 %v960
        %v1145 = vpop.f32.mrb[0].mxu0
        %v1146 = vadd.f32 0.0, %v1145
        %v1147 = vpop.f32.mrb[0].mxu0
        %1148 = vmatprep.mubr.f32.mxu0 0.0
        %1149 = vmatmul.mubr.f32.gmra.mrb[0].mxu0 %v963
        %v1150 = vpop.f32.mrb[0].mxu0
        %v1151 = vadd.f32 0.0, %v1150
        %v1152 = vpop.f32.mrb[0].mxu0
        %1153 = vmatprep.mubr.f32.mxu0 0.0
        %1154 = vmatmul.mubr.f32.gmra.mrb[0].mxu0 %v966
        %v1155 = vpop.f32.mrb[0].mxu0
        %v1156 = vadd.f32 0.0, %v1155
        %v1157 = vpop.f32.mrb[0].mxu0
        %1158 = vmatprep.mubr.f32.mxu0 0.0
        %1159 = vmatmul.mubr.f32.gmra.mrb[0].mxu0 %v969
        %v1160 = vpop.f32.mrb[0].mxu0
        %v1161 = vadd.f32 0.0, %v1160
        %v1162 = vpop.f32.mrb[0].mxu0
        %1163 = vmatprep.mubr.f32.mxu0 0.0
        %1164 = vmatmul.mubr.f32.gmra.mrb[0].mxu0 %v972
        %v1165 = vpop.f32.mrb[0].mxu0
        %v1166 = vadd.f32 0.0, %v1165
        %v1167 = vpop.f32.mrb[0].mxu0
        %1168 = vmatprep.mubr.f32.mxu0 0.0
        %1169 = vmatmul.mubr.f32.gmra.mrb[0].mxu0 %v975
        %v1170 = vpop.f32.mrb[0].mxu0
        %v1171 = vadd.f32 0.0, %v1170
        %v1172 = vpop.f32.mrb[0].mxu0
        %1173 = vmatprep.mubr.f32.mxu0 0.0
        %1174 = vmatmul.mubr.f32.gmra.mrb[0].mxu0 %v978
        %v1175 = vpop.f32.mrb[0].mxu0
        %v1176 = vadd.f32 0.0, %v1175
        %v1177 = vpop.f32.mrb[0].mxu0
        %1178 = vmatprep.mubr.f32.mxu0 0.0
        %1179 = vmatmul.mubr.f32.gmra.mrb[0].mxu0 %v981
        %v1180 = vpop.f32.mrb[0].mxu0
        %v1181 = vadd.f32 0.0, %v1180
        %v1182 = vpop.f32.mrb[0].mxu0
        %1183 = vmatprep.mubr.f32.mxu0 0.0
        %1184 = vmatmul.mubr.f32.gmra.mrb[0].mxu0 %v984
        %v1185 = vpop.f32.mrb[0].mxu0
        %v1186 = vadd.f32 0.0, %v1185
        %v1187 = vpop.f32.mrb[0].mxu0
        %1188 = vmatprep.mubr.f32.mxu0 0.0
        %1189 = vmatmul.mubr.f32.gmra.mrb[0].mxu0 %v987
        %v1190 = vpop.f32.mrb[0].mxu0
        %v1191 = vadd.f32 0.0, %v1190
        %v1192 = vpop.f32.mrb[0].mxu0
        %1193 = vmatprep.mubr.f32.mxu0 0.0
        %1194 = vmatmul.mubr.f32.gmra.mrb[0].mxu0 %v990
        %v1195 = vpop.f32.mrb[0].mxu0
        %v1196 = vadd.f32 0.0, %v1195
        %v1197 = vpop.f32.mrb[0].mxu0
        %1198 = vmatprep.mubr.f32.mxu0 0.0
        %1199 = vmatmul.mubr.f32.gmra.mrb[0].mxu0 %v993
        %v1200 = vpop.f32.mrb[0].mxu0
        %v1201 = vadd.f32 0.0, %v1200
        %v1202 = vpop.f32.mrb[0].mxu0
        %1203 = vmatprep.mubr.f32.mxu0 0.0
        %1204 = vmatmul.mubr.f32.gmra.mrb[0].mxu0 %v996
        %v1205 = vpop.f32.mrb[0].mxu0
        %v1206 = vadd.f32 0.0, %v1205
        %v1207 = vpop.f32.mrb[0].mxu0
        %1208 = vmatprep.mubr.f32.mxu0 0.0
        %1209 = vmatmul.mubr.f32.gmra.mrb[0].mxu0 %v999
        %v1210 = vpop.f32.mrb[0].mxu0
        %v1211 = vadd.f32 0.0, %v1210
        %v1212 = vpop.f32.mrb[0].mxu0
        %1213 = vmatprep.mubr.f32.mxu0 0.0
        %1214 = vmatmul.mubr.f32.gmra.mrb[0].mxu0 %v1002
        %v1215 = vpop.f32.mrb[0].mxu0
        %v1216 = vadd.f32 0.0, %v1215
        %v1217 = vpop.f32.mrb[0].mxu0
        %1218 = vmatprep.mubr.f32.mxu0 0.0
        %1219 = vmatmul.mubr.f32.gmra.mrb[0].mxu0 %v1005
        %v1220 = vpop.f32.mrb[0].mxu0
        %v1221 = vadd.f32 0.0, %v1220
        %v1222 = vpop.f32.mrb[0].mxu0
        %1223 = vmatprep.mubr.f32.mxu0 0.0
        %1224 = vmatmul.mubr.f32.gmra.mrb[0].mxu0 %v1008
        %v1225 = vpop.f32.mrb[0].mxu0
        %v1226 = vadd.f32 0.0, %v1225
        %v1227 = vpop.f32.mrb[0].mxu0
        %1228 = vdwg.mxu0
        %v1230 = vsel %vm919, %v851, 0
        %v1233 = vsel %vm919, %v852, 0
        %v1236 = vsel %vm919, %v853, 0
        %v1239 = vsel %vm919, %v854, 0
        %v1242 = vsel %vm919, %v855, 0
        %v1245 = vsel %vm919, %v856, 0
        %v1248 = vsel %vm919, %v857, 0
        %v1251 = vsel %vm919, %v858, 0
        %v1254 = vsel %vm919, %v859, 0
        %v1257 = vsel %vm919, %v860, 0
        %v1260 = vsel %vm919, %v861, 0
        %v1263 = vsel %vm919, %v862, 0
        %v1266 = vsel %vm919, %v863, 0
        %v1269 = vsel %vm919, %v864, 0
        %v1272 = vsel %vm919, %v865, 0
        %v1275 = vsel %vm919, %v866, 0
        %v1278 = vsel %vm919, %v867, 0
        %v1281 = vsel %vm919, %v868, 0
        %v1284 = vsel %vm919, %v869, 0
        %v1287 = vsel %vm919, %v870, 0
        %v1290 = vsel %vm919, %v871, 0
        %v1293 = vsel %vm919, %v872, 0
        %v1296 = vsel %vm919, %v873, 0
        %v1299 = vsel %vm919, %v874, 0
        %v1302 = vsel %vm919, %v875, 0
        %v1305 = vsel %vm919, %v876, 0
        %v1308 = vsel %vm919, %v877, 0
        %v1311 = vsel %vm919, %v878, 0
        %v1314 = vsel %vm919, %v879, 0
        %v1317 = vsel %vm919, %v880, 0
        %v1320 = vsel %vm1010, %v882, 0
        %1322 = vmatprep.subr.mxu0 0.0
        %1323 = vmatpush1.msra.mxu0 %v881
        %1324 = vmatprep.subr.mxu0 0.0
        %1325 = vmatpush1.msra.mxu0 %v1320
        %1326 = vmatprep.subr.mxu0 0.0
        %1327 = vmatpush1.msra.mxu0 0.0
        %1328 = vmatprep.subr.mxu0 0.0
        %1329 = vmatpush1.msra.mxu0 0.0
        %1330 = vmatprep.subr.mxu0 0.0
        %1331 = vmatpush1.msra.mxu0 0.0
        %1332 = vmatprep.subr.mxu0 0.0
        %1333 = vmatpush1.msra.mxu0 0.0
        %1334 = vmatprep.subr.mxu0 0.0
        %1335 = vmatpush1.msra.mxu0 0.0
        %1336 = vmatprep.subr.mxu0 0.0
        %1337 = vmatpush1.msra.mxu0 0.0
        %1338 = vmatprep.subr.mxu0 0.0
        %1339 = vmatpush1.msra.mxu0 0.0
        %1340 = vmatprep.subr.mxu0 0.0
        %1341 = vmatpush1.msra.mxu0 0.0
        %1342 = vmatprep.subr.mxu0 0.0
        %1343 = vmatpush1.msra.mxu0 0.0
        %1344 = vmatprep.subr.mxu0 0.0
        %1345 = vmatpush1.msra.mxu0 0.0
        %1346 = vmatprep.subr.mxu0 0.0
        %1347 = vmatpush1.msra.mxu0 0.0
        %1348 = vmatprep.subr.mxu0 0.0
        %1349 = vmatpush1.msra.mxu0 0.0
        %1350 = vmatprep.subr.mxu0 0.0
        %1351 = vmatpush1.msra.mxu0 0.0
        %1352 = vmatprep.subr.mxu0 0.0
        %1353 = vmatpush1.msra.mxu0 0.0
        %1354 = vmatprep.subr.mxu0 0.0
        %1355 = vmatpush1.msra.mxu0 0.0
        %1356 = vmatprep.subr.mxu0 0.0
        %1357 = vmatpush1.msra.mxu0 0.0
        %1358 = vmatprep.subr.mxu0 0.0
        %1359 = vmatpush1.msra.mxu0 0.0
        %1360 = vmatprep.subr.mxu0 0.0
        %1361 = vmatpush1.msra.mxu0 0.0
        %1362 = vmatprep.subr.mxu0 0.0
        %1363 = vmatpush1.msra.mxu0 0.0
        %1364 = vmatprep.subr.mxu0 0.0
        %1365 = vmatpush1.msra.mxu0 0.0
        %1366 = vmatprep.subr.mxu0 0.0
        %1367 = vmatpush1.msra.mxu0 0.0
        %1368 = vmatprep.subr.mxu0 0.0
        %1369 = vmatpush1.msra.mxu0 0.0
        %1370 = vmatprep.subr.mxu0 0.0
        %1371 = vmatpush1.msra.mxu0 0.0
        %1372 = vmatprep.subr.mxu0 0.0
        %1373 = vmatpush1.msra.mxu0 0.0
        %1374 = vmatprep.subr.mxu0 0.0
        %1375 = vmatpush1.msra.mxu0 0.0
        %1376 = vmatprep.subr.mxu0 0.0
        %1377 = vmatpush1.msra.mxu0 0.0
        %1378 = vmatprep.subr.mxu0 0.0
        %1379 = vmatpush1.msra.mxu0 0.0
        %1380 = vmatprep.subr.mxu0 0.0
        %1381 = vmatpush1.msra.mxu0 0.0
        %1382 = vmatprep.subr.mxu0 0.0
        %1383 = vmatpush1.msra.mxu0 0.0
        %1384 = vmatprep.subr.mxu0 0.0
        %1385 = vmatpush1.msra.mxu0 0.0
        %1386 = vmatprep.mubr.f32.mxu0 0.0
        %1387 = vmatmul.mubr.f32.gmra.mrb[0].mxu0 %v1230
        %v1388 = vpop.f32.mrb[0].mxu0
        %v1389 = vadd.f32 %v1081, %v1388
        %v1390 = vpop.f32.mrb[0].mxu0
        %1391 = vmatprep.mubr.f32.mxu0 0.0
        %1392 = vmatmul.mubr.f32.gmra.mrb[0].mxu0 %v1233
        %v1393 = vpop.f32.mrb[0].mxu0
        %v1394 = vadd.f32 %v1086, %v1393
        %v1395 = vpop.f32.mrb[0].mxu0
        %1396 = vmatprep.mubr.f32.mxu0 0.0
        %1397 = vmatmul.mubr.f32.gmra.mrb[0].mxu0 %v1236
        %v1398 = vpop.f32.mrb[0].mxu0
        %v1399 = vadd.f32 %v1091, %v1398
        %v1400 = vpop.f32.mrb[0].mxu0
        %1401 = vmatprep.mubr.f32.mxu0 0.0
        %1402 = vmatmul.mubr.f32.gmra.mrb[0].mxu0 %v1239
        %v1403 = vpop.f32.mrb[0].mxu0
        %v1404 = vadd.f32 %v1096, %v1403
        %v1405 = vpop.f32.mrb[0].mxu0
        %1406 = vmatprep.mubr.f32.mxu0 0.0
        %1407 = vmatmul.mubr.f32.gmra.mrb[0].mxu0 %v1242
        %v1408 = vpop.f32.mrb[0].mxu0
        %v1409 = vadd.f32 %v1101, %v1408
        %v1410 = vpop.f32.mrb[0].mxu0
        %1411 = vmatprep.mubr.f32.mxu0 0.0
        %1412 = vmatmul.mubr.f32.gmra.mrb[0].mxu0 %v1245
        %v1413 = vpop.f32.mrb[0].mxu0
        %v1414 = vadd.f32 %v1106, %v1413
        %v1415 = vpop.f32.mrb[0].mxu0
        %1416 = vmatprep.mubr.f32.mxu0 0.0
        %1417 = vmatmul.mubr.f32.gmra.mrb[0].mxu0 %v1248
        %v1418 = vpop.f32.mrb[0].mxu0
        %v1419 = vadd.f32 %v1111, %v1418
        %v1420 = vpop.f32.mrb[0].mxu0
        %1421 = vmatprep.mubr.f32.mxu0 0.0
        %1422 = vmatmul.mubr.f32.gmra.mrb[0].mxu0 %v1251
        %v1423 = vpop.f32.mrb[0].mxu0
        %v1424 = vadd.f32 %v1116, %v1423
        %v1425 = vpop.f32.mrb[0].mxu0
        %1426 = vmatprep.mubr.f32.mxu0 0.0
        %1427 = vmatmul.mubr.f32.gmra.mrb[0].mxu0 %v1254
        %v1428 = vpop.f32.mrb[0].mxu0
        %v1429 = vadd.f32 %v1121, %v1428
        %v1430 = vpop.f32.mrb[0].mxu0
        %1431 = vmatprep.mubr.f32.mxu0 0.0
        %1432 = vmatmul.mubr.f32.gmra.mrb[0].mxu0 %v1257
        %v1433 = vpop.f32.mrb[0].mxu0
        %v1434 = vadd.f32 %v1126, %v1433
        %v1435 = vpop.f32.mrb[0].mxu0
        %1436 = vmatprep.mubr.f32.mxu0 0.0
        %1437 = vmatmul.mubr.f32.gmra.mrb[0].mxu0 %v1260
        %v1438 = vpop.f32.mrb[0].mxu0
        %v1439 = vadd.f32 %v1131, %v1438
        %v1440 = vpop.f32.mrb[0].mxu0
        %1441 = vmatprep.mubr.f32.mxu0 0.0
        %1442 = vmatmul.mubr.f32.gmra.mrb[0].mxu0 %v1263
        %v1443 = vpop.f32.mrb[0].mxu0
        %v1444 = vadd.f32 %v1136, %v1443
        %v1445 = vpop.f32.mrb[0].mxu0
        %1446 = vmatprep.mubr.f32.mxu0 0.0
        %1447 = vmatmul.mubr.f32.gmra.mrb[0].mxu0 %v1266
        %v1448 = vpop.f32.mrb[0].mxu0
        %v1449 = vadd.f32 %v1141, %v1448
        %v1450 = vpop.f32.mrb[0].mxu0
        %1451 = vmatprep.mubr.f32.mxu0 0.0
        %1452 = vmatmul.mubr.f32.gmra.mrb[0].mxu0 %v1269
        %v1453 = vpop.f32.mrb[0].mxu0
        %v1454 = vadd.f32 %v1146, %v1453
        %v1455 = vpop.f32.mrb[0].mxu0
        %1456 = vmatprep.mubr.f32.mxu0 0.0
        %1457 = vmatmul.mubr.f32.gmra.mrb[0].mxu0 %v1272
        %v1458 = vpop.f32.mrb[0].mxu0
        %v1459 = vadd.f32 %v1151, %v1458
        %v1460 = vpop.f32.mrb[0].mxu0
        %1461 = vmatprep.mubr.f32.mxu0 0.0
        %1462 = vmatmul.mubr.f32.gmra.mrb[0].mxu0 %v1275
        %v1463 = vpop.f32.mrb[0].mxu0
        %v1464 = vadd.f32 %v1156, %v1463
        %v1465 = vpop.f32.mrb[0].mxu0
        %1466 = vmatprep.mubr.f32.mxu0 0.0
        %1467 = vmatmul.mubr.f32.gmra.mrb[0].mxu0 %v1278
        %v1468 = vpop.f32.mrb[0].mxu0
        %v1469 = vadd.f32 %v1161, %v1468
        %v1470 = vpop.f32.mrb[0].mxu0
        %1471 = vmatprep.mubr.f32.mxu0 0.0
        %1472 = vmatmul.mubr.f32.gmra.mrb[0].mxu0 %v1281
        %v1473 = vpop.f32.mrb[0].mxu0
        %v1474 = vadd.f32 %v1166, %v1473
        %v1475 = vpop.f32.mrb[0].mxu0
        %1476 = vmatprep.mubr.f32.mxu0 0.0
        %1477 = vmatmul.mubr.f32.gmra.mrb[0].mxu0 %v1284
        %v1478 = vpop.f32.mrb[0].mxu0
        %v1479 = vadd.f32 %v1171, %v1478
        %v1480 = vpop.f32.mrb[0].mxu0
        %1481 = vmatprep.mubr.f32.mxu0 0.0
        %1482 = vmatmul.mubr.f32.gmra.mrb[0].mxu0 %v1287
        %v1483 = vpop.f32.mrb[0].mxu0
        %v1484 = vadd.f32 %v1176, %v1483
        %v1485 = vpop.f32.mrb[0].mxu0
        %1486 = vmatprep.mubr.f32.mxu0 0.0
        %1487 = vmatmul.mubr.f32.gmra.mrb[0].mxu0 %v1290
        %v1488 = vpop.f32.mrb[0].mxu0
        %v1489 = vadd.f32 %v1181, %v1488
        %v1490 = vpop.f32.mrb[0].mxu0
        %1491 = vmatprep.mubr.f32.mxu0 0.0
        %1492 = vmatmul.mubr.f32.gmra.mrb[0].mxu0 %v1293
        %v1493 = vpop.f32.mrb[0].mxu0
        %v1494 = vadd.f32 %v1186, %v1493
        %v1495 = vpop.f32.mrb[0].mxu0
        %1496 = vmatprep.mubr.f32.mxu0 0.0
        %1497 = vmatmul.mubr.f32.gmra.mrb[0].mxu0 %v1296
        %v1498 = vpop.f32.mrb[0].mxu0
        %v1499 = vadd.f32 %v1191, %v1498
        %v1500 = vpop.f32.mrb[0].mxu0
        %1501 = vmatprep.mubr.f32.mxu0 0.0
        %1502 = vmatmul.mubr.f32.gmra.mrb[0].mxu0 %v1299
        %v1503 = vpop.f32.mrb[0].mxu0
        %v1504 = vadd.f32 %v1196, %v1503
        %v1505 = vpop.f32.mrb[0].mxu0
        %1506 = vmatprep.mubr.f32.mxu0 0.0
        %1507 = vmatmul.mubr.f32.gmra.mrb[0].mxu0 %v1302
        %v1508 = vpop.f32.mrb[0].mxu0
        %v1509 = vadd.f32 %v1201, %v1508
        %v1510 = vpop.f32.mrb[0].mxu0
        %1511 = vmatprep.mubr.f32.mxu0 0.0
        %1512 = vmatmul.mubr.f32.gmra.mrb[0].mxu0 %v1305
        %v1513 = vpop.f32.mrb[0].mxu0
        %v1514 = vadd.f32 %v1206, %v1513
        %v1515 = vpop.f32.mrb[0].mxu0
        %1516 = vmatprep.mubr.f32.mxu0 0.0
        %1517 = vmatmul.mubr.f32.gmra.mrb[0].mxu0 %v1308
        %v1518 = vpop.f32.mrb[0].mxu0
        %v1519 = vadd.f32 %v1211, %v1518
        %v1520 = vpop.f32.mrb[0].mxu0
        %1521 = vmatprep.mubr.f32.mxu0 0.0
        %1522 = vmatmul.mubr.f32.gmra.mrb[0].mxu0 %v1311
        %v1523 = vpop.f32.mrb[0].mxu0
        %v1524 = vadd.f32 %v1216, %v1523
        %v1525 = vpop.f32.mrb[0].mxu0
        %1526 = vmatprep.mubr.f32.mxu0 0.0
        %1527 = vmatmul.mubr.f32.gmra.mrb[0].mxu0 %v1314
        %v1528 = vpop.f32.mrb[0].mxu0
        %v1529 = vadd.f32 %v1221, %v1528
        %v1530 = vpop.f32.mrb[0].mxu0
        %1531 = vmatprep.mubr.f32.mxu0 0.0
        %1532 = vmatmul.mubr.f32.gmra.mrb[0].mxu0 %v1317
        %v1533 = vpop.f32.mrb[0].mxu0
        %v1534 = vadd.f32 %v1226, %v1533
        %v1535 = vpop.f32.mrb[0].mxu0
        %1536 = vdwg.mxu0
        %s1537 = sadd.s32 %s847, 3
        %s1538 = smul.u32 %s1537, 24
        %s1539 = scalar_lea.vmem %s219, %s1538
        %v1540 = vld [vmem:[%s1539] sm:$0xff]
        %v1541 = vld [vmem:[%s1539 + $0x8] sm:$0xff]
        %v1542 = vld [vmem:[%s1539 + $0x10] sm:$0xff]
        %v1543 = vld [vmem:[%s1539 + $0x18] sm:$0xff]
        %v1544 = vld [vmem:[%s1539 + $0x20] sm:$0xff]
        %v1545 = vld [vmem:[%s1539 + $0x28] sm:$0xff]
        %v1546 = vld [vmem:[%s1539 + $0x30] sm:$0xff]
        %v1547 = vld [vmem:[%s1539 + $0x38] sm:$0xff]
        %v1548 = vld [vmem:[%s1539 + $0x40] sm:$0xff]
        %v1549 = vld [vmem:[%s1539 + $0x48] sm:$0xff]
        %v1550 = vld [vmem:[%s1539 + $0x50] sm:$0xff]
        %v1551 = vld [vmem:[%s1539 + $0x58] sm:$0xff]
        %v1552 = vld [vmem:[%s1539 + $0x60] sm:$0xff]
        %v1553 = vld [vmem:[%s1539 + $0x68] sm:$0xff]
        %v1554 = vld [vmem:[%s1539 + $0x70] sm:$0xff]
        %v1555 = vld [vmem:[%s1539 + $0x78] sm:$0xff]
        %v1556 = vld [vmem:[%s1539 + $0x80] sm:$0xff]
        %v1557 = vld [vmem:[%s1539 + $0x88] sm:$0xff]
        %v1558 = vld [vmem:[%s1539 + $0x90] sm:$0xff]
        %v1559 = vld [vmem:[%s1539 + $0x98] sm:$0xff]
        %v1560 = vld [vmem:[%s1539 + $0xa0] sm:$0xff]
        %v1561 = vld [vmem:[%s1539 + $0xa8] sm:$0xff]
        %v1562 = vld [vmem:[%s1539 + $0xb0] sm:$0xff]
        %v1563 = vld [vmem:[%s1539 + $0xb8] sm:$0xff]
        %v1564 = vld [vmem:[%s1539 + $0xc0] sm:$0xff]
        %v1565 = vld [vmem:[%s1539 + $0xc8] sm:$0xff]
        %v1566 = vld [vmem:[%s1539 + $0xd0] sm:$0xff]
        %v1567 = vld [vmem:[%s1539 + $0xd8] sm:$0xff]
        %v1568 = vld [vmem:[%s1539 + $0xe0] sm:$0xff]
        %v1569 = vld [vmem:[%s1539 + $0xe8] sm:$0xff]
        %s1570 = scalar_lea.vmem %s1, 32
        %v1571 = vld [vmem:[%s1570] sm:$0xff]
        %v1572 = vld [vmem:[%s1570 + $0x8] sm:$0xf]
        %v1574 = vsel %vm919, %v1540, 0
        %v1577 = vsel %vm919, %v1541, 0
        %v1580 = vsel %vm919, %v1542, 0
        %v1583 = vsel %vm919, %v1543, 0
        %v1586 = vsel %vm919, %v1544, 0
        %v1589 = vsel %vm919, %v1545, 0
        %v1592 = vsel %vm919, %v1546, 0
        %v1595 = vsel %vm919, %v1547, 0
        %v1598 = vsel %vm919, %v1548, 0
        %v1601 = vsel %vm919, %v1549, 0
        %v1604 = vsel %vm919, %v1550, 0
        %v1607 = vsel %vm919, %v1551, 0
        %v1610 = vsel %vm919, %v1552, 0
        %v1613 = vsel %vm919, %v1553, 0
        %v1616 = vsel %vm919, %v1554, 0
        %v1619 = vsel %vm919, %v1555, 0
        %v1622 = vsel %vm919, %v1556, 0
        %v1625 = vsel %vm919, %v1557, 0
        %v1628 = vsel %vm919, %v1558, 0
        %v1631 = vsel %vm919, %v1559, 0
        %v1634 = vsel %vm919, %v1560, 0
        %v1637 = vsel %vm919, %v1561, 0
        %v1640 = vsel %vm919, %v1562, 0
        %v1643 = vsel %vm919, %v1563, 0
        %v1646 = vsel %vm919, %v1564, 0
        %v1649 = vsel %vm919, %v1565, 0
        %v1652 = vsel %vm919, %v1566, 0
        %v1655 = vsel %vm919, %v1567, 0
        %v1658 = vsel %vm919, %v1568, 0
        %v1661 = vsel %vm919, %v1569, 0
        %v1664 = vsel %vm1010, %v1572, 0
        %1666 = vmatprep.subr.mxu0 0.0
        %1667 = vmatpush1.msra.mxu0 %v1571
        %1668 = vmatprep.subr.mxu0 0.0
        %1669 = vmatpush1.msra.mxu0 %v1664
        %1670 = vmatprep.subr.mxu0 0.0
        %1671 = vmatpush1.msra.mxu0 0.0
        %1672 = vmatprep.subr.mxu0 0.0
        %1673 = vmatpush1.msra.mxu0 0.0
        %1674 = vmatprep.subr.mxu0 0.0
        %1675 = vmatpush1.msra.mxu0 0.0
        %1676 = vmatprep.subr.mxu0 0.0
        %1677 = vmatpush1.msra.mxu0 0.0
        %1678 = vmatprep.subr.mxu0 0.0
        %1679 = vmatpush1.msra.mxu0 0.0
        %1680 = vmatprep.subr.mxu0 0.0
        %1681 = vmatpush1.msra.mxu0 0.0
        %1682 = vmatprep.subr.mxu0 0.0
        %1683 = vmatpush1.msra.mxu0 0.0
        %1684 = vmatprep.subr.mxu0 0.0
        %1685 = vmatpush1.msra.mxu0 0.0
        %1686 = vmatprep.subr.mxu0 0.0
        %1687 = vmatpush1.msra.mxu0 0.0
        %1688 = vmatprep.subr.mxu0 0.0
        %1689 = vmatpush1.msra.mxu0 0.0
        %1690 = vmatprep.subr.mxu0 0.0
        %1691 = vmatpush1.msra.mxu0 0.0
        %1692 = vmatprep.subr.mxu0 0.0
        %1693 = vmatpush1.msra.mxu0 0.0
        %1694 = vmatprep.subr.mxu0 0.0
        %1695 = vmatpush1.msra.mxu0 0.0
        %1696 = vmatprep.subr.mxu0 0.0
        %1697 = vmatpush1.msra.mxu0 0.0
        %1698 = vmatprep.subr.mxu0 0.0
        %1699 = vmatpush1.msra.mxu0 0.0
        %1700 = vmatprep.subr.mxu0 0.0
        %1701 = vmatpush1.msra.mxu0 0.0
        %1702 = vmatprep.subr.mxu0 0.0
        %1703 = vmatpush1.msra.mxu0 0.0
        %1704 = vmatprep.subr.mxu0 0.0
        %1705 = vmatpush1.msra.mxu0 0.0
        %1706 = vmatprep.subr.mxu0 0.0
        %1707 = vmatpush1.msra.mxu0 0.0
        %1708 = vmatprep.subr.mxu0 0.0
        %1709 = vmatpush1.msra.mxu0 0.0
        %1710 = vmatprep.subr.mxu0 0.0
        %1711 = vmatpush1.msra.mxu0 0.0
        %1712 = vmatprep.subr.mxu0 0.0
        %1713 = vmatpush1.msra.mxu0 0.0
        %1714 = vmatprep.subr.mxu0 0.0
        %1715 = vmatpush1.msra.mxu0 0.0
        %1716 = vmatprep.subr.mxu0 0.0
        %1717 = vmatpush1.msra.mxu0 0.0
        %1718 = vmatprep.subr.mxu0 0.0
        %1719 = vmatpush1.msra.mxu0 0.0
        %1720 = vmatprep.subr.mxu0 0.0
        %1721 = vmatpush1.msra.mxu0 0.0
        %1722 = vmatprep.subr.mxu0 0.0
        %1723 = vmatpush1.msra.mxu0 0.0
        %1724 = vmatprep.subr.mxu0 0.0
        %1725 = vmatpush1.msra.mxu0 0.0
        %1726 = vmatprep.subr.mxu0 0.0
        %1727 = vmatpush1.msra.mxu0 0.0
        %1728 = vmatprep.subr.mxu0 0.0
        %1729 = vmatpush1.msra.mxu0 0.0
        %1730 = vmatprep.mubr.f32.mxu0 0.0
        %1731 = vmatmul.mubr.f32.gmra.mrb[0].mxu0 %v1574
        %v1732 = vpop.f32.mrb[0].mxu0
        %v1733 = vadd.f32 0.0, %v1732
        %v1734 = vpop.f32.mrb[0].mxu0
        %1735 = vmatprep.mubr.f32.mxu0 0.0
        %1736 = vmatmul.mubr.f32.gmra.mrb[0].mxu0 %v1577
        %v1737 = vpop.f32.mrb[0].mxu0
        %v1738 = vadd.f32 0.0, %v1737
        %v1739 = vpop.f32.mrb[0].mxu0
        %1740 = vmatprep.mubr.f32.mxu0 0.0
        %1741 = vmatmul.mubr.f32.gmra.mrb[0].mxu0 %v1580
        %v1742 = vpop.f32.mrb[0].mxu0
        %v1743 = vadd.f32 0.0, %v1742
        %v1744 = vpop.f32.mrb[0].mxu0
        %1745 = vmatprep.mubr.f32.mxu0 0.0
        %1746 = vmatmul.mubr.f32.gmra.mrb[0].mxu0 %v1583
        %v1747 = vpop.f32.mrb[0].mxu0
        %v1748 = vadd.f32 0.0, %v1747
        %v1749 = vpop.f32.mrb[0].mxu0
        %1750 = vmatprep.mubr.f32.mxu0 0.0
        %1751 = vmatmul.mubr.f32.gmra.mrb[0].mxu0 %v1586
        %v1752 = vpop.f32.mrb[0].mxu0
        %v1753 = vadd.f32 0.0, %v1752
        %v1754 = vpop.f32.mrb[0].mxu0
        %1755 = vmatprep.mubr.f32.mxu0 0.0
        %1756 = vmatmul.mubr.f32.gmra.mrb[0].mxu0 %v1589
        %v1757 = vpop.f32.mrb[0].mxu0
        %v1758 = vadd.f32 0.0, %v1757
        %v1759 = vpop.f32.mrb[0].mxu0
        %1760 = vmatprep.mubr.f32.mxu0 0.0
        %1761 = vmatmul.mubr.f32.gmra.mrb[0].mxu0 %v1592
        %v1762 = vpop.f32.mrb[0].mxu0
        %v1763 = vadd.f32 0.0, %v1762
        %v1764 = vpop.f32.mrb[0].mxu0
        %1765 = vmatprep.mubr.f32.mxu0 0.0
        %1766 = vmatmul.mubr.f32.gmra.mrb[0].mxu0 %v1595
        %v1767 = vpop.f32.mrb[0].mxu0
        %v1768 = vadd.f32 0.0, %v1767
        %v1769 = vpop.f32.mrb[0].mxu0
        %1770 = vmatprep.mubr.f32.mxu0 0.0
        %1771 = vmatmul.mubr.f32.gmra.mrb[0].mxu0 %v1598
        %v1772 = vpop.f32.mrb[0].mxu0
        %v1773 = vadd.f32 0.0, %v1772
        %v1774 = vpop.f32.mrb[0].mxu0
        %1775 = vmatprep.mubr.f32.mxu0 0.0
        %1776 = vmatmul.mubr.f32.gmra.mrb[0].mxu0 %v1601
        %v1777 = vpop.f32.mrb[0].mxu0
        %v1778 = vadd.f32 0.0, %v1777
        %v1779 = vpop.f32.mrb[0].mxu0
        %1780 = vmatprep.mubr.f32.mxu0 0.0
        %1781 = vmatmul.mubr.f32.gmra.mrb[0].mxu0 %v1604
        %v1782 = vpop.f32.mrb[0].mxu0
        %v1783 = vadd.f32 0.0, %v1782
        %v1784 = vpop.f32.mrb[0].mxu0
        %1785 = vmatprep.mubr.f32.mxu0 0.0
        %1786 = vmatmul.mubr.f32.gmra.mrb[0].mxu0 %v1607
        %v1787 = vpop.f32.mrb[0].mxu0
        %v1788 = vadd.f32 0.0, %v1787
        %v1789 = vpop.f32.mrb[0].mxu0
        %1790 = vmatprep.mubr.f32.mxu0 0.0
        %1791 = vmatmul.mubr.f32.gmra.mrb[0].mxu0 %v1610
        %v1792 = vpop.f32.mrb[0].mxu0
        %v1793 = vadd.f32 0.0, %v1792
        %v1794 = vpop.f32.mrb[0].mxu0
        %1795 = vmatprep.mubr.f32.mxu0 0.0
        %1796 = vmatmul.mubr.f32.gmra.mrb[0].mxu0 %v1613
        %v1797 = vpop.f32.mrb[0].mxu0
        %v1798 = vadd.f32 0.0, %v1797
        %v1799 = vpop.f32.mrb[0].mxu0
        %1800 = vmatprep.mubr.f32.mxu0 0.0
        %1801 = vmatmul.mubr.f32.gmra.mrb[0].mxu0 %v1616
        %v1802 = vpop.f32.mrb[0].mxu0
        %v1803 = vadd.f32 0.0, %v1802
        %v1804 = vpop.f32.mrb[0].mxu0
        %1805 = vmatprep.mubr.f32.mxu0 0.0
        %1806 = vmatmul.mubr.f32.gmra.mrb[0].mxu0 %v1619
        %v1807 = vpop.f32.mrb[0].mxu0
        %v1808 = vadd.f32 0.0, %v1807
        %v1809 = vpop.f32.mrb[0].mxu0
        %1810 = vmatprep.mubr.f32.mxu0 0.0
        %1811 = vmatmul.mubr.f32.gmra.mrb[0].mxu0 %v1622
        %v1812 = vpop.f32.mrb[0].mxu0
        %v1813 = vadd.f32 0.0, %v1812
        %v1814 = vpop.f32.mrb[0].mxu0
        %1815 = vmatprep.mubr.f32.mxu0 0.0
        %1816 = vmatmul.mubr.f32.gmra.mrb[0].mxu0 %v1625
        %v1817 = vpop.f32.mrb[0].mxu0
        %v1818 = vadd.f32 0.0, %v1817
        %v1819 = vpop.f32.mrb[0].mxu0
        %1820 = vmatprep.mubr.f32.mxu0 0.0
        %1821 = vmatmul.mubr.f32.gmra.mrb[0].mxu0 %v1628
        %v1822 = vpop.f32.mrb[0].mxu0
        %v1823 = vadd.f32 0.0, %v1822
        %v1824 = vpop.f32.mrb[0].mxu0
        %1825 = vmatprep.mubr.f32.mxu0 0.0
        %1826 = vmatmul.mubr.f32.gmra.mrb[0].mxu0 %v1631
        %v1827 = vpop.f32.mrb[0].mxu0
        %v1828 = vadd.f32 0.0, %v1827
        %v1829 = vpop.f32.mrb[0].mxu0
        %1830 = vmatprep.mubr.f32.mxu0 0.0
        %1831 = vmatmul.mubr.f32.gmra.mrb[0].mxu0 %v1634
        %v1832 = vpop.f32.mrb[0].mxu0
        %v1833 = vadd.f32 0.0, %v1832
        %v1834 = vpop.f32.mrb[0].mxu0
        %1835 = vmatprep.mubr.f32.mxu0 0.0
        %1836 = vmatmul.mubr.f32.gmra.mrb[0].mxu0 %v1637
        %v1837 = vpop.f32.mrb[0].mxu0
        %v1838 = vadd.f32 0.0, %v1837
        %v1839 = vpop.f32.mrb[0].mxu0
        %1840 = vmatprep.mubr.f32.mxu0 0.0
        %1841 = vmatmul.mubr.f32.gmra.mrb[0].mxu0 %v1640
        %v1842 = vpop.f32.mrb[0].mxu0
        %v1843 = vadd.f32 0.0, %v1842
        %v1844 = vpop.f32.mrb[0].mxu0
        %1845 = vmatprep.mubr.f32.mxu0 0.0
        %1846 = vmatmul.mubr.f32.gmra.mrb[0].mxu0 %v1643
        %v1847 = vpop.f32.mrb[0].mxu0
        %v1848 = vadd.f32 0.0, %v1847
        %v1849 = vpop.f32.mrb[0].mxu0
        %1850 = vmatprep.mubr.f32.mxu0 0.0
        %1851 = vmatmul.mubr.f32.gmra.mrb[0].mxu0 %v1646
        %v1852 = vpop.f32.mrb[0].mxu0
        %v1853 = vadd.f32 0.0, %v1852
        %v1854 = vpop.f32.mrb[0].mxu0
        %1855 = vmatprep.mubr.f32.mxu0 0.0
        %1856 = vmatmul.mubr.f32.gmra.mrb[0].mxu0 %v1649
        %v1857 = vpop.f32.mrb[0].mxu0
        %v1858 = vadd.f32 0.0, %v1857
        %v1859 = vpop.f32.mrb[0].mxu0
        %1860 = vmatprep.mubr.f32.mxu0 0.0
        %1861 = vmatmul.mubr.f32.gmra.mrb[0].mxu0 %v1652
        %v1862 = vpop.f32.mrb[0].mxu0
        %v1863 = vadd.f32 0.0, %v1862
        %v1864 = vpop.f32.mrb[0].mxu0
        %1865 = vmatprep.mubr.f32.mxu0 0.0
        %1866 = vmatmul.mubr.f32.gmra.mrb[0].mxu0 %v1655
        %v1867 = vpop.f32.mrb[0].mxu0
        %v1868 = vadd.f32 0.0, %v1867
        %v1869 = vpop.f32.mrb[0].mxu0
        %1870 = vmatprep.mubr.f32.mxu0 0.0
        %1871 = vmatmul.mubr.f32.gmra.mrb[0].mxu0 %v1658
        %v1872 = vpop.f32.mrb[0].mxu0
        %v1873 = vadd.f32 0.0, %v1872
        %v1874 = vpop.f32.mrb[0].mxu0
        %1875 = vmatprep.mubr.f32.mxu0 0.0
        %1876 = vmatmul.mubr.f32.gmra.mrb[0].mxu0 %v1661
        %v1877 = vpop.f32.mrb[0].mxu0
        %v1878 = vadd.f32 0.0, %v1877
        %v1879 = vpop.f32.mrb[0].mxu0
        %1880 = vdwg.mxu0
        %v1881 = vadd.f32 %v1389, %v1733
        %v1882 = vadd.f32 %v1394, %v1738
        %v1883 = vadd.f32 %v1399, %v1743
        %v1884 = vadd.f32 %v1404, %v1748
        %v1885 = vadd.f32 %v1409, %v1753
        %v1886 = vadd.f32 %v1414, %v1758
        %v1887 = vadd.f32 %v1419, %v1763
        %v1888 = vadd.f32 %v1424, %v1768
        %v1889 = vadd.f32 %v1429, %v1773
        %v1890 = vadd.f32 %v1434, %v1778
        %v1891 = vadd.f32 %v1439, %v1783
        %v1892 = vadd.f32 %v1444, %v1788
        %v1893 = vadd.f32 %v1449, %v1793
        %v1894 = vadd.f32 %v1454, %v1798
        %v1895 = vadd.f32 %v1459, %v1803
        %v1896 = vadd.f32 %v1464, %v1808
        %v1897 = vadd.f32 %v1469, %v1813
        %v1898 = vadd.f32 %v1474, %v1818
        %v1899 = vadd.f32 %v1479, %v1823
        %v1900 = vadd.f32 %v1484, %v1828
        %v1901 = vadd.f32 %v1489, %v1833
        %v1902 = vadd.f32 %v1494, %v1838
        %v1903 = vadd.f32 %v1499, %v1843
        %v1904 = vadd.f32 %v1504, %v1848
        %v1905 = vadd.f32 %v1509, %v1853
        %v1906 = vadd.f32 %v1514, %v1858
        %v1907 = vadd.f32 %v1519, %v1863
        %v1908 = vadd.f32 %v1524, %v1868
        %v1909 = vadd.f32 %v1529, %v1873
        %v1910 = vadd.f32 %v1534, %v1878
        %v1912 = vlaneseq
        %v1913 = vshrl.u32 %v1912, 7
        %v1914 = vsub.s32 0, %v1913
        %v1915 = vrot.slane %v838, %v1914
        %v1917 = vadd.f32 %v1881, %v1915
        %v1918 = vadd.f32 %v1882, %v1915
        %v1919 = vadd.f32 %v1883, %v1915
        %v1920 = vadd.f32 %v1884, %v1915
        %v1921 = vadd.f32 %v1885, %v1915
        %v1922 = vadd.f32 %v1886, %v1915
        %v1923 = vadd.f32 %v1887, %v1915
        %v1924 = vadd.f32 %v1888, %v1915
        %v1925 = vadd.f32 %v1889, %v1915
        %v1926 = vadd.f32 %v1890, %v1915
        %v1927 = vadd.f32 %v1891, %v1915
        %v1928 = vadd.f32 %v1892, %v1915
        %v1929 = vadd.f32 %v1893, %v1915
        %v1930 = vadd.f32 %v1894, %v1915
        %v1931 = vadd.f32 %v1895, %v1915
        %v1932 = vadd.f32 %v1896, %v1915
        %v1933 = vadd.f32 %v1897, %v1915
        %v1934 = vadd.f32 %v1898, %v1915
        %v1935 = vadd.f32 %v1899, %v1915
        %v1936 = vadd.f32 %v1900, %v1915
        %v1937 = vadd.f32 %v1901, %v1915
        %v1938 = vadd.f32 %v1902, %v1915
        %v1939 = vadd.f32 %v1903, %v1915
        %v1940 = vadd.f32 %v1904, %v1915
        %v1941 = vadd.f32 %v1905, %v1915
        %v1942 = vadd.f32 %v1906, %v1915
        %v1943 = vadd.f32 %v1907, %v1915
        %v1944 = vadd.f32 %v1908, %v1915
        %v1945 = vadd.f32 %v1909, %v1915
        %v1946 = vadd.f32 %v1910, %v1915
        %v1947 = vmax.f32 %v1917, 0.0
        %v1948 = vmax.f32 %v1918, 0.0
        %v1949 = vmax.f32 %v1919, 0.0
        %v1950 = vmax.f32 %v1920, 0.0
        %v1951 = vmax.f32 %v1921, 0.0
        %v1952 = vmax.f32 %v1922, 0.0
        %v1953 = vmax.f32 %v1923, 0.0
        %v1954 = vmax.f32 %v1924, 0.0
        %v1955 = vmax.f32 %v1925, 0.0
        %v1956 = vmax.f32 %v1926, 0.0
        %v1957 = vmax.f32 %v1927, 0.0
        %v1958 = vmax.f32 %v1928, 0.0
        %v1959 = vmax.f32 %v1929, 0.0
        %v1960 = vmax.f32 %v1930, 0.0
        %v1961 = vmax.f32 %v1931, 0.0
        %v1962 = vmax.f32 %v1932, 0.0
        %v1963 = vmax.f32 %v1933, 0.0
        %v1964 = vmax.f32 %v1934, 0.0
        %v1965 = vmax.f32 %v1935, 0.0
        %v1966 = vmax.f32 %v1936, 0.0
        %v1967 = vmax.f32 %v1937, 0.0
        %v1968 = vmax.f32 %v1938, 0.0
        %v1969 = vmax.f32 %v1939, 0.0
        %v1970 = vmax.f32 %v1940, 0.0
        %v1971 = vmax.f32 %v1941, 0.0
        %v1972 = vmax.f32 %v1942, 0.0
        %v1973 = vmax.f32 %v1943, 0.0
        %v1974 = vmax.f32 %v1944, 0.0
        %v1975 = vmax.f32 %v1945, 0.0
        %v1976 = vmax.f32 %v1946, 0.0
        %v1977 = vsel %vm808, 1, 0
        %v1978 = vsel %vm809, 1, 0
        %v1979 = vsel %vm810, 1, 0
        %v1980 = vsel %vm811, 1, 0
        %v1981 = vsel %vm812, 1, 0
        %v1982 = vsel %vm813, 1, 0
        %v1983 = vsel %vm814, 1, 0
        %v1984 = vsel %vm815, 1, 0
        %v1985 = vsel %vm816, 1, 0
        %v1986 = vsel %vm817, 1, 0
        %v1987 = vsel %vm818, 1, 0
        %v1988 = vsel %vm819, 1, 0
        %v1989 = vsel %vm820, 1, 0
        %v1990 = vsel %vm821, 1, 0
        %v1991 = vsel %vm822, 1, 0
        %v1992 = vsel %vm823, 1, 0
        %v1993 = vsel %vm824, 1, 0
        %v1994 = vsel %vm825, 1, 0
        %v1995 = vsel %vm826, 1, 0
        %v1996 = vsel %vm827, 1, 0
        %v1997 = vsel %vm828, 1, 0
        %v1998 = vsel %vm829, 1, 0
        %v1999 = vsel %vm830, 1, 0
        %v2000 = vsel %vm831, 1, 0
        %v2001 = vsel %vm832, 1, 0
        %v2002 = vsel %vm833, 1, 0
        %v2003 = vsel %vm834, 1, 0
        %v2004 = vsel %vm835, 1, 0
        %v2005 = vsel %vm836, 1, 0
        %v2006 = vsel %vm837, 1, 0
        %vm2007 = vcmp.eq.s32.totalorder %v1977, 1
        %vm2008 = vcmp.eq.s32.totalorder %v1978, 1
        %vm2009 = vcmp.eq.s32.totalorder %v1979, 1
        %vm2010 = vcmp.eq.s32.totalorder %v1980, 1
        %vm2011 = vcmp.eq.s32.totalorder %v1981, 1
        %vm2012 = vcmp.eq.s32.totalorder %v1982, 1
        %vm2013 = vcmp.eq.s32.totalorder %v1983, 1
        %vm2014 = vcmp.eq.s32.totalorder %v1984, 1
        %vm2015 = vcmp.eq.s32.totalorder %v1985, 1
        %vm2016 = vcmp.eq.s32.totalorder %v1986, 1
        %vm2017 = vcmp.eq.s32.totalorder %v1987, 1
        %vm2018 = vcmp.eq.s32.totalorder %v1988, 1
        %vm2019 = vcmp.eq.s32.totalorder %v1989, 1
        %vm2020 = vcmp.eq.s32.totalorder %v1990, 1
        %vm2021 = vcmp.eq.s32.totalorder %v1991, 1
        %vm2022 = vcmp.eq.s32.totalorder %v1992, 1
        %vm2023 = vcmp.eq.s32.totalorder %v1993, 1
        %vm2024 = vcmp.eq.s32.totalorder %v1994, 1
        %vm2025 = vcmp.eq.s32.totalorder %v1995, 1
        %vm2026 = vcmp.eq.s32.totalorder %v1996, 1
        %vm2027 = vcmp.eq.s32.totalorder %v1997, 1
        %vm2028 = vcmp.eq.s32.totalorder %v1998, 1
        %vm2029 = vcmp.eq.s32.totalorder %v1999, 1
        %vm2030 = vcmp.eq.s32.totalorder %v2000, 1
        %vm2031 = vcmp.eq.s32.totalorder %v2001, 1
        %vm2032 = vcmp.eq.s32.totalorder %v2002, 1
        %vm2033 = vcmp.eq.s32.totalorder %v2003, 1
        %vm2034 = vcmp.eq.s32.totalorder %v2004, 1
        %vm2035 = vcmp.eq.s32.totalorder %v2005, 1
        %vm2036 = vcmp.eq.s32.totalorder %v2006, 1
        %v2037 = vsel %vm2007, %v1947, 0.0
        %v2038 = vsel %vm2008, %v1948, 0.0
        %v2039 = vsel %vm2009, %v1949, 0.0
        %v2040 = vsel %vm2010, %v1950, 0.0
        %v2041 = vsel %vm2011, %v1951, 0.0
        %v2042 = vsel %vm2012, %v1952, 0.0
        %v2043 = vsel %vm2013, %v1953, 0.0
        %v2044 = vsel %vm2014, %v1954, 0.0
        %v2045 = vsel %vm2015, %v1955, 0.0
        %v2046 = vsel %vm2016, %v1956, 0.0
        %v2047 = vsel %vm2017, %v1957, 0.0
        %v2048 = vsel %vm2018, %v1958, 0.0
        %v2049 = vsel %vm2019, %v1959, 0.0
        %v2050 = vsel %vm2020, %v1960, 0.0
        %v2051 = vsel %vm2021, %v1961, 0.0
        %v2052 = vsel %vm2022, %v1962, 0.0
        %v2053 = vsel %vm2023, %v1963, 0.0
        %v2054 = vsel %vm2024, %v1964, 0.0
        %v2055 = vsel %vm2025, %v1965, 0.0
        %v2056 = vsel %vm2026, %v1966, 0.0
        %v2057 = vsel %vm2027, %v1967, 0.0
        %v2058 = vsel %vm2028, %v1968, 0.0
        %v2059 = vsel %vm2029, %v1969, 0.0
        %v2060 = vsel %vm2030, %v1970, 0.0
        %v2061 = vsel %vm2031, %v1971, 0.0
        %v2062 = vsel %vm2032, %v1972, 0.0
        %v2063 = vsel %vm2033, %v1973, 0.0
        %v2064 = vsel %vm2034, %v1974, 0.0
        %v2065 = vsel %vm2035, %v1975, 0.0
        %v2066 = vsel %vm2036, %v1976, 0.0
        %s2067 = scalar_lea.vmem [#allocation2], %s884
        %2068 = vst [vmem:[%s2067] sm:$0xff] %v2037
        %2069 = vst [vmem:[%s2067 + $0x8] sm:$0xff] %v2038
        %2070 = vst [vmem:[%s2067 + $0x10] sm:$0xff] %v2039
        %2071 = vst [vmem:[%s2067 + $0x18] sm:$0xff] %v2040
        %2072 = vst [vmem:[%s2067 + $0x20] sm:$0xff] %v2041
        %2073 = vst [vmem:[%s2067 + $0x28] sm:$0xff] %v2042
        %2074 = vst [vmem:[%s2067 + $0x30] sm:$0xff] %v2043
        %2075 = vst [vmem:[%s2067 + $0x38] sm:$0xff] %v2044
        %2076 = vst [vmem:[%s2067 + $0x40] sm:$0xff] %v2045
        %2077 = vst [vmem:[%s2067 + $0x48] sm:$0xff] %v2046
        %2078 = vst [vmem:[%s2067 + $0x50] sm:$0xff] %v2047
        %2079 = vst [vmem:[%s2067 + $0x58] sm:$0xff] %v2048
        %2080 = vst [vmem:[%s2067 + $0x60] sm:$0xff] %v2049
        %2081 = vst [vmem:[%s2067 + $0x68] sm:$0xff] %v2050
        %2082 = vst [vmem:[%s2067 + $0x70] sm:$0xff] %v2051
        %2083 = vst [vmem:[%s2067 + $0x78] sm:$0xff] %v2052
        %2084 = vst [vmem:[%s2067 + $0x80] sm:$0xff] %v2053
        %2085 = vst [vmem:[%s2067 + $0x88] sm:$0xff] %v2054
        %2086 = vst [vmem:[%s2067 + $0x90] sm:$0xff] %v2055
        %2087 = vst [vmem:[%s2067 + $0x98] sm:$0xff] %v2056
        %2088 = vst [vmem:[%s2067 + $0xa0] sm:$0xff] %v2057
        %2089 = vst [vmem:[%s2067 + $0xa8] sm:$0xff] %v2058
        %2090 = vst [vmem:[%s2067 + $0xb0] sm:$0xff] %v2059
        %2091 = vst [vmem:[%s2067 + $0xb8] sm:$0xff] %v2060
        %2092 = vst [vmem:[%s2067 + $0xc0] sm:$0xff] %v2061
        %2093 = vst [vmem:[%s2067 + $0xc8] sm:$0xff] %v2062
        %2094 = vst [vmem:[%s2067 + $0xd0] sm:$0xff] %v2063
        %2095 = vst [vmem:[%s2067 + $0xd8] sm:$0xff] %v2064
        %2096 = vst [vmem:[%s2067 + $0xe0] sm:$0xff] %v2065
        %2097 = vst [vmem:[%s2067 + $0xe8] sm:$0xff] %v2066
      $region45: #{_double_conv_impl.1} parent=39 // loop_footer
        %s844 = sadd.s32 1, %s840
      $region46: #{_double_conv_impl.1} parent=39 // loop_footer_branch
        %839 = sbr.rel target = $region42
      $region47: #{_double_conv_impl.1} parent=39 // loop_exit
        _
      %v2098 = vld [vmem:[%s4] sm:$0x1]
      loop: start=0, step=1, limit=2
      $region48: #{_double_conv_impl.1} parent=39 // loop_pre_header
        _
      $region49: #{_double_conv_impl.1} parent=39 // loop_header
        %s2100 = sphi 0, %s2104
        %p2101 = scmp.ge.s32.totalorder %s2100, 2
      $region50: #{_double_conv_impl.1} parent=39 // loop_header_branch
        %2103 = sbr.rel (%p2101) target = $region54
      $region51: #{_double_conv_impl.1} parent=39 // loop_body
        %s2105 = smul.u32 %s2100, 10
        %p2106 = scmp.lt.s32.totalorder %s2105, 6
        %s2107 = scalar_select %p2106, %s2105, 6
        %s2108 = sadd.s32 %s2107, 1
        %s2109 = smul.u32 %s2108, 24
        %s2110 = sadd.s32 %s2109, 4294967295
        %s2111 = scalar_lea.vmem [#allocation2], %s2110
        %v2112 = vld [vmem:[%s2111] sm:$0xff]
        %v2113 = vld [vmem:[%s2111 + $0x8] sm:$0xff]
        %v2114 = vld [vmem:[%s2111 + $0x10] sm:$0xff]
        %v2115 = vld [vmem:[%s2111 + $0x18] sm:$0xff]
        %v2116 = vld [vmem:[%s2111 + $0x20] sm:$0xff]
        %v2117 = vld [vmem:[%s2111 + $0x28] sm:$0xff]
        %v2118 = vld [vmem:[%s2111 + $0x30] sm:$0xff]
        %v2119 = vld [vmem:[%s2111 + $0x38] sm:$0xff]
        %v2120 = vld [vmem:[%s2111 + $0x40] sm:$0xff]
        %v2121 = vld [vmem:[%s2111 + $0x48] sm:$0xff]
        %v2122 = vld [vmem:[%s2111 + $0x50] sm:$0xff]
        %v2123 = vld [vmem:[%s2111 + $0x58] sm:$0xff]
        %v2124 = vld [vmem:[%s2111 + $0x60] sm:$0xff]
        %v2125 = vld [vmem:[%s2111 + $0x68] sm:$0xff]
        %v2126 = vld [vmem:[%s2111 + $0x70] sm:$0xff]
        %v2127 = vld [vmem:[%s2111 + $0x78] sm:$0xff]
        %v2128 = vld [vmem:[%s2111 + $0x80] sm:$0xff]
        %v2129 = vld [vmem:[%s2111 + $0x88] sm:$0xff]
        %v2130 = vld [vmem:[%s2111 + $0x90] sm:$0xff]
        %v2131 = vld [vmem:[%s2111 + $0x98] sm:$0xff]
        %v2132 = vld [vmem:[%s2111 + $0xa0] sm:$0xff]
        %v2133 = vld [vmem:[%s2111 + $0xa8] sm:$0xff]
        %v2134 = vld [vmem:[%s2111 + $0xb0] sm:$0xff]
        %v2135 = vld [vmem:[%s2111 + $0xb8] sm:$0xff]
        %v2136 = vld [vmem:[%s2111 + $0xc0] sm:$0xff]
        %v2137 = vld [vmem:[%s2111 + $0xc8] sm:$0xff]
        %v2138 = vld [vmem:[%s2111 + $0xd0] sm:$0xff]
        %v2139 = vld [vmem:[%s2111 + $0xd8] sm:$0xff]
        %v2140 = vld [vmem:[%s2111 + $0xe0] sm:$0xff]
        %v2141 = vld [vmem:[%s2111 + $0xe8] sm:$0xff]
        %s2142 = scalar_lea.vmem [#allocation2], %s2109
        %v2143 = vld [vmem:[%s2142] sm:$0xff]
        %v2144 = vld [vmem:[%s2142 + $0x8] sm:$0xff]
        %v2145 = vld [vmem:[%s2142 + $0x10] sm:$0xff]
        %v2146 = vld [vmem:[%s2142 + $0x18] sm:$0xff]
        %v2147 = vld [vmem:[%s2142 + $0x20] sm:$0xff]
        %v2148 = vld [vmem:[%s2142 + $0x28] sm:$0xff]
        %v2149 = vld [vmem:[%s2142 + $0x30] sm:$0xff]
        %v2150 = vld [vmem:[%s2142 + $0x38] sm:$0xff]
        %v2151 = vld [vmem:[%s2142 + $0x40] sm:$0xff]
        %v2152 = vld [vmem:[%s2142 + $0x48] sm:$0xff]
        %v2153 = vld [vmem:[%s2142 + $0x50] sm:$0xff]
        %v2154 = vld [vmem:[%s2142 + $0x58] sm:$0xff]
        %v2155 = vld [vmem:[%s2142 + $0x60] sm:$0xff]
        %v2156 = vld [vmem:[%s2142 + $0x68] sm:$0xff]
        %v2157 = vld [vmem:[%s2142 + $0x70] sm:$0xff]
        %v2158 = vld [vmem:[%s2142 + $0x78] sm:$0xff]
        %v2159 = vld [vmem:[%s2142 + $0x80] sm:$0xff]
        %v2160 = vld [vmem:[%s2142 + $0x88] sm:$0xff]
        %v2161 = vld [vmem:[%s2142 + $0x90] sm:$0xff]
        %v2162 = vld [vmem:[%s2142 + $0x98] sm:$0xff]
        %v2163 = vld [vmem:[%s2142 + $0xa0] sm:$0xff]
        %v2164 = vld [vmem:[%s2142 + $0xa8] sm:$0xff]
        %v2165 = vld [vmem:[%s2142 + $0xb0] sm:$0xff]
        %v2166 = vld [vmem:[%s2142 + $0xb8] sm:$0xff]
        %v2167 = vld [vmem:[%s2142 + $0xc0] sm:$0xff]
        %v2168 = vld [vmem:[%s2142 + $0xc8] sm:$0xff]
        %v2169 = vld [vmem:[%s2142 + $0xd0] sm:$0xff]
        %v2170 = vld [vmem:[%s2142 + $0xd8] sm:$0xff]
        %v2171 = vld [vmem:[%s2142 + $0xe0] sm:$0xff]
        %v2172 = vld [vmem:[%s2142 + $0xe8] sm:$0xff]
        %s2173 = sadd.s32 %s2109, 1
        %s2174 = scalar_lea.vmem [#allocation2], %s2173
        %v2175 = vld [vmem:[%s2174] sm:$0xff]
        %v2176 = vld [vmem:[%s2174 + $0x8] sm:$0xff]
        %v2177 = vld [vmem:[%s2174 + $0x10] sm:$0xff]
        %v2178 = vld [vmem:[%s2174 + $0x18] sm:$0xff]
        %v2179 = vld [vmem:[%s2174 + $0x20] sm:$0xff]
        %v2180 = vld [vmem:[%s2174 + $0x28] sm:$0xff]
        %v2181 = vld [vmem:[%s2174 + $0x30] sm:$0xff]
        %v2182 = vld [vmem:[%s2174 + $0x38] sm:$0xff]
        %v2183 = vld [vmem:[%s2174 + $0x40] sm:$0xff]
        %v2184 = vld [vmem:[%s2174 + $0x48] sm:$0xff]
        %v2185 = vld [vmem:[%s2174 + $0x50] sm:$0xff]
        %v2186 = vld [vmem:[%s2174 + $0x58] sm:$0xff]
        %v2187 = vld [vmem:[%s2174 + $0x60] sm:$0xff]
        %v2188 = vld [vmem:[%s2174 + $0x68] sm:$0xff]
        %v2189 = vld [vmem:[%s2174 + $0x70] sm:$0xff]
        %v2190 = vld [vmem:[%s2174 + $0x78] sm:$0xff]
        %v2191 = vld [vmem:[%s2174 + $0x80] sm:$0xff]
        %v2192 = vld [vmem:[%s2174 + $0x88] sm:$0xff]
        %v2193 = vld [vmem:[%s2174 + $0x90] sm:$0xff]
        %v2194 = vld [vmem:[%s2174 + $0x98] sm:$0xff]
        %v2195 = vld [vmem:[%s2174 + $0xa0] sm:$0xff]
        %v2196 = vld [vmem:[%s2174 + $0xa8] sm:$0xff]
        %v2197 = vld [vmem:[%s2174 + $0xb0] sm:$0xff]
        %v2198 = vld [vmem:[%s2174 + $0xb8] sm:$0xff]
        %v2199 = vld [vmem:[%s2174 + $0xc0] sm:$0xff]
        %v2200 = vld [vmem:[%s2174 + $0xc8] sm:$0xff]
        %v2201 = vld [vmem:[%s2174 + $0xd0] sm:$0xff]
        %v2202 = vld [vmem:[%s2174 + $0xd8] sm:$0xff]
        %v2203 = vld [vmem:[%s2174 + $0xe0] sm:$0xff]
        %v2204 = vld [vmem:[%s2174 + $0xe8] sm:$0xff]
        %v2205 = vld [vmem:[%s3] sm:$0xff]
        %v2206 = vld [vmem:[%s3 + $0x8] sm:$0xff]
        %v2207 = vld [vmem:[%s3 + $0x10] sm:$0xff]
        %v2208 = vld [vmem:[%s3 + $0x18] sm:$0xff]
        %v2209 = vld [vmem:[%s3 + $0x20] sm:$0xff]
        %v2210 = vld [vmem:[%s3 + $0x28] sm:$0xff]
        %v2211 = vld [vmem:[%s3 + $0x30] sm:$0xff]
        %v2212 = vld [vmem:[%s3 + $0x38] sm:$0xff]
        %v2213 = vld [vmem:[%s3 + $0x40] sm:$0xff]
        %v2214 = vld [vmem:[%s3 + $0x48] sm:$0xff]
        %v2215 = vld [vmem:[%s3 + $0x50] sm:$0xff]
        %v2216 = vld [vmem:[%s3 + $0x58] sm:$0xff]
        %v2217 = vld [vmem:[%s3 + $0x60] sm:$0xff]
        %v2218 = vld [vmem:[%s3 + $0x68] sm:$0xff]
        %v2219 = vld [vmem:[%s3 + $0x70] sm:$0xff]
        %v2220 = vld [vmem:[%s3 + $0x78] sm:$0xff]
        %v2221 = vld [vmem:[%s3 + $0x80] sm:$0xff]
        %v2222 = vld [vmem:[%s3 + $0x88] sm:$0xff]
        %v2223 = vld [vmem:[%s3 + $0x90] sm:$0xff]
        %v2224 = vld [vmem:[%s3 + $0x98] sm:$0xff]
        %v2225 = vld [vmem:[%s3 + $0xa0] sm:$0xff]
        %v2226 = vld [vmem:[%s3 + $0xa8] sm:$0xff]
        %v2227 = vld [vmem:[%s3 + $0xb0] sm:$0xff]
        %v2228 = vld [vmem:[%s3 + $0xb8] sm:$0xff]
        %v2229 = vld [vmem:[%s3 + $0xc0] sm:$0xff]
        %v2230 = vld [vmem:[%s3 + $0xc8] sm:$0xff]
        %v2231 = vld [vmem:[%s3 + $0xd0] sm:$0xff]
        %v2232 = vld [vmem:[%s3 + $0xd8] sm:$0xff]
        %v2233 = vld [vmem:[%s3 + $0xe0] sm:$0xff]
        %v2234 = vld [vmem:[%s3 + $0xe8] sm:$0xff]
        %v2235 = vld [vmem:[%s3 + $0xf0] sm:$0xff]
        %v2236 = vld [vmem:[%s3 + $0xf8] sm:$0xff]
        %v2237 = vld [vmem:[%s3 + $0x100] sm:$0xff]
        %v2238 = vld [vmem:[%s3 + $0x108] sm:$0xff]
        %v2239 = vld [vmem:[%s3 + $0x110] sm:$0xff]
        %v2240 = vld [vmem:[%s3 + $0x118] sm:$0xff]
        %v2241 = vld [vmem:[%s3 + $0x120] sm:$0xff]
        %v2242 = vld [vmem:[%s3 + $0x128] sm:$0xff]
        %v2243 = vld [vmem:[%s3 + $0x130] sm:$0xff]
        %v2244 = vld [vmem:[%s3 + $0x138] sm:$0xff]
        %v2245 = vld [vmem:[%s3 + $0x140] sm:$0xff]
        %v2246 = vld [vmem:[%s3 + $0x148] sm:$0xff]
        %v2247 = vld [vmem:[%s3 + $0x150] sm:$0xff]
        %v2248 = vld [vmem:[%s3 + $0x158] sm:$0xff]
        %v2249 = vld [vmem:[%s3 + $0x160] sm:$0xff]
        %v2250 = vld [vmem:[%s3 + $0x168] sm:$0xff]
        %v2251 = vld [vmem:[%s3 + $0x170] sm:$0xff]
        %v2252 = vld [vmem:[%s3 + $0x178] sm:$0xff]
        %s2253 = sadd.s32 %s2107, 2
        %s2254 = smul.u32 %s2253, 24
        %s2255 = sadd.s32 %s2254, 4294967295
        %s2256 = scalar_lea.vmem [#allocation2], %s2255
        %v2257 = vld [vmem:[%s2256] sm:$0xff]
        %v2258 = vld [vmem:[%s2256 + $0x8] sm:$0xff]
        %v2259 = vld [vmem:[%s2256 + $0x10] sm:$0xff]
        %v2260 = vld [vmem:[%s2256 + $0x18] sm:$0xff]
        %v2261 = vld [vmem:[%s2256 + $0x20] sm:$0xff]
        %v2262 = vld [vmem:[%s2256 + $0x28] sm:$0xff]
        %v2263 = vld [vmem:[%s2256 + $0x30] sm:$0xff]
        %v2264 = vld [vmem:[%s2256 + $0x38] sm:$0xff]
        %v2265 = vld [vmem:[%s2256 + $0x40] sm:$0xff]
        %v2266 = vld [vmem:[%s2256 + $0x48] sm:$0xff]
        %v2267 = vld [vmem:[%s2256 + $0x50] sm:$0xff]
        %v2268 = vld [vmem:[%s2256 + $0x58] sm:$0xff]
        %v2269 = vld [vmem:[%s2256 + $0x60] sm:$0xff]
        %v2270 = vld [vmem:[%s2256 + $0x68] sm:$0xff]
        %v2271 = vld [vmem:[%s2256 + $0x70] sm:$0xff]
        %v2272 = vld [vmem:[%s2256 + $0x78] sm:$0xff]
        %v2273 = vld [vmem:[%s2256 + $0x80] sm:$0xff]
        %v2274 = vld [vmem:[%s2256 + $0x88] sm:$0xff]
        %v2275 = vld [vmem:[%s2256 + $0x90] sm:$0xff]
        %v2276 = vld [vmem:[%s2256 + $0x98] sm:$0xff]
        %v2277 = vld [vmem:[%s2256 + $0xa0] sm:$0xff]
        %v2278 = vld [vmem:[%s2256 + $0xa8] sm:$0xff]
        %v2279 = vld [vmem:[%s2256 + $0xb0] sm:$0xff]
        %v2280 = vld [vmem:[%s2256 + $0xb8] sm:$0xff]
        %v2281 = vld [vmem:[%s2256 + $0xc0] sm:$0xff]
        %v2282 = vld [vmem:[%s2256 + $0xc8] sm:$0xff]
        %v2283 = vld [vmem:[%s2256 + $0xd0] sm:$0xff]
        %v2284 = vld [vmem:[%s2256 + $0xd8] sm:$0xff]
        %v2285 = vld [vmem:[%s2256 + $0xe0] sm:$0xff]
        %v2286 = vld [vmem:[%s2256 + $0xe8] sm:$0xff]
        %s2287 = scalar_lea.vmem [#allocation2], %s2254
        %v2288 = vld [vmem:[%s2287] sm:$0xff]
        %v2289 = vld [vmem:[%s2287 + $0x8] sm:$0xff]
        %v2290 = vld [vmem:[%s2287 + $0x10] sm:$0xff]
        %v2291 = vld [vmem:[%s2287 + $0x18] sm:$0xff]
        %v2292 = vld [vmem:[%s2287 + $0x20] sm:$0xff]
        %v2293 = vld [vmem:[%s2287 + $0x28] sm:$0xff]
        %v2294 = vld [vmem:[%s2287 + $0x30] sm:$0xff]
        %v2295 = vld [vmem:[%s2287 + $0x38] sm:$0xff]
        %v2296 = vld [vmem:[%s2287 + $0x40] sm:$0xff]
        %v2297 = vld [vmem:[%s2287 + $0x48] sm:$0xff]
        %v2298 = vld [vmem:[%s2287 + $0x50] sm:$0xff]
        %v2299 = vld [vmem:[%s2287 + $0x58] sm:$0xff]
        %v2300 = vld [vmem:[%s2287 + $0x60] sm:$0xff]
        %v2301 = vld [vmem:[%s2287 + $0x68] sm:$0xff]
        %v2302 = vld [vmem:[%s2287 + $0x70] sm:$0xff]
        %v2303 = vld [vmem:[%s2287 + $0x78] sm:$0xff]
        %v2304 = vld [vmem:[%s2287 + $0x80] sm:$0xff]
        %v2305 = vld [vmem:[%s2287 + $0x88] sm:$0xff]
        %v2306 = vld [vmem:[%s2287 + $0x90] sm:$0xff]
        %v2307 = vld [vmem:[%s2287 + $0x98] sm:$0xff]
        %v2308 = vld [vmem:[%s2287 + $0xa0] sm:$0xff]
        %v2309 = vld [vmem:[%s2287 + $0xa8] sm:$0xff]
        %v2310 = vld [vmem:[%s2287 + $0xb0] sm:$0xff]
        %v2311 = vld [vmem:[%s2287 + $0xb8] sm:$0xff]
        %v2312 = vld [vmem:[%s2287 + $0xc0] sm:$0xff]
        %v2313 = vld [vmem:[%s2287 + $0xc8] sm:$0xff]
        %v2314 = vld [vmem:[%s2287 + $0xd0] sm:$0xff]
        %v2315 = vld [vmem:[%s2287 + $0xd8] sm:$0xff]
        %v2316 = vld [vmem:[%s2287 + $0xe0] sm:$0xff]
        %v2317 = vld [vmem:[%s2287 + $0xe8] sm:$0xff]
        %s2318 = sadd.s32 %s2254, 1
        %s2319 = scalar_lea.vmem [#allocation2], %s2318
        %v2320 = vld [vmem:[%s2319] sm:$0xff]
        %v2321 = vld [vmem:[%s2319 + $0x8] sm:$0xff]
        %v2322 = vld [vmem:[%s2319 + $0x10] sm:$0xff]
        %v2323 = vld [vmem:[%s2319 + $0x18] sm:$0xff]
        %v2324 = vld [vmem:[%s2319 + $0x20] sm:$0xff]
        %v2325 = vld [vmem:[%s2319 + $0x28] sm:$0xff]
        %v2326 = vld [vmem:[%s2319 + $0x30] sm:$0xff]
        %v2327 = vld [vmem:[%s2319 + $0x38] sm:$0xff]
        %v2328 = vld [vmem:[%s2319 + $0x40] sm:$0xff]
        %v2329 = vld [vmem:[%s2319 + $0x48] sm:$0xff]
        %v2330 = vld [vmem:[%s2319 + $0x50] sm:$0xff]
        %v2331 = vld [vmem:[%s2319 + $0x58] sm:$0xff]
        %v2332 = vld [vmem:[%s2319 + $0x60] sm:$0xff]
        %v2333 = vld [vmem:[%s2319 + $0x68] sm:$0xff]
        %v2334 = vld [vmem:[%s2319 + $0x70] sm:$0xff]
        %v2335 = vld [vmem:[%s2319 + $0x78] sm:$0xff]
        %v2336 = vld [vmem:[%s2319 + $0x80] sm:$0xff]
        %v2337 = vld [vmem:[%s2319 + $0x88] sm:$0xff]
        %v2338 = vld [vmem:[%s2319 + $0x90] sm:$0xff]
        %v2339 = vld [vmem:[%s2319 + $0x98] sm:$0xff]
        %v2340 = vld [vmem:[%s2319 + $0xa0] sm:$0xff]
        %v2341 = vld [vmem:[%s2319 + $0xa8] sm:$0xff]
        %v2342 = vld [vmem:[%s2319 + $0xb0] sm:$0xff]
        %v2343 = vld [vmem:[%s2319 + $0xb8] sm:$0xff]
        %v2344 = vld [vmem:[%s2319 + $0xc0] sm:$0xff]
        %v2345 = vld [vmem:[%s2319 + $0xc8] sm:$0xff]
        %v2346 = vld [vmem:[%s2319 + $0xd0] sm:$0xff]
        %v2347 = vld [vmem:[%s2319 + $0xd8] sm:$0xff]
        %v2348 = vld [vmem:[%s2319 + $0xe0] sm:$0xff]
        %v2349 = vld [vmem:[%s2319 + $0xe8] sm:$0xff]
        %s2350 = scalar_lea.vmem %s3, 384
        %v2351 = vld [vmem:[%s2350] sm:$0xff]
        %v2352 = vld [vmem:[%s2350 + $0x8] sm:$0xff]
        %v2353 = vld [vmem:[%s2350 + $0x10] sm:$0xff]
        %v2354 = vld [vmem:[%s2350 + $0x18] sm:$0xff]
        %v2355 = vld [vmem:[%s2350 + $0x20] sm:$0xff]
        %v2356 = vld [vmem:[%s2350 + $0x28] sm:$0xff]
        %v2357 = vld [vmem:[%s2350 + $0x30] sm:$0xff]
        %v2358 = vld [vmem:[%s2350 + $0x38] sm:$0xff]
        %v2359 = vld [vmem:[%s2350 + $0x40] sm:$0xff]
        %v2360 = vld [vmem:[%s2350 + $0x48] sm:$0xff]
        %v2361 = vld [vmem:[%s2350 + $0x50] sm:$0xff]
        %v2362 = vld [vmem:[%s2350 + $0x58] sm:$0xff]
        %v2363 = vld [vmem:[%s2350 + $0x60] sm:$0xff]
        %v2364 = vld [vmem:[%s2350 + $0x68] sm:$0xff]
        %v2365 = vld [vmem:[%s2350 + $0x70] sm:$0xff]
        %v2366 = vld [vmem:[%s2350 + $0x78] sm:$0xff]
        %v2367 = vld [vmem:[%s2350 + $0x80] sm:$0xff]
        %v2368 = vld [vmem:[%s2350 + $0x88] sm:$0xff]
        %v2369 = vld [vmem:[%s2350 + $0x90] sm:$0xff]
        %v2370 = vld [vmem:[%s2350 + $0x98] sm:$0xff]
        %v2371 = vld [vmem:[%s2350 + $0xa0] sm:$0xff]
        %v2372 = vld [vmem:[%s2350 + $0xa8] sm:$0xff]
        %v2373 = vld [vmem:[%s2350 + $0xb0] sm:$0xff]
        %v2374 = vld [vmem:[%s2350 + $0xb8] sm:$0xff]
        %v2375 = vld [vmem:[%s2350 + $0xc0] sm:$0xff]
        %v2376 = vld [vmem:[%s2350 + $0xc8] sm:$0xff]
        %v2377 = vld [vmem:[%s2350 + $0xd0] sm:$0xff]
        %v2378 = vld [vmem:[%s2350 + $0xd8] sm:$0xff]
        %v2379 = vld [vmem:[%s2350 + $0xe0] sm:$0xff]
        %v2380 = vld [vmem:[%s2350 + $0xe8] sm:$0xff]
        %v2381 = vld [vmem:[%s2350 + $0xf0] sm:$0xff]
        %v2382 = vld [vmem:[%s2350 + $0xf8] sm:$0xff]
        %v2383 = vld [vmem:[%s2350 + $0x100] sm:$0xff]
        %v2384 = vld [vmem:[%s2350 + $0x108] sm:$0xff]
        %v2385 = vld [vmem:[%s2350 + $0x110] sm:$0xff]
        %v2386 = vld [vmem:[%s2350 + $0x118] sm:$0xff]
        %v2387 = vld [vmem:[%s2350 + $0x120] sm:$0xff]
        %v2388 = vld [vmem:[%s2350 + $0x128] sm:$0xff]
        %v2389 = vld [vmem:[%s2350 + $0x130] sm:$0xff]
        %v2390 = vld [vmem:[%s2350 + $0x138] sm:$0xff]
        %v2391 = vld [vmem:[%s2350 + $0x140] sm:$0xff]
        %v2392 = vld [vmem:[%s2350 + $0x148] sm:$0xff]
        %v2393 = vld [vmem:[%s2350 + $0x150] sm:$0xff]
        %v2394 = vld [vmem:[%s2350 + $0x158] sm:$0xff]
        %v2395 = vld [vmem:[%s2350 + $0x160] sm:$0xff]
        %v2396 = vld [vmem:[%s2350 + $0x168] sm:$0xff]
        %v2397 = vld [vmem:[%s2350 + $0x170] sm:$0xff]
        %v2398 = vld [vmem:[%s2350 + $0x178] sm:$0xff]
        %2399 = vmatprep.subr.mxu0 0.0
        %2400 = vmatpush1.msra.mxu0 %v2351
        %2401 = vmatprep.subr.mxu0 0.0
        %2402 = vmatpush1.msra.mxu0 %v2352
        %2403 = vmatprep.subr.mxu0 0.0
        %2404 = vmatpush1.msra.mxu0 %v2353
        %2405 = vmatprep.subr.mxu0 0.0
        %2406 = vmatpush1.msra.mxu0 %v2354
        %2407 = vmatprep.subr.mxu0 0.0
        %2408 = vmatpush1.msra.mxu0 %v2355
        %2409 = vmatprep.subr.mxu0 0.0
        %2410 = vmatpush1.msra.mxu0 %v2356
        %2411 = vmatprep.subr.mxu0 0.0
        %2412 = vmatpush1.msra.mxu0 %v2357
        %2413 = vmatprep.subr.mxu0 0.0
        %2414 = vmatpush1.msra.mxu0 %v2358
        %2415 = vmatprep.subr.mxu0 0.0
        %2416 = vmatpush1.msra.mxu0 %v2359
        %2417 = vmatprep.subr.mxu0 0.0
        %2418 = vmatpush1.msra.mxu0 %v2360
        %2419 = vmatprep.subr.mxu0 0.0
        %2420 = vmatpush1.msra.mxu0 %v2361
        %2421 = vmatprep.subr.mxu0 0.0
        %2422 = vmatpush1.msra.mxu0 %v2362
        %2423 = vmatprep.subr.mxu0 0.0
        %2424 = vmatpush1.msra.mxu0 %v2363
        %2425 = vmatprep.subr.mxu0 0.0
        %2426 = vmatpush1.msra.mxu0 %v2364
        %2427 = vmatprep.subr.mxu0 0.0
        %2428 = vmatpush1.msra.mxu0 %v2365
        %2429 = vmatprep.subr.mxu0 0.0
        %2430 = vmatpush1.msra.mxu0 %v2366
        %2431 = vmatprep.subr.mxu0 0.0
        %2432 = vmatpush1.msra.mxu0 %v2367
        %2433 = vmatprep.subr.mxu0 0.0
        %2434 = vmatpush1.msra.mxu0 %v2368
        %2435 = vmatprep.subr.mxu0 0.0
        %2436 = vmatpush1.msra.mxu0 %v2369
        %2437 = vmatprep.subr.mxu0 0.0
        %2438 = vmatpush1.msra.mxu0 %v2370
        %2439 = vmatprep.subr.mxu0 0.0
        %2440 = vmatpush1.msra.mxu0 %v2371
        %2441 = vmatprep.subr.mxu0 0.0
        %2442 = vmatpush1.msra.mxu0 %v2372
        %2443 = vmatprep.subr.mxu0 0.0
        %2444 = vmatpush1.msra.mxu0 %v2373
        %2445 = vmatprep.subr.mxu0 0.0
        %2446 = vmatpush1.msra.mxu0 %v2374
        %2447 = vmatprep.subr.mxu0 0.0
        %2448 = vmatpush1.msra.mxu0 %v2375
        %2449 = vmatprep.subr.mxu0 0.0
        %2450 = vmatpush1.msra.mxu0 %v2376
        %2451 = vmatprep.subr.mxu0 0.0
        %2452 = vmatpush1.msra.mxu0 %v2377
        %2453 = vmatprep.subr.mxu0 0.0
        %2454 = vmatpush1.msra.mxu0 %v2378
        %2455 = vmatprep.subr.mxu0 0.0
        %2456 = vmatpush1.msra.mxu0 %v2379
        %2457 = vmatprep.subr.mxu0 0.0
        %2458 = vmatpush1.msra.mxu0 %v2380
        %2459 = vmatprep.subr.mxu0 0.0
        %2460 = vmatpush1.msra.mxu0 %v2381
        %2461 = vmatprep.subr.mxu0 0.0
        %2462 = vmatpush1.msra.mxu0 %v2382
        %2463 = vmatprep.mubr.f32.mxu0 %v2288
        %2464 = vmatmul.mubr.f32.gmra.mrb[0].mxu0 %v2257
        %v2465 = vpop.f32.mrb[0].mxu0
        %v2466 = vadd.f32 0.0, %v2465
        %v2467 = vpop.f32.mrb[0].mxu0
        %2468 = vmatprep.mubr.f32.mxu0 %v2289
        %2469 = vmatmul.mubr.f32.gmra.mrb[0].mxu0 %v2258
        %v2470 = vpop.f32.mrb[0].mxu0
        %v2471 = vadd.f32 0.0, %v2470
        %v2472 = vpop.f32.mrb[0].mxu0
        %2473 = vmatprep.mubr.f32.mxu0 %v2290
        %2474 = vmatmul.mubr.f32.gmra.mrb[0].mxu0 %v2259
        %v2475 = vpop.f32.mrb[0].mxu0
        %v2476 = vadd.f32 0.0, %v2475
        %v2477 = vpop.f32.mrb[0].mxu0
        %2478 = vmatprep.mubr.f32.mxu0 %v2291
        %2479 = vmatmul.mubr.f32.gmra.mrb[0].mxu0 %v2260
        %v2480 = vpop.f32.mrb[0].mxu0
        %v2481 = vadd.f32 0.0, %v2480
        %v2482 = vpop.f32.mrb[0].mxu0
        %2483 = vmatprep.mubr.f32.mxu0 %v2292
        %2484 = vmatmul.mubr.f32.gmra.mrb[0].mxu0 %v2261
        %v2485 = vpop.f32.mrb[0].mxu0
        %v2486 = vadd.f32 0.0, %v2485
        %v2487 = vpop.f32.mrb[0].mxu0
        %2488 = vmatprep.mubr.f32.mxu0 %v2293
        %2489 = vmatmul.mubr.f32.gmra.mrb[0].mxu0 %v2262
        %v2490 = vpop.f32.mrb[0].mxu0
        %v2491 = vadd.f32 0.0, %v2490
        %v2492 = vpop.f32.mrb[0].mxu0
        %2493 = vmatprep.mubr.f32.mxu0 %v2294
        %2494 = vmatmul.mubr.f32.gmra.mrb[0].mxu0 %v2263
        %v2495 = vpop.f32.mrb[0].mxu0
        %v2496 = vadd.f32 0.0, %v2495
        %v2497 = vpop.f32.mrb[0].mxu0
        %2498 = vmatprep.mubr.f32.mxu0 %v2295
        %2499 = vmatmul.mubr.f32.gmra.mrb[0].mxu0 %v2264
        %v2500 = vpop.f32.mrb[0].mxu0
        %v2501 = vadd.f32 0.0, %v2500
        %v2502 = vpop.f32.mrb[0].mxu0
        %2503 = vmatprep.mubr.f32.mxu0 %v2296
        %2504 = vmatmul.mubr.f32.gmra.mrb[0].mxu0 %v2265
        %v2505 = vpop.f32.mrb[0].mxu0
        %v2506 = vadd.f32 0.0, %v2505
        %v2507 = vpop.f32.mrb[0].mxu0
        %2508 = vmatprep.mubr.f32.mxu0 %v2297
        %2509 = vmatmul.mubr.f32.gmra.mrb[0].mxu0 %v2266
        %v2510 = vpop.f32.mrb[0].mxu0
        %v2511 = vadd.f32 0.0, %v2510
        %v2512 = vpop.f32.mrb[0].mxu0
        %2513 = vmatprep.mubr.f32.mxu0 %v2298
        %2514 = vmatmul.mubr.f32.gmra.mrb[0].mxu0 %v2267
        %v2515 = vpop.f32.mrb[0].mxu0
        %v2516 = vadd.f32 0.0, %v2515
        %v2517 = vpop.f32.mrb[0].mxu0
        %2518 = vmatprep.mubr.f32.mxu0 %v2299
        %2519 = vmatmul.mubr.f32.gmra.mrb[0].mxu0 %v2268
        %v2520 = vpop.f32.mrb[0].mxu0
        %v2521 = vadd.f32 0.0, %v2520
        %v2522 = vpop.f32.mrb[0].mxu0
        %2523 = vmatprep.mubr.f32.mxu0 %v2300
        %2524 = vmatmul.mubr.f32.gmra.mrb[0].mxu0 %v2269
        %v2525 = vpop.f32.mrb[0].mxu0
        %v2526 = vadd.f32 0.0, %v2525
        %v2527 = vpop.f32.mrb[0].mxu0
        %2528 = vmatprep.mubr.f32.mxu0 %v2301
        %2529 = vmatmul.mubr.f32.gmra.mrb[0].mxu0 %v2270
        %v2530 = vpop.f32.mrb[0].mxu0
        %v2531 = vadd.f32 0.0, %v2530
        %v2532 = vpop.f32.mrb[0].mxu0
        %2533 = vmatprep.mubr.f32.mxu0 %v2302
        %2534 = vmatmul.mubr.f32.gmra.mrb[0].mxu0 %v2271
        %v2535 = vpop.f32.mrb[0].mxu0
        %v2536 = vadd.f32 0.0, %v2535
        %v2537 = vpop.f32.mrb[0].mxu0
        %2538 = vmatprep.mubr.f32.mxu0 %v2303
        %2539 = vmatmul.mubr.f32.gmra.mrb[0].mxu0 %v2272
        %v2540 = vpop.f32.mrb[0].mxu0
        %v2541 = vadd.f32 0.0, %v2540
        %v2542 = vpop.f32.mrb[0].mxu0
        %2543 = vmatprep.mubr.f32.mxu0 %v2304
        %2544 = vmatmul.mubr.f32.gmra.mrb[0].mxu0 %v2273
        %v2545 = vpop.f32.mrb[0].mxu0
        %v2546 = vadd.f32 0.0, %v2545
        %v2547 = vpop.f32.mrb[0].mxu0
        %2548 = vmatprep.mubr.f32.mxu0 %v2305
        %2549 = vmatmul.mubr.f32.gmra.mrb[0].mxu0 %v2274
        %v2550 = vpop.f32.mrb[0].mxu0
        %v2551 = vadd.f32 0.0, %v2550
        %v2552 = vpop.f32.mrb[0].mxu0
        %2553 = vmatprep.mubr.f32.mxu0 %v2306
        %2554 = vmatmul.mubr.f32.gmra.mrb[0].mxu0 %v2275
        %v2555 = vpop.f32.mrb[0].mxu0
        %v2556 = vadd.f32 0.0, %v2555
        %v2557 = vpop.f32.mrb[0].mxu0
        %2558 = vmatprep.mubr.f32.mxu0 %v2307
        %2559 = vmatmul.mubr.f32.gmra.mrb[0].mxu0 %v2276
        %v2560 = vpop.f32.mrb[0].mxu0
        %v2561 = vadd.f32 0.0, %v2560
        %v2562 = vpop.f32.mrb[0].mxu0
        %2563 = vmatprep.mubr.f32.mxu0 %v2308
        %2564 = vmatmul.mubr.f32.gmra.mrb[0].mxu0 %v2277
        %v2565 = vpop.f32.mrb[0].mxu0
        %v2566 = vadd.f32 0.0, %v2565
        %v2567 = vpop.f32.mrb[0].mxu0
        %2568 = vmatprep.mubr.f32.mxu0 %v2309
        %2569 = vmatmul.mubr.f32.gmra.mrb[0].mxu0 %v2278
        %v2570 = vpop.f32.mrb[0].mxu0
        %v2571 = vadd.f32 0.0, %v2570
        %v2572 = vpop.f32.mrb[0].mxu0
        %2573 = vmatprep.mubr.f32.mxu0 %v2310
        %2574 = vmatmul.mubr.f32.gmra.mrb[0].mxu0 %v2279
        %v2575 = vpop.f32.mrb[0].mxu0
        %v2576 = vadd.f32 0.0, %v2575
        %v2577 = vpop.f32.mrb[0].mxu0
        %2578 = vmatprep.mubr.f32.mxu0 %v2311
        %2579 = vmatmul.mubr.f32.gmra.mrb[0].mxu0 %v2280
        %v2580 = vpop.f32.mrb[0].mxu0
        %v2581 = vadd.f32 0.0, %v2580
        %v2582 = vpop.f32.mrb[0].mxu0
        %2583 = vmatprep.mubr.f32.mxu0 %v2312
        %2584 = vmatmul.mubr.f32.gmra.mrb[0].mxu0 %v2281
        %v2585 = vpop.f32.mrb[0].mxu0
        %v2586 = vadd.f32 0.0, %v2585
        %v2587 = vpop.f32.mrb[0].mxu0
        %2588 = vmatprep.mubr.f32.mxu0 %v2313
        %2589 = vmatmul.mubr.f32.gmra.mrb[0].mxu0 %v2282
        %v2590 = vpop.f32.mrb[0].mxu0
        %v2591 = vadd.f32 0.0, %v2590
        %v2592 = vpop.f32.mrb[0].mxu0
        %2593 = vmatprep.mubr.f32.mxu0 %v2314
        %2594 = vmatmul.mubr.f32.gmra.mrb[0].mxu0 %v2283
        %v2595 = vpop.f32.mrb[0].mxu0
        %v2596 = vadd.f32 0.0, %v2595
        %v2597 = vpop.f32.mrb[0].mxu0
        %2598 = vmatprep.mubr.f32.mxu0 %v2315
        %2599 = vmatmul.mubr.f32.gmra.mrb[0].mxu0 %v2284
        %v2600 = vpop.f32.mrb[0].mxu0
        %v2601 = vadd.f32 0.0, %v2600
        %v2602 = vpop.f32.mrb[0].mxu0
        %2603 = vmatprep.mubr.f32.mxu0 %v2316
        %2604 = vmatmul.mubr.f32.gmra.mrb[0].mxu0 %v2285
        %v2605 = vpop.f32.mrb[0].mxu0
        %v2606 = vadd.f32 0.0, %v2605
        %v2607 = vpop.f32.mrb[0].mxu0
        %2608 = vmatprep.mubr.f32.mxu0 %v2317
        %2609 = vmatmul.mubr.f32.gmra.mrb[0].mxu0 %v2286
        %v2610 = vpop.f32.mrb[0].mxu0
        %v2611 = vadd.f32 0.0, %v2610
        %v2612 = vpop.f32.mrb[0].mxu0
        %2613 = vdwg.mxu0
        %2614 = vmatprep.subr.mxu0 0.0
        %2615 = vmatpush1.msra.mxu0 %v2383
        %2616 = vmatprep.subr.mxu0 0.0
        %2617 = vmatpush1.msra.mxu0 %v2384
        %2618 = vmatprep.subr.mxu0 0.0
        %2619 = vmatpush1.msra.mxu0 %v2385
        %2620 = vmatprep.subr.mxu0 0.0
        %2621 = vmatpush1.msra.mxu0 %v2386
        %2622 = vmatprep.subr.mxu0 0.0
        %2623 = vmatpush1.msra.mxu0 %v2387
        %2624 = vmatprep.subr.mxu0 0.0
        %2625 = vmatpush1.msra.mxu0 %v2388
        %2626 = vmatprep.subr.mxu0 0.0
        %2627 = vmatpush1.msra.mxu0 %v2389
        %2628 = vmatprep.subr.mxu0 0.0
        %2629 = vmatpush1.msra.mxu0 %v2390
        %2630 = vmatprep.subr.mxu0 0.0
        %2631 = vmatpush1.msra.mxu0 %v2391
        %2632 = vmatprep.subr.mxu0 0.0
        %2633 = vmatpush1.msra.mxu0 %v2392
        %2634 = vmatprep.subr.mxu0 0.0
        %2635 = vmatpush1.msra.mxu0 %v2393
        %2636 = vmatprep.subr.mxu0 0.0
        %2637 = vmatpush1.msra.mxu0 %v2394
        %2638 = vmatprep.subr.mxu0 0.0
        %2639 = vmatpush1.msra.mxu0 %v2395
        %2640 = vmatprep.subr.mxu0 0.0
        %2641 = vmatpush1.msra.mxu0 %v2396
        %2642 = vmatprep.subr.mxu0 0.0
        %2643 = vmatpush1.msra.mxu0 %v2397
        %2644 = vmatprep.subr.mxu0 0.0
        %2645 = vmatpush1.msra.mxu0 %v2398
        %2646 = vmatprep.subr.mxu0 0.0
        %2647 = vmatpush1.msra.mxu0 0.0
        %2648 = vmatprep.subr.mxu0 0.0
        %2649 = vmatpush1.msra.mxu0 0.0
        %2650 = vmatprep.subr.mxu0 0.0
        %2651 = vmatpush1.msra.mxu0 0.0
        %2652 = vmatprep.subr.mxu0 0.0
        %2653 = vmatpush1.msra.mxu0 0.0
        %2654 = vmatprep.subr.mxu0 0.0
        %2655 = vmatpush1.msra.mxu0 0.0
        %2656 = vmatprep.subr.mxu0 0.0
        %2657 = vmatpush1.msra.mxu0 0.0
        %2658 = vmatprep.subr.mxu0 0.0
        %2659 = vmatpush1.msra.mxu0 0.0
        %2660 = vmatprep.subr.mxu0 0.0
        %2661 = vmatpush1.msra.mxu0 0.0
        %2662 = vmatprep.subr.mxu0 0.0
        %2663 = vmatpush1.msra.mxu0 0.0
        %2664 = vmatprep.subr.mxu0 0.0
        %2665 = vmatpush1.msra.mxu0 0.0
        %2666 = vmatprep.subr.mxu0 0.0
        %2667 = vmatpush1.msra.mxu0 0.0
        %2668 = vmatprep.subr.mxu0 0.0
        %2669 = vmatpush1.msra.mxu0 0.0
        %2670 = vmatprep.subr.mxu0 0.0
        %2671 = vmatpush1.msra.mxu0 0.0
        %2672 = vmatprep.subr.mxu0 0.0
        %2673 = vmatpush1.msra.mxu0 0.0
        %2674 = vmatprep.subr.mxu0 0.0
        %2675 = vmatpush1.msra.mxu0 0.0
        %2676 = vmatprep.subr.mxu0 0.0
        %2677 = vmatpush1.msra.mxu0 0.0
        %2678 = vmatprep.mubr.f32.mxu0 0.0
        %2679 = vmatmul.mubr.f32.gmra.mrb[0].mxu0 %v2320
        %v2680 = vpop.f32.mrb[0].mxu0
        %v2681 = vadd.f32 %v2466, %v2680
        %v2682 = vpop.f32.mrb[0].mxu0
        %2683 = vmatprep.mubr.f32.mxu0 0.0
        %2684 = vmatmul.mubr.f32.gmra.mrb[0].mxu0 %v2321
        %v2685 = vpop.f32.mrb[0].mxu0
        %v2686 = vadd.f32 %v2471, %v2685
        %v2687 = vpop.f32.mrb[0].mxu0
        %2688 = vmatprep.mubr.f32.mxu0 0.0
        %2689 = vmatmul.mubr.f32.gmra.mrb[0].mxu0 %v2322
        %v2690 = vpop.f32.mrb[0].mxu0
        %v2691 = vadd.f32 %v2476, %v2690
        %v2692 = vpop.f32.mrb[0].mxu0
        %2693 = vmatprep.mubr.f32.mxu0 0.0
        %2694 = vmatmul.mubr.f32.gmra.mrb[0].mxu0 %v2323
        %v2695 = vpop.f32.mrb[0].mxu0
        %v2696 = vadd.f32 %v2481, %v2695
        %v2697 = vpop.f32.mrb[0].mxu0
        %2698 = vmatprep.mubr.f32.mxu0 0.0
        %2699 = vmatmul.mubr.f32.gmra.mrb[0].mxu0 %v2324
        %v2700 = vpop.f32.mrb[0].mxu0
        %v2701 = vadd.f32 %v2486, %v2700
        %v2702 = vpop.f32.mrb[0].mxu0
        %2703 = vmatprep.mubr.f32.mxu0 0.0
        %2704 = vmatmul.mubr.f32.gmra.mrb[0].mxu0 %v2325
        %v2705 = vpop.f32.mrb[0].mxu0
        %v2706 = vadd.f32 %v2491, %v2705
        %v2707 = vpop.f32.mrb[0].mxu0
        %2708 = vmatprep.mubr.f32.mxu0 0.0
        %2709 = vmatmul.mubr.f32.gmra.mrb[0].mxu0 %v2326
        %v2710 = vpop.f32.mrb[0].mxu0
        %v2711 = vadd.f32 %v2496, %v2710
        %v2712 = vpop.f32.mrb[0].mxu0
        %2713 = vmatprep.mubr.f32.mxu0 0.0
        %2714 = vmatmul.mubr.f32.gmra.mrb[0].mxu0 %v2327
        %v2715 = vpop.f32.mrb[0].mxu0
        %v2716 = vadd.f32 %v2501, %v2715
        %v2717 = vpop.f32.mrb[0].mxu0
        %2718 = vmatprep.mubr.f32.mxu0 0.0
        %2719 = vmatmul.mubr.f32.gmra.mrb[0].mxu0 %v2328
        %v2720 = vpop.f32.mrb[0].mxu0
        %v2721 = vadd.f32 %v2506, %v2720
        %v2722 = vpop.f32.mrb[0].mxu0
        %2723 = vmatprep.mubr.f32.mxu0 0.0
        %2724 = vmatmul.mubr.f32.gmra.mrb[0].mxu0 %v2329
        %v2725 = vpop.f32.mrb[0].mxu0
        %v2726 = vadd.f32 %v2511, %v2725
        %v2727 = vpop.f32.mrb[0].mxu0
        %2728 = vmatprep.mubr.f32.mxu0 0.0
        %2729 = vmatmul.mubr.f32.gmra.mrb[0].mxu0 %v2330
        %v2730 = vpop.f32.mrb[0].mxu0
        %v2731 = vadd.f32 %v2516, %v2730
        %v2732 = vpop.f32.mrb[0].mxu0
        %2733 = vmatprep.mubr.f32.mxu0 0.0
        %2734 = vmatmul.mubr.f32.gmra.mrb[0].mxu0 %v2331
        %v2735 = vpop.f32.mrb[0].mxu0
        %v2736 = vadd.f32 %v2521, %v2735
        %v2737 = vpop.f32.mrb[0].mxu0
        %2738 = vmatprep.mubr.f32.mxu0 0.0
        %2739 = vmatmul.mubr.f32.gmra.mrb[0].mxu0 %v2332
        %v2740 = vpop.f32.mrb[0].mxu0
        %v2741 = vadd.f32 %v2526, %v2740
        %v2742 = vpop.f32.mrb[0].mxu0
        %2743 = vmatprep.mubr.f32.mxu0 0.0
        %2744 = vmatmul.mubr.f32.gmra.mrb[0].mxu0 %v2333
        %v2745 = vpop.f32.mrb[0].mxu0
        %v2746 = vadd.f32 %v2531, %v2745
        %v2747 = vpop.f32.mrb[0].mxu0
        %2748 = vmatprep.mubr.f32.mxu0 0.0
        %2749 = vmatmul.mubr.f32.gmra.mrb[0].mxu0 %v2334
        %v2750 = vpop.f32.mrb[0].mxu0
        %v2751 = vadd.f32 %v2536, %v2750
        %v2752 = vpop.f32.mrb[0].mxu0
        %2753 = vmatprep.mubr.f32.mxu0 0.0
        %2754 = vmatmul.mubr.f32.gmra.mrb[0].mxu0 %v2335
        %v2755 = vpop.f32.mrb[0].mxu0
        %v2756 = vadd.f32 %v2541, %v2755
        %v2757 = vpop.f32.mrb[0].mxu0
        %2758 = vmatprep.mubr.f32.mxu0 0.0
        %2759 = vmatmul.mubr.f32.gmra.mrb[0].mxu0 %v2336
        %v2760 = vpop.f32.mrb[0].mxu0
        %v2761 = vadd.f32 %v2546, %v2760
        %v2762 = vpop.f32.mrb[0].mxu0
        %2763 = vmatprep.mubr.f32.mxu0 0.0
        %2764 = vmatmul.mubr.f32.gmra.mrb[0].mxu0 %v2337
        %v2765 = vpop.f32.mrb[0].mxu0
        %v2766 = vadd.f32 %v2551, %v2765
        %v2767 = vpop.f32.mrb[0].mxu0
        %2768 = vmatprep.mubr.f32.mxu0 0.0
        %2769 = vmatmul.mubr.f32.gmra.mrb[0].mxu0 %v2338
        %v2770 = vpop.f32.mrb[0].mxu0
        %v2771 = vadd.f32 %v2556, %v2770
        %v2772 = vpop.f32.mrb[0].mxu0
        %2773 = vmatprep.mubr.f32.mxu0 0.0
        %2774 = vmatmul.mubr.f32.gmra.mrb[0].mxu0 %v2339
        %v2775 = vpop.f32.mrb[0].mxu0
        %v2776 = vadd.f32 %v2561, %v2775
        %v2777 = vpop.f32.mrb[0].mxu0
        %2778 = vmatprep.mubr.f32.mxu0 0.0
        %2779 = vmatmul.mubr.f32.gmra.mrb[0].mxu0 %v2340
        %v2780 = vpop.f32.mrb[0].mxu0
        %v2781 = vadd.f32 %v2566, %v2780
        %v2782 = vpop.f32.mrb[0].mxu0
        %2783 = vmatprep.mubr.f32.mxu0 0.0
        %2784 = vmatmul.mubr.f32.gmra.mrb[0].mxu0 %v2341
        %v2785 = vpop.f32.mrb[0].mxu0
        %v2786 = vadd.f32 %v2571, %v2785
        %v2787 = vpop.f32.mrb[0].mxu0
        %2788 = vmatprep.mubr.f32.mxu0 0.0
        %2789 = vmatmul.mubr.f32.gmra.mrb[0].mxu0 %v2342
        %v2790 = vpop.f32.mrb[0].mxu0
        %v2791 = vadd.f32 %v2576, %v2790
        %v2792 = vpop.f32.mrb[0].mxu0
        %2793 = vmatprep.mubr.f32.mxu0 0.0
        %2794 = vmatmul.mubr.f32.gmra.mrb[0].mxu0 %v2343
        %v2795 = vpop.f32.mrb[0].mxu0
        %v2796 = vadd.f32 %v2581, %v2795
        %v2797 = vpop.f32.mrb[0].mxu0
        %2798 = vmatprep.mubr.f32.mxu0 0.0
        %2799 = vmatmul.mubr.f32.gmra.mrb[0].mxu0 %v2344
        %v2800 = vpop.f32.mrb[0].mxu0
        %v2801 = vadd.f32 %v2586, %v2800
        %v2802 = vpop.f32.mrb[0].mxu0
        %2803 = vmatprep.mubr.f32.mxu0 0.0
        %2804 = vmatmul.mubr.f32.gmra.mrb[0].mxu0 %v2345
        %v2805 = vpop.f32.mrb[0].mxu0
        %v2806 = vadd.f32 %v2591, %v2805
        %v2807 = vpop.f32.mrb[0].mxu0
        %2808 = vmatprep.mubr.f32.mxu0 0.0
        %2809 = vmatmul.mubr.f32.gmra.mrb[0].mxu0 %v2346
        %v2810 = vpop.f32.mrb[0].mxu0
        %v2811 = vadd.f32 %v2596, %v2810
        %v2812 = vpop.f32.mrb[0].mxu0
        %2813 = vmatprep.mubr.f32.mxu0 0.0
        %2814 = vmatmul.mubr.f32.gmra.mrb[0].mxu0 %v2347
        %v2815 = vpop.f32.mrb[0].mxu0
        %v2816 = vadd.f32 %v2601, %v2815
        %v2817 = vpop.f32.mrb[0].mxu0
        %2818 = vmatprep.mubr.f32.mxu0 0.0
        %2819 = vmatmul.mubr.f32.gmra.mrb[0].mxu0 %v2348
        %v2820 = vpop.f32.mrb[0].mxu0
        %v2821 = vadd.f32 %v2606, %v2820
        %v2822 = vpop.f32.mrb[0].mxu0
        %2823 = vmatprep.mubr.f32.mxu0 0.0
        %2824 = vmatmul.mubr.f32.gmra.mrb[0].mxu0 %v2349
        %v2825 = vpop.f32.mrb[0].mxu0
        %v2826 = vadd.f32 %v2611, %v2825
        %v2827 = vpop.f32.mrb[0].mxu0
        %2828 = vdwg.mxu0
        %2829 = vmatprep.subr.mxu0 0.0
        %2830 = vmatpush1.msra.mxu0 %v2205
        %2831 = vmatprep.subr.mxu0 0.0
        %2832 = vmatpush1.msra.mxu0 %v2206
        %2833 = vmatprep.subr.mxu0 0.0
        %2834 = vmatpush1.msra.mxu0 %v2207
        %2835 = vmatprep.subr.mxu0 0.0
        %2836 = vmatpush1.msra.mxu0 %v2208
        %2837 = vmatprep.subr.mxu0 0.0
        %2838 = vmatpush1.msra.mxu0 %v2209
        %2839 = vmatprep.subr.mxu0 0.0
        %2840 = vmatpush1.msra.mxu0 %v2210
        %2841 = vmatprep.subr.mxu0 0.0
        %2842 = vmatpush1.msra.mxu0 %v2211
        %2843 = vmatprep.subr.mxu0 0.0
        %2844 = vmatpush1.msra.mxu0 %v2212
        %2845 = vmatprep.subr.mxu0 0.0
        %2846 = vmatpush1.msra.mxu0 %v2213
        %2847 = vmatprep.subr.mxu0 0.0
        %2848 = vmatpush1.msra.mxu0 %v2214
        %2849 = vmatprep.subr.mxu0 0.0
        %2850 = vmatpush1.msra.mxu0 %v2215
        %2851 = vmatprep.subr.mxu0 0.0
        %2852 = vmatpush1.msra.mxu0 %v2216
        %2853 = vmatprep.subr.mxu0 0.0
        %2854 = vmatpush1.msra.mxu0 %v2217
        %2855 = vmatprep.subr.mxu0 0.0
        %2856 = vmatpush1.msra.mxu0 %v2218
        %2857 = vmatprep.subr.mxu0 0.0
        %2858 = vmatpush1.msra.mxu0 %v2219
        %2859 = vmatprep.subr.mxu0 0.0
        %2860 = vmatpush1.msra.mxu0 %v2220
        %2861 = vmatprep.subr.mxu0 0.0
        %2862 = vmatpush1.msra.mxu0 %v2221
        %2863 = vmatprep.subr.mxu0 0.0
        %2864 = vmatpush1.msra.mxu0 %v2222
        %2865 = vmatprep.subr.mxu0 0.0
        %2866 = vmatpush1.msra.mxu0 %v2223
        %2867 = vmatprep.subr.mxu0 0.0
        %2868 = vmatpush1.msra.mxu0 %v2224
        %2869 = vmatprep.subr.mxu0 0.0
        %2870 = vmatpush1.msra.mxu0 %v2225
        %2871 = vmatprep.subr.mxu0 0.0
        %2872 = vmatpush1.msra.mxu0 %v2226
        %2873 = vmatprep.subr.mxu0 0.0
        %2874 = vmatpush1.msra.mxu0 %v2227
        %2875 = vmatprep.subr.mxu0 0.0
        %2876 = vmatpush1.msra.mxu0 %v2228
        %2877 = vmatprep.subr.mxu0 0.0
        %2878 = vmatpush1.msra.mxu0 %v2229
        %2879 = vmatprep.subr.mxu0 0.0
        %2880 = vmatpush1.msra.mxu0 %v2230
        %2881 = vmatprep.subr.mxu0 0.0
        %2882 = vmatpush1.msra.mxu0 %v2231
        %2883 = vmatprep.subr.mxu0 0.0
        %2884 = vmatpush1.msra.mxu0 %v2232
        %2885 = vmatprep.subr.mxu0 0.0
        %2886 = vmatpush1.msra.mxu0 %v2233
        %2887 = vmatprep.subr.mxu0 0.0
        %2888 = vmatpush1.msra.mxu0 %v2234
        %2889 = vmatprep.subr.mxu0 0.0
        %2890 = vmatpush1.msra.mxu0 %v2235
        %2891 = vmatprep.subr.mxu0 0.0
        %2892 = vmatpush1.msra.mxu0 %v2236
        %2893 = vmatprep.mubr.f32.mxu0 %v2143
        %2894 = vmatmul.mubr.f32.gmra.mrb[0].mxu0 %v2112
        %v2895 = vpop.f32.mrb[0].mxu0
        %v2896 = vadd.f32 %v2681, %v2895
        %v2897 = vpop.f32.mrb[0].mxu0
        %2898 = vmatprep.mubr.f32.mxu0 %v2144
        %2899 = vmatmul.mubr.f32.gmra.mrb[0].mxu0 %v2113
        %v2900 = vpop.f32.mrb[0].mxu0
        %v2901 = vadd.f32 %v2686, %v2900
        %v2902 = vpop.f32.mrb[0].mxu0
        %2903 = vmatprep.mubr.f32.mxu0 %v2145
        %2904 = vmatmul.mubr.f32.gmra.mrb[0].mxu0 %v2114
        %v2905 = vpop.f32.mrb[0].mxu0
        %v2906 = vadd.f32 %v2691, %v2905
        %v2907 = vpop.f32.mrb[0].mxu0
        %2908 = vmatprep.mubr.f32.mxu0 %v2146
        %2909 = vmatmul.mubr.f32.gmra.mrb[0].mxu0 %v2115
        %v2910 = vpop.f32.mrb[0].mxu0
        %v2911 = vadd.f32 %v2696, %v2910
        %v2912 = vpop.f32.mrb[0].mxu0
        %2913 = vmatprep.mubr.f32.mxu0 %v2147
        %2914 = vmatmul.mubr.f32.gmra.mrb[0].mxu0 %v2116
        %v2915 = vpop.f32.mrb[0].mxu0
        %v2916 = vadd.f32 %v2701, %v2915
        %v2917 = vpop.f32.mrb[0].mxu0
        %2918 = vmatprep.mubr.f32.mxu0 %v2148
        %2919 = vmatmul.mubr.f32.gmra.mrb[0].mxu0 %v2117
        %v2920 = vpop.f32.mrb[0].mxu0
        %v2921 = vadd.f32 %v2706, %v2920
        %v2922 = vpop.f32.mrb[0].mxu0
        %2923 = vmatprep.mubr.f32.mxu0 %v2149
        %2924 = vmatmul.mubr.f32.gmra.mrb[0].mxu0 %v2118
        %v2925 = vpop.f32.mrb[0].mxu0
        %v2926 = vadd.f32 %v2711, %v2925
        %v2927 = vpop.f32.mrb[0].mxu0
        %2928 = vmatprep.mubr.f32.mxu0 %v2150
        %2929 = vmatmul.mubr.f32.gmra.mrb[0].mxu0 %v2119
        %v2930 = vpop.f32.mrb[0].mxu0
        %v2931 = vadd.f32 %v2716, %v2930
        %v2932 = vpop.f32.mrb[0].mxu0
        %2933 = vmatprep.mubr.f32.mxu0 %v2151
        %2934 = vmatmul.mubr.f32.gmra.mrb[0].mxu0 %v2120
        %v2935 = vpop.f32.mrb[0].mxu0
        %v2936 = vadd.f32 %v2721, %v2935
        %v2937 = vpop.f32.mrb[0].mxu0
        %2938 = vmatprep.mubr.f32.mxu0 %v2152
        %2939 = vmatmul.mubr.f32.gmra.mrb[0].mxu0 %v2121
        %v2940 = vpop.f32.mrb[0].mxu0
        %v2941 = vadd.f32 %v2726, %v2940
        %v2942 = vpop.f32.mrb[0].mxu0
        %2943 = vmatprep.mubr.f32.mxu0 %v2153
        %2944 = vmatmul.mubr.f32.gmra.mrb[0].mxu0 %v2122
        %v2945 = vpop.f32.mrb[0].mxu0
        %v2946 = vadd.f32 %v2731, %v2945
        %v2947 = vpop.f32.mrb[0].mxu0
        %2948 = vmatprep.mubr.f32.mxu0 %v2154
        %2949 = vmatmul.mubr.f32.gmra.mrb[0].mxu0 %v2123
        %v2950 = vpop.f32.mrb[0].mxu0
        %v2951 = vadd.f32 %v2736, %v2950
        %v2952 = vpop.f32.mrb[0].mxu0
        %2953 = vmatprep.mubr.f32.mxu0 %v2155
        %2954 = vmatmul.mubr.f32.gmra.mrb[0].mxu0 %v2124
        %v2955 = vpop.f32.mrb[0].mxu0
        %v2956 = vadd.f32 %v2741, %v2955
        %v2957 = vpop.f32.mrb[0].mxu0
        %2958 = vmatprep.mubr.f32.mxu0 %v2156
        %2959 = vmatmul.mubr.f32.gmra.mrb[0].mxu0 %v2125
        %v2960 = vpop.f32.mrb[0].mxu0
        %v2961 = vadd.f32 %v2746, %v2960
        %v2962 = vpop.f32.mrb[0].mxu0
        %2963 = vmatprep.mubr.f32.mxu0 %v2157
        %2964 = vmatmul.mubr.f32.gmra.mrb[0].mxu0 %v2126
        %v2965 = vpop.f32.mrb[0].mxu0
        %v2966 = vadd.f32 %v2751, %v2965
        %v2967 = vpop.f32.mrb[0].mxu0
        %2968 = vmatprep.mubr.f32.mxu0 %v2158
        %2969 = vmatmul.mubr.f32.gmra.mrb[0].mxu0 %v2127
        %v2970 = vpop.f32.mrb[0].mxu0
        %v2971 = vadd.f32 %v2756, %v2970
        %v2972 = vpop.f32.mrb[0].mxu0
        %2973 = vmatprep.mubr.f32.mxu0 %v2159
        %2974 = vmatmul.mubr.f32.gmra.mrb[0].mxu0 %v2128
        %v2975 = vpop.f32.mrb[0].mxu0
        %v2976 = vadd.f32 %v2761, %v2975
        %v2977 = vpop.f32.mrb[0].mxu0
        %2978 = vmatprep.mubr.f32.mxu0 %v2160
        %2979 = vmatmul.mubr.f32.gmra.mrb[0].mxu0 %v2129
        %v2980 = vpop.f32.mrb[0].mxu0
        %v2981 = vadd.f32 %v2766, %v2980
        %v2982 = vpop.f32.mrb[0].mxu0
        %2983 = vmatprep.mubr.f32.mxu0 %v2161
        %2984 = vmatmul.mubr.f32.gmra.mrb[0].mxu0 %v2130
        %v2985 = vpop.f32.mrb[0].mxu0
        %v2986 = vadd.f32 %v2771, %v2985
        %v2987 = vpop.f32.mrb[0].mxu0
        %2988 = vmatprep.mubr.f32.mxu0 %v2162
        %2989 = vmatmul.mubr.f32.gmra.mrb[0].mxu0 %v2131
        %v2990 = vpop.f32.mrb[0].mxu0
        %v2991 = vadd.f32 %v2776, %v2990
        %v2992 = vpop.f32.mrb[0].mxu0
        %2993 = vmatprep.mubr.f32.mxu0 %v2163
        %2994 = vmatmul.mubr.f32.gmra.mrb[0].mxu0 %v2132
        %v2995 = vpop.f32.mrb[0].mxu0
        %v2996 = vadd.f32 %v2781, %v2995
        %v2997 = vpop.f32.mrb[0].mxu0
        %2998 = vmatprep.mubr.f32.mxu0 %v2164
        %2999 = vmatmul.mubr.f32.gmra.mrb[0].mxu0 %v2133
        %v3000 = vpop.f32.mrb[0].mxu0
        %v3001 = vadd.f32 %v2786, %v3000
        %v3002 = vpop.f32.mrb[0].mxu0
        %3003 = vmatprep.mubr.f32.mxu0 %v2165
        %3004 = vmatmul.mubr.f32.gmra.mrb[0].mxu0 %v2134
        %v3005 = vpop.f32.mrb[0].mxu0
        %v3006 = vadd.f32 %v2791, %v3005
        %v3007 = vpop.f32.mrb[0].mxu0
        %3008 = vmatprep.mubr.f32.mxu0 %v2166
        %3009 = vmatmul.mubr.f32.gmra.mrb[0].mxu0 %v2135
        %v3010 = vpop.f32.mrb[0].mxu0
        %v3011 = vadd.f32 %v2796, %v3010
        %v3012 = vpop.f32.mrb[0].mxu0
        %3013 = vmatprep.mubr.f32.mxu0 %v2167
        %3014 = vmatmul.mubr.f32.gmra.mrb[0].mxu0 %v2136
        %v3015 = vpop.f32.mrb[0].mxu0
        %v3016 = vadd.f32 %v2801, %v3015
        %v3017 = vpop.f32.mrb[0].mxu0
        %3018 = vmatprep.mubr.f32.mxu0 %v2168
        %3019 = vmatmul.mubr.f32.gmra.mrb[0].mxu0 %v2137
        %v3020 = vpop.f32.mrb[0].mxu0
        %v3021 = vadd.f32 %v2806, %v3020
        %v3022 = vpop.f32.mrb[0].mxu0
        %3023 = vmatprep.mubr.f32.mxu0 %v2169
        %3024 = vmatmul.mubr.f32.gmra.mrb[0].mxu0 %v2138
        %v3025 = vpop.f32.mrb[0].mxu0
        %v3026 = vadd.f32 %v2811, %v3025
        %v3027 = vpop.f32.mrb[0].mxu0
        %3028 = vmatprep.mubr.f32.mxu0 %v2170
        %3029 = vmatmul.mubr.f32.gmra.mrb[0].mxu0 %v2139
        %v3030 = vpop.f32.mrb[0].mxu0
        %v3031 = vadd.f32 %v2816, %v3030
        %v3032 = vpop.f32.mrb[0].mxu0
        %3033 = vmatprep.mubr.f32.mxu0 %v2171
        %3034 = vmatmul.mubr.f32.gmra.mrb[0].mxu0 %v2140
        %v3035 = vpop.f32.mrb[0].mxu0
        %v3036 = vadd.f32 %v2821, %v3035
        %v3037 = vpop.f32.mrb[0].mxu0
        %3038 = vmatprep.mubr.f32.mxu0 %v2172
        %3039 = vmatmul.mubr.f32.gmra.mrb[0].mxu0 %v2141
        %v3040 = vpop.f32.mrb[0].mxu0
        %v3041 = vadd.f32 %v2826, %v3040
        %v3042 = vpop.f32.mrb[0].mxu0
        %3043 = vdwg.mxu0
        %3044 = vmatprep.subr.mxu0 0.0
        %3045 = vmatpush1.msra.mxu0 %v2237
        %3046 = vmatprep.subr.mxu0 0.0
        %3047 = vmatpush1.msra.mxu0 %v2238
        %3048 = vmatprep.subr.mxu0 0.0
        %3049 = vmatpush1.msra.mxu0 %v2239
        %3050 = vmatprep.subr.mxu0 0.0
        %3051 = vmatpush1.msra.mxu0 %v2240
        %3052 = vmatprep.subr.mxu0 0.0
        %3053 = vmatpush1.msra.mxu0 %v2241
        %3054 = vmatprep.subr.mxu0 0.0
        %3055 = vmatpush1.msra.mxu0 %v2242
        %3056 = vmatprep.subr.mxu0 0.0
        %3057 = vmatpush1.msra.mxu0 %v2243
        %3058 = vmatprep.subr.mxu0 0.0
        %3059 = vmatpush1.msra.mxu0 %v2244
        %3060 = vmatprep.subr.mxu0 0.0
        %3061 = vmatpush1.msra.mxu0 %v2245
        %3062 = vmatprep.subr.mxu0 0.0
        %3063 = vmatpush1.msra.mxu0 %v2246
        %3064 = vmatprep.subr.mxu0 0.0
        %3065 = vmatpush1.msra.mxu0 %v2247
        %3066 = vmatprep.subr.mxu0 0.0
        %3067 = vmatpush1.msra.mxu0 %v2248
        %3068 = vmatprep.subr.mxu0 0.0
        %3069 = vmatpush1.msra.mxu0 %v2249
        %3070 = vmatprep.subr.mxu0 0.0
        %3071 = vmatpush1.msra.mxu0 %v2250
        %3072 = vmatprep.subr.mxu0 0.0
        %3073 = vmatpush1.msra.mxu0 %v2251
        %3074 = vmatprep.subr.mxu0 0.0
        %3075 = vmatpush1.msra.mxu0 %v2252
        %3076 = vmatprep.subr.mxu0 0.0
        %3077 = vmatpush1.msra.mxu0 0.0
        %3078 = vmatprep.subr.mxu0 0.0
        %3079 = vmatpush1.msra.mxu0 0.0
        %3080 = vmatprep.subr.mxu0 0.0
        %3081 = vmatpush1.msra.mxu0 0.0
        %3082 = vmatprep.subr.mxu0 0.0
        %3083 = vmatpush1.msra.mxu0 0.0
        %3084 = vmatprep.subr.mxu0 0.0
        %3085 = vmatpush1.msra.mxu0 0.0
        %3086 = vmatprep.subr.mxu0 0.0
        %3087 = vmatpush1.msra.mxu0 0.0
        %3088 = vmatprep.subr.mxu0 0.0
        %3089 = vmatpush1.msra.mxu0 0.0
        %3090 = vmatprep.subr.mxu0 0.0
        %3091 = vmatpush1.msra.mxu0 0.0
        %3092 = vmatprep.subr.mxu0 0.0
        %3093 = vmatpush1.msra.mxu0 0.0
        %3094 = vmatprep.subr.mxu0 0.0
        %3095 = vmatpush1.msra.mxu0 0.0
        %3096 = vmatprep.subr.mxu0 0.0
        %3097 = vmatpush1.msra.mxu0 0.0
        %3098 = vmatprep.subr.mxu0 0.0
        %3099 = vmatpush1.msra.mxu0 0.0
        %3100 = vmatprep.subr.mxu0 0.0
        %3101 = vmatpush1.msra.mxu0 0.0
        %3102 = vmatprep.subr.mxu0 0.0
        %3103 = vmatpush1.msra.mxu0 0.0
        %3104 = vmatprep.subr.mxu0 0.0
        %3105 = vmatpush1.msra.mxu0 0.0
        %3106 = vmatprep.subr.mxu0 0.0
        %3107 = vmatpush1.msra.mxu0 0.0
        %3108 = vmatprep.mubr.f32.mxu0 0.0
        %3109 = vmatmul.mubr.f32.gmra.mrb[0].mxu0 %v2175
        %v3110 = vpop.f32.mrb[0].mxu0
        %v3111 = vadd.f32 %v2896, %v3110
        %v3112 = vpop.f32.mrb[0].mxu0
        %3113 = vmatprep.mubr.f32.mxu0 0.0
        %3114 = vmatmul.mubr.f32.gmra.mrb[0].mxu0 %v2176
        %v3115 = vpop.f32.mrb[0].mxu0
        %v3116 = vadd.f32 %v2901, %v3115
        %v3117 = vpop.f32.mrb[0].mxu0
        %3118 = vmatprep.mubr.f32.mxu0 0.0
        %3119 = vmatmul.mubr.f32.gmra.mrb[0].mxu0 %v2177
        %v3120 = vpop.f32.mrb[0].mxu0
        %v3121 = vadd.f32 %v2906, %v3120
        %v3122 = vpop.f32.mrb[0].mxu0
        %3123 = vmatprep.mubr.f32.mxu0 0.0
        %3124 = vmatmul.mubr.f32.gmra.mrb[0].mxu0 %v2178
        %v3125 = vpop.f32.mrb[0].mxu0
        %v3126 = vadd.f32 %v2911, %v3125
        %v3127 = vpop.f32.mrb[0].mxu0
        %3128 = vmatprep.mubr.f32.mxu0 0.0
        %3129 = vmatmul.mubr.f32.gmra.mrb[0].mxu0 %v2179
        %v3130 = vpop.f32.mrb[0].mxu0
        %v3131 = vadd.f32 %v2916, %v3130
        %v3132 = vpop.f32.mrb[0].mxu0
        %3133 = vmatprep.mubr.f32.mxu0 0.0
        %3134 = vmatmul.mubr.f32.gmra.mrb[0].mxu0 %v2180
        %v3135 = vpop.f32.mrb[0].mxu0
        %v3136 = vadd.f32 %v2921, %v3135
        %v3137 = vpop.f32.mrb[0].mxu0
        %3138 = vmatprep.mubr.f32.mxu0 0.0
        %3139 = vmatmul.mubr.f32.gmra.mrb[0].mxu0 %v2181
        %v3140 = vpop.f32.mrb[0].mxu0
        %v3141 = vadd.f32 %v2926, %v3140
        %v3142 = vpop.f32.mrb[0].mxu0
        %3143 = vmatprep.mubr.f32.mxu0 0.0
        %3144 = vmatmul.mubr.f32.gmra.mrb[0].mxu0 %v2182
        %v3145 = vpop.f32.mrb[0].mxu0
        %v3146 = vadd.f32 %v2931, %v3145
        %v3147 = vpop.f32.mrb[0].mxu0
        %3148 = vmatprep.mubr.f32.mxu0 0.0
        %3149 = vmatmul.mubr.f32.gmra.mrb[0].mxu0 %v2183
        %v3150 = vpop.f32.mrb[0].mxu0
        %v3151 = vadd.f32 %v2936, %v3150
        %v3152 = vpop.f32.mrb[0].mxu0
        %3153 = vmatprep.mubr.f32.mxu0 0.0
        %3154 = vmatmul.mubr.f32.gmra.mrb[0].mxu0 %v2184
        %v3155 = vpop.f32.mrb[0].mxu0
        %v3156 = vadd.f32 %v2941, %v3155
        %v3157 = vpop.f32.mrb[0].mxu0
        %3158 = vmatprep.mubr.f32.mxu0 0.0
        %3159 = vmatmul.mubr.f32.gmra.mrb[0].mxu0 %v2185
        %v3160 = vpop.f32.mrb[0].mxu0
        %v3161 = vadd.f32 %v2946, %v3160
        %v3162 = vpop.f32.mrb[0].mxu0
        %3163 = vmatprep.mubr.f32.mxu0 0.0
        %3164 = vmatmul.mubr.f32.gmra.mrb[0].mxu0 %v2186
        %v3165 = vpop.f32.mrb[0].mxu0
        %v3166 = vadd.f32 %v2951, %v3165
        %v3167 = vpop.f32.mrb[0].mxu0
        %3168 = vmatprep.mubr.f32.mxu0 0.0
        %3169 = vmatmul.mubr.f32.gmra.mrb[0].mxu0 %v2187
        %v3170 = vpop.f32.mrb[0].mxu0
        %v3171 = vadd.f32 %v2956, %v3170
        %v3172 = vpop.f32.mrb[0].mxu0
        %3173 = vmatprep.mubr.f32.mxu0 0.0
        %3174 = vmatmul.mubr.f32.gmra.mrb[0].mxu0 %v2188
        %v3175 = vpop.f32.mrb[0].mxu0
        %v3176 = vadd.f32 %v2961, %v3175
        %v3177 = vpop.f32.mrb[0].mxu0
        %3178 = vmatprep.mubr.f32.mxu0 0.0
        %3179 = vmatmul.mubr.f32.gmra.mrb[0].mxu0 %v2189
        %v3180 = vpop.f32.mrb[0].mxu0
        %v3181 = vadd.f32 %v2966, %v3180
        %v3182 = vpop.f32.mrb[0].mxu0
        %3183 = vmatprep.mubr.f32.mxu0 0.0
        %3184 = vmatmul.mubr.f32.gmra.mrb[0].mxu0 %v2190
        %v3185 = vpop.f32.mrb[0].mxu0
        %v3186 = vadd.f32 %v2971, %v3185
        %v3187 = vpop.f32.mrb[0].mxu0
        %3188 = vmatprep.mubr.f32.mxu0 0.0
        %3189 = vmatmul.mubr.f32.gmra.mrb[0].mxu0 %v2191
        %v3190 = vpop.f32.mrb[0].mxu0
        %v3191 = vadd.f32 %v2976, %v3190
        %v3192 = vpop.f32.mrb[0].mxu0
        %3193 = vmatprep.mubr.f32.mxu0 0.0
        %3194 = vmatmul.mubr.f32.gmra.mrb[0].mxu0 %v2192
        %v3195 = vpop.f32.mrb[0].mxu0
        %v3196 = vadd.f32 %v2981, %v3195
        %v3197 = vpop.f32.mrb[0].mxu0
        %3198 = vmatprep.mubr.f32.mxu0 0.0
        %3199 = vmatmul.mubr.f32.gmra.mrb[0].mxu0 %v2193
        %v3200 = vpop.f32.mrb[0].mxu0
        %v3201 = vadd.f32 %v2986, %v3200
        %v3202 = vpop.f32.mrb[0].mxu0
        %3203 = vmatprep.mubr.f32.mxu0 0.0
        %3204 = vmatmul.mubr.f32.gmra.mrb[0].mxu0 %v2194
        %v3205 = vpop.f32.mrb[0].mxu0
        %v3206 = vadd.f32 %v2991, %v3205
        %v3207 = vpop.f32.mrb[0].mxu0
        %3208 = vmatprep.mubr.f32.mxu0 0.0
        %3209 = vmatmul.mubr.f32.gmra.mrb[0].mxu0 %v2195
        %v3210 = vpop.f32.mrb[0].mxu0
        %v3211 = vadd.f32 %v2996, %v3210
        %v3212 = vpop.f32.mrb[0].mxu0
        %3213 = vmatprep.mubr.f32.mxu0 0.0
        %3214 = vmatmul.mubr.f32.gmra.mrb[0].mxu0 %v2196
        %v3215 = vpop.f32.mrb[0].mxu0
        %v3216 = vadd.f32 %v3001, %v3215
        %v3217 = vpop.f32.mrb[0].mxu0
        %3218 = vmatprep.mubr.f32.mxu0 0.0
        %3219 = vmatmul.mubr.f32.gmra.mrb[0].mxu0 %v2197
        %v3220 = vpop.f32.mrb[0].mxu0
        %v3221 = vadd.f32 %v3006, %v3220
        %v3222 = vpop.f32.mrb[0].mxu0
        %3223 = vmatprep.mubr.f32.mxu0 0.0
        %3224 = vmatmul.mubr.f32.gmra.mrb[0].mxu0 %v2198
        %v3225 = vpop.f32.mrb[0].mxu0
        %v3226 = vadd.f32 %v3011, %v3225
        %v3227 = vpop.f32.mrb[0].mxu0
        %3228 = vmatprep.mubr.f32.mxu0 0.0
        %3229 = vmatmul.mubr.f32.gmra.mrb[0].mxu0 %v2199
        %v3230 = vpop.f32.mrb[0].mxu0
        %v3231 = vadd.f32 %v3016, %v3230
        %v3232 = vpop.f32.mrb[0].mxu0
        %3233 = vmatprep.mubr.f32.mxu0 0.0
        %3234 = vmatmul.mubr.f32.gmra.mrb[0].mxu0 %v2200
        %v3235 = vpop.f32.mrb[0].mxu0
        %v3236 = vadd.f32 %v3021, %v3235
        %v3237 = vpop.f32.mrb[0].mxu0
        %3238 = vmatprep.mubr.f32.mxu0 0.0
        %3239 = vmatmul.mubr.f32.gmra.mrb[0].mxu0 %v2201
        %v3240 = vpop.f32.mrb[0].mxu0
        %v3241 = vadd.f32 %v3026, %v3240
        %v3242 = vpop.f32.mrb[0].mxu0
        %3243 = vmatprep.mubr.f32.mxu0 0.0
        %3244 = vmatmul.mubr.f32.gmra.mrb[0].mxu0 %v2202
        %v3245 = vpop.f32.mrb[0].mxu0
        %v3246 = vadd.f32 %v3031, %v3245
        %v3247 = vpop.f32.mrb[0].mxu0
        %3248 = vmatprep.mubr.f32.mxu0 0.0
        %3249 = vmatmul.mubr.f32.gmra.mrb[0].mxu0 %v2203
        %v3250 = vpop.f32.mrb[0].mxu0
        %v3251 = vadd.f32 %v3036, %v3250
        %v3252 = vpop.f32.mrb[0].mxu0
        %3253 = vmatprep.mubr.f32.mxu0 0.0
        %3254 = vmatmul.mubr.f32.gmra.mrb[0].mxu0 %v2204
        %v3255 = vpop.f32.mrb[0].mxu0
        %v3256 = vadd.f32 %v3041, %v3255
        %v3257 = vpop.f32.mrb[0].mxu0
        %3258 = vdwg.mxu0
        %s3259 = sadd.s32 %s2107, 3
        %s3260 = smul.u32 %s3259, 24
        %s3261 = sadd.s32 %s3260, 4294967295
        %s3262 = scalar_lea.vmem [#allocation2], %s3261
        %v3263 = vld [vmem:[%s3262] sm:$0xff]
        %v3264 = vld [vmem:[%s3262 + $0x8] sm:$0xff]
        %v3265 = vld [vmem:[%s3262 + $0x10] sm:$0xff]
        %v3266 = vld [vmem:[%s3262 + $0x18] sm:$0xff]
        %v3267 = vld [vmem:[%s3262 + $0x20] sm:$0xff]
        %v3268 = vld [vmem:[%s3262 + $0x28] sm:$0xff]
        %v3269 = vld [vmem:[%s3262 + $0x30] sm:$0xff]
        %v3270 = vld [vmem:[%s3262 + $0x38] sm:$0xff]
        %v3271 = vld [vmem:[%s3262 + $0x40] sm:$0xff]
        %v3272 = vld [vmem:[%s3262 + $0x48] sm:$0xff]
        %v3273 = vld [vmem:[%s3262 + $0x50] sm:$0xff]
        %v3274 = vld [vmem:[%s3262 + $0x58] sm:$0xff]
        %v3275 = vld [vmem:[%s3262 + $0x60] sm:$0xff]
        %v3276 = vld [vmem:[%s3262 + $0x68] sm:$0xff]
        %v3277 = vld [vmem:[%s3262 + $0x70] sm:$0xff]
        %v3278 = vld [vmem:[%s3262 + $0x78] sm:$0xff]
        %v3279 = vld [vmem:[%s3262 + $0x80] sm:$0xff]
        %v3280 = vld [vmem:[%s3262 + $0x88] sm:$0xff]
        %v3281 = vld [vmem:[%s3262 + $0x90] sm:$0xff]
        %v3282 = vld [vmem:[%s3262 + $0x98] sm:$0xff]
        %v3283 = vld [vmem:[%s3262 + $0xa0] sm:$0xff]
        %v3284 = vld [vmem:[%s3262 + $0xa8] sm:$0xff]
        %v3285 = vld [vmem:[%s3262 + $0xb0] sm:$0xff]
        %v3286 = vld [vmem:[%s3262 + $0xb8] sm:$0xff]
        %v3287 = vld [vmem:[%s3262 + $0xc0] sm:$0xff]
        %v3288 = vld [vmem:[%s3262 + $0xc8] sm:$0xff]
        %v3289 = vld [vmem:[%s3262 + $0xd0] sm:$0xff]
        %v3290 = vld [vmem:[%s3262 + $0xd8] sm:$0xff]
        %v3291 = vld [vmem:[%s3262 + $0xe0] sm:$0xff]
        %v3292 = vld [vmem:[%s3262 + $0xe8] sm:$0xff]
        %s3293 = scalar_lea.vmem [#allocation2], %s3260
        %v3294 = vld [vmem:[%s3293] sm:$0xff]
        %v3295 = vld [vmem:[%s3293 + $0x8] sm:$0xff]
        %v3296 = vld [vmem:[%s3293 + $0x10] sm:$0xff]
        %v3297 = vld [vmem:[%s3293 + $0x18] sm:$0xff]
        %v3298 = vld [vmem:[%s3293 + $0x20] sm:$0xff]
        %v3299 = vld [vmem:[%s3293 + $0x28] sm:$0xff]
        %v3300 = vld [vmem:[%s3293 + $0x30] sm:$0xff]
        %v3301 = vld [vmem:[%s3293 + $0x38] sm:$0xff]
        %v3302 = vld [vmem:[%s3293 + $0x40] sm:$0xff]
        %v3303 = vld [vmem:[%s3293 + $0x48] sm:$0xff]
        %v3304 = vld [vmem:[%s3293 + $0x50] sm:$0xff]
        %v3305 = vld [vmem:[%s3293 + $0x58] sm:$0xff]
        %v3306 = vld [vmem:[%s3293 + $0x60] sm:$0xff]
        %v3307 = vld [vmem:[%s3293 + $0x68] sm:$0xff]
        %v3308 = vld [vmem:[%s3293 + $0x70] sm:$0xff]
        %v3309 = vld [vmem:[%s3293 + $0x78] sm:$0xff]
        %v3310 = vld [vmem:[%s3293 + $0x80] sm:$0xff]
        %v3311 = vld [vmem:[%s3293 + $0x88] sm:$0xff]
        %v3312 = vld [vmem:[%s3293 + $0x90] sm:$0xff]
        %v3313 = vld [vmem:[%s3293 + $0x98] sm:$0xff]
        %v3314 = vld [vmem:[%s3293 + $0xa0] sm:$0xff]
        %v3315 = vld [vmem:[%s3293 + $0xa8] sm:$0xff]
        %v3316 = vld [vmem:[%s3293 + $0xb0] sm:$0xff]
        %v3317 = vld [vmem:[%s3293 + $0xb8] sm:$0xff]
        %v3318 = vld [vmem:[%s3293 + $0xc0] sm:$0xff]
        %v3319 = vld [vmem:[%s3293 + $0xc8] sm:$0xff]
        %v3320 = vld [vmem:[%s3293 + $0xd0] sm:$0xff]
        %v3321 = vld [vmem:[%s3293 + $0xd8] sm:$0xff]
        %v3322 = vld [vmem:[%s3293 + $0xe0] sm:$0xff]
        %v3323 = vld [vmem:[%s3293 + $0xe8] sm:$0xff]
        %s3324 = sadd.s32 %s3260, 1
        %s3325 = scalar_lea.vmem [#allocation2], %s3324
        %v3326 = vld [vmem:[%s3325] sm:$0xff]
        %v3327 = vld [vmem:[%s3325 + $0x8] sm:$0xff]
        %v3328 = vld [vmem:[%s3325 + $0x10] sm:$0xff]
        %v3329 = vld [vmem:[%s3325 + $0x18] sm:$0xff]
        %v3330 = vld [vmem:[%s3325 + $0x20] sm:$0xff]
        %v3331 = vld [vmem:[%s3325 + $0x28] sm:$0xff]
        %v3332 = vld [vmem:[%s3325 + $0x30] sm:$0xff]
        %v3333 = vld [vmem:[%s3325 + $0x38] sm:$0xff]
        %v3334 = vld [vmem:[%s3325 + $0x40] sm:$0xff]
        %v3335 = vld [vmem:[%s3325 + $0x48] sm:$0xff]
        %v3336 = vld [vmem:[%s3325 + $0x50] sm:$0xff]
        %v3337 = vld [vmem:[%s3325 + $0x58] sm:$0xff]
        %v3338 = vld [vmem:[%s3325 + $0x60] sm:$0xff]
        %v3339 = vld [vmem:[%s3325 + $0x68] sm:$0xff]
        %v3340 = vld [vmem:[%s3325 + $0x70] sm:$0xff]
        %v3341 = vld [vmem:[%s3325 + $0x78] sm:$0xff]
        %v3342 = vld [vmem:[%s3325 + $0x80] sm:$0xff]
        %v3343 = vld [vmem:[%s3325 + $0x88] sm:$0xff]
        %v3344 = vld [vmem:[%s3325 + $0x90] sm:$0xff]
        %v3345 = vld [vmem:[%s3325 + $0x98] sm:$0xff]
        %v3346 = vld [vmem:[%s3325 + $0xa0] sm:$0xff]
        %v3347 = vld [vmem:[%s3325 + $0xa8] sm:$0xff]
        %v3348 = vld [vmem:[%s3325 + $0xb0] sm:$0xff]
        %v3349 = vld [vmem:[%s3325 + $0xb8] sm:$0xff]
        %v3350 = vld [vmem:[%s3325 + $0xc0] sm:$0xff]
        %v3351 = vld [vmem:[%s3325 + $0xc8] sm:$0xff]
        %v3352 = vld [vmem:[%s3325 + $0xd0] sm:$0xff]
        %v3353 = vld [vmem:[%s3325 + $0xd8] sm:$0xff]
        %v3354 = vld [vmem:[%s3325 + $0xe0] sm:$0xff]
        %v3355 = vld [vmem:[%s3325 + $0xe8] sm:$0xff]
        %s3356 = scalar_lea.vmem %s3, 768
        %v3357 = vld [vmem:[%s3356] sm:$0xff]
        %v3358 = vld [vmem:[%s3356 + $0x8] sm:$0xff]
        %v3359 = vld [vmem:[%s3356 + $0x10] sm:$0xff]
        %v3360 = vld [vmem:[%s3356 + $0x18] sm:$0xff]
        %v3361 = vld [vmem:[%s3356 + $0x20] sm:$0xff]
        %v3362 = vld [vmem:[%s3356 + $0x28] sm:$0xff]
        %v3363 = vld [vmem:[%s3356 + $0x30] sm:$0xff]
        %v3364 = vld [vmem:[%s3356 + $0x38] sm:$0xff]
        %v3365 = vld [vmem:[%s3356 + $0x40] sm:$0xff]
        %v3366 = vld [vmem:[%s3356 + $0x48] sm:$0xff]
        %v3367 = vld [vmem:[%s3356 + $0x50] sm:$0xff]
        %v3368 = vld [vmem:[%s3356 + $0x58] sm:$0xff]
        %v3369 = vld [vmem:[%s3356 + $0x60] sm:$0xff]
        %v3370 = vld [vmem:[%s3356 + $0x68] sm:$0xff]
        %v3371 = vld [vmem:[%s3356 + $0x70] sm:$0xff]
        %v3372 = vld [vmem:[%s3356 + $0x78] sm:$0xff]
        %v3373 = vld [vmem:[%s3356 + $0x80] sm:$0xff]
        %v3374 = vld [vmem:[%s3356 + $0x88] sm:$0xff]
        %v3375 = vld [vmem:[%s3356 + $0x90] sm:$0xff]
        %v3376 = vld [vmem:[%s3356 + $0x98] sm:$0xff]
        %v3377 = vld [vmem:[%s3356 + $0xa0] sm:$0xff]
        %v3378 = vld [vmem:[%s3356 + $0xa8] sm:$0xff]
        %v3379 = vld [vmem:[%s3356 + $0xb0] sm:$0xff]
        %v3380 = vld [vmem:[%s3356 + $0xb8] sm:$0xff]
        %v3381 = vld [vmem:[%s3356 + $0xc0] sm:$0xff]
        %v3382 = vld [vmem:[%s3356 + $0xc8] sm:$0xff]
        %v3383 = vld [vmem:[%s3356 + $0xd0] sm:$0xff]
        %v3384 = vld [vmem:[%s3356 + $0xd8] sm:$0xff]
        %v3385 = vld [vmem:[%s3356 + $0xe0] sm:$0xff]
        %v3386 = vld [vmem:[%s3356 + $0xe8] sm:$0xff]
        %v3387 = vld [vmem:[%s3356 + $0xf0] sm:$0xff]
        %v3388 = vld [vmem:[%s3356 + $0xf8] sm:$0xff]
        %v3389 = vld [vmem:[%s3356 + $0x100] sm:$0xff]
        %v3390 = vld [vmem:[%s3356 + $0x108] sm:$0xff]
        %v3391 = vld [vmem:[%s3356 + $0x110] sm:$0xff]
        %v3392 = vld [vmem:[%s3356 + $0x118] sm:$0xff]
        %v3393 = vld [vmem:[%s3356 + $0x120] sm:$0xff]
        %v3394 = vld [vmem:[%s3356 + $0x128] sm:$0xff]
        %v3395 = vld [vmem:[%s3356 + $0x130] sm:$0xff]
        %v3396 = vld [vmem:[%s3356 + $0x138] sm:$0xff]
        %v3397 = vld [vmem:[%s3356 + $0x140] sm:$0xff]
        %v3398 = vld [vmem:[%s3356 + $0x148] sm:$0xff]
        %v3399 = vld [vmem:[%s3356 + $0x150] sm:$0xff]
        %v3400 = vld [vmem:[%s3356 + $0x158] sm:$0xff]
        %v3401 = vld [vmem:[%s3356 + $0x160] sm:$0xff]
        %v3402 = vld [vmem:[%s3356 + $0x168] sm:$0xff]
        %v3403 = vld [vmem:[%s3356 + $0x170] sm:$0xff]
        %v3404 = vld [vmem:[%s3356 + $0x178] sm:$0xff]
        %3405 = vmatprep.subr.mxu0 0.0
        %3406 = vmatpush1.msra.mxu0 %v3357
        %3407 = vmatprep.subr.mxu0 0.0
        %3408 = vmatpush1.msra.mxu0 %v3358
        %3409 = vmatprep.subr.mxu0 0.0
        %3410 = vmatpush1.msra.mxu0 %v3359
        %3411 = vmatprep.subr.mxu0 0.0
        %3412 = vmatpush1.msra.mxu0 %v3360
        %3413 = vmatprep.subr.mxu0 0.0
        %3414 = vmatpush1.msra.mxu0 %v3361
        %3415 = vmatprep.subr.mxu0 0.0
        %3416 = vmatpush1.msra.mxu0 %v3362
        %3417 = vmatprep.subr.mxu0 0.0
        %3418 = vmatpush1.msra.mxu0 %v3363
        %3419 = vmatprep.subr.mxu0 0.0
        %3420 = vmatpush1.msra.mxu0 %v3364
        %3421 = vmatprep.subr.mxu0 0.0
        %3422 = vmatpush1.msra.mxu0 %v3365
        %3423 = vmatprep.subr.mxu0 0.0
        %3424 = vmatpush1.msra.mxu0 %v3366
        %3425 = vmatprep.subr.mxu0 0.0
        %3426 = vmatpush1.msra.mxu0 %v3367
        %3427 = vmatprep.subr.mxu0 0.0
        %3428 = vmatpush1.msra.mxu0 %v3368
        %3429 = vmatprep.subr.mxu0 0.0
        %3430 = vmatpush1.msra.mxu0 %v3369
        %3431 = vmatprep.subr.mxu0 0.0
        %3432 = vmatpush1.msra.mxu0 %v3370
        %3433 = vmatprep.subr.mxu0 0.0
        %3434 = vmatpush1.msra.mxu0 %v3371
        %3435 = vmatprep.subr.mxu0 0.0
        %3436 = vmatpush1.msra.mxu0 %v3372
        %3437 = vmatprep.subr.mxu0 0.0
        %3438 = vmatpush1.msra.mxu0 %v3373
        %3439 = vmatprep.subr.mxu0 0.0
        %3440 = vmatpush1.msra.mxu0 %v3374
        %3441 = vmatprep.subr.mxu0 0.0
        %3442 = vmatpush1.msra.mxu0 %v3375
        %3443 = vmatprep.subr.mxu0 0.0
        %3444 = vmatpush1.msra.mxu0 %v3376
        %3445 = vmatprep.subr.mxu0 0.0
        %3446 = vmatpush1.msra.mxu0 %v3377
        %3447 = vmatprep.subr.mxu0 0.0
        %3448 = vmatpush1.msra.mxu0 %v3378
        %3449 = vmatprep.subr.mxu0 0.0
        %3450 = vmatpush1.msra.mxu0 %v3379
        %3451 = vmatprep.subr.mxu0 0.0
        %3452 = vmatpush1.msra.mxu0 %v3380
        %3453 = vmatprep.subr.mxu0 0.0
        %3454 = vmatpush1.msra.mxu0 %v3381
        %3455 = vmatprep.subr.mxu0 0.0
        %3456 = vmatpush1.msra.mxu0 %v3382
        %3457 = vmatprep.subr.mxu0 0.0
        %3458 = vmatpush1.msra.mxu0 %v3383
        %3459 = vmatprep.subr.mxu0 0.0
        %3460 = vmatpush1.msra.mxu0 %v3384
        %3461 = vmatprep.subr.mxu0 0.0
        %3462 = vmatpush1.msra.mxu0 %v3385
        %3463 = vmatprep.subr.mxu0 0.0
        %3464 = vmatpush1.msra.mxu0 %v3386
        %3465 = vmatprep.subr.mxu0 0.0
        %3466 = vmatpush1.msra.mxu0 %v3387
        %3467 = vmatprep.subr.mxu0 0.0
        %3468 = vmatpush1.msra.mxu0 %v3388
        %3469 = vmatprep.mubr.f32.mxu0 %v3294
        %3470 = vmatmul.mubr.f32.gmra.mrb[0].mxu0 %v3263
        %v3471 = vpop.f32.mrb[0].mxu0
        %v3472 = vadd.f32 0.0, %v3471
        %v3473 = vpop.f32.mrb[0].mxu0
        %3474 = vmatprep.mubr.f32.mxu0 %v3295
        %3475 = vmatmul.mubr.f32.gmra.mrb[0].mxu0 %v3264
        %v3476 = vpop.f32.mrb[0].mxu0
        %v3477 = vadd.f32 0.0, %v3476
        %v3478 = vpop.f32.mrb[0].mxu0
        %3479 = vmatprep.mubr.f32.mxu0 %v3296
        %3480 = vmatmul.mubr.f32.gmra.mrb[0].mxu0 %v3265
        %v3481 = vpop.f32.mrb[0].mxu0
        %v3482 = vadd.f32 0.0, %v3481
        %v3483 = vpop.f32.mrb[0].mxu0
        %3484 = vmatprep.mubr.f32.mxu0 %v3297
        %3485 = vmatmul.mubr.f32.gmra.mrb[0].mxu0 %v3266
        %v3486 = vpop.f32.mrb[0].mxu0
        %v3487 = vadd.f32 0.0, %v3486
        %v3488 = vpop.f32.mrb[0].mxu0
        %3489 = vmatprep.mubr.f32.mxu0 %v3298
        %3490 = vmatmul.mubr.f32.gmra.mrb[0].mxu0 %v3267
        %v3491 = vpop.f32.mrb[0].mxu0
        %v3492 = vadd.f32 0.0, %v3491
        %v3493 = vpop.f32.mrb[0].mxu0
        %3494 = vmatprep.mubr.f32.mxu0 %v3299
        %3495 = vmatmul.mubr.f32.gmra.mrb[0].mxu0 %v3268
        %v3496 = vpop.f32.mrb[0].mxu0
        %v3497 = vadd.f32 0.0, %v3496
        %v3498 = vpop.f32.mrb[0].mxu0
        %3499 = vmatprep.mubr.f32.mxu0 %v3300
        %3500 = vmatmul.mubr.f32.gmra.mrb[0].mxu0 %v3269
        %v3501 = vpop.f32.mrb[0].mxu0
        %v3502 = vadd.f32 0.0, %v3501
        %v3503 = vpop.f32.mrb[0].mxu0
        %3504 = vmatprep.mubr.f32.mxu0 %v3301
        %3505 = vmatmul.mubr.f32.gmra.mrb[0].mxu0 %v3270
        %v3506 = vpop.f32.mrb[0].mxu0
        %v3507 = vadd.f32 0.0, %v3506
        %v3508 = vpop.f32.mrb[0].mxu0
        %3509 = vmatprep.mubr.f32.mxu0 %v3302
        %3510 = vmatmul.mubr.f32.gmra.mrb[0].mxu0 %v3271
        %v3511 = vpop.f32.mrb[0].mxu0
        %v3512 = vadd.f32 0.0, %v3511
        %v3513 = vpop.f32.mrb[0].mxu0
        %3514 = vmatprep.mubr.f32.mxu0 %v3303
        %3515 = vmatmul.mubr.f32.gmra.mrb[0].mxu0 %v3272
        %v3516 = vpop.f32.mrb[0].mxu0
        %v3517 = vadd.f32 0.0, %v3516
        %v3518 = vpop.f32.mrb[0].mxu0
        %3519 = vmatprep.mubr.f32.mxu0 %v3304
        %3520 = vmatmul.mubr.f32.gmra.mrb[0].mxu0 %v3273
        %v3521 = vpop.f32.mrb[0].mxu0
        %v3522 = vadd.f32 0.0, %v3521
        %v3523 = vpop.f32.mrb[0].mxu0
        %3524 = vmatprep.mubr.f32.mxu0 %v3305
        %3525 = vmatmul.mubr.f32.gmra.mrb[0].mxu0 %v3274
        %v3526 = vpop.f32.mrb[0].mxu0
        %v3527 = vadd.f32 0.0, %v3526
        %v3528 = vpop.f32.mrb[0].mxu0
        %3529 = vmatprep.mubr.f32.mxu0 %v3306
        %3530 = vmatmul.mubr.f32.gmra.mrb[0].mxu0 %v3275
        %v3531 = vpop.f32.mrb[0].mxu0
        %v3532 = vadd.f32 0.0, %v3531
        %v3533 = vpop.f32.mrb[0].mxu0
        %3534 = vmatprep.mubr.f32.mxu0 %v3307
        %3535 = vmatmul.mubr.f32.gmra.mrb[0].mxu0 %v3276
        %v3536 = vpop.f32.mrb[0].mxu0
        %v3537 = vadd.f32 0.0, %v3536
        %v3538 = vpop.f32.mrb[0].mxu0
        %3539 = vmatprep.mubr.f32.mxu0 %v3308
        %3540 = vmatmul.mubr.f32.gmra.mrb[0].mxu0 %v3277
        %v3541 = vpop.f32.mrb[0].mxu0
        %v3542 = vadd.f32 0.0, %v3541
        %v3543 = vpop.f32.mrb[0].mxu0
        %3544 = vmatprep.mubr.f32.mxu0 %v3309
        %3545 = vmatmul.mubr.f32.gmra.mrb[0].mxu0 %v3278
        %v3546 = vpop.f32.mrb[0].mxu0
        %v3547 = vadd.f32 0.0, %v3546
        %v3548 = vpop.f32.mrb[0].mxu0
        %3549 = vmatprep.mubr.f32.mxu0 %v3310
        %3550 = vmatmul.mubr.f32.gmra.mrb[0].mxu0 %v3279
        %v3551 = vpop.f32.mrb[0].mxu0
        %v3552 = vadd.f32 0.0, %v3551
        %v3553 = vpop.f32.mrb[0].mxu0
        %3554 = vmatprep.mubr.f32.mxu0 %v3311
        %3555 = vmatmul.mubr.f32.gmra.mrb[0].mxu0 %v3280
        %v3556 = vpop.f32.mrb[0].mxu0
        %v3557 = vadd.f32 0.0, %v3556
        %v3558 = vpop.f32.mrb[0].mxu0
        %3559 = vmatprep.mubr.f32.mxu0 %v3312
        %3560 = vmatmul.mubr.f32.gmra.mrb[0].mxu0 %v3281
        %v3561 = vpop.f32.mrb[0].mxu0
        %v3562 = vadd.f32 0.0, %v3561
        %v3563 = vpop.f32.mrb[0].mxu0
        %3564 = vmatprep.mubr.f32.mxu0 %v3313
        %3565 = vmatmul.mubr.f32.gmra.mrb[0].mxu0 %v3282
        %v3566 = vpop.f32.mrb[0].mxu0
        %v3567 = vadd.f32 0.0, %v3566
        %v3568 = vpop.f32.mrb[0].mxu0
        %3569 = vmatprep.mubr.f32.mxu0 %v3314
        %3570 = vmatmul.mubr.f32.gmra.mrb[0].mxu0 %v3283
        %v3571 = vpop.f32.mrb[0].mxu0
        %v3572 = vadd.f32 0.0, %v3571
        %v3573 = vpop.f32.mrb[0].mxu0
        %3574 = vmatprep.mubr.f32.mxu0 %v3315
        %3575 = vmatmul.mubr.f32.gmra.mrb[0].mxu0 %v3284
        %v3576 = vpop.f32.mrb[0].mxu0
        %v3577 = vadd.f32 0.0, %v3576
        %v3578 = vpop.f32.mrb[0].mxu0
        %3579 = vmatprep.mubr.f32.mxu0 %v3316
        %3580 = vmatmul.mubr.f32.gmra.mrb[0].mxu0 %v3285
        %v3581 = vpop.f32.mrb[0].mxu0
        %v3582 = vadd.f32 0.0, %v3581
        %v3583 = vpop.f32.mrb[0].mxu0
        %3584 = vmatprep.mubr.f32.mxu0 %v3317
        %3585 = vmatmul.mubr.f32.gmra.mrb[0].mxu0 %v3286
        %v3586 = vpop.f32.mrb[0].mxu0
        %v3587 = vadd.f32 0.0, %v3586
        %v3588 = vpop.f32.mrb[0].mxu0
        %3589 = vmatprep.mubr.f32.mxu0 %v3318
        %3590 = vmatmul.mubr.f32.gmra.mrb[0].mxu0 %v3287
        %v3591 = vpop.f32.mrb[0].mxu0
        %v3592 = vadd.f32 0.0, %v3591
        %v3593 = vpop.f32.mrb[0].mxu0
        %3594 = vmatprep.mubr.f32.mxu0 %v3319
        %3595 = vmatmul.mubr.f32.gmra.mrb[0].mxu0 %v3288
        %v3596 = vpop.f32.mrb[0].mxu0
        %v3597 = vadd.f32 0.0, %v3596
        %v3598 = vpop.f32.mrb[0].mxu0
        %3599 = vmatprep.mubr.f32.mxu0 %v3320
        %3600 = vmatmul.mubr.f32.gmra.mrb[0].mxu0 %v3289
        %v3601 = vpop.f32.mrb[0].mxu0
        %v3602 = vadd.f32 0.0, %v3601
        %v3603 = vpop.f32.mrb[0].mxu0
        %3604 = vmatprep.mubr.f32.mxu0 %v3321
        %3605 = vmatmul.mubr.f32.gmra.mrb[0].mxu0 %v3290
        %v3606 = vpop.f32.mrb[0].mxu0
        %v3607 = vadd.f32 0.0, %v3606
        %v3608 = vpop.f32.mrb[0].mxu0
        %3609 = vmatprep.mubr.f32.mxu0 %v3322
        %3610 = vmatmul.mubr.f32.gmra.mrb[0].mxu0 %v3291
        %v3611 = vpop.f32.mrb[0].mxu0
        %v3612 = vadd.f32 0.0, %v3611
        %v3613 = vpop.f32.mrb[0].mxu0
        %3614 = vmatprep.mubr.f32.mxu0 %v3323
        %3615 = vmatmul.mubr.f32.gmra.mrb[0].mxu0 %v3292
        %v3616 = vpop.f32.mrb[0].mxu0
        %v3617 = vadd.f32 0.0, %v3616
        %v3618 = vpop.f32.mrb[0].mxu0
        %3619 = vdwg.mxu0
        %3620 = vmatprep.subr.mxu0 0.0
        %3621 = vmatpush1.msra.mxu0 %v3389
        %3622 = vmatprep.subr.mxu0 0.0
        %3623 = vmatpush1.msra.mxu0 %v3390
        %3624 = vmatprep.subr.mxu0 0.0
        %3625 = vmatpush1.msra.mxu0 %v3391
        %3626 = vmatprep.subr.mxu0 0.0
        %3627 = vmatpush1.msra.mxu0 %v3392
        %3628 = vmatprep.subr.mxu0 0.0
        %3629 = vmatpush1.msra.mxu0 %v3393
        %3630 = vmatprep.subr.mxu0 0.0
        %3631 = vmatpush1.msra.mxu0 %v3394
        %3632 = vmatprep.subr.mxu0 0.0
        %3633 = vmatpush1.msra.mxu0 %v3395
        %3634 = vmatprep.subr.mxu0 0.0
        %3635 = vmatpush1.msra.mxu0 %v3396
        %3636 = vmatprep.subr.mxu0 0.0
        %3637 = vmatpush1.msra.mxu0 %v3397
        %3638 = vmatprep.subr.mxu0 0.0
        %3639 = vmatpush1.msra.mxu0 %v3398
        %3640 = vmatprep.subr.mxu0 0.0
        %3641 = vmatpush1.msra.mxu0 %v3399
        %3642 = vmatprep.subr.mxu0 0.0
        %3643 = vmatpush1.msra.mxu0 %v3400
        %3644 = vmatprep.subr.mxu0 0.0
        %3645 = vmatpush1.msra.mxu0 %v3401
        %3646 = vmatprep.subr.mxu0 0.0
        %3647 = vmatpush1.msra.mxu0 %v3402
        %3648 = vmatprep.subr.mxu0 0.0
        %3649 = vmatpush1.msra.mxu0 %v3403
        %3650 = vmatprep.subr.mxu0 0.0
        %3651 = vmatpush1.msra.mxu0 %v3404
        %3652 = vmatprep.subr.mxu0 0.0
        %3653 = vmatpush1.msra.mxu0 0.0
        %3654 = vmatprep.subr.mxu0 0.0
        %3655 = vmatpush1.msra.mxu0 0.0
        %3656 = vmatprep.subr.mxu0 0.0
        %3657 = vmatpush1.msra.mxu0 0.0
        %3658 = vmatprep.subr.mxu0 0.0
        %3659 = vmatpush1.msra.mxu0 0.0
        %3660 = vmatprep.subr.mxu0 0.0
        %3661 = vmatpush1.msra.mxu0 0.0
        %3662 = vmatprep.subr.mxu0 0.0
        %3663 = vmatpush1.msra.mxu0 0.0
        %3664 = vmatprep.subr.mxu0 0.0
        %3665 = vmatpush1.msra.mxu0 0.0
        %3666 = vmatprep.subr.mxu0 0.0
        %3667 = vmatpush1.msra.mxu0 0.0
        %3668 = vmatprep.subr.mxu0 0.0
        %3669 = vmatpush1.msra.mxu0 0.0
        %3670 = vmatprep.subr.mxu0 0.0
        %3671 = vmatpush1.msra.mxu0 0.0
        %3672 = vmatprep.subr.mxu0 0.0
        %3673 = vmatpush1.msra.mxu0 0.0
        %3674 = vmatprep.subr.mxu0 0.0
        %3675 = vmatpush1.msra.mxu0 0.0
        %3676 = vmatprep.subr.mxu0 0.0
        %3677 = vmatpush1.msra.mxu0 0.0
        %3678 = vmatprep.subr.mxu0 0.0
        %3679 = vmatpush1.msra.mxu0 0.0
        %3680 = vmatprep.subr.mxu0 0.0
        %3681 = vmatpush1.msra.mxu0 0.0
        %3682 = vmatprep.subr.mxu0 0.0
        %3683 = vmatpush1.msra.mxu0 0.0
        %3684 = vmatprep.mubr.f32.mxu0 0.0
        %3685 = vmatmul.mubr.f32.gmra.mrb[0].mxu0 %v3326
        %v3686 = vpop.f32.mrb[0].mxu0
        %v3687 = vadd.f32 %v3472, %v3686
        %v3688 = vpop.f32.mrb[0].mxu0
        %3689 = vmatprep.mubr.f32.mxu0 0.0
        %3690 = vmatmul.mubr.f32.gmra.mrb[0].mxu0 %v3327
        %v3691 = vpop.f32.mrb[0].mxu0
        %v3692 = vadd.f32 %v3477, %v3691
        %v3693 = vpop.f32.mrb[0].mxu0
        %3694 = vmatprep.mubr.f32.mxu0 0.0
        %3695 = vmatmul.mubr.f32.gmra.mrb[0].mxu0 %v3328
        %v3696 = vpop.f32.mrb[0].mxu0
        %v3697 = vadd.f32 %v3482, %v3696
        %v3698 = vpop.f32.mrb[0].mxu0
        %3699 = vmatprep.mubr.f32.mxu0 0.0
        %3700 = vmatmul.mubr.f32.gmra.mrb[0].mxu0 %v3329
        %v3701 = vpop.f32.mrb[0].mxu0
        %v3702 = vadd.f32 %v3487, %v3701
        %v3703 = vpop.f32.mrb[0].mxu0
        %3704 = vmatprep.mubr.f32.mxu0 0.0
        %3705 = vmatmul.mubr.f32.gmra.mrb[0].mxu0 %v3330
        %v3706 = vpop.f32.mrb[0].mxu0
        %v3707 = vadd.f32 %v3492, %v3706
        %v3708 = vpop.f32.mrb[0].mxu0
        %3709 = vmatprep.mubr.f32.mxu0 0.0
        %3710 = vmatmul.mubr.f32.gmra.mrb[0].mxu0 %v3331
        %v3711 = vpop.f32.mrb[0].mxu0
        %v3712 = vadd.f32 %v3497, %v3711
        %v3713 = vpop.f32.mrb[0].mxu0
        %3714 = vmatprep.mubr.f32.mxu0 0.0
        %3715 = vmatmul.mubr.f32.gmra.mrb[0].mxu0 %v3332
        %v3716 = vpop.f32.mrb[0].mxu0
        %v3717 = vadd.f32 %v3502, %v3716
        %v3718 = vpop.f32.mrb[0].mxu0
        %3719 = vmatprep.mubr.f32.mxu0 0.0
        %3720 = vmatmul.mubr.f32.gmra.mrb[0].mxu0 %v3333
        %v3721 = vpop.f32.mrb[0].mxu0
        %v3722 = vadd.f32 %v3507, %v3721
        %v3723 = vpop.f32.mrb[0].mxu0
        %3724 = vmatprep.mubr.f32.mxu0 0.0
        %3725 = vmatmul.mubr.f32.gmra.mrb[0].mxu0 %v3334
        %v3726 = vpop.f32.mrb[0].mxu0
        %v3727 = vadd.f32 %v3512, %v3726
        %v3728 = vpop.f32.mrb[0].mxu0
        %3729 = vmatprep.mubr.f32.mxu0 0.0
        %3730 = vmatmul.mubr.f32.gmra.mrb[0].mxu0 %v3335
        %v3731 = vpop.f32.mrb[0].mxu0
        %v3732 = vadd.f32 %v3517, %v3731
        %v3733 = vpop.f32.mrb[0].mxu0
        %3734 = vmatprep.mubr.f32.mxu0 0.0
        %3735 = vmatmul.mubr.f32.gmra.mrb[0].mxu0 %v3336
        %v3736 = vpop.f32.mrb[0].mxu0
        %v3737 = vadd.f32 %v3522, %v3736
        %v3738 = vpop.f32.mrb[0].mxu0
        %3739 = vmatprep.mubr.f32.mxu0 0.0
        %3740 = vmatmul.mubr.f32.gmra.mrb[0].mxu0 %v3337
        %v3741 = vpop.f32.mrb[0].mxu0
        %v3742 = vadd.f32 %v3527, %v3741
        %v3743 = vpop.f32.mrb[0].mxu0
        %3744 = vmatprep.mubr.f32.mxu0 0.0
        %3745 = vmatmul.mubr.f32.gmra.mrb[0].mxu0 %v3338
        %v3746 = vpop.f32.mrb[0].mxu0
        %v3747 = vadd.f32 %v3532, %v3746
        %v3748 = vpop.f32.mrb[0].mxu0
        %3749 = vmatprep.mubr.f32.mxu0 0.0
        %3750 = vmatmul.mubr.f32.gmra.mrb[0].mxu0 %v3339
        %v3751 = vpop.f32.mrb[0].mxu0
        %v3752 = vadd.f32 %v3537, %v3751
        %v3753 = vpop.f32.mrb[0].mxu0
        %3754 = vmatprep.mubr.f32.mxu0 0.0
        %3755 = vmatmul.mubr.f32.gmra.mrb[0].mxu0 %v3340
        %v3756 = vpop.f32.mrb[0].mxu0
        %v3757 = vadd.f32 %v3542, %v3756
        %v3758 = vpop.f32.mrb[0].mxu0
        %3759 = vmatprep.mubr.f32.mxu0 0.0
        %3760 = vmatmul.mubr.f32.gmra.mrb[0].mxu0 %v3341
        %v3761 = vpop.f32.mrb[0].mxu0
        %v3762 = vadd.f32 %v3547, %v3761
        %v3763 = vpop.f32.mrb[0].mxu0
        %3764 = vmatprep.mubr.f32.mxu0 0.0
        %3765 = vmatmul.mubr.f32.gmra.mrb[0].mxu0 %v3342
        %v3766 = vpop.f32.mrb[0].mxu0
        %v3767 = vadd.f32 %v3552, %v3766
        %v3768 = vpop.f32.mrb[0].mxu0
        %3769 = vmatprep.mubr.f32.mxu0 0.0
        %3770 = vmatmul.mubr.f32.gmra.mrb[0].mxu0 %v3343
        %v3771 = vpop.f32.mrb[0].mxu0
        %v3772 = vadd.f32 %v3557, %v3771
        %v3773 = vpop.f32.mrb[0].mxu0
        %3774 = vmatprep.mubr.f32.mxu0 0.0
        %3775 = vmatmul.mubr.f32.gmra.mrb[0].mxu0 %v3344
        %v3776 = vpop.f32.mrb[0].mxu0
        %v3777 = vadd.f32 %v3562, %v3776
        %v3778 = vpop.f32.mrb[0].mxu0
        %3779 = vmatprep.mubr.f32.mxu0 0.0
        %3780 = vmatmul.mubr.f32.gmra.mrb[0].mxu0 %v3345
        %v3781 = vpop.f32.mrb[0].mxu0
        %v3782 = vadd.f32 %v3567, %v3781
        %v3783 = vpop.f32.mrb[0].mxu0
        %3784 = vmatprep.mubr.f32.mxu0 0.0
        %3785 = vmatmul.mubr.f32.gmra.mrb[0].mxu0 %v3346
        %v3786 = vpop.f32.mrb[0].mxu0
        %v3787 = vadd.f32 %v3572, %v3786
        %v3788 = vpop.f32.mrb[0].mxu0
        %3789 = vmatprep.mubr.f32.mxu0 0.0
        %3790 = vmatmul.mubr.f32.gmra.mrb[0].mxu0 %v3347
        %v3791 = vpop.f32.mrb[0].mxu0
        %v3792 = vadd.f32 %v3577, %v3791
        %v3793 = vpop.f32.mrb[0].mxu0
        %3794 = vmatprep.mubr.f32.mxu0 0.0
        %3795 = vmatmul.mubr.f32.gmra.mrb[0].mxu0 %v3348
        %v3796 = vpop.f32.mrb[0].mxu0
        %v3797 = vadd.f32 %v3582, %v3796
        %v3798 = vpop.f32.mrb[0].mxu0
        %3799 = vmatprep.mubr.f32.mxu0 0.0
        %3800 = vmatmul.mubr.f32.gmra.mrb[0].mxu0 %v3349
        %v3801 = vpop.f32.mrb[0].mxu0
        %v3802 = vadd.f32 %v3587, %v3801
        %v3803 = vpop.f32.mrb[0].mxu0
        %3804 = vmatprep.mubr.f32.mxu0 0.0
        %3805 = vmatmul.mubr.f32.gmra.mrb[0].mxu0 %v3350
        %v3806 = vpop.f32.mrb[0].mxu0
        %v3807 = vadd.f32 %v3592, %v3806
        %v3808 = vpop.f32.mrb[0].mxu0
        %3809 = vmatprep.mubr.f32.mxu0 0.0
        %3810 = vmatmul.mubr.f32.gmra.mrb[0].mxu0 %v3351
        %v3811 = vpop.f32.mrb[0].mxu0
        %v3812 = vadd.f32 %v3597, %v3811
        %v3813 = vpop.f32.mrb[0].mxu0
        %3814 = vmatprep.mubr.f32.mxu0 0.0
        %3815 = vmatmul.mubr.f32.gmra.mrb[0].mxu0 %v3352
        %v3816 = vpop.f32.mrb[0].mxu0
        %v3817 = vadd.f32 %v3602, %v3816
        %v3818 = vpop.f32.mrb[0].mxu0
        %3819 = vmatprep.mubr.f32.mxu0 0.0
        %3820 = vmatmul.mubr.f32.gmra.mrb[0].mxu0 %v3353
        %v3821 = vpop.f32.mrb[0].mxu0
        %v3822 = vadd.f32 %v3607, %v3821
        %v3823 = vpop.f32.mrb[0].mxu0
        %3824 = vmatprep.mubr.f32.mxu0 0.0
        %3825 = vmatmul.mubr.f32.gmra.mrb[0].mxu0 %v3354
        %v3826 = vpop.f32.mrb[0].mxu0
        %v3827 = vadd.f32 %v3612, %v3826
        %v3828 = vpop.f32.mrb[0].mxu0
        %3829 = vmatprep.mubr.f32.mxu0 0.0
        %3830 = vmatmul.mubr.f32.gmra.mrb[0].mxu0 %v3355
        %v3831 = vpop.f32.mrb[0].mxu0
        %v3832 = vadd.f32 %v3617, %v3831
        %v3833 = vpop.f32.mrb[0].mxu0
        %3834 = vdwg.mxu0
        %v3835 = vadd.f32 %v3111, %v3687
        %v3836 = vadd.f32 %v3116, %v3692
        %v3837 = vadd.f32 %v3121, %v3697
        %v3838 = vadd.f32 %v3126, %v3702
        %v3839 = vadd.f32 %v3131, %v3707
        %v3840 = vadd.f32 %v3136, %v3712
        %v3841 = vadd.f32 %v3141, %v3717
        %v3842 = vadd.f32 %v3146, %v3722
        %v3843 = vadd.f32 %v3151, %v3727
        %v3844 = vadd.f32 %v3156, %v3732
        %v3845 = vadd.f32 %v3161, %v3737
        %v3846 = vadd.f32 %v3166, %v3742
        %v3847 = vadd.f32 %v3171, %v3747
        %v3848 = vadd.f32 %v3176, %v3752
        %v3849 = vadd.f32 %v3181, %v3757
        %v3850 = vadd.f32 %v3186, %v3762
        %v3851 = vadd.f32 %v3191, %v3767
        %v3852 = vadd.f32 %v3196, %v3772
        %v3853 = vadd.f32 %v3201, %v3777
        %v3854 = vadd.f32 %v3206, %v3782
        %v3855 = vadd.f32 %v3211, %v3787
        %v3856 = vadd.f32 %v3216, %v3792
        %v3857 = vadd.f32 %v3221, %v3797
        %v3858 = vadd.f32 %v3226, %v3802
        %v3859 = vadd.f32 %v3231, %v3807
        %v3860 = vadd.f32 %v3236, %v3812
        %v3861 = vadd.f32 %v3241, %v3817
        %v3862 = vadd.f32 %v3246, %v3822
        %v3863 = vadd.f32 %v3251, %v3827
        %v3864 = vadd.f32 %v3256, %v3832
        %v3866 = vlaneseq
        %v3867 = vshrl.u32 %v3866, 7
        %v3868 = vsub.s32 0, %v3867
        %v3869 = vrot.slane %v2098, %v3868
        %v3871 = vadd.f32 %v3835, %v3869
        %v3872 = vadd.f32 %v3836, %v3869
        %v3873 = vadd.f32 %v3837, %v3869
        %v3874 = vadd.f32 %v3838, %v3869
        %v3875 = vadd.f32 %v3839, %v3869
        %v3876 = vadd.f32 %v3840, %v3869
        %v3877 = vadd.f32 %v3841, %v3869
        %v3878 = vadd.f32 %v3842, %v3869
        %v3879 = vadd.f32 %v3843, %v3869
        %v3880 = vadd.f32 %v3844, %v3869
        %v3881 = vadd.f32 %v3845, %v3869
        %v3882 = vadd.f32 %v3846, %v3869
        %v3883 = vadd.f32 %v3847, %v3869
        %v3884 = vadd.f32 %v3848, %v3869
        %v3885 = vadd.f32 %v3849, %v3869
        %v3886 = vadd.f32 %v3850, %v3869
        %v3887 = vadd.f32 %v3851, %v3869
        %v3888 = vadd.f32 %v3852, %v3869
        %v3889 = vadd.f32 %v3853, %v3869
        %v3890 = vadd.f32 %v3854, %v3869
        %v3891 = vadd.f32 %v3855, %v3869
        %v3892 = vadd.f32 %v3856, %v3869
        %v3893 = vadd.f32 %v3857, %v3869
        %v3894 = vadd.f32 %v3858, %v3869
        %v3895 = vadd.f32 %v3859, %v3869
        %v3896 = vadd.f32 %v3860, %v3869
        %v3897 = vadd.f32 %v3861, %v3869
        %v3898 = vadd.f32 %v3862, %v3869
        %v3899 = vadd.f32 %v3863, %v3869
        %v3900 = vadd.f32 %v3864, %v3869
        %v3901 = vmax.f32 %v3871, 0.0
        %v3902 = vmax.f32 %v3872, 0.0
        %v3903 = vmax.f32 %v3873, 0.0
        %v3904 = vmax.f32 %v3874, 0.0
        %v3905 = vmax.f32 %v3875, 0.0
        %v3906 = vmax.f32 %v3876, 0.0
        %v3907 = vmax.f32 %v3877, 0.0
        %v3908 = vmax.f32 %v3878, 0.0
        %v3909 = vmax.f32 %v3879, 0.0
        %v3910 = vmax.f32 %v3880, 0.0
        %v3911 = vmax.f32 %v3881, 0.0
        %v3912 = vmax.f32 %v3882, 0.0
        %v3913 = vmax.f32 %v3883, 0.0
        %v3914 = vmax.f32 %v3884, 0.0
        %v3915 = vmax.f32 %v3885, 0.0
        %v3916 = vmax.f32 %v3886, 0.0
        %v3917 = vmax.f32 %v3887, 0.0
        %v3918 = vmax.f32 %v3888, 0.0
        %v3919 = vmax.f32 %v3889, 0.0
        %v3920 = vmax.f32 %v3890, 0.0
        %v3921 = vmax.f32 %v3891, 0.0
        %v3922 = vmax.f32 %v3892, 0.0
        %v3923 = vmax.f32 %v3893, 0.0
        %v3924 = vmax.f32 %v3894, 0.0
        %v3925 = vmax.f32 %v3895, 0.0
        %v3926 = vmax.f32 %v3896, 0.0
        %v3927 = vmax.f32 %v3897, 0.0
        %v3928 = vmax.f32 %v3898, 0.0
        %v3929 = vmax.f32 %v3899, 0.0
        %v3930 = vmax.f32 %v3900, 0.0
        %s3931 = smul.u32 %s2107, 24
        %s3932 = scalar_lea.vmem %s224, %s3931
        %3933 = vst [vmem:[%s3932] sm:$0xff] %v3901
        %3934 = vst [vmem:[%s3932 + $0x8] sm:$0xff] %v3902
        %3935 = vst [vmem:[%s3932 + $0x10] sm:$0xff] %v3903
        %3936 = vst [vmem:[%s3932 + $0x18] sm:$0xff] %v3904
        %3937 = vst [vmem:[%s3932 + $0x20] sm:$0xff] %v3905
        %3938 = vst [vmem:[%s3932 + $0x28] sm:$0xff] %v3906
        %3939 = vst [vmem:[%s3932 + $0x30] sm:$0xff] %v3907
        %3940 = vst [vmem:[%s3932 + $0x38] sm:$0xff] %v3908
        %3941 = vst [vmem:[%s3932 + $0x40] sm:$0xff] %v3909
        %3942 = vst [vmem:[%s3932 + $0x48] sm:$0xff] %v3910
        %3943 = vst [vmem:[%s3932 + $0x50] sm:$0xff] %v3911
        %3944 = vst [vmem:[%s3932 + $0x58] sm:$0xff] %v3912
        %3945 = vst [vmem:[%s3932 + $0x60] sm:$0xff] %v3913
        %3946 = vst [vmem:[%s3932 + $0x68] sm:$0xff] %v3914
        %3947 = vst [vmem:[%s3932 + $0x70] sm:$0xff] %v3915
        %3948 = vst [vmem:[%s3932 + $0x78] sm:$0xff] %v3916
        %3949 = vst [vmem:[%s3932 + $0x80] sm:$0xff] %v3917
        %3950 = vst [vmem:[%s3932 + $0x88] sm:$0xff] %v3918
        %3951 = vst [vmem:[%s3932 + $0x90] sm:$0xff] %v3919
        %3952 = vst [vmem:[%s3932 + $0x98] sm:$0xff] %v3920
        %3953 = vst [vmem:[%s3932 + $0xa0] sm:$0xff] %v3921
        %3954 = vst [vmem:[%s3932 + $0xa8] sm:$0xff] %v3922
        %3955 = vst [vmem:[%s3932 + $0xb0] sm:$0xff] %v3923
        %3956 = vst [vmem:[%s3932 + $0xb8] sm:$0xff] %v3924
        %3957 = vst [vmem:[%s3932 + $0xc0] sm:$0xff] %v3925
        %3958 = vst [vmem:[%s3932 + $0xc8] sm:$0xff] %v3926
        %3959 = vst [vmem:[%s3932 + $0xd0] sm:$0xff] %v3927
        %3960 = vst [vmem:[%s3932 + $0xd8] sm:$0xff] %v3928
        %3961 = vst [vmem:[%s3932 + $0xe0] sm:$0xff] %v3929
        %3962 = vst [vmem:[%s3932 + $0xe8] sm:$0xff] %v3930
      $region52: #{_double_conv_impl.1} parent=39 // loop_footer
        %s2104 = sadd.s32 1, %s2100
      $region53: #{_double_conv_impl.1} parent=39 // loop_footer_branch
        %2099 = sbr.rel target = $region49
      $region54: #{_double_conv_impl.1} parent=39 // loop_exit
        _
      %p3963 = scmp.lt.s32.totalorder %s16, 1
      %s3964 = scalar_select %p3963, %s16, 1
      %s3965 = smul.addr %s3964, 48
      %s3966 = smul.addr %s3965, 8
      %s3967 = scalar_lea.vmem %s5, %s3966
      // Predicated region
      $region55: #{_double_conv_impl.1} parent=39 // pred_check
        %p3968 = pneg %p144
      $region56: #{_double_conv_impl.1} parent=39 // pred_check_branch
        %3970 = sbr.rel (%p3968) target = $region58
      $region57: #{_double_conv_impl.1} parent=39 // pred_region
        _
      $region58: #{_double_conv_impl.1} parent=39 // pred_fallthru
        _
    $region40: #{_double_conv_impl.1} parent=5 // pred_fallthru
      _
    %p3971 = scmp.le.s32.totalorder 2, %s11
    // Predicated region
    $region59: #{_double_conv_impl.1} parent=5 // pred_check
      %p3972 = pneg %p3971
    $region60: #{_double_conv_impl.1} parent=5 // pred_check_branch
      %3974 = sbr.rel (%p3972) target = $region62
    $region61: #{_double_conv_impl.1} parent=5 // pred_region
      %s3975 = ssub.s32 %s11, 2
      // Predicated region
      $region63: #{_double_conv_impl.1} parent=61 // pred_check
        %p3976 = pneg %p150
      $region64: #{_double_conv_impl.1} parent=61 // pred_check_branch
        %3978 = sbr.rel (%p3976) target = $region66
      $region65: #{_double_conv_impl.1} parent=61 // pred_region
        %p3979 = scmp.lt.s32.totalorder %s17, 1
        %s3980 = scalar_select %p3979, %s17, 1
        %s3981 = smul.addr %s3980, 48
        %s3982 = smul.addr %s3981, 8
        %s3983 = scalar_lea.vmem %s5, %s3982
      $region66: #{_double_conv_impl.1} parent=61 // pred_fallthru
        _
    $region62: #{_double_conv_impl.1} parent=5 // pred_fallthru
      _
  $region6: #{_double_conv_impl.1} parent=0 // loop_footer
    %s15 = sadd.s32 1, %s11
  $region7: #{_double_conv_impl.1} parent=0 // loop_footer_branch
    %10 = sbr.rel target = $region3
  $region8: #{_double_conv_impl.1} parent=0 // loop_exit
    _

</llo_original>
